<compile_context>
chip_gen: v6e
topology: v6e:2x2x1
jax: 0.10.0
libtpu: 0.0.40
codegen_flags: <defaults>
</compile_context>

<pallas_src>
import functools
import math

import jax
import jax.numpy as jnp
import numpy as np
from jax import lax
from jax.experimental import pallas as pl
from jax.experimental.pallas import tpu as pltpu

NEG_SLOPE = 0.01     # InPlaceABNSync default activation: leaky_relu(0.01)
BN_EPS = 1e-5
LANE = 128


def _leaky(x):
    return jnp.where(x > 0, x, NEG_SLOPE * x)


# ----------------------------- fused Pallas kernel --------------------------

def _isa_fused_kernel(x_ref, grow_ref, gcol_ref,
                      wk1l_ref, bk1l_ref, wk2l_ref, bk2l_ref,
                      wvl_ref, wol_ref, bol_ref,
                      wk1s_ref, bk1s_ref, wk2s_ref, bk2s_ref,
                      wvs_ref, wos_ref, bos_ref,
                      wcx_ref, wcc_ref, bcb_ref,
                      o_ref):
    """Whole ISA_Module forward for one batch image (R interlaced pixel rows)."""
    x = x_ref[0]                               # (R, Cin)
    grow = grow_ref[...]                       # (R, 2) int32 group ids (rows)
    gcol = gcol_ref[...]                       # (2, R) int32 group ids (cols)
    # long range: attention within rows sharing (di, dj) -> contiguous Q-blocks
    # short range: attention within rows sharing (oi, oj) -> strided groups
    mask_long = grow[:, 0:1] == gcol[0:1, :]   # (R, R)
    mask_short = grow[:, 1:2] == gcol[1:2, :]  # (R, R)

    def sa_stage(inp, wk1, bk1, wk2, bk2, wv, wo, bo, mask):
        # f_key / f_query (shared weights): 1x1 conv + BN + leaky, twice.
        # The key_channels**-0.5 similarity scale is pre-folded into wk2/bk2.
        k1 = _leaky(jnp.dot(inp, wk1[...],
                            preferred_element_type=jnp.float32) + bk1[...])
        kq = _leaky(jnp.dot(k1, wk2[...],
                            preferred_element_type=jnp.float32) + bk2[...])
        v = jnp.dot(inp, wv[...], preferred_element_type=jnp.float32)
        # sim = query @ key^T (query/key share weights)
        sim = lax.dot_general(kq, kq, (((1,), (1,)), ((), ())),
                              preferred_element_type=jnp.float32)
        sim = jnp.where(mask, sim, -1e30)
        m = jnp.max(sim, axis=-1, keepdims=True)
        e = jnp.exp(sim - m)
        denom = jnp.sum(e, axis=-1, keepdims=True)
        # approx=True would move this onto the EUP; kept exact so the 5e-4
        # numerical check against the pure-JAX reference holds.
        attn = e * pl.reciprocal(denom, approx=False)
        ctx = jnp.dot(attn, v, preferred_element_type=jnp.float32)
        return _leaky(jnp.dot(ctx, wo[...],
                              preferred_element_type=jnp.float32) + bo[...])

    y_long = sa_stage(x, wk1l_ref, bk1l_ref, wk2l_ref, bk2l_ref,
                      wvl_ref, wol_ref, bol_ref, mask_long)
    y_short = sa_stage(y_long, wk1s_ref, bk1s_ref, wk2s_ref, bk2s_ref,
                       wvs_ref, wos_ref, bos_ref, mask_short)

    # conv_bn head on concat([x, context]); split weights avoid an in-kernel
    # concatenate, and the output slab is 128 lanes wide (lane-dense stores).
    out = (jnp.dot(x, wcx_ref[...], preferred_element_type=jnp.float32)
           + jnp.dot(y_short, wcc_ref[...], preferred_element_type=jnp.float32)
           + bcb_ref[...])
    o_ref[0] = _leaky(out)


# ----------------------------- wrapper ---------------------------------------

def _sa_weights(p, ck):
    """Kernel-ready weights for one SelfAttentionBlock2D (sim scale folded in).

    leaky_relu is positively homogeneous, so scaling the (shared) second
    key/query conv weight and bias by ck**-0.25 scales sim by ck**-0.5 exactly.
    """
    s = ck ** (-0.25)
    return [p["wk1"], p["bk1"], p["wk2"] * s, p["bk2"] * s,
            p["wv"], p["wo"], p["bo"]]


def _convbn_weights(params, cin, cout):
    """Split + lane-pad the fused conv_bn weights to a 128-wide output slab."""
    cpad = ((cout + LANE - 1) // LANE) * LANE
    w = jnp.zeros((cin + cout, cpad), jnp.float32).at[:, :cout].set(params["w_cb"])
    b = jnp.zeros((1, cpad), jnp.float32).at[:, :cout].set(params["b_cb"])
    return [w[:cin], w[cin:], b], cpad


def isa_module_fwd(x, params, *, down_factor=(8, 8)):
    """ISA_Module forward: one fused pallas_call over grid=(N,)."""
    N, Cin, H, W = x.shape
    dh, dw = down_factor
    p_long, p_short = params["long"], params["short"]
    Cout = p_long["wo"].shape[1]
    Ck = p_long["wk1"].shape[1]

    out_h, out_w = math.ceil(H / dh), math.ceil(W / dw)
    pad_h, pad_w = out_h * dh - H, out_w * dw - W
    feats = x
    if pad_h > 0 or pad_w > 0:
        feats = jnp.pad(feats, ((0, 0), (0, 0),
                                (pad_h // 2, pad_h - pad_h // 2),
                                (pad_w // 2, pad_w - pad_w // 2)))
    P, Q = dh * dw, out_h * out_w
    R = P * Q

    # Single interlace rearrangement NCHW -> (N, R, Cin); rows ordered
    # (di, dj, oi, oj).
    xi = feats.reshape(N, Cin, out_h, dh, out_w, dw)
    xi = xi.transpose(0, 3, 5, 2, 4, 1).reshape(N, R, Cin)

    # Static group-id tables (avoids integer div/mod on vectors in-kernel).
    r = np.arange(R, dtype=np.int32)
    gl, gs = r // Q, r % Q
    grow = jnp.asarray(np.stack([gl, gs], axis=1))       # (R, 2)
    gcol = jnp.asarray(np.stack([gl, gs], axis=0))       # (2, R)

    cb_w, cpad = _convbn_weights(params, Cin, Cout)
    w_list = _sa_weights(p_long, Ck) + _sa_weights(p_short, Ck) + cb_w

    out_pad = pl.pallas_call(
        _isa_fused_kernel,
        out_shape=jax.ShapeDtypeStruct((N, R, cpad), jnp.float32),
        grid=(N,),
        in_specs=[pl.BlockSpec((1, R, Cin), lambda b: (b, 0, 0)),
                  pl.BlockSpec((R, 2), lambda b: (0, 0)),
                  pl.BlockSpec((2, R), lambda b: (0, 0))]
                 + [pl.BlockSpec(w.shape, lambda b: (0, 0)) for w in w_list],
        out_specs=pl.BlockSpec((1, R, cpad), lambda b: (b, 0, 0)),
        compiler_params=pltpu.CompilerParams(
            dimension_semantics=("parallel",)),   # both v7x TCs get a step
    )(xi, grow, gcol, *w_list)

    out = out_pad[..., :Cout]                         # (N, R, Cout)
    o = out.reshape(N, dh, dw, out_h, out_w, Cout)
    o = o.transpose(0, 5, 3, 1, 4, 2).reshape(N, Cout, out_h * dh, out_w * dw)
    if pad_h > 0 or pad_w > 0:
        o = o[:, :, pad_h // 2:pad_h // 2 + H, pad_w // 2:pad_w // 2 + W]
    return o


# ----------------------------- parameter setup -------------------------------

def _make_bn(key, c):
    k1, k2, k3, k4 = jax.random.split(key, 4)
    gamma = 1.0 + 0.1 * jax.random.normal(k1, (c,), jnp.float32)
    beta = 0.1 * jax.random.normal(k2, (c,), jnp.float32)
    mean = 0.1 * jax.random.normal(k3, (c,), jnp.float32)
    var = 1.0 + 0.1 * jnp.abs(jax.random.normal(k4, (c,), jnp.float32))
    return gamma, beta, mean, var


def _fuse_conv_bn(w_torch, gamma, beta, mean, var):
    """Fuse eval-mode BN into a bias-free 1x1 conv: (Cout,Cin) -> W (Cin,Cout), b (1,Cout)."""
    scale = gamma / jnp.sqrt(var + BN_EPS)
    w = (w_torch * scale[:, None]).T
    b = (beta - mean * scale)[None, :]
    return w, b


def make_sa_params(key, cin, ck, cv, cout):
    ks = jax.random.split(key, 7)
    wk1 = 0.3 * jax.random.normal(ks[0], (ck, cin), jnp.float32)
    wk2 = 0.3 * jax.random.normal(ks[1], (ck, ck), jnp.float32)
    wv = 0.3 * jax.random.normal(ks[2], (cv, cin), jnp.float32)
    wo = 0.3 * jax.random.normal(ks[3], (cout, cv), jnp.float32)
    wk1f, bk1 = _fuse_conv_bn(wk1, *_make_bn(ks[4], ck))
    wk2f, bk2 = _fuse_conv_bn(wk2, *_make_bn(ks[5], ck))
    wof, bo = _fuse_conv_bn(wo, *_make_bn(ks[6], cout))
    return dict(wk1=wk1f, bk1=bk1, wk2=wk2f, bk2=bk2, wv=wv.T, wo=wof, bo=bo)


def make_isa_params(key, cin, ck, cv, cout):
    k1, k2, k3, k4 = jax.random.split(key, 4)
    p_long = make_sa_params(k1, cin, ck, cv, cout)
    p_short = make_sa_params(k2, cout, ck, cv, cout)
    w_cb = 0.3 * jax.random.normal(k3, (cout, cin + cout), jnp.float32)
    w_cbf, b_cb = _fuse_conv_bn(w_cb, *_make_bn(k4, cout))
    return dict(long=p_long, short=p_short, w_cb=w_cbf, b_cb=b_cb)


# ----------------------------- pure-JAX reference ----------------------------

def _sa_block_ref(x_nchw, p):
    B, Cin, H, W = x_nchw.shape
    L = H * W
    ck = p["wk1"].shape[1]
    cout = p["wo"].shape[1]
    xl = x_nchw.reshape(B, Cin, L).transpose(0, 2, 1)
    k1 = _leaky(xl @ p["wk1"] + p["bk1"])
    kq = _leaky(k1 @ p["wk2"] + p["bk2"])
    v = xl @ p["wv"]
    sim = jnp.einsum("bld,bmd->blm", kq, kq) * ck ** (-0.5)
    attn = jax.nn.softmax(sim, axis=-1)
    ctx = jnp.einsum("blm,bmd->bld", attn, v)
    out = _leaky(ctx @ p["wo"] + p["bo"])
    return out.transpose(0, 2, 1).reshape(B, cout, H, W)


def isa_module_ref(x, params, *, down_factor=(8, 8)):
    n, c, h, w = x.shape
    dh, dw = down_factor
    co = params["long"]["wo"].shape[1]
    out_h, out_w = math.ceil(h / dh), math.ceil(w / dw)
    pad_h, pad_w = out_h * dh - h, out_w * dw - w
    feats = x
    if pad_h > 0 or pad_w > 0:
        feats = jnp.pad(feats, ((0, 0), (0, 0),
                                (pad_h // 2, pad_h - pad_h // 2),
                                (pad_w // 2, pad_w - pad_w // 2)))
    feats = feats.reshape(n, c, out_h, dh, out_w, dw)
    feats = feats.transpose(0, 3, 5, 1, 2, 4).reshape(-1, c, out_h, out_w)
    feats = _sa_block_ref(feats, params["long"])
    feats = feats.reshape(n, dh, dw, co, out_h, out_w)
    feats = feats.transpose(0, 4, 5, 3, 1, 2).reshape(-1, co, dh, dw)
    feats = _sa_block_ref(feats, params["short"])
    feats = feats.reshape(n, out_h, out_w, co, dh, dw).transpose(0, 3, 1, 4, 2, 5)
    feats = feats.reshape(n, co, dh * out_h, dw * out_w)
    if pad_h > 0 or pad_w > 0:
        feats = feats[:, :, pad_h // 2:pad_h // 2 + h, pad_w // 2:pad_w // 2 + w]
    cat = jnp.concatenate([x, feats], axis=1)
    B, Cc, H, W = cat.shape
    xl = cat.reshape(B, Cc, H * W).transpose(0, 2, 1)
    y = _leaky(xl @ params["w_cb"] + params["b_cb"])
    return y.transpose(0, 2, 1).reshape(B, co, H, W)


# ----------------------------- main -------------------------------------------

if __name__ == "__main__":
    # Small shapes: N=2, in_channels=8, key_channels=4, value_channels=8,
    # out_channels=8, H=W=16, down_factors=[[8, 8]]  (no padding needed).
    N, Cin, H, W = 2, 8, 16, 16
    Ck, Cv, Cout = 4, 8, 8

    root = jax.random.PRNGKey(0)
    kx, kp = jax.random.split(root)
    x = jax.random.normal(kx, (N, Cin, H, W), jnp.float32)
    params = make_isa_params(kp, Cin, Ck, Cv, Cout)

    fwd = jax.jit(functools.partial(isa_module_fwd, down_factor=(8, 8)))
    out = jax.block_until_ready(fwd(x, params))

    with jax.default_matmul_precision("highest"):
        ref = jax.block_until_ready(isa_module_ref(x, params, down_factor=(8, 8)))

    assert out.shape == (N, Cout, H, W), out.shape
    np.testing.assert_allclose(np.asarray(out), np.asarray(ref),
                               rtol=5e-4, atol=5e-4)

    print("KERNEL_OK")
</pallas_src>

<mosaic_0001>
module attributes {stable_mosaic.version = 11 : i64} {
  func.func @_isa_fused_kernel(%arg0: i32, %arg1: memref<1x256x8xf32, #tpu.memory_space<vmem>>, %arg2: memref<256x2xi32, #tpu.memory_space<vmem>>, %arg3: memref<2x256xi32, #tpu.memory_space<vmem>>, %arg4: memref<8x4xf32, #tpu.memory_space<vmem>>, %arg5: memref<1x4xf32, #tpu.memory_space<vmem>>, %arg6: memref<4x4xf32, #tpu.memory_space<vmem>>, %arg7: memref<1x4xf32, #tpu.memory_space<vmem>>, %arg8: memref<8x8xf32, #tpu.memory_space<vmem>>, %arg9: memref<8x8xf32, #tpu.memory_space<vmem>>, %arg10: memref<1x8xf32, #tpu.memory_space<vmem>>, %arg11: memref<8x4xf32, #tpu.memory_space<vmem>>, %arg12: memref<1x4xf32, #tpu.memory_space<vmem>>, %arg13: memref<4x4xf32, #tpu.memory_space<vmem>>, %arg14: memref<1x4xf32, #tpu.memory_space<vmem>>, %arg15: memref<8x8xf32, #tpu.memory_space<vmem>>, %arg16: memref<8x8xf32, #tpu.memory_space<vmem>>, %arg17: memref<1x8xf32, #tpu.memory_space<vmem>>, %arg18: memref<8x128xf32, #tpu.memory_space<vmem>>, %arg19: memref<8x128xf32, #tpu.memory_space<vmem>>, %arg20: memref<1x128xf32, #tpu.memory_space<vmem>>, %arg21: memref<1x256x128xf32, #tpu.memory_space<vmem>>) attributes {dimension_semantics = [#tpu.dimension_semantics<parallel>], iteration_bounds = array<i64: 2>, scalar_prefetch = 0 : i64, scratch_operands = 0 : i64, tpu.core_type = #tpu.core_type<tc>, window_params = [{transform_indices = @transform_0, window_bounds = array<i64: 1, 256, 8>}, {pipeline_mode = #tpu.pipeline_mode<synchronous>, transform_indices = @transform_1, window_bounds = array<i64: 256, 2>}, {pipeline_mode = #tpu.pipeline_mode<synchronous>, transform_indices = @transform_2, window_bounds = array<i64: 2, 256>}, {pipeline_mode = #tpu.pipeline_mode<synchronous>, transform_indices = @transform_3, window_bounds = array<i64: 8, 4>}, {pipeline_mode = #tpu.pipeline_mode<synchronous>, transform_indices = @transform_4, window_bounds = array<i64: 1, 4>}, {pipeline_mode = #tpu.pipeline_mode<synchronous>, transform_indices = @transform_5, window_bounds = array<i64: 4, 4>}, {pipeline_mode = #tpu.pipeline_mode<synchronous>, transform_indices = @transform_6, window_bounds = array<i64: 1, 4>}, {pipeline_mode = #tpu.pipeline_mode<synchronous>, transform_indices = @transform_7, window_bounds = array<i64: 8, 8>}, {pipeline_mode = #tpu.pipeline_mode<synchronous>, transform_indices = @transform_8, window_bounds = array<i64: 8, 8>}, {pipeline_mode = #tpu.pipeline_mode<synchronous>, transform_indices = @transform_9, window_bounds = array<i64: 1, 8>}, {pipeline_mode = #tpu.pipeline_mode<synchronous>, transform_indices = @transform_10, window_bounds = array<i64: 8, 4>}, {pipeline_mode = #tpu.pipeline_mode<synchronous>, transform_indices = @transform_11, window_bounds = array<i64: 1, 4>}, {pipeline_mode = #tpu.pipeline_mode<synchronous>, transform_indices = @transform_12, window_bounds = array<i64: 4, 4>}, {pipeline_mode = #tpu.pipeline_mode<synchronous>, transform_indices = @transform_13, window_bounds = array<i64: 1, 4>}, {pipeline_mode = #tpu.pipeline_mode<synchronous>, transform_indices = @transform_14, window_bounds = array<i64: 8, 8>}, {pipeline_mode = #tpu.pipeline_mode<synchronous>, transform_indices = @transform_15, window_bounds = array<i64: 8, 8>}, {pipeline_mode = #tpu.pipeline_mode<synchronous>, transform_indices = @transform_16, window_bounds = array<i64: 1, 8>}, {pipeline_mode = #tpu.pipeline_mode<synchronous>, transform_indices = @transform_17, window_bounds = array<i64: 8, 128>}, {pipeline_mode = #tpu.pipeline_mode<synchronous>, transform_indices = @transform_18, window_bounds = array<i64: 8, 128>}, {pipeline_mode = #tpu.pipeline_mode<synchronous>, transform_indices = @transform_19, window_bounds = array<i64: 1, 128>}, {transform_indices = @transform_20, window_bounds = array<i64: 1, 256, 128>}]} {
    %c0 = arith.constant 0 : index
    %c0_0 = arith.constant 0 : index
    %c0_1 = arith.constant 0 : index
    %0 = vector.load %arg1[%c0, %c0_0, %c0_1] : memref<1x256x8xf32, #tpu.memory_space<vmem>>, vector<1x256x8xf32>
    %1 = vector.shape_cast %0 : vector<1x256x8xf32> to vector<256x8xf32>
    %c0_2 = arith.constant 0 : index
    %c0_3 = arith.constant 0 : index
    %2 = vector.load %arg2[%c0_2, %c0_3] : memref<256x2xi32, #tpu.memory_space<vmem>>, vector<256x2xi32>
    %c0_4 = arith.constant 0 : index
    %c0_5 = arith.constant 0 : index
    %3 = vector.load %arg3[%c0_4, %c0_5] : memref<2x256xi32, #tpu.memory_space<vmem>>, vector<2x256xi32>
    %4 = vector.extract_strided_slice %2 {offsets = [0, 0], sizes = [256, 1], strides = [1, 1]} : vector<256x2xi32> to vector<256x1xi32>
    %5 = vector.extract_strided_slice %3 {offsets = [0, 0], sizes = [1, 256], strides = [1, 1]} : vector<2x256xi32> to vector<1x256xi32>
    %6 = vector.broadcast %4 : vector<256x1xi32> to vector<256x256xi32>
    %7 = vector.broadcast %5 : vector<1x256xi32> to vector<256x256xi32>
    %8 = arith.cmpi eq, %6, %7 : vector<256x256xi32>
    %9 = vector.extract_strided_slice %2 {offsets = [0, 1], sizes = [256, 1], strides = [1, 1]} : vector<256x2xi32> to vector<256x1xi32>
    %10 = vector.extract_strided_slice %3 {offsets = [1, 0], sizes = [1, 256], strides = [1, 1]} : vector<2x256xi32> to vector<1x256xi32>
    %11 = vector.broadcast %9 : vector<256x1xi32> to vector<256x256xi32>
    %12 = vector.broadcast %10 : vector<1x256xi32> to vector<256x256xi32>
    %13 = arith.cmpi eq, %11, %12 : vector<256x256xi32>
    %c0_6 = arith.constant 0 : index
    %c0_7 = arith.constant 0 : index
    %14 = vector.load %arg4[%c0_6, %c0_7] : memref<8x4xf32, #tpu.memory_space<vmem>>, vector<8x4xf32>
    %cst = arith.constant dense<0.000000e+00> : vector<256x4xf32>
    %15 = tpu.matmul %1, %14, %cst {dimension_numbers = #tpu.dot_dimension_numbers<[1], [0], [0], [1], [0, 0, 1, 1], [], []>} : vector<256x8xf32>, vector<8x4xf32>, vector<256x4xf32> -> vector<256x4xf32>
    %c0_8 = arith.constant 0 : index
    %c0_9 = arith.constant 0 : index
    %16 = vector.load %arg5[%c0_8, %c0_9] : memref<1x4xf32, #tpu.memory_space<vmem>>, vector<1x4xf32>
    %17 = vector.broadcast %16 : vector<1x4xf32> to vector<256x4xf32>
    %18 = arith.addf %15, %17 : vector<256x4xf32>
    %cst_10 = arith.constant 0.000000e+00 : f32
    %19 = vector.broadcast %cst_10 : f32 to vector<256x4xf32>
    %20 = arith.cmpf ogt, %18, %19 : vector<256x4xf32>
    %cst_11 = arith.constant 0.00999999977 : f32
    %21 = vector.broadcast %cst_11 : f32 to vector<256x4xf32>
    %22 = arith.mulf %21, %18 : vector<256x4xf32>
    %23 = arith.select %20, %18, %22 : vector<256x4xi1>, vector<256x4xf32>
    %c0_12 = arith.constant 0 : index
    %c0_13 = arith.constant 0 : index
    %24 = vector.load %arg6[%c0_12, %c0_13] : memref<4x4xf32, #tpu.memory_space<vmem>>, vector<4x4xf32>
    %cst_14 = arith.constant dense<0.000000e+00> : vector<256x4xf32>
    %25 = tpu.matmul %23, %24, %cst_14 {dimension_numbers = #tpu.dot_dimension_numbers<[1], [0], [0], [1], [0, 0, 1, 1], [], []>} : vector<256x4xf32>, vector<4x4xf32>, vector<256x4xf32> -> vector<256x4xf32>
    %c0_15 = arith.constant 0 : index
    %c0_16 = arith.constant 0 : index
    %26 = vector.load %arg7[%c0_15, %c0_16] : memref<1x4xf32, #tpu.memory_space<vmem>>, vector<1x4xf32>
    %27 = vector.broadcast %26 : vector<1x4xf32> to vector<256x4xf32>
    %28 = arith.addf %25, %27 : vector<256x4xf32>
    %cst_17 = arith.constant 0.000000e+00 : f32
    %29 = vector.broadcast %cst_17 : f32 to vector<256x4xf32>
    %30 = arith.cmpf ogt, %28, %29 : vector<256x4xf32>
    %cst_18 = arith.constant 0.00999999977 : f32
    %31 = vector.broadcast %cst_18 : f32 to vector<256x4xf32>
    %32 = arith.mulf %31, %28 : vector<256x4xf32>
    %33 = arith.select %30, %28, %32 : vector<256x4xi1>, vector<256x4xf32>
    %c0_19 = arith.constant 0 : index
    %c0_20 = arith.constant 0 : index
    %34 = vector.load %arg8[%c0_19, %c0_20] : memref<8x8xf32, #tpu.memory_space<vmem>>, vector<8x8xf32>
    %cst_21 = arith.constant dense<0.000000e+00> : vector<256x8xf32>
    %35 = tpu.matmul %1, %34, %cst_21 {dimension_numbers = #tpu.dot_dimension_numbers<[1], [0], [0], [1], [0, 0, 1, 1], [], []>} : vector<256x8xf32>, vector<8x8xf32>, vector<256x8xf32> -> vector<256x8xf32>
    %cst_22 = arith.constant dense<0.000000e+00> : vector<256x256xf32>
    %36 = tpu.matmul %33, %33, %cst_22 {dimension_numbers = #tpu.dot_dimension_numbers<[1], [1], [0], [0], [0, 0, 1, 0], [], []>} : vector<256x4xf32>, vector<256x4xf32>, vector<256x256xf32> -> vector<256x256xf32>
    %cst_23 = arith.constant -1.000000e+30 : f32
    %37 = vector.broadcast %cst_23 : f32 to vector<256x256xf32>
    %38 = arith.select %8, %36, %37 : vector<256x256xi1>, vector<256x256xf32>
    %cst_24 = arith.constant dense<0xFF800000> : vector<256xf32>
    %39 = vector.multi_reduction <maximumf>, %38, %cst_24 [1] : vector<256x256xf32> to vector<256xf32>
    %40 = vector.shape_cast %39 : vector<256xf32> to vector<256x1xf32>
    %41 = vector.broadcast %40 : vector<256x1xf32> to vector<256x256xf32>
    %42 = arith.subf %38, %41 : vector<256x256xf32>
    %43 = math.exp %42 : vector<256x256xf32>
    %cst_25 = arith.constant dense<0.000000e+00> : vector<256xf32>
    %44 = vector.multi_reduction <add>, %43, %cst_25 [1] : vector<256x256xf32> to vector<256xf32>
    %45 = vector.shape_cast %44 : vector<256xf32> to vector<256x1xf32>
    %46 = tpu.reciprocal %45 : vector<256x1xf32> -> vector<256x1xf32>
    %47 = vector.broadcast %46 : vector<256x1xf32> to vector<256x256xf32>
    %48 = arith.mulf %43, %47 : vector<256x256xf32>
    %cst_26 = arith.constant dense<0.000000e+00> : vector<256x8xf32>
    %49 = tpu.matmul %48, %35, %cst_26 {dimension_numbers = #tpu.dot_dimension_numbers<[1], [0], [0], [1], [0, 0, 1, 1], [], []>} : vector<256x256xf32>, vector<256x8xf32>, vector<256x8xf32> -> vector<256x8xf32>
    %c0_27 = arith.constant 0 : index
    %c0_28 = arith.constant 0 : index
    %50 = vector.load %arg9[%c0_27, %c0_28] : memref<8x8xf32, #tpu.memory_space<vmem>>, vector<8x8xf32>
    %cst_29 = arith.constant dense<0.000000e+00> : vector<256x8xf32>
    %51 = tpu.matmul %49, %50, %cst_29 {dimension_numbers = #tpu.dot_dimension_numbers<[1], [0], [0], [1], [0, 0, 1, 1], [], []>} : vector<256x8xf32>, vector<8x8xf32>, vector<256x8xf32> -> vector<256x8xf32>
    %c0_30 = arith.constant 0 : index
    %c0_31 = arith.constant 0 : index
    %52 = vector.load %arg10[%c0_30, %c0_31] : memref<1x8xf32, #tpu.memory_space<vmem>>, vector<1x8xf32>
    %53 = vector.broadcast %52 : vector<1x8xf32> to vector<256x8xf32>
    %54 = arith.addf %51, %53 : vector<256x8xf32>
    %cst_32 = arith.constant 0.000000e+00 : f32
    %55 = vector.broadcast %cst_32 : f32 to vector<256x8xf32>
    %56 = arith.cmpf ogt, %54, %55 : vector<256x8xf32>
    %cst_33 = arith.constant 0.00999999977 : f32
    %57 = vector.broadcast %cst_33 : f32 to vector<256x8xf32>
    %58 = arith.mulf %57, %54 : vector<256x8xf32>
    %59 = arith.select %56, %54, %58 : vector<256x8xi1>, vector<256x8xf32>
    %c0_34 = arith.constant 0 : index
    %c0_35 = arith.constant 0 : index
    %60 = vector.load %arg11[%c0_34, %c0_35] : memref<8x4xf32, #tpu.memory_space<vmem>>, vector<8x4xf32>
    %cst_36 = arith.constant dense<0.000000e+00> : vector<256x4xf32>
    %61 = tpu.matmul %59, %60, %cst_36 {dimension_numbers = #tpu.dot_dimension_numbers<[1], [0], [0], [1], [0, 0, 1, 1], [], []>} : vector<256x8xf32>, vector<8x4xf32>, vector<256x4xf32> -> vector<256x4xf32>
    %c0_37 = arith.constant 0 : index
    %c0_38 = arith.constant 0 : index
    %62 = vector.load %arg12[%c0_37, %c0_38] : memref<1x4xf32, #tpu.memory_space<vmem>>, vector<1x4xf32>
    %63 = vector.broadcast %62 : vector<1x4xf32> to vector<256x4xf32>
    %64 = arith.addf %61, %63 : vector<256x4xf32>
    %cst_39 = arith.constant 0.000000e+00 : f32
    %65 = vector.broadcast %cst_39 : f32 to vector<256x4xf32>
    %66 = arith.cmpf ogt, %64, %65 : vector<256x4xf32>
    %cst_40 = arith.constant 0.00999999977 : f32
    %67 = vector.broadcast %cst_40 : f32 to vector<256x4xf32>
    %68 = arith.mulf %67, %64 : vector<256x4xf32>
    %69 = arith.select %66, %64, %68 : vector<256x4xi1>, vector<256x4xf32>
    %c0_41 = arith.constant 0 : index
    %c0_42 = arith.constant 0 : index
    %70 = vector.load %arg13[%c0_41, %c0_42] : memref<4x4xf32, #tpu.memory_space<vmem>>, vector<4x4xf32>
    %cst_43 = arith.constant dense<0.000000e+00> : vector<256x4xf32>
    %71 = tpu.matmul %69, %70, %cst_43 {dimension_numbers = #tpu.dot_dimension_numbers<[1], [0], [0], [1], [0, 0, 1, 1], [], []>} : vector<256x4xf32>, vector<4x4xf32>, vector<256x4xf32> -> vector<256x4xf32>
    %c0_44 = arith.constant 0 : index
    %c0_45 = arith.constant 0 : index
    %72 = vector.load %arg14[%c0_44, %c0_45] : memref<1x4xf32, #tpu.memory_space<vmem>>, vector<1x4xf32>
    %73 = vector.broadcast %72 : vector<1x4xf32> to vector<256x4xf32>
    %74 = arith.addf %71, %73 : vector<256x4xf32>
    %cst_46 = arith.constant 0.000000e+00 : f32
    %75 = vector.broadcast %cst_46 : f32 to vector<256x4xf32>
    %76 = arith.cmpf ogt, %74, %75 : vector<256x4xf32>
    %cst_47 = arith.constant 0.00999999977 : f32
    %77 = vector.broadcast %cst_47 : f32 to vector<256x4xf32>
    %78 = arith.mulf %77, %74 : vector<256x4xf32>
    %79 = arith.select %76, %74, %78 : vector<256x4xi1>, vector<256x4xf32>
    %c0_48 = arith.constant 0 : index
    %c0_49 = arith.constant 0 : index
    %80 = vector.load %arg15[%c0_48, %c0_49] : memref<8x8xf32, #tpu.memory_space<vmem>>, vector<8x8xf32>
    %cst_50 = arith.constant dense<0.000000e+00> : vector<256x8xf32>
    %81 = tpu.matmul %59, %80, %cst_50 {dimension_numbers = #tpu.dot_dimension_numbers<[1], [0], [0], [1], [0, 0, 1, 1], [], []>} : vector<256x8xf32>, vector<8x8xf32>, vector<256x8xf32> -> vector<256x8xf32>
    %cst_51 = arith.constant dense<0.000000e+00> : vector<256x256xf32>
    %82 = tpu.matmul %79, %79, %cst_51 {dimension_numbers = #tpu.dot_dimension_numbers<[1], [1], [0], [0], [0, 0, 1, 0], [], []>} : vector<256x4xf32>, vector<256x4xf32>, vector<256x256xf32> -> vector<256x256xf32>
    %cst_52 = arith.constant -1.000000e+30 : f32
    %83 = vector.broadcast %cst_52 : f32 to vector<256x256xf32>
    %84 = arith.select %13, %82, %83 : vector<256x256xi1>, vector<256x256xf32>
    %cst_53 = arith.constant dense<0xFF800000> : vector<256xf32>
    %85 = vector.multi_reduction <maximumf>, %84, %cst_53 [1] : vector<256x256xf32> to vector<256xf32>
    %86 = vector.shape_cast %85 : vector<256xf32> to vector<256x1xf32>
    %87 = vector.broadcast %86 : vector<256x1xf32> to vector<256x256xf32>
    %88 = arith.subf %84, %87 : vector<256x256xf32>
    %89 = math.exp %88 : vector<256x256xf32>
    %cst_54 = arith.constant dense<0.000000e+00> : vector<256xf32>
    %90 = vector.multi_reduction <add>, %89, %cst_54 [1] : vector<256x256xf32> to vector<256xf32>
    %91 = vector.shape_cast %90 : vector<256xf32> to vector<256x1xf32>
    %92 = tpu.reciprocal %91 : vector<256x1xf32> -> vector<256x1xf32>
    %93 = vector.broadcast %92 : vector<256x1xf32> to vector<256x256xf32>
    %94 = arith.mulf %89, %93 : vector<256x256xf32>
    %cst_55 = arith.constant dense<0.000000e+00> : vector<256x8xf32>
    %95 = tpu.matmul %94, %81, %cst_55 {dimension_numbers = #tpu.dot_dimension_numbers<[1], [0], [0], [1], [0, 0, 1, 1], [], []>} : vector<256x256xf32>, vector<256x8xf32>, vector<256x8xf32> -> vector<256x8xf32>
    %c0_56 = arith.constant 0 : index
    %c0_57 = arith.constant 0 : index
    %96 = vector.load %arg16[%c0_56, %c0_57] : memref<8x8xf32, #tpu.memory_space<vmem>>, vector<8x8xf32>
    %cst_58 = arith.constant dense<0.000000e+00> : vector<256x8xf32>
    %97 = tpu.matmul %95, %96, %cst_58 {dimension_numbers = #tpu.dot_dimension_numbers<[1], [0], [0], [1], [0, 0, 1, 1], [], []>} : vector<256x8xf32>, vector<8x8xf32>, vector<256x8xf32> -> vector<256x8xf32>
    %c0_59 = arith.constant 0 : index
    %c0_60 = arith.constant 0 : index
    %98 = vector.load %arg17[%c0_59, %c0_60] : memref<1x8xf32, #tpu.memory_space<vmem>>, vector<1x8xf32>
    %99 = vector.broadcast %98 : vector<1x8xf32> to vector<256x8xf32>
    %100 = arith.addf %97, %99 : vector<256x8xf32>
    %cst_61 = arith.constant 0.000000e+00 : f32
    %101 = vector.broadcast %cst_61 : f32 to vector<256x8xf32>
    %102 = arith.cmpf ogt, %100, %101 : vector<256x8xf32>
    %cst_62 = arith.constant 0.00999999977 : f32
    %103 = vector.broadcast %cst_62 : f32 to vector<256x8xf32>
    %104 = arith.mulf %103, %100 : vector<256x8xf32>
    %105 = arith.select %102, %100, %104 : vector<256x8xi1>, vector<256x8xf32>
    %c0_63 = arith.constant 0 : index
    %c0_64 = arith.constant 0 : index
    %106 = vector.load %arg18[%c0_63, %c0_64] : memref<8x128xf32, #tpu.memory_space<vmem>>, vector<8x128xf32>
    %cst_65 = arith.constant dense<0.000000e+00> : vector<256x128xf32>
    %107 = tpu.matmul %1, %106, %cst_65 {dimension_numbers = #tpu.dot_dimension_numbers<[1], [0], [0], [1], [0, 0, 1, 1], [], []>} : vector<256x8xf32>, vector<8x128xf32>, vector<256x128xf32> -> vector<256x128xf32>
    %c0_66 = arith.constant 0 : index
    %c0_67 = arith.constant 0 : index
    %108 = vector.load %arg19[%c0_66, %c0_67] : memref<8x128xf32, #tpu.memory_space<vmem>>, vector<8x128xf32>
    %cst_68 = arith.constant dense<0.000000e+00> : vector<256x128xf32>
    %109 = tpu.matmul %105, %108, %cst_68 {dimension_numbers = #tpu.dot_dimension_numbers<[1], [0], [0], [1], [0, 0, 1, 1], [], []>} : vector<256x8xf32>, vector<8x128xf32>, vector<256x128xf32> -> vector<256x128xf32>
    %110 = arith.addf %107, %109 : vector<256x128xf32>
    %c0_69 = arith.constant 0 : index
    %c0_70 = arith.constant 0 : index
    %111 = vector.load %arg20[%c0_69, %c0_70] : memref<1x128xf32, #tpu.memory_space<vmem>>, vector<1x128xf32>
    %112 = vector.broadcast %111 : vector<1x128xf32> to vector<256x128xf32>
    %113 = arith.addf %110, %112 : vector<256x128xf32>
    %cst_71 = arith.constant 0.000000e+00 : f32
    %114 = vector.broadcast %cst_71 : f32 to vector<256x128xf32>
    %115 = arith.cmpf ogt, %113, %114 : vector<256x128xf32>
    %cst_72 = arith.constant 0.00999999977 : f32
    %116 = vector.broadcast %cst_72 : f32 to vector<256x128xf32>
    %117 = arith.mulf %116, %113 : vector<256x128xf32>
    %118 = arith.select %115, %113, %117 : vector<256x128xi1>, vector<256x128xf32>
    %c0_73 = arith.constant 0 : index
    %c0_74 = arith.constant 0 : index
    %c0_75 = arith.constant 0 : index
    %119 = vector.load %arg21[%c0_73, %c0_74, %c0_75] : memref<1x256x128xf32, #tpu.memory_space<vmem>>, vector<1x256x128xf32>
    %120 = vector.shape_cast %119 : vector<1x256x128xf32> to vector<256x128xf32>
    %121 = vector.shape_cast %118 : vector<256x128xf32> to vector<1x256x128xf32>
    tpu.vector_store %arg21[%c0_73, %c0_74, %c0_75], %121 {strides = array<i32>} : memref<1x256x128xf32, #tpu.memory_space<vmem>>, vector<1x256x128xf32>,
    return
  }
  func.func @transform_0(%arg0: i32) -> (i32, i32, i32) {
    %c0_i32 = arith.constant 0 : i32
    %c0_i32_0 = arith.constant 0 : i32
    %c0_i32_1 = arith.constant 0 : i32
    return %arg0, %c0_i32, %c0_i32_0 : i32, i32, i32
  }
  func.func @transform_1(%arg0: i32) -> (i32, i32) {
    %c0_i32 = arith.constant 0 : i32
    %c0_i32_0 = arith.constant 0 : i32
    %c0_i32_1 = arith.constant 0 : i32
    return %c0_i32, %c0_i32_0 : i32, i32
  }
  func.func @transform_2(%arg0: i32) -> (i32, i32) {
    %c0_i32 = arith.constant 0 : i32
    %c0_i32_0 = arith.constant 0 : i32
    %c0_i32_1 = arith.constant 0 : i32
    return %c0_i32, %c0_i32_0 : i32, i32
  }
  func.func @transform_3(%arg0: i32) -> (i32, i32) {
    %c0_i32 = arith.constant 0 : i32
    %c0_i32_0 = arith.constant 0 : i32
    %c0_i32_1 = arith.constant 0 : i32
    return %c0_i32, %c0_i32_0 : i32, i32
  }
  func.func @transform_4(%arg0: i32) -> (i32, i32) {
    %c0_i32 = arith.constant 0 : i32
    %c0_i32_0 = arith.constant 0 : i32
    %c0_i32_1 = arith.constant 0 : i32
    return %c0_i32, %c0_i32_0 : i32, i32
  }
  func.func @transform_5(%arg0: i32) -> (i32, i32) {
    %c0_i32 = arith.constant 0 : i32
    %c0_i32_0 = arith.constant 0 : i32
    %c0_i32_1 = arith.constant 0 : i32
    return %c0_i32, %c0_i32_0 : i32, i32
  }
  func.func @transform_6(%arg0: i32) -> (i32, i32) {
    %c0_i32 = arith.constant 0 : i32
    %c0_i32_0 = arith.constant 0 : i32
    %c0_i32_1 = arith.constant 0 : i32
    return %c0_i32, %c0_i32_0 : i32, i32
  }
  func.func @transform_7(%arg0: i32) -> (i32, i32) {
    %c0_i32 = arith.constant 0 : i32
    %c0_i32_0 = arith.constant 0 : i32
    %c0_i32_1 = arith.constant 0 : i32
    return %c0_i32, %c0_i32_0 : i32, i32
  }
  func.func @transform_8(%arg0: i32) -> (i32, i32) {
    %c0_i32 = arith.constant 0 : i32
    %c0_i32_0 = arith.constant 0 : i32
    %c0_i32_1 = arith.constant 0 : i32
    return %c0_i32, %c0_i32_0 : i32, i32
  }
  func.func @transform_9(%arg0: i32) -> (i32, i32) {
    %c0_i32 = arith.constant 0 : i32
    %c0_i32_0 = arith.constant 0 : i32
    %c0_i32_1 = arith.constant 0 : i32
    return %c0_i32, %c0_i32_0 : i32, i32
  }
  func.func @transform_10(%arg0: i32) -> (i32, i32) {
    %c0_i32 = arith.constant 0 : i32
    %c0_i32_0 = arith.constant 0 : i32
    %c0_i32_1 = arith.constant 0 : i32
    return %c0_i32, %c0_i32_0 : i32, i32
  }
  func.func @transform_11(%arg0: i32) -> (i32, i32) {
    %c0_i32 = arith.constant 0 : i32
    %c0_i32_0 = arith.constant 0 : i32
    %c0_i32_1 = arith.constant 0 : i32
    return %c0_i32, %c0_i32_0 : i32, i32
  }
  func.func @transform_12(%arg0: i32) -> (i32, i32) {
    %c0_i32 = arith.constant 0 : i32
    %c0_i32_0 = arith.constant 0 : i32
    %c0_i32_1 = arith.constant 0 : i32
    return %c0_i32, %c0_i32_0 : i32, i32
  }
  func.func @transform_13(%arg0: i32) -> (i32, i32) {
    %c0_i32 = arith.constant 0 : i32
    %c0_i32_0 = arith.constant 0 : i32
    %c0_i32_1 = arith.constant 0 : i32
    return %c0_i32, %c0_i32_0 : i32, i32
  }
  func.func @transform_14(%arg0: i32) -> (i32, i32) {
    %c0_i32 = arith.constant 0 : i32
    %c0_i32_0 = arith.constant 0 : i32
    %c0_i32_1 = arith.constant 0 : i32
    return %c0_i32, %c0_i32_0 : i32, i32
  }
  func.func @transform_15(%arg0: i32) -> (i32, i32) {
    %c0_i32 = arith.constant 0 : i32
    %c0_i32_0 = arith.constant 0 : i32
    %c0_i32_1 = arith.constant 0 : i32
    return %c0_i32, %c0_i32_0 : i32, i32
  }
  func.func @transform_16(%arg0: i32) -> (i32, i32) {
    %c0_i32 = arith.constant 0 : i32
    %c0_i32_0 = arith.constant 0 : i32
    %c0_i32_1 = arith.constant 0 : i32
    return %c0_i32, %c0_i32_0 : i32, i32
  }
  func.func @transform_17(%arg0: i32) -> (i32, i32) {
    %c0_i32 = arith.constant 0 : i32
    %c0_i32_0 = arith.constant 0 : i32
    %c0_i32_1 = arith.constant 0 : i32
    return %c0_i32, %c0_i32_0 : i32, i32
  }
  func.func @transform_18(%arg0: i32) -> (i32, i32) {
    %c0_i32 = arith.constant 0 : i32
    %c0_i32_0 = arith.constant 0 : i32
    %c0_i32_1 = arith.constant 0 : i32
    return %c0_i32, %c0_i32_0 : i32, i32
  }
  func.func @transform_19(%arg0: i32) -> (i32, i32) {
    %c0_i32 = arith.constant 0 : i32
    %c0_i32_0 = arith.constant 0 : i32
    %c0_i32_1 = arith.constant 0 : i32
    return %c0_i32, %c0_i32_0 : i32, i32
  }
  func.func @transform_20(%arg0: i32) -> (i32, i32, i32) {
    %c0_i32 = arith.constant 0 : i32
    %c0_i32_0 = arith.constant 0 : i32
    %c0_i32_1 = arith.constant 0 : i32
    return %arg0, %c0_i32, %c0_i32_0 : i32, i32, i32
  }
}

</mosaic_0001>

<llo_original>
// kernel: isa_module_fwd.1
$region0: #{isa_module_fwd.1}
  #allocation0 [shape = 'u32[]', space=smem, size = 0x4, offset = 0x4, fixed_abs, tag = 'smem constant byte address 0x4 - core index']
  #allocation1 [shape = 'u32[144,128]{1,0:T(1,128)}', space=vmem, size = 0x12000, scoped, tag = 'internal scratch']
  %s0 = inlined_call_operand.vmem [shape: f32[2,256,8], index: 0, kind: input, shape index: {}]
  %s1 = inlined_call_operand.vmem [shape: s32[256,2], index: 1, kind: input, shape index: {}]
  %s2 = inlined_call_operand.vmem [shape: s32[2,256], index: 2, kind: input, shape index: {}]
  %s3 = inlined_call_operand.vmem [shape: f32[8,4], index: 3, kind: input, shape index: {}]
  %s4 = inlined_call_operand.vmem [shape: f32[1,4], index: 4, kind: input, shape index: {}]
  %s5 = inlined_call_operand.vmem [shape: f32[4,4], index: 5, kind: input, shape index: {}]
  %s6 = inlined_call_operand.vmem [shape: f32[1,4], index: 6, kind: input, shape index: {}]
  %s7 = inlined_call_operand.vmem [shape: f32[8,8], index: 7, kind: input, shape index: {}]
  %s8 = inlined_call_operand.vmem [shape: f32[8,8], index: 8, kind: input, shape index: {}]
  %s9 = inlined_call_operand.vmem [shape: f32[1,8], index: 9, kind: input, shape index: {}]
  %s10 = inlined_call_operand.vmem [shape: f32[8,4], index: 10, kind: input, shape index: {}]
  %s11 = inlined_call_operand.vmem [shape: f32[1,4], index: 11, kind: input, shape index: {}]
  %s12 = inlined_call_operand.vmem [shape: f32[4,4], index: 12, kind: input, shape index: {}]
  %s13 = inlined_call_operand.vmem [shape: f32[1,4], index: 13, kind: input, shape index: {}]
  %s14 = inlined_call_operand.vmem [shape: f32[8,8], index: 14, kind: input, shape index: {}]
  %s15 = inlined_call_operand.vmem [shape: f32[8,8], index: 15, kind: input, shape index: {}]
  %s16 = inlined_call_operand.vmem [shape: f32[1,8], index: 16, kind: input, shape index: {}]
  %s17 = inlined_call_operand.vmem [shape: f32[8,128], index: 17, kind: input, shape index: {}]
  %s18 = inlined_call_operand.vmem [shape: f32[8,128], index: 18, kind: input, shape index: {}]
  %s19 = inlined_call_operand.vmem [shape: f32[1,128], index: 19, kind: input, shape index: {}]
  %s20 = inlined_call_operand.vmem [shape: f32[2,256,128], index: 20, kind: output, shape index: {}]
  %s21 = sld [smem:[#allocation0]]
  $region113: #{isa_module_fwd.1} parent=0
    _
  %s23 = ssub.s32 1, %s21
  %s24 = scalar_select 0, %s23, %s21
  loop: start=0, step=1, limit=4
  $region2: #{isa_module_fwd.1} parent=0 // loop_pre_header
    _
  $region3: #{isa_module_fwd.1} parent=0 // loop_header
    %s26 = sphi 0, %s30
    %p27 = scmp.ge.s32.totalorder %s26, 4
    %s36 = sphi 0, %s38
    %s39 = sphi 0, %s36
    %s40 = sphi 0, %s39
    %s56 = sphi 0, %s40
    %s60 = sphi 0, %s60
    %s62 = sphi 0, %s60
    %s63 = sphi 0, %s62
    %s77 = sphi 0, %s63
    %s81 = sphi 0, %s81
    %s83 = sphi 0, %s81
    %s84 = sphi 0, %s83
    %s98 = sphi 0, %s84
    %s102 = sphi 0, %s102
    %s104 = sphi 0, %s102
    %s105 = sphi 0, %s104
    %s119 = sphi 0, %s105
    %s123 = sphi 0, %s123
    %s125 = sphi 0, %s123
    %s126 = sphi 0, %s125
    %s140 = sphi 0, %s126
    %s144 = sphi 0, %s144
    %s146 = sphi 0, %s144
    %s147 = sphi 0, %s146
    %s161 = sphi 0, %s147
    %s165 = sphi 0, %s165
    %s167 = sphi 0, %s165
    %s168 = sphi 0, %s167
    %s182 = sphi 0, %s168
    %s186 = sphi 0, %s186
    %s188 = sphi 0, %s186
    %s189 = sphi 0, %s188
    %s203 = sphi 0, %s189
    %s207 = sphi 0, %s207
    %s209 = sphi 0, %s207
    %s210 = sphi 0, %s209
    %s224 = sphi 0, %s210
    %s228 = sphi 0, %s228
    %s230 = sphi 0, %s228
    %s231 = sphi 0, %s230
    %s245 = sphi 0, %s231
    %s249 = sphi 0, %s249
    %s251 = sphi 0, %s249
    %s252 = sphi 0, %s251
    %s266 = sphi 0, %s252
    %s270 = sphi 0, %s270
    %s272 = sphi 0, %s270
    %s273 = sphi 0, %s272
    %s287 = sphi 0, %s273
    %s291 = sphi 0, %s291
    %s293 = sphi 0, %s291
    %s294 = sphi 0, %s293
    %s308 = sphi 0, %s294
    %s312 = sphi 0, %s312
    %s314 = sphi 0, %s312
    %s315 = sphi 0, %s314
    %s329 = sphi 0, %s315
    %s333 = sphi 0, %s333
    %s335 = sphi 0, %s333
    %s336 = sphi 0, %s335
    %s350 = sphi 0, %s336
    %s354 = sphi 0, %s354
    %s356 = sphi 0, %s354
    %s357 = sphi 0, %s356
    %s371 = sphi 0, %s357
    %s375 = sphi 0, %s375
    %s377 = sphi 0, %s375
    %s378 = sphi 0, %s377
    %s392 = sphi 0, %s378
    %s396 = sphi 0, %s396
    %s398 = sphi 0, %s396
    %s399 = sphi 0, %s398
    %s413 = sphi 0, %s399
    %s417 = sphi 0, %s417
    %s419 = sphi 0, %s417
    %s420 = sphi 0, %s419
    %s434 = sphi 0, %s420
    %s438 = sphi 0, %s438
    %s440 = sphi 0, %s438
    %s441 = sphi 0, %s440
    %s455 = sphi 0, %s441
    %s461 = sphi 0, %s463
    %s464 = sphi 0, %s461
    %s465 = sphi 0, %s464
    %s481 = sphi 0, %s465
  $region4: #{isa_module_fwd.1} parent=0 // loop_header_branch
    %29 = sbr.rel (%p27) target = $region8
  $region5: #{isa_module_fwd.1} parent=0 // loop_body
    %s31 = ssub.s32 %s26, 1
    %s32 = ssub.s32 %s26, 2
    %s33 = sadd.s32 %s26, 1
    %s34 = ssub.s32 %s26, %s33
    %p35 = scmp.eq.s32.totalorder %s34, 0
    %s37 = sadd.s32 %s36, 1
    %s38 = scalar_select %p35, %s36, %s37
    %p41 = pneg %p35
    %p42 = scmp.eq.s32.totalorder %s26, 1
    %p43 = por %p41, %p42
    %p44 = scmp.ne.s32.totalorder %s36, %s39
    %p45 = scmp.eq.s32.totalorder %s26, 0
    %p46 = por %p44, %p45
    %p47 = scmp.ne.s32.totalorder %s36, %s39
    %p48 = scmp.eq.s32.totalorder %s31, 1
    %p49 = por %p47, %p48
    %p50 = scmp.ne.s32.totalorder %s39, %s40
    %p51 = scmp.eq.s32.totalorder %s31, 0
    %p52 = por %p50, %p51
    %p53 = scmp.ne.s32.totalorder %s39, %s40
    %p54 = scmp.eq.s32.totalorder %s32, 1
    %p55 = por %p53, %p54
    %p57 = scmp.ne.s32.totalorder %s40, %s56
    %p58 = scmp.eq.s32.totalorder %s32, 0
    %p59 = por %p57, %p58
    %s61 = sadd.s32 %s60, 1
    %p64 = scmp.eq.s32.totalorder %s26, 1
    %p65 = scmp.ne.s32.totalorder %s60, %s62
    %p66 = scmp.eq.s32.totalorder %s26, 0
    %p67 = por %p65, %p66
    %p68 = scmp.ne.s32.totalorder %s60, %s62
    %p69 = scmp.eq.s32.totalorder %s31, 1
    %p70 = por %p68, %p69
    %p71 = scmp.ne.s32.totalorder %s62, %s63
    %p72 = scmp.eq.s32.totalorder %s31, 0
    %p73 = por %p71, %p72
    %p74 = scmp.ne.s32.totalorder %s62, %s63
    %p75 = scmp.eq.s32.totalorder %s32, 1
    %p76 = por %p74, %p75
    %p78 = scmp.ne.s32.totalorder %s63, %s77
    %p79 = scmp.eq.s32.totalorder %s32, 0
    %p80 = por %p78, %p79
    %s82 = sadd.s32 %s81, 1
    %p85 = scmp.eq.s32.totalorder %s26, 1
    %p86 = scmp.ne.s32.totalorder %s81, %s83
    %p87 = scmp.eq.s32.totalorder %s26, 0
    %p88 = por %p86, %p87
    %p89 = scmp.ne.s32.totalorder %s81, %s83
    %p90 = scmp.eq.s32.totalorder %s31, 1
    %p91 = por %p89, %p90
    %p92 = scmp.ne.s32.totalorder %s83, %s84
    %p93 = scmp.eq.s32.totalorder %s31, 0
    %p94 = por %p92, %p93
    %p95 = scmp.ne.s32.totalorder %s83, %s84
    %p96 = scmp.eq.s32.totalorder %s32, 1
    %p97 = por %p95, %p96
    %p99 = scmp.ne.s32.totalorder %s84, %s98
    %p100 = scmp.eq.s32.totalorder %s32, 0
    %p101 = por %p99, %p100
    %s103 = sadd.s32 %s102, 1
    %p106 = scmp.eq.s32.totalorder %s26, 1
    %p107 = scmp.ne.s32.totalorder %s102, %s104
    %p108 = scmp.eq.s32.totalorder %s26, 0
    %p109 = por %p107, %p108
    %p110 = scmp.ne.s32.totalorder %s102, %s104
    %p111 = scmp.eq.s32.totalorder %s31, 1
    %p112 = por %p110, %p111
    %p113 = scmp.ne.s32.totalorder %s104, %s105
    %p114 = scmp.eq.s32.totalorder %s31, 0
    %p115 = por %p113, %p114
    %p116 = scmp.ne.s32.totalorder %s104, %s105
    %p117 = scmp.eq.s32.totalorder %s32, 1
    %p118 = por %p116, %p117
    %p120 = scmp.ne.s32.totalorder %s105, %s119
    %p121 = scmp.eq.s32.totalorder %s32, 0
    %p122 = por %p120, %p121
    %s124 = sadd.s32 %s123, 1
    %p127 = scmp.eq.s32.totalorder %s26, 1
    %p128 = scmp.ne.s32.totalorder %s123, %s125
    %p129 = scmp.eq.s32.totalorder %s26, 0
    %p130 = por %p128, %p129
    %p131 = scmp.ne.s32.totalorder %s123, %s125
    %p132 = scmp.eq.s32.totalorder %s31, 1
    %p133 = por %p131, %p132
    %p134 = scmp.ne.s32.totalorder %s125, %s126
    %p135 = scmp.eq.s32.totalorder %s31, 0
    %p136 = por %p134, %p135
    %p137 = scmp.ne.s32.totalorder %s125, %s126
    %p138 = scmp.eq.s32.totalorder %s32, 1
    %p139 = por %p137, %p138
    %p141 = scmp.ne.s32.totalorder %s126, %s140
    %p142 = scmp.eq.s32.totalorder %s32, 0
    %p143 = por %p141, %p142
    %s145 = sadd.s32 %s144, 1
    %p148 = scmp.eq.s32.totalorder %s26, 1
    %p149 = scmp.ne.s32.totalorder %s144, %s146
    %p150 = scmp.eq.s32.totalorder %s26, 0
    %p151 = por %p149, %p150
    %p152 = scmp.ne.s32.totalorder %s144, %s146
    %p153 = scmp.eq.s32.totalorder %s31, 1
    %p154 = por %p152, %p153
    %p155 = scmp.ne.s32.totalorder %s146, %s147
    %p156 = scmp.eq.s32.totalorder %s31, 0
    %p157 = por %p155, %p156
    %p158 = scmp.ne.s32.totalorder %s146, %s147
    %p159 = scmp.eq.s32.totalorder %s32, 1
    %p160 = por %p158, %p159
    %p162 = scmp.ne.s32.totalorder %s147, %s161
    %p163 = scmp.eq.s32.totalorder %s32, 0
    %p164 = por %p162, %p163
    %s166 = sadd.s32 %s165, 1
    %p169 = scmp.eq.s32.totalorder %s26, 1
    %p170 = scmp.ne.s32.totalorder %s165, %s167
    %p171 = scmp.eq.s32.totalorder %s26, 0
    %p172 = por %p170, %p171
    %p173 = scmp.ne.s32.totalorder %s165, %s167
    %p174 = scmp.eq.s32.totalorder %s31, 1
    %p175 = por %p173, %p174
    %p176 = scmp.ne.s32.totalorder %s167, %s168
    %p177 = scmp.eq.s32.totalorder %s31, 0
    %p178 = por %p176, %p177
    %p179 = scmp.ne.s32.totalorder %s167, %s168
    %p180 = scmp.eq.s32.totalorder %s32, 1
    %p181 = por %p179, %p180
    %p183 = scmp.ne.s32.totalorder %s168, %s182
    %p184 = scmp.eq.s32.totalorder %s32, 0
    %p185 = por %p183, %p184
    %s187 = sadd.s32 %s186, 1
    %p190 = scmp.eq.s32.totalorder %s26, 1
    %p191 = scmp.ne.s32.totalorder %s186, %s188
    %p192 = scmp.eq.s32.totalorder %s26, 0
    %p193 = por %p191, %p192
    %p194 = scmp.ne.s32.totalorder %s186, %s188
    %p195 = scmp.eq.s32.totalorder %s31, 1
    %p196 = por %p194, %p195
    %p197 = scmp.ne.s32.totalorder %s188, %s189
    %p198 = scmp.eq.s32.totalorder %s31, 0
    %p199 = por %p197, %p198
    %p200 = scmp.ne.s32.totalorder %s188, %s189
    %p201 = scmp.eq.s32.totalorder %s32, 1
    %p202 = por %p200, %p201
    %p204 = scmp.ne.s32.totalorder %s189, %s203
    %p205 = scmp.eq.s32.totalorder %s32, 0
    %p206 = por %p204, %p205
    %s208 = sadd.s32 %s207, 1
    %p211 = scmp.eq.s32.totalorder %s26, 1
    %p212 = scmp.ne.s32.totalorder %s207, %s209
    %p213 = scmp.eq.s32.totalorder %s26, 0
    %p214 = por %p212, %p213
    %p215 = scmp.ne.s32.totalorder %s207, %s209
    %p216 = scmp.eq.s32.totalorder %s31, 1
    %p217 = por %p215, %p216
    %p218 = scmp.ne.s32.totalorder %s209, %s210
    %p219 = scmp.eq.s32.totalorder %s31, 0
    %p220 = por %p218, %p219
    %p221 = scmp.ne.s32.totalorder %s209, %s210
    %p222 = scmp.eq.s32.totalorder %s32, 1
    %p223 = por %p221, %p222
    %p225 = scmp.ne.s32.totalorder %s210, %s224
    %p226 = scmp.eq.s32.totalorder %s32, 0
    %p227 = por %p225, %p226
    %s229 = sadd.s32 %s228, 1
    %p232 = scmp.eq.s32.totalorder %s26, 1
    %p233 = scmp.ne.s32.totalorder %s228, %s230
    %p234 = scmp.eq.s32.totalorder %s26, 0
    %p235 = por %p233, %p234
    %p236 = scmp.ne.s32.totalorder %s228, %s230
    %p237 = scmp.eq.s32.totalorder %s31, 1
    %p238 = por %p236, %p237
    %p239 = scmp.ne.s32.totalorder %s230, %s231
    %p240 = scmp.eq.s32.totalorder %s31, 0
    %p241 = por %p239, %p240
    %p242 = scmp.ne.s32.totalorder %s230, %s231
    %p243 = scmp.eq.s32.totalorder %s32, 1
    %p244 = por %p242, %p243
    %p246 = scmp.ne.s32.totalorder %s231, %s245
    %p247 = scmp.eq.s32.totalorder %s32, 0
    %p248 = por %p246, %p247
    %s250 = sadd.s32 %s249, 1
    %p253 = scmp.eq.s32.totalorder %s26, 1
    %p254 = scmp.ne.s32.totalorder %s249, %s251
    %p255 = scmp.eq.s32.totalorder %s26, 0
    %p256 = por %p254, %p255
    %p257 = scmp.ne.s32.totalorder %s249, %s251
    %p258 = scmp.eq.s32.totalorder %s31, 1
    %p259 = por %p257, %p258
    %p260 = scmp.ne.s32.totalorder %s251, %s252
    %p261 = scmp.eq.s32.totalorder %s31, 0
    %p262 = por %p260, %p261
    %p263 = scmp.ne.s32.totalorder %s251, %s252
    %p264 = scmp.eq.s32.totalorder %s32, 1
    %p265 = por %p263, %p264
    %p267 = scmp.ne.s32.totalorder %s252, %s266
    %p268 = scmp.eq.s32.totalorder %s32, 0
    %p269 = por %p267, %p268
    %s271 = sadd.s32 %s270, 1
    %p274 = scmp.eq.s32.totalorder %s26, 1
    %p275 = scmp.ne.s32.totalorder %s270, %s272
    %p276 = scmp.eq.s32.totalorder %s26, 0
    %p277 = por %p275, %p276
    %p278 = scmp.ne.s32.totalorder %s270, %s272
    %p279 = scmp.eq.s32.totalorder %s31, 1
    %p280 = por %p278, %p279
    %p281 = scmp.ne.s32.totalorder %s272, %s273
    %p282 = scmp.eq.s32.totalorder %s31, 0
    %p283 = por %p281, %p282
    %p284 = scmp.ne.s32.totalorder %s272, %s273
    %p285 = scmp.eq.s32.totalorder %s32, 1
    %p286 = por %p284, %p285
    %p288 = scmp.ne.s32.totalorder %s273, %s287
    %p289 = scmp.eq.s32.totalorder %s32, 0
    %p290 = por %p288, %p289
    %s292 = sadd.s32 %s291, 1
    %p295 = scmp.eq.s32.totalorder %s26, 1
    %p296 = scmp.ne.s32.totalorder %s291, %s293
    %p297 = scmp.eq.s32.totalorder %s26, 0
    %p298 = por %p296, %p297
    %p299 = scmp.ne.s32.totalorder %s291, %s293
    %p300 = scmp.eq.s32.totalorder %s31, 1
    %p301 = por %p299, %p300
    %p302 = scmp.ne.s32.totalorder %s293, %s294
    %p303 = scmp.eq.s32.totalorder %s31, 0
    %p304 = por %p302, %p303
    %p305 = scmp.ne.s32.totalorder %s293, %s294
    %p306 = scmp.eq.s32.totalorder %s32, 1
    %p307 = por %p305, %p306
    %p309 = scmp.ne.s32.totalorder %s294, %s308
    %p310 = scmp.eq.s32.totalorder %s32, 0
    %p311 = por %p309, %p310
    %s313 = sadd.s32 %s312, 1
    %p316 = scmp.eq.s32.totalorder %s26, 1
    %p317 = scmp.ne.s32.totalorder %s312, %s314
    %p318 = scmp.eq.s32.totalorder %s26, 0
    %p319 = por %p317, %p318
    %p320 = scmp.ne.s32.totalorder %s312, %s314
    %p321 = scmp.eq.s32.totalorder %s31, 1
    %p322 = por %p320, %p321
    %p323 = scmp.ne.s32.totalorder %s314, %s315
    %p324 = scmp.eq.s32.totalorder %s31, 0
    %p325 = por %p323, %p324
    %p326 = scmp.ne.s32.totalorder %s314, %s315
    %p327 = scmp.eq.s32.totalorder %s32, 1
    %p328 = por %p326, %p327
    %p330 = scmp.ne.s32.totalorder %s315, %s329
    %p331 = scmp.eq.s32.totalorder %s32, 0
    %p332 = por %p330, %p331
    %s334 = sadd.s32 %s333, 1
    %p337 = scmp.eq.s32.totalorder %s26, 1
    %p338 = scmp.ne.s32.totalorder %s333, %s335
    %p339 = scmp.eq.s32.totalorder %s26, 0
    %p340 = por %p338, %p339
    %p341 = scmp.ne.s32.totalorder %s333, %s335
    %p342 = scmp.eq.s32.totalorder %s31, 1
    %p343 = por %p341, %p342
    %p344 = scmp.ne.s32.totalorder %s335, %s336
    %p345 = scmp.eq.s32.totalorder %s31, 0
    %p346 = por %p344, %p345
    %p347 = scmp.ne.s32.totalorder %s335, %s336
    %p348 = scmp.eq.s32.totalorder %s32, 1
    %p349 = por %p347, %p348
    %p351 = scmp.ne.s32.totalorder %s336, %s350
    %p352 = scmp.eq.s32.totalorder %s32, 0
    %p353 = por %p351, %p352
    %s355 = sadd.s32 %s354, 1
    %p358 = scmp.eq.s32.totalorder %s26, 1
    %p359 = scmp.ne.s32.totalorder %s354, %s356
    %p360 = scmp.eq.s32.totalorder %s26, 0
    %p361 = por %p359, %p360
    %p362 = scmp.ne.s32.totalorder %s354, %s356
    %p363 = scmp.eq.s32.totalorder %s31, 1
    %p364 = por %p362, %p363
    %p365 = scmp.ne.s32.totalorder %s356, %s357
    %p366 = scmp.eq.s32.totalorder %s31, 0
    %p367 = por %p365, %p366
    %p368 = scmp.ne.s32.totalorder %s356, %s357
    %p369 = scmp.eq.s32.totalorder %s32, 1
    %p370 = por %p368, %p369
    %p372 = scmp.ne.s32.totalorder %s357, %s371
    %p373 = scmp.eq.s32.totalorder %s32, 0
    %p374 = por %p372, %p373
    %s376 = sadd.s32 %s375, 1
    %p379 = scmp.eq.s32.totalorder %s26, 1
    %p380 = scmp.ne.s32.totalorder %s375, %s377
    %p381 = scmp.eq.s32.totalorder %s26, 0
    %p382 = por %p380, %p381
    %p383 = scmp.ne.s32.totalorder %s375, %s377
    %p384 = scmp.eq.s32.totalorder %s31, 1
    %p385 = por %p383, %p384
    %p386 = scmp.ne.s32.totalorder %s377, %s378
    %p387 = scmp.eq.s32.totalorder %s31, 0
    %p388 = por %p386, %p387
    %p389 = scmp.ne.s32.totalorder %s377, %s378
    %p390 = scmp.eq.s32.totalorder %s32, 1
    %p391 = por %p389, %p390
    %p393 = scmp.ne.s32.totalorder %s378, %s392
    %p394 = scmp.eq.s32.totalorder %s32, 0
    %p395 = por %p393, %p394
    %s397 = sadd.s32 %s396, 1
    %p400 = scmp.eq.s32.totalorder %s26, 1
    %p401 = scmp.ne.s32.totalorder %s396, %s398
    %p402 = scmp.eq.s32.totalorder %s26, 0
    %p403 = por %p401, %p402
    %p404 = scmp.ne.s32.totalorder %s396, %s398
    %p405 = scmp.eq.s32.totalorder %s31, 1
    %p406 = por %p404, %p405
    %p407 = scmp.ne.s32.totalorder %s398, %s399
    %p408 = scmp.eq.s32.totalorder %s31, 0
    %p409 = por %p407, %p408
    %p410 = scmp.ne.s32.totalorder %s398, %s399
    %p411 = scmp.eq.s32.totalorder %s32, 1
    %p412 = por %p410, %p411
    %p414 = scmp.ne.s32.totalorder %s399, %s413
    %p415 = scmp.eq.s32.totalorder %s32, 0
    %p416 = por %p414, %p415
    %s418 = sadd.s32 %s417, 1
    %p421 = scmp.eq.s32.totalorder %s26, 1
    %p422 = scmp.ne.s32.totalorder %s417, %s419
    %p423 = scmp.eq.s32.totalorder %s26, 0
    %p424 = por %p422, %p423
    %p425 = scmp.ne.s32.totalorder %s417, %s419
    %p426 = scmp.eq.s32.totalorder %s31, 1
    %p427 = por %p425, %p426
    %p428 = scmp.ne.s32.totalorder %s419, %s420
    %p429 = scmp.eq.s32.totalorder %s31, 0
    %p430 = por %p428, %p429
    %p431 = scmp.ne.s32.totalorder %s419, %s420
    %p432 = scmp.eq.s32.totalorder %s32, 1
    %p433 = por %p431, %p432
    %p435 = scmp.ne.s32.totalorder %s420, %s434
    %p436 = scmp.eq.s32.totalorder %s32, 0
    %p437 = por %p435, %p436
    %s439 = sadd.s32 %s438, 1
    %p442 = scmp.eq.s32.totalorder %s26, 1
    %p443 = scmp.ne.s32.totalorder %s438, %s440
    %p444 = scmp.eq.s32.totalorder %s26, 0
    %p445 = por %p443, %p444
    %p446 = scmp.ne.s32.totalorder %s438, %s440
    %p447 = scmp.eq.s32.totalorder %s31, 1
    %p448 = por %p446, %p447
    %p449 = scmp.ne.s32.totalorder %s440, %s441
    %p450 = scmp.eq.s32.totalorder %s31, 0
    %p451 = por %p449, %p450
    %p452 = scmp.ne.s32.totalorder %s440, %s441
    %p453 = scmp.eq.s32.totalorder %s32, 1
    %p454 = por %p452, %p453
    %p456 = scmp.ne.s32.totalorder %s441, %s455
    %p457 = scmp.eq.s32.totalorder %s32, 0
    %p458 = por %p456, %p457
    %s459 = ssub.s32 %s26, %s33
    %p460 = scmp.eq.s32.totalorder %s459, 0
    %s462 = sadd.s32 %s461, 1
    %s463 = scalar_select %p460, %s461, %s462
    %p466 = pneg %p460
    %p467 = scmp.eq.s32.totalorder %s26, 1
    %p468 = por %p466, %p467
    %p469 = scmp.ne.s32.totalorder %s461, %s464
    %p470 = scmp.eq.s32.totalorder %s26, 0
    %p471 = por %p469, %p470
    %p472 = scmp.ne.s32.totalorder %s461, %s464
    %p473 = scmp.eq.s32.totalorder %s31, 1
    %p474 = por %p472, %p473
    %p475 = scmp.ne.s32.totalorder %s464, %s465
    %p476 = scmp.eq.s32.totalorder %s31, 0
    %p477 = por %p475, %p476
    %p478 = scmp.ne.s32.totalorder %s464, %s465
    %p479 = scmp.eq.s32.totalorder %s32, 1
    %p480 = por %p478, %p479
    %p482 = scmp.ne.s32.totalorder %s465, %s481
    %p483 = scmp.eq.s32.totalorder %s32, 0
    %p484 = por %p482, %p483
    %p485 = scmp.le.s32.totalorder 1, %s26
    %p486 = scmp.lt.s32.totalorder %s26, 3
    %p487 = pnand %p485, %p486
    %p488 = pneg %p487
    // Predicated region
    $region9: #{isa_module_fwd.1} parent=5 // pred_check
      _
    $region10: #{isa_module_fwd.1} parent=5 // pred_check_branch
      %490 = sbr.rel (%p487) target = $region12
    $region11: #{isa_module_fwd.1} parent=5 // pred_region
      %s491 = ssub.s32 %s26, 1
      // Predicated region
      $region13: #{isa_module_fwd.1} parent=11 // pred_check
        %p492 = pneg %p73
      $region14: #{isa_module_fwd.1} parent=11 // pred_check_branch
        %494 = sbr.rel (%p492) target = $region16
      $region15: #{isa_module_fwd.1} parent=11 // pred_region
        _
      $region16: #{isa_module_fwd.1} parent=11 // pred_fallthru
        _
      // Predicated region
      $region17: #{isa_module_fwd.1} parent=11 // pred_check
        %p495 = pneg %p94
      $region18: #{isa_module_fwd.1} parent=11 // pred_check_branch
        %497 = sbr.rel (%p495) target = $region20
      $region19: #{isa_module_fwd.1} parent=11 // pred_region
        _
      $region20: #{isa_module_fwd.1} parent=11 // pred_fallthru
        _
      // Predicated region
      $region21: #{isa_module_fwd.1} parent=11 // pred_check
        %p498 = pneg %p115
      $region22: #{isa_module_fwd.1} parent=11 // pred_check_branch
        %500 = sbr.rel (%p498) target = $region24
      $region23: #{isa_module_fwd.1} parent=11 // pred_region
        _
      $region24: #{isa_module_fwd.1} parent=11 // pred_fallthru
        _
      // Predicated region
      $region25: #{isa_module_fwd.1} parent=11 // pred_check
        %p501 = pneg %p136
      $region26: #{isa_module_fwd.1} parent=11 // pred_check_branch
        %503 = sbr.rel (%p501) target = $region28
      $region27: #{isa_module_fwd.1} parent=11 // pred_region
        _
      $region28: #{isa_module_fwd.1} parent=11 // pred_fallthru
        _
      // Predicated region
      $region29: #{isa_module_fwd.1} parent=11 // pred_check
        %p504 = pneg %p157
      $region30: #{isa_module_fwd.1} parent=11 // pred_check_branch
        %506 = sbr.rel (%p504) target = $region32
      $region31: #{isa_module_fwd.1} parent=11 // pred_region
        _
      $region32: #{isa_module_fwd.1} parent=11 // pred_fallthru
        _
      // Predicated region
      $region33: #{isa_module_fwd.1} parent=11 // pred_check
        %p507 = pneg %p178
      $region34: #{isa_module_fwd.1} parent=11 // pred_check_branch
        %509 = sbr.rel (%p507) target = $region36
      $region35: #{isa_module_fwd.1} parent=11 // pred_region
        _
      $region36: #{isa_module_fwd.1} parent=11 // pred_fallthru
        _
      // Predicated region
      $region37: #{isa_module_fwd.1} parent=11 // pred_check
        %p510 = pneg %p199
      $region38: #{isa_module_fwd.1} parent=11 // pred_check_branch
        %512 = sbr.rel (%p510) target = $region40
      $region39: #{isa_module_fwd.1} parent=11 // pred_region
        _
      $region40: #{isa_module_fwd.1} parent=11 // pred_fallthru
        _
      // Predicated region
      $region41: #{isa_module_fwd.1} parent=11 // pred_check
        %p513 = pneg %p220
      $region42: #{isa_module_fwd.1} parent=11 // pred_check_branch
        %515 = sbr.rel (%p513) target = $region44
      $region43: #{isa_module_fwd.1} parent=11 // pred_region
        _
      $region44: #{isa_module_fwd.1} parent=11 // pred_fallthru
        _
      // Predicated region
      $region45: #{isa_module_fwd.1} parent=11 // pred_check
        %p516 = pneg %p241
      $region46: #{isa_module_fwd.1} parent=11 // pred_check_branch
        %518 = sbr.rel (%p516) target = $region48
      $region47: #{isa_module_fwd.1} parent=11 // pred_region
        _
      $region48: #{isa_module_fwd.1} parent=11 // pred_fallthru
        _
      // Predicated region
      $region49: #{isa_module_fwd.1} parent=11 // pred_check
        %p519 = pneg %p262
      $region50: #{isa_module_fwd.1} parent=11 // pred_check_branch
        %521 = sbr.rel (%p519) target = $region52
      $region51: #{isa_module_fwd.1} parent=11 // pred_region
        _
      $region52: #{isa_module_fwd.1} parent=11 // pred_fallthru
        _
      // Predicated region
      $region53: #{isa_module_fwd.1} parent=11 // pred_check
        %p522 = pneg %p283
      $region54: #{isa_module_fwd.1} parent=11 // pred_check_branch
        %524 = sbr.rel (%p522) target = $region56
      $region55: #{isa_module_fwd.1} parent=11 // pred_region
        _
      $region56: #{isa_module_fwd.1} parent=11 // pred_fallthru
        _
      // Predicated region
      $region57: #{isa_module_fwd.1} parent=11 // pred_check
        %p525 = pneg %p304
      $region58: #{isa_module_fwd.1} parent=11 // pred_check_branch
        %527 = sbr.rel (%p525) target = $region60
      $region59: #{isa_module_fwd.1} parent=11 // pred_region
        _
      $region60: #{isa_module_fwd.1} parent=11 // pred_fallthru
        _
      // Predicated region
      $region61: #{isa_module_fwd.1} parent=11 // pred_check
        %p528 = pneg %p325
      $region62: #{isa_module_fwd.1} parent=11 // pred_check_branch
        %530 = sbr.rel (%p528) target = $region64
      $region63: #{isa_module_fwd.1} parent=11 // pred_region
        _
      $region64: #{isa_module_fwd.1} parent=11 // pred_fallthru
        _
      // Predicated region
      $region65: #{isa_module_fwd.1} parent=11 // pred_check
        %p531 = pneg %p346
      $region66: #{isa_module_fwd.1} parent=11 // pred_check_branch
        %533 = sbr.rel (%p531) target = $region68
      $region67: #{isa_module_fwd.1} parent=11 // pred_region
        _
      $region68: #{isa_module_fwd.1} parent=11 // pred_fallthru
        _
      // Predicated region
      $region69: #{isa_module_fwd.1} parent=11 // pred_check
        %p534 = pneg %p367
      $region70: #{isa_module_fwd.1} parent=11 // pred_check_branch
        %536 = sbr.rel (%p534) target = $region72
      $region71: #{isa_module_fwd.1} parent=11 // pred_region
        _
      $region72: #{isa_module_fwd.1} parent=11 // pred_fallthru
        _
      // Predicated region
      $region73: #{isa_module_fwd.1} parent=11 // pred_check
        %p537 = pneg %p388
      $region74: #{isa_module_fwd.1} parent=11 // pred_check_branch
        %539 = sbr.rel (%p537) target = $region76
      $region75: #{isa_module_fwd.1} parent=11 // pred_region
        _
      $region76: #{isa_module_fwd.1} parent=11 // pred_fallthru
        _
      // Predicated region
      $region77: #{isa_module_fwd.1} parent=11 // pred_check
        %p540 = pneg %p409
      $region78: #{isa_module_fwd.1} parent=11 // pred_check_branch
        %542 = sbr.rel (%p540) target = $region80
      $region79: #{isa_module_fwd.1} parent=11 // pred_region
        _
      $region80: #{isa_module_fwd.1} parent=11 // pred_fallthru
        _
      // Predicated region
      $region81: #{isa_module_fwd.1} parent=11 // pred_check
        %p543 = pneg %p430
      $region82: #{isa_module_fwd.1} parent=11 // pred_check_branch
        %545 = sbr.rel (%p543) target = $region84
      $region83: #{isa_module_fwd.1} parent=11 // pred_region
        _
      $region84: #{isa_module_fwd.1} parent=11 // pred_fallthru
        _
      // Predicated region
      $region85: #{isa_module_fwd.1} parent=11 // pred_check
        %p546 = pneg %p451
      $region86: #{isa_module_fwd.1} parent=11 // pred_check_branch
        %548 = sbr.rel (%p546) target = $region88
      $region87: #{isa_module_fwd.1} parent=11 // pred_region
        _
      $region88: #{isa_module_fwd.1} parent=11 // pred_fallthru
        _
    $region12: #{isa_module_fwd.1} parent=5 // pred_fallthru
      _
    %p549 = scmp.lt.s32.totalorder %s26, 2
    // Predicated region
    $region89: #{isa_module_fwd.1} parent=5 // pred_check
      %p550 = pneg %p549
    $region90: #{isa_module_fwd.1} parent=5 // pred_check_branch
      %552 = sbr.rel (%p550) target = $region92
    $region91: #{isa_module_fwd.1} parent=5 // pred_region
      // Predicated region
      $region93: #{isa_module_fwd.1} parent=91 // pred_check
        %p553 = pneg %p46
      $region94: #{isa_module_fwd.1} parent=91 // pred_check_branch
        %555 = sbr.rel (%p553) target = $region96
      $region95: #{isa_module_fwd.1} parent=91 // pred_region
        %p556 = scmp.lt.s32.totalorder %s26, 1
        %s557 = scalar_select %p556, %s26, 1
        %s558 = smul.addr %s557, 32
        %s559 = smul.addr %s558, 8
        %s560 = scalar_lea.vmem %s0, %s559
      $region96: #{isa_module_fwd.1} parent=91 // pred_fallthru
        _
    $region92: #{isa_module_fwd.1} parent=5 // pred_fallthru
      _
    %p561 = scmp.le.s32.totalorder 1, %s26
    %p562 = scmp.lt.s32.totalorder %s26, 3
    %p563 = pnand %p561, %p562
    %p564 = pneg %p563
    // Predicated region
    $region97: #{isa_module_fwd.1} parent=5 // pred_check
      _
    $region98: #{isa_module_fwd.1} parent=5 // pred_check_branch
      %566 = sbr.rel (%p563) target = $region100
    $region99: #{isa_module_fwd.1} parent=5 // pred_region
      %s567 = ssub.s32 %s26, 1
      %p568 = scmp.lt.s32.totalorder %s31, 1
      %s569 = scalar_select %p568, %s31, 1
      %s570 = smul.addr %s569, 32
      %s571 = smul.addr %s570, 8
      %s572 = scalar_lea.vmem %s0, %s571
      %p573 = pneg %p52
      %p574 = pneg %p49
      %p575 = pneg %p73
      %p576 = pneg %p70
      %p577 = pneg %p94
      %p578 = pneg %p91
      %p579 = pneg %p115
      %p580 = pneg %p112
      %p581 = pneg %p136
      %p582 = pneg %p133
      %p583 = pneg %p157
      %p584 = pneg %p154
      %p585 = pneg %p178
      %p586 = pneg %p175
      %p587 = pneg %p199
      %p588 = pneg %p196
      %p589 = pneg %p220
      %p590 = pneg %p217
      %p591 = pneg %p241
      %p592 = pneg %p238
      %p593 = pneg %p262
      %p594 = pneg %p259
      %p595 = pneg %p283
      %p596 = pneg %p280
      %p597 = pneg %p304
      %p598 = pneg %p301
      %p599 = pneg %p325
      %p600 = pneg %p322
      %p601 = pneg %p346
      %p602 = pneg %p343
      %p603 = pneg %p367
      %p604 = pneg %p364
      %p605 = pneg %p388
      %p606 = pneg %p385
      %p607 = pneg %p409
      %p608 = pneg %p406
      %p609 = pneg %p430
      %p610 = pneg %p427
      %p611 = pneg %p451
      %p612 = pneg %p448
      %p613 = pneg %p477
      %p614 = pneg %p474
      %p615 = scmp.lt.s32.totalorder %s31, 1
      %s616 = scalar_select %p615, %s31, 1
      %s617 = smul.addr %s616, 32
      %s618 = smul.addr %s617, 8
      %s619 = scalar_lea.vmem %s20, %s618
      %p620 = scmp.lt.s32.totalorder %s31, 1
      %s621 = scalar_select %p620, %s31, 1
      %s622 = smul.addr %s621, 32
      %s623 = smul.addr %s622, 8
      %s624 = scalar_lea.vmem %s0, %s623
      %p625 = scmp.lt.s32.totalorder %s31, 1
      %s626 = scalar_select %p625, %s31, 1
      %s627 = smul.addr %s626, 32
      %s628 = smul.addr %s627, 8
      %s629 = scalar_lea.vmem %s20, %s628
      %v630 = vld [vmem:[%s624] sm:$0xff]
      %v631 = vld [vmem:[%s624 + $0x8] sm:$0xff]
      %v632 = vld [vmem:[%s624 + $0x10] sm:$0xff]
      %v633 = vld [vmem:[%s624 + $0x18] sm:$0xff]
      %v634 = vld [vmem:[%s624 + $0x20] sm:$0xff]
      %v635 = vld [vmem:[%s624 + $0x28] sm:$0xff]
      %v636 = vld [vmem:[%s624 + $0x30] sm:$0xff]
      %v637 = vld [vmem:[%s624 + $0x38] sm:$0xff]
      %v638 = vld [vmem:[%s624 + $0x40] sm:$0xff]
      %v639 = vld [vmem:[%s624 + $0x48] sm:$0xff]
      %v640 = vld [vmem:[%s624 + $0x50] sm:$0xff]
      %v641 = vld [vmem:[%s624 + $0x58] sm:$0xff]
      %v642 = vld [vmem:[%s624 + $0x60] sm:$0xff]
      %v643 = vld [vmem:[%s624 + $0x68] sm:$0xff]
      %v644 = vld [vmem:[%s624 + $0x70] sm:$0xff]
      %v645 = vld [vmem:[%s624 + $0x78] sm:$0xff]
      %v646 = vld [vmem:[%s624 + $0x80] sm:$0xff]
      %v647 = vld [vmem:[%s624 + $0x88] sm:$0xff]
      %v648 = vld [vmem:[%s624 + $0x90] sm:$0xff]
      %v649 = vld [vmem:[%s624 + $0x98] sm:$0xff]
      %v650 = vld [vmem:[%s624 + $0xa0] sm:$0xff]
      %v651 = vld [vmem:[%s624 + $0xa8] sm:$0xff]
      %v652 = vld [vmem:[%s624 + $0xb0] sm:$0xff]
      %v653 = vld [vmem:[%s624 + $0xb8] sm:$0xff]
      %v654 = vld [vmem:[%s624 + $0xc0] sm:$0xff]
      %v655 = vld [vmem:[%s624 + $0xc8] sm:$0xff]
      %v656 = vld [vmem:[%s624 + $0xd0] sm:$0xff]
      %v657 = vld [vmem:[%s624 + $0xd8] sm:$0xff]
      %v658 = vld [vmem:[%s624 + $0xe0] sm:$0xff]
      %v659 = vld [vmem:[%s624 + $0xe8] sm:$0xff]
      %v660 = vld [vmem:[%s624 + $0xf0] sm:$0xff]
      %v661 = vld [vmem:[%s624 + $0xf8] sm:$0xff]
      %v662 = vld [vmem:[%s1] sm:$0xff]
      %v663 = vld [vmem:[%s1 + $0x8] sm:$0xff]
      %v664 = vld [vmem:[%s1 + $0x10] sm:$0xff]
      %v665 = vld [vmem:[%s1 + $0x18] sm:$0xff]
      %v666 = vld [vmem:[%s1 + $0x20] sm:$0xff]
      %v667 = vld [vmem:[%s1 + $0x28] sm:$0xff]
      %v668 = vld [vmem:[%s1 + $0x30] sm:$0xff]
      %v669 = vld [vmem:[%s1 + $0x38] sm:$0xff]
      %v670 = vld [vmem:[%s1 + $0x40] sm:$0xff]
      %v671 = vld [vmem:[%s1 + $0x48] sm:$0xff]
      %v672 = vld [vmem:[%s1 + $0x50] sm:$0xff]
      %v673 = vld [vmem:[%s1 + $0x58] sm:$0xff]
      %v674 = vld [vmem:[%s1 + $0x60] sm:$0xff]
      %v675 = vld [vmem:[%s1 + $0x68] sm:$0xff]
      %v676 = vld [vmem:[%s1 + $0x70] sm:$0xff]
      %v677 = vld [vmem:[%s1 + $0x78] sm:$0xff]
      %v678 = vld [vmem:[%s1 + $0x80] sm:$0xff]
      %v679 = vld [vmem:[%s1 + $0x88] sm:$0xff]
      %v680 = vld [vmem:[%s1 + $0x90] sm:$0xff]
      %v681 = vld [vmem:[%s1 + $0x98] sm:$0xff]
      %v682 = vld [vmem:[%s1 + $0xa0] sm:$0xff]
      %v683 = vld [vmem:[%s1 + $0xa8] sm:$0xff]
      %v684 = vld [vmem:[%s1 + $0xb0] sm:$0xff]
      %v685 = vld [vmem:[%s1 + $0xb8] sm:$0xff]
      %v686 = vld [vmem:[%s1 + $0xc0] sm:$0xff]
      %v687 = vld [vmem:[%s1 + $0xc8] sm:$0xff]
      %v688 = vld [vmem:[%s1 + $0xd0] sm:$0xff]
      %v689 = vld [vmem:[%s1 + $0xd8] sm:$0xff]
      %v690 = vld [vmem:[%s1 + $0xe0] sm:$0xff]
      %v691 = vld [vmem:[%s1 + $0xe8] sm:$0xff]
      %v692 = vld [vmem:[%s1 + $0xf0] sm:$0xff]
      %v693 = vld [vmem:[%s1 + $0xf8] sm:$0xff]
      %v694 = vld [vmem:[%s2] sm:$0xf]
      %695 = vset.pattern.permute.xlu0 0
      %696 = vperm.xlu0 %695, %v662
      %v697 = vpop.permute.xlu0 %696
      %698 = vset.pattern.permute.xlu0 0
      %699 = vperm.xlu0 %698, %v663
      %v700 = vpop.permute.xlu0 %699
      %701 = vset.pattern.permute.xlu0 0
      %702 = vperm.xlu0 %701, %v664
      %v703 = vpop.permute.xlu0 %702
      %704 = vset.pattern.permute.xlu0 0
      %705 = vperm.xlu0 %704, %v665
      %v706 = vpop.permute.xlu0 %705
      %707 = vset.pattern.permute.xlu0 0
      %708 = vperm.xlu0 %707, %v666
      %v709 = vpop.permute.xlu0 %708
      %710 = vset.pattern.permute.xlu0 0
      %711 = vperm.xlu0 %710, %v667
      %v712 = vpop.permute.xlu0 %711
      %713 = vset.pattern.permute.xlu0 0
      %714 = vperm.xlu0 %713, %v668
      %v715 = vpop.permute.xlu0 %714
      %716 = vset.pattern.permute.xlu0 0
      %717 = vperm.xlu0 %716, %v669
      %v718 = vpop.permute.xlu0 %717
      %719 = vset.pattern.permute.xlu0 0
      %720 = vperm.xlu0 %719, %v670
      %v721 = vpop.permute.xlu0 %720
      %722 = vset.pattern.permute.xlu0 0
      %723 = vperm.xlu0 %722, %v671
      %v724 = vpop.permute.xlu0 %723
      %725 = vset.pattern.permute.xlu0 0
      %726 = vperm.xlu0 %725, %v672
      %v727 = vpop.permute.xlu0 %726
      %728 = vset.pattern.permute.xlu0 0
      %729 = vperm.xlu0 %728, %v673
      %v730 = vpop.permute.xlu0 %729
      %731 = vset.pattern.permute.xlu0 0
      %732 = vperm.xlu0 %731, %v674
      %v733 = vpop.permute.xlu0 %732
      %734 = vset.pattern.permute.xlu0 0
      %735 = vperm.xlu0 %734, %v675
      %v736 = vpop.permute.xlu0 %735
      %737 = vset.pattern.permute.xlu0 0
      %738 = vperm.xlu0 %737, %v676
      %v739 = vpop.permute.xlu0 %738
      %740 = vset.pattern.permute.xlu0 0
      %741 = vperm.xlu0 %740, %v677
      %v742 = vpop.permute.xlu0 %741
      %743 = vset.pattern.permute.xlu0 0
      %744 = vperm.xlu0 %743, %v678
      %v745 = vpop.permute.xlu0 %744
      %746 = vset.pattern.permute.xlu0 0
      %747 = vperm.xlu0 %746, %v679
      %v748 = vpop.permute.xlu0 %747
      %749 = vset.pattern.permute.xlu0 0
      %750 = vperm.xlu0 %749, %v680
      %v751 = vpop.permute.xlu0 %750
      %752 = vset.pattern.permute.xlu0 0
      %753 = vperm.xlu0 %752, %v681
      %v754 = vpop.permute.xlu0 %753
      %755 = vset.pattern.permute.xlu0 0
      %756 = vperm.xlu0 %755, %v682
      %v757 = vpop.permute.xlu0 %756
      %758 = vset.pattern.permute.xlu0 0
      %759 = vperm.xlu0 %758, %v683
      %v760 = vpop.permute.xlu0 %759
      %761 = vset.pattern.permute.xlu0 0
      %762 = vperm.xlu0 %761, %v684
      %v763 = vpop.permute.xlu0 %762
      %764 = vset.pattern.permute.xlu0 0
      %765 = vperm.xlu0 %764, %v685
      %v766 = vpop.permute.xlu0 %765
      %767 = vset.pattern.permute.xlu0 0
      %768 = vperm.xlu0 %767, %v686
      %v769 = vpop.permute.xlu0 %768
      %770 = vset.pattern.permute.xlu0 0
      %771 = vperm.xlu0 %770, %v687
      %v772 = vpop.permute.xlu0 %771
      %773 = vset.pattern.permute.xlu0 0
      %774 = vperm.xlu0 %773, %v688
      %v775 = vpop.permute.xlu0 %774
      %776 = vset.pattern.permute.xlu0 0
      %777 = vperm.xlu0 %776, %v689
      %v778 = vpop.permute.xlu0 %777
      %779 = vset.pattern.permute.xlu0 0
      %780 = vperm.xlu0 %779, %v690
      %v781 = vpop.permute.xlu0 %780
      %782 = vset.pattern.permute.xlu0 0
      %783 = vperm.xlu0 %782, %v691
      %v784 = vpop.permute.xlu0 %783
      %785 = vset.pattern.permute.xlu0 0
      %786 = vperm.xlu0 %785, %v692
      %v787 = vpop.permute.xlu0 %786
      %788 = vset.pattern.permute.xlu0 0
      %789 = vperm.xlu0 %788, %v693
      %v790 = vpop.permute.xlu0 %789
      %v791 = vlaneseq
      %v792 = vshrl.u32 %v791, 7
      %v793 = vsub.s32 0, %v792
      %v794 = vrot.slane %v694, %v793
      %v795 = vlaneseq
      %v796 = vshrl.u32 %v795, 7
      %v797 = vsub.s32 2, %v796
      %v798 = vrot.slane %v694, %v797
      %v799 = vlaneseq
      %v800 = vshrl.u32 %v799, 7
      %v801 = vsub.s32 0, %v800
      %v802 = vrot.slane %v794, %v801
      %v803 = vlaneseq
      %v804 = vshrl.u32 %v803, 7
      %v805 = vsub.s32 0, %v804
      %v806 = vrot.slane %v798, %v805
      %vm807 = vcmp.eq.s32.totalorder %v697, %v802
      %vm808 = vcmp.eq.s32.totalorder %v697, %v806
      %vm809 = vcmp.eq.s32.totalorder %v700, %v802
      %vm810 = vcmp.eq.s32.totalorder %v700, %v806
      %vm811 = vcmp.eq.s32.totalorder %v703, %v802
      %vm812 = vcmp.eq.s32.totalorder %v703, %v806
      %vm813 = vcmp.eq.s32.totalorder %v706, %v802
      %vm814 = vcmp.eq.s32.totalorder %v706, %v806
      %vm815 = vcmp.eq.s32.totalorder %v709, %v802
      %vm816 = vcmp.eq.s32.totalorder %v709, %v806
      %vm817 = vcmp.eq.s32.totalorder %v712, %v802
      %vm818 = vcmp.eq.s32.totalorder %v712, %v806
      %vm819 = vcmp.eq.s32.totalorder %v715, %v802
      %vm820 = vcmp.eq.s32.totalorder %v715, %v806
      %vm821 = vcmp.eq.s32.totalorder %v718, %v802
      %vm822 = vcmp.eq.s32.totalorder %v718, %v806
      %vm823 = vcmp.eq.s32.totalorder %v721, %v802
      %vm824 = vcmp.eq.s32.totalorder %v721, %v806
      %vm825 = vcmp.eq.s32.totalorder %v724, %v802
      %vm826 = vcmp.eq.s32.totalorder %v724, %v806
      %vm827 = vcmp.eq.s32.totalorder %v727, %v802
      %vm828 = vcmp.eq.s32.totalorder %v727, %v806
      %vm829 = vcmp.eq.s32.totalorder %v730, %v802
      %vm830 = vcmp.eq.s32.totalorder %v730, %v806
      %vm831 = vcmp.eq.s32.totalorder %v733, %v802
      %vm832 = vcmp.eq.s32.totalorder %v733, %v806
      %vm833 = vcmp.eq.s32.totalorder %v736, %v802
      %vm834 = vcmp.eq.s32.totalorder %v736, %v806
      %vm835 = vcmp.eq.s32.totalorder %v739, %v802
      %vm836 = vcmp.eq.s32.totalorder %v739, %v806
      %vm837 = vcmp.eq.s32.totalorder %v742, %v802
      %vm838 = vcmp.eq.s32.totalorder %v742, %v806
      %vm839 = vcmp.eq.s32.totalorder %v745, %v802
      %vm840 = vcmp.eq.s32.totalorder %v745, %v806
      %vm841 = vcmp.eq.s32.totalorder %v748, %v802
      %vm842 = vcmp.eq.s32.totalorder %v748, %v806
      %vm843 = vcmp.eq.s32.totalorder %v751, %v802
      %vm844 = vcmp.eq.s32.totalorder %v751, %v806
      %vm845 = vcmp.eq.s32.totalorder %v754, %v802
      %vm846 = vcmp.eq.s32.totalorder %v754, %v806
      %vm847 = vcmp.eq.s32.totalorder %v757, %v802
      %vm848 = vcmp.eq.s32.totalorder %v757, %v806
      %vm849 = vcmp.eq.s32.totalorder %v760, %v802
      %vm850 = vcmp.eq.s32.totalorder %v760, %v806
      %vm851 = vcmp.eq.s32.totalorder %v763, %v802
      %vm852 = vcmp.eq.s32.totalorder %v763, %v806
      %vm853 = vcmp.eq.s32.totalorder %v766, %v802
      %vm854 = vcmp.eq.s32.totalorder %v766, %v806
      %vm855 = vcmp.eq.s32.totalorder %v769, %v802
      %vm856 = vcmp.eq.s32.totalorder %v769, %v806
      %vm857 = vcmp.eq.s32.totalorder %v772, %v802
      %vm858 = vcmp.eq.s32.totalorder %v772, %v806
      %vm859 = vcmp.eq.s32.totalorder %v775, %v802
      %vm860 = vcmp.eq.s32.totalorder %v775, %v806
      %vm861 = vcmp.eq.s32.totalorder %v778, %v802
      %vm862 = vcmp.eq.s32.totalorder %v778, %v806
      %vm863 = vcmp.eq.s32.totalorder %v781, %v802
      %vm864 = vcmp.eq.s32.totalorder %v781, %v806
      %vm865 = vcmp.eq.s32.totalorder %v784, %v802
      %vm866 = vcmp.eq.s32.totalorder %v784, %v806
      %vm867 = vcmp.eq.s32.totalorder %v787, %v802
      %vm868 = vcmp.eq.s32.totalorder %v787, %v806
      %vm869 = vcmp.eq.s32.totalorder %v790, %v802
      %vm870 = vcmp.eq.s32.totalorder %v790, %v806
      %871 = vset.pattern.permute.xlu0 1
      %872 = vperm.xlu0 %871, %v662
      %v873 = vpop.permute.xlu0 %872
      %874 = vset.pattern.permute.xlu0 1
      %875 = vperm.xlu0 %874, %v663
      %v876 = vpop.permute.xlu0 %875
      %877 = vset.pattern.permute.xlu0 1
      %878 = vperm.xlu0 %877, %v664
      %v879 = vpop.permute.xlu0 %878
      %880 = vset.pattern.permute.xlu0 1
      %881 = vperm.xlu0 %880, %v665
      %v882 = vpop.permute.xlu0 %881
      %883 = vset.pattern.permute.xlu0 1
      %884 = vperm.xlu0 %883, %v666
      %v885 = vpop.permute.xlu0 %884
      %886 = vset.pattern.permute.xlu0 1
      %887 = vperm.xlu0 %886, %v667
      %v888 = vpop.permute.xlu0 %887
      %889 = vset.pattern.permute.xlu0 1
      %890 = vperm.xlu0 %889, %v668
      %v891 = vpop.permute.xlu0 %890
      %892 = vset.pattern.permute.xlu0 1
      %893 = vperm.xlu0 %892, %v669
      %v894 = vpop.permute.xlu0 %893
      %895 = vset.pattern.permute.xlu0 1
      %896 = vperm.xlu0 %895, %v670
      %v897 = vpop.permute.xlu0 %896
      %898 = vset.pattern.permute.xlu0 1
      %899 = vperm.xlu0 %898, %v671
      %v900 = vpop.permute.xlu0 %899
      %901 = vset.pattern.permute.xlu0 1
      %902 = vperm.xlu0 %901, %v672
      %v903 = vpop.permute.xlu0 %902
      %904 = vset.pattern.permute.xlu0 1
      %905 = vperm.xlu0 %904, %v673
      %v906 = vpop.permute.xlu0 %905
      %907 = vset.pattern.permute.xlu0 1
      %908 = vperm.xlu0 %907, %v674
      %v909 = vpop.permute.xlu0 %908
      %910 = vset.pattern.permute.xlu0 1
      %911 = vperm.xlu0 %910, %v675
      %v912 = vpop.permute.xlu0 %911
      %913 = vset.pattern.permute.xlu0 1
      %914 = vperm.xlu0 %913, %v676
      %v915 = vpop.permute.xlu0 %914
      %916 = vset.pattern.permute.xlu0 1
      %917 = vperm.xlu0 %916, %v677
      %v918 = vpop.permute.xlu0 %917
      %919 = vset.pattern.permute.xlu0 1
      %920 = vperm.xlu0 %919, %v678
      %v921 = vpop.permute.xlu0 %920
      %922 = vset.pattern.permute.xlu0 1
      %923 = vperm.xlu0 %922, %v679
      %v924 = vpop.permute.xlu0 %923
      %925 = vset.pattern.permute.xlu0 1
      %926 = vperm.xlu0 %925, %v680
      %v927 = vpop.permute.xlu0 %926
      %928 = vset.pattern.permute.xlu0 1
      %929 = vperm.xlu0 %928, %v681
      %v930 = vpop.permute.xlu0 %929
      %931 = vset.pattern.permute.xlu0 1
      %932 = vperm.xlu0 %931, %v682
      %v933 = vpop.permute.xlu0 %932
      %934 = vset.pattern.permute.xlu0 1
      %935 = vperm.xlu0 %934, %v683
      %v936 = vpop.permute.xlu0 %935
      %937 = vset.pattern.permute.xlu0 1
      %938 = vperm.xlu0 %937, %v684
      %v939 = vpop.permute.xlu0 %938
      %940 = vset.pattern.permute.xlu0 1
      %941 = vperm.xlu0 %940, %v685
      %v942 = vpop.permute.xlu0 %941
      %943 = vset.pattern.permute.xlu0 1
      %944 = vperm.xlu0 %943, %v686
      %v945 = vpop.permute.xlu0 %944
      %946 = vset.pattern.permute.xlu0 1
      %947 = vperm.xlu0 %946, %v687
      %v948 = vpop.permute.xlu0 %947
      %949 = vset.pattern.permute.xlu0 1
      %950 = vperm.xlu0 %949, %v688
      %v951 = vpop.permute.xlu0 %950
      %952 = vset.pattern.permute.xlu0 1
      %953 = vperm.xlu0 %952, %v689
      %v954 = vpop.permute.xlu0 %953
      %955 = vset.pattern.permute.xlu0 1
      %956 = vperm.xlu0 %955, %v690
      %v957 = vpop.permute.xlu0 %956
      %958 = vset.pattern.permute.xlu0 1
      %959 = vperm.xlu0 %958, %v691
      %v960 = vpop.permute.xlu0 %959
      %961 = vset.pattern.permute.xlu0 1
      %962 = vperm.xlu0 %961, %v692
      %v963 = vpop.permute.xlu0 %962
      %964 = vset.pattern.permute.xlu0 1
      %965 = vperm.xlu0 %964, %v693
      %v966 = vpop.permute.xlu0 %965
      %v967 = vlaneseq
      %v968 = vshrl.u32 %v967, 7
      %v969 = vsub.s32 1, %v968
      %v970 = vrot.slane %v694, %v969
      %v971 = vlaneseq
      %v972 = vshrl.u32 %v971, 7
      %v973 = vsub.s32 3, %v972
      %v974 = vrot.slane %v694, %v973
      %v975 = vlaneseq
      %v976 = vshrl.u32 %v975, 7
      %v977 = vsub.s32 1, %v976
      %v978 = vrot.slane %v970, %v977
      %v979 = vlaneseq
      %v980 = vshrl.u32 %v979, 7
      %v981 = vsub.s32 1, %v980
      %v982 = vrot.slane %v974, %v981
      %vm983 = vcmp.eq.s32.totalorder %v873, %v978
      %vm984 = vcmp.eq.s32.totalorder %v873, %v982
      %vm985 = vcmp.eq.s32.totalorder %v876, %v978
      %vm986 = vcmp.eq.s32.totalorder %v876, %v982
      %vm987 = vcmp.eq.s32.totalorder %v879, %v978
      %vm988 = vcmp.eq.s32.totalorder %v879, %v982
      %vm989 = vcmp.eq.s32.totalorder %v882, %v978
      %vm990 = vcmp.eq.s32.totalorder %v882, %v982
      %vm991 = vcmp.eq.s32.totalorder %v885, %v978
      %vm992 = vcmp.eq.s32.totalorder %v885, %v982
      %vm993 = vcmp.eq.s32.totalorder %v888, %v978
      %vm994 = vcmp.eq.s32.totalorder %v888, %v982
      %vm995 = vcmp.eq.s32.totalorder %v891, %v978
      %vm996 = vcmp.eq.s32.totalorder %v891, %v982
      %vm997 = vcmp.eq.s32.totalorder %v894, %v978
      %vm998 = vcmp.eq.s32.totalorder %v894, %v982
      %vm999 = vcmp.eq.s32.totalorder %v897, %v978
      %vm1000 = vcmp.eq.s32.totalorder %v897, %v982
      %vm1001 = vcmp.eq.s32.totalorder %v900, %v978
      %vm1002 = vcmp.eq.s32.totalorder %v900, %v982
      %vm1003 = vcmp.eq.s32.totalorder %v903, %v978
      %vm1004 = vcmp.eq.s32.totalorder %v903, %v982
      %vm1005 = vcmp.eq.s32.totalorder %v906, %v978
      %vm1006 = vcmp.eq.s32.totalorder %v906, %v982
      %vm1007 = vcmp.eq.s32.totalorder %v909, %v978
      %vm1008 = vcmp.eq.s32.totalorder %v909, %v982
      %vm1009 = vcmp.eq.s32.totalorder %v912, %v978
      %vm1010 = vcmp.eq.s32.totalorder %v912, %v982
      %vm1011 = vcmp.eq.s32.totalorder %v915, %v978
      %vm1012 = vcmp.eq.s32.totalorder %v915, %v982
      %vm1013 = vcmp.eq.s32.totalorder %v918, %v978
      %vm1014 = vcmp.eq.s32.totalorder %v918, %v982
      %vm1015 = vcmp.eq.s32.totalorder %v921, %v978
      %vm1016 = vcmp.eq.s32.totalorder %v921, %v982
      %vm1017 = vcmp.eq.s32.totalorder %v924, %v978
      %vm1018 = vcmp.eq.s32.totalorder %v924, %v982
      %vm1019 = vcmp.eq.s32.totalorder %v927, %v978
      %vm1020 = vcmp.eq.s32.totalorder %v927, %v982
      %vm1021 = vcmp.eq.s32.totalorder %v930, %v978
      %vm1022 = vcmp.eq.s32.totalorder %v930, %v982
      %vm1023 = vcmp.eq.s32.totalorder %v933, %v978
      %vm1024 = vcmp.eq.s32.totalorder %v933, %v982
      %vm1025 = vcmp.eq.s32.totalorder %v936, %v978
      %vm1026 = vcmp.eq.s32.totalorder %v936, %v982
      %vm1027 = vcmp.eq.s32.totalorder %v939, %v978
      %vm1028 = vcmp.eq.s32.totalorder %v939, %v982
      %vm1029 = vcmp.eq.s32.totalorder %v942, %v978
      %vm1030 = vcmp.eq.s32.totalorder %v942, %v982
      %vm1031 = vcmp.eq.s32.totalorder %v945, %v978
      %vm1032 = vcmp.eq.s32.totalorder %v945, %v982
      %vm1033 = vcmp.eq.s32.totalorder %v948, %v978
      %vm1034 = vcmp.eq.s32.totalorder %v948, %v982
      %vm1035 = vcmp.eq.s32.totalorder %v951, %v978
      %vm1036 = vcmp.eq.s32.totalorder %v951, %v982
      %vm1037 = vcmp.eq.s32.totalorder %v954, %v978
      %vm1038 = vcmp.eq.s32.totalorder %v954, %v982
      %vm1039 = vcmp.eq.s32.totalorder %v957, %v978
      %vm1040 = vcmp.eq.s32.totalorder %v957, %v982
      %vm1041 = vcmp.eq.s32.totalorder %v960, %v978
      %vm1042 = vcmp.eq.s32.totalorder %v960, %v982
      %vm1043 = vcmp.eq.s32.totalorder %v963, %v978
      %vm1044 = vcmp.eq.s32.totalorder %v963, %v982
      %vm1045 = vcmp.eq.s32.totalorder %v966, %v978
      %vm1046 = vcmp.eq.s32.totalorder %v966, %v982
      %v1047 = vld [vmem:[%s3] sm:$0xff]
      %v1048 = vld [vmem:[%s4] sm:$0x1]
      %v1050 = vlaneseq
      %v1051 = vshrl.u32 %v1050, 7
      %v1052 = vsub.s32 0, %v1051
      %v1053 = vrot.slane %v1048, %v1052
      %vm1055 = vcmask 64512
      %v1057 = vsel %vm1055, %v630, 0
      %v1060 = vsel %vm1055, %v631, 0
      %v1063 = vsel %vm1055, %v632, 0
      %v1066 = vsel %vm1055, %v633, 0
      %v1069 = vsel %vm1055, %v634, 0
      %v1072 = vsel %vm1055, %v635, 0
      %v1075 = vsel %vm1055, %v636, 0
      %v1078 = vsel %vm1055, %v637, 0
      %v1081 = vsel %vm1055, %v638, 0
      %v1084 = vsel %vm1055, %v639, 0
      %v1087 = vsel %vm1055, %v640, 0
      %v1090 = vsel %vm1055, %v641, 0
      %v1093 = vsel %vm1055, %v642, 0
      %v1096 = vsel %vm1055, %v643, 0
      %v1099 = vsel %vm1055, %v644, 0
      %v1102 = vsel %vm1055, %v645, 0
      %v1105 = vsel %vm1055, %v646, 0
      %v1108 = vsel %vm1055, %v647, 0
      %v1111 = vsel %vm1055, %v648, 0
      %v1114 = vsel %vm1055, %v649, 0
      %v1117 = vsel %vm1055, %v650, 0
      %v1120 = vsel %vm1055, %v651, 0
      %v1123 = vsel %vm1055, %v652, 0
      %v1126 = vsel %vm1055, %v653, 0
      %v1129 = vsel %vm1055, %v654, 0
      %v1132 = vsel %vm1055, %v655, 0
      %v1135 = vsel %vm1055, %v656, 0
      %v1138 = vsel %vm1055, %v657, 0
      %v1141 = vsel %vm1055, %v658, 0
      %v1144 = vsel %vm1055, %v659, 0
      %v1147 = vsel %vm1055, %v660, 0
      %v1150 = vsel %vm1055, %v661, 0
      %1152 = vmatprep.subr.mxu0 0.0
      %1153 = vmatpush1.msra.mxu0 0.0
      %1154 = vmatprep.subr.mxu0 0.0
      %1155 = vmatpush1.msra.mxu0 0.0
      %1156 = vmatprep.subr.mxu0 0.0
      %1157 = vmatpush1.msra.mxu0 0.0
      %1158 = vmatprep.subr.mxu0 0.0
      %1159 = vmatpush1.msra.mxu0 0.0
      %1160 = vmatprep.subr.mxu0 0.0
      %1161 = vmatpush1.msra.mxu0 0.0
      %1162 = vmatprep.subr.mxu0 0.0
      %1163 = vmatpush1.msra.mxu0 0.0
      %1164 = vmatprep.subr.mxu0 0.0
      %1165 = vmatpush1.msra.mxu0 0.0
      %1166 = vmatprep.subr.mxu0 0.0
      %1167 = vmatpush1.msra.mxu0 0.0
      %1168 = vmatprep.subr.mxu0 0.0
      %1169 = vmatpush1.msra.mxu0 0.0
      %1170 = vmatprep.subr.mxu0 0.0
      %1171 = vmatpush1.msra.mxu0 0.0
      %1172 = vmatprep.subr.mxu0 0.0
      %1173 = vmatpush1.msra.mxu0 0.0
      %1174 = vmatprep.subr.mxu0 0.0
      %1175 = vmatpush1.msra.mxu0 0.0
      %1176 = vmatprep.subr.mxu0 0.0
      %1177 = vmatpush1.msra.mxu0 0.0
      %1178 = vmatprep.subr.mxu0 0.0
      %1179 = vmatpush1.msra.mxu0 0.0
      %1180 = vmatprep.subr.mxu0 0.0
      %1181 = vmatpush1.msra.mxu0 0.0
      %1182 = vmatprep.subr.mxu0 0.0
      %1183 = vmatpush1.msra.mxu0 %v1047
      %1184 = vmatprep.subr.mxu0 0.0
      %1185 = vmatpush2.msra.mxu0 0.0
      %1186 = vmatprep.subr.mxu0 0.0
      %1187 = vmatpush2.msra.mxu0 0.0
      %1188 = vmatprep.subr.mxu0 0.0
      %1189 = vmatpush2.msra.mxu0 0.0
      %1190 = vmatprep.subr.mxu0 0.0
      %1191 = vmatpush2.msra.mxu0 0.0
      %1192 = vmatprep.subr.mxu0 0.0
      %1193 = vmatpush2.msra.mxu0 0.0
      %1194 = vmatprep.subr.mxu0 0.0
      %1195 = vmatpush2.msra.mxu0 0.0
      %1196 = vmatprep.subr.mxu0 0.0
      %1197 = vmatpush2.msra.mxu0 0.0
      %1198 = vmatprep.subr.mxu0 0.0
      %1199 = vmatpush2.msra.mxu0 0.0
      %1200 = vmatprep.subr.mxu0 0.0
      %1201 = vmatpush2.msra.mxu0 0.0
      %1202 = vmatprep.subr.mxu0 0.0
      %1203 = vmatpush2.msra.mxu0 0.0
      %1204 = vmatprep.subr.mxu0 0.0
      %1205 = vmatpush2.msra.mxu0 0.0
      %1206 = vmatprep.subr.mxu0 0.0
      %1207 = vmatpush2.msra.mxu0 0.0
      %1208 = vmatprep.subr.mxu0 0.0
      %1209 = vmatpush2.msra.mxu0 0.0
      %1210 = vmatprep.subr.mxu0 0.0
      %1211 = vmatpush2.msra.mxu0 0.0
      %1212 = vmatprep.subr.mxu0 0.0
      %1213 = vmatpush2.msra.mxu0 0.0
      %1214 = vmatprep.subr.mxu0 0.0
      %1215 = vmatpush2.msra.mxu0 0.0
      %1216 = vmatprep.mubr.f32.mxu0 0.0
      %1217 = vmatmul.mubr.f32.gmra.mxu0 %v1057
      %v1218 = vpop.f32.mrf.mxu0
      %v1219 = vadd.f32 %v1053, %v1218
      %v1220 = vpop.f32.mrf.mxu0
      %1221 = vmatprep.mubr.f32.mxu0 0.0
      %1222 = vmatmul.mubr.f32.gmra.mxu0 %v1060
      %v1223 = vpop.f32.mrf.mxu0
      %v1224 = vadd.f32 %v1053, %v1223
      %v1225 = vpop.f32.mrf.mxu0
      %1226 = vmatprep.mubr.f32.mxu0 0.0
      %1227 = vmatmul.mubr.f32.gmra.mxu0 %v1063
      %v1228 = vpop.f32.mrf.mxu0
      %v1229 = vadd.f32 %v1053, %v1228
      %v1230 = vpop.f32.mrf.mxu0
      %1231 = vmatprep.mubr.f32.mxu0 0.0
      %1232 = vmatmul.mubr.f32.gmra.mxu0 %v1066
      %v1233 = vpop.f32.mrf.mxu0
      %v1234 = vadd.f32 %v1053, %v1233
      %v1235 = vpop.f32.mrf.mxu0
      %1236 = vmatprep.mubr.f32.mxu0 0.0
      %1237 = vmatmul.mubr.f32.gmra.mxu0 %v1069
      %v1238 = vpop.f32.mrf.mxu0
      %v1239 = vadd.f32 %v1053, %v1238
      %v1240 = vpop.f32.mrf.mxu0
      %1241 = vmatprep.mubr.f32.mxu0 0.0
      %1242 = vmatmul.mubr.f32.gmra.mxu0 %v1072
      %v1243 = vpop.f32.mrf.mxu0
      %v1244 = vadd.f32 %v1053, %v1243
      %v1245 = vpop.f32.mrf.mxu0
      %1246 = vmatprep.mubr.f32.mxu0 0.0
      %1247 = vmatmul.mubr.f32.gmra.mxu0 %v1075
      %v1248 = vpop.f32.mrf.mxu0
      %v1249 = vadd.f32 %v1053, %v1248
      %v1250 = vpop.f32.mrf.mxu0
      %1251 = vmatprep.mubr.f32.mxu0 0.0
      %1252 = vmatmul.mubr.f32.gmra.mxu0 %v1078
      %v1253 = vpop.f32.mrf.mxu0
      %v1254 = vadd.f32 %v1053, %v1253
      %v1255 = vpop.f32.mrf.mxu0
      %1256 = vmatprep.mubr.f32.mxu0 0.0
      %1257 = vmatmul.mubr.f32.gmra.mxu0 %v1081
      %v1258 = vpop.f32.mrf.mxu0
      %v1259 = vadd.f32 %v1053, %v1258
      %v1260 = vpop.f32.mrf.mxu0
      %1261 = vmatprep.mubr.f32.mxu0 0.0
      %1262 = vmatmul.mubr.f32.gmra.mxu0 %v1084
      %v1263 = vpop.f32.mrf.mxu0
      %v1264 = vadd.f32 %v1053, %v1263
      %v1265 = vpop.f32.mrf.mxu0
      %1266 = vmatprep.mubr.f32.mxu0 0.0
      %1267 = vmatmul.mubr.f32.gmra.mxu0 %v1087
      %v1268 = vpop.f32.mrf.mxu0
      %v1269 = vadd.f32 %v1053, %v1268
      %v1270 = vpop.f32.mrf.mxu0
      %1271 = vmatprep.mubr.f32.mxu0 0.0
      %1272 = vmatmul.mubr.f32.gmra.mxu0 %v1090
      %v1273 = vpop.f32.mrf.mxu0
      %v1274 = vadd.f32 %v1053, %v1273
      %v1275 = vpop.f32.mrf.mxu0
      %1276 = vmatprep.mubr.f32.mxu0 0.0
      %1277 = vmatmul.mubr.f32.gmra.mxu0 %v1093
      %v1278 = vpop.f32.mrf.mxu0
      %v1279 = vadd.f32 %v1053, %v1278
      %v1280 = vpop.f32.mrf.mxu0
      %1281 = vmatprep.mubr.f32.mxu0 0.0
      %1282 = vmatmul.mubr.f32.gmra.mxu0 %v1096
      %v1283 = vpop.f32.mrf.mxu0
      %v1284 = vadd.f32 %v1053, %v1283
      %v1285 = vpop.f32.mrf.mxu0
      %1286 = vmatprep.mubr.f32.mxu0 0.0
      %1287 = vmatmul.mubr.f32.gmra.mxu0 %v1099
      %v1288 = vpop.f32.mrf.mxu0
      %v1289 = vadd.f32 %v1053, %v1288
      %v1290 = vpop.f32.mrf.mxu0
      %1291 = vmatprep.mubr.f32.mxu0 0.0
      %1292 = vmatmul.mubr.f32.gmra.mxu0 %v1102
      %v1293 = vpop.f32.mrf.mxu0
      %v1294 = vadd.f32 %v1053, %v1293
      %v1295 = vpop.f32.mrf.mxu0
      %1296 = vmatprep.mubr.f32.mxu0 0.0
      %1297 = vmatmul.mubr.f32.gmra.mxu0 %v1105
      %v1298 = vpop.f32.mrf.mxu0
      %v1299 = vadd.f32 %v1053, %v1298
      %v1300 = vpop.f32.mrf.mxu0
      %1301 = vmatprep.mubr.f32.mxu0 0.0
      %1302 = vmatmul.mubr.f32.gmra.mxu0 %v1108
      %v1303 = vpop.f32.mrf.mxu0
      %v1304 = vadd.f32 %v1053, %v1303
      %v1305 = vpop.f32.mrf.mxu0
      %1306 = vmatprep.mubr.f32.mxu0 0.0
      %1307 = vmatmul.mubr.f32.gmra.mxu0 %v1111
      %v1308 = vpop.f32.mrf.mxu0
      %v1309 = vadd.f32 %v1053, %v1308
      %v1310 = vpop.f32.mrf.mxu0
      %1311 = vmatprep.mubr.f32.mxu0 0.0
      %1312 = vmatmul.mubr.f32.gmra.mxu0 %v1114
      %v1313 = vpop.f32.mrf.mxu0
      %v1314 = vadd.f32 %v1053, %v1313
      %v1315 = vpop.f32.mrf.mxu0
      %1316 = vmatprep.mubr.f32.mxu0 0.0
      %1317 = vmatmul.mubr.f32.gmra.mxu0 %v1117
      %v1318 = vpop.f32.mrf.mxu0
      %v1319 = vadd.f32 %v1053, %v1318
      %v1320 = vpop.f32.mrf.mxu0
      %1321 = vmatprep.mubr.f32.mxu0 0.0
      %1322 = vmatmul.mubr.f32.gmra.mxu0 %v1120
      %v1323 = vpop.f32.mrf.mxu0
      %v1324 = vadd.f32 %v1053, %v1323
      %v1325 = vpop.f32.mrf.mxu0
      %1326 = vmatprep.mubr.f32.mxu0 0.0
      %1327 = vmatmul.mubr.f32.gmra.mxu0 %v1123
      %v1328 = vpop.f32.mrf.mxu0
      %v1329 = vadd.f32 %v1053, %v1328
      %v1330 = vpop.f32.mrf.mxu0
      %1331 = vmatprep.mubr.f32.mxu0 0.0
      %1332 = vmatmul.mubr.f32.gmra.mxu0 %v1126
      %v1333 = vpop.f32.mrf.mxu0
      %v1334 = vadd.f32 %v1053, %v1333
      %v1335 = vpop.f32.mrf.mxu0
      %1336 = vmatprep.mubr.f32.mxu0 0.0
      %1337 = vmatmul.mubr.f32.gmra.mxu0 %v1129
      %v1338 = vpop.f32.mrf.mxu0
      %v1339 = vadd.f32 %v1053, %v1338
      %v1340 = vpop.f32.mrf.mxu0
      %1341 = vmatprep.mubr.f32.mxu0 0.0
      %1342 = vmatmul.mubr.f32.gmra.mxu0 %v1132
      %v1343 = vpop.f32.mrf.mxu0
      %v1344 = vadd.f32 %v1053, %v1343
      %v1345 = vpop.f32.mrf.mxu0
      %1346 = vmatprep.mubr.f32.mxu0 0.0
      %1347 = vmatmul.mubr.f32.gmra.mxu0 %v1135
      %v1348 = vpop.f32.mrf.mxu0
      %v1349 = vadd.f32 %v1053, %v1348
      %v1350 = vpop.f32.mrf.mxu0
      %1351 = vmatprep.mubr.f32.mxu0 0.0
      %1352 = vmatmul.mubr.f32.gmra.mxu0 %v1138
      %v1353 = vpop.f32.mrf.mxu0
      %v1354 = vadd.f32 %v1053, %v1353
      %v1355 = vpop.f32.mrf.mxu0
      %1356 = vmatprep.mubr.f32.mxu0 0.0
      %1357 = vmatmul.mubr.f32.gmra.mxu0 %v1141
      %v1358 = vpop.f32.mrf.mxu0
      %v1359 = vadd.f32 %v1053, %v1358
      %v1360 = vpop.f32.mrf.mxu0
      %1361 = vmatprep.mubr.f32.mxu0 0.0
      %1362 = vmatmul.mubr.f32.gmra.mxu0 %v1144
      %v1363 = vpop.f32.mrf.mxu0
      %v1364 = vadd.f32 %v1053, %v1363
      %v1365 = vpop.f32.mrf.mxu0
      %1366 = vmatprep.mubr.f32.mxu0 0.0
      %1367 = vmatmul.mubr.f32.gmra.mxu0 %v1147
      %v1368 = vpop.f32.mrf.mxu0
      %v1369 = vadd.f32 %v1053, %v1368
      %v1370 = vpop.f32.mrf.mxu0
      %1371 = vmatprep.mubr.f32.mxu0 0.0
      %1372 = vmatmul.mubr.f32.gmra.mxu0 %v1150
      %v1373 = vpop.f32.mrf.mxu0
      %v1374 = vadd.f32 %v1053, %v1373
      %v1375 = vpop.f32.mrf.mxu0
      %1376 = vdwg.mxu0
      %vm1377 = vcmp.gt.f32.partialorder %v1219, 0.0
      %vm1378 = vcmp.gt.f32.partialorder %v1224, 0.0
      %vm1379 = vcmp.gt.f32.partialorder %v1229, 0.0
      %vm1380 = vcmp.gt.f32.partialorder %v1234, 0.0
      %vm1381 = vcmp.gt.f32.partialorder %v1239, 0.0
      %vm1382 = vcmp.gt.f32.partialorder %v1244, 0.0
      %vm1383 = vcmp.gt.f32.partialorder %v1249, 0.0
      %vm1384 = vcmp.gt.f32.partialorder %v1254, 0.0
      %vm1385 = vcmp.gt.f32.partialorder %v1259, 0.0
      %vm1386 = vcmp.gt.f32.partialorder %v1264, 0.0
      %vm1387 = vcmp.gt.f32.partialorder %v1269, 0.0
      %vm1388 = vcmp.gt.f32.partialorder %v1274, 0.0
      %vm1389 = vcmp.gt.f32.partialorder %v1279, 0.0
      %vm1390 = vcmp.gt.f32.partialorder %v1284, 0.0
      %vm1391 = vcmp.gt.f32.partialorder %v1289, 0.0
      %vm1392 = vcmp.gt.f32.partialorder %v1294, 0.0
      %vm1393 = vcmp.gt.f32.partialorder %v1299, 0.0
      %vm1394 = vcmp.gt.f32.partialorder %v1304, 0.0
      %vm1395 = vcmp.gt.f32.partialorder %v1309, 0.0
      %vm1396 = vcmp.gt.f32.partialorder %v1314, 0.0
      %vm1397 = vcmp.gt.f32.partialorder %v1319, 0.0
      %vm1398 = vcmp.gt.f32.partialorder %v1324, 0.0
      %vm1399 = vcmp.gt.f32.partialorder %v1329, 0.0
      %vm1400 = vcmp.gt.f32.partialorder %v1334, 0.0
      %vm1401 = vcmp.gt.f32.partialorder %v1339, 0.0
      %vm1402 = vcmp.gt.f32.partialorder %v1344, 0.0
      %vm1403 = vcmp.gt.f32.partialorder %v1349, 0.0
      %vm1404 = vcmp.gt.f32.partialorder %v1354, 0.0
      %vm1405 = vcmp.gt.f32.partialorder %v1359, 0.0
      %vm1406 = vcmp.gt.f32.partialorder %v1364, 0.0
      %vm1407 = vcmp.gt.f32.partialorder %v1369, 0.0
      %vm1408 = vcmp.gt.f32.partialorder %v1374, 0.0
      %v1409 = vmul.f32 %v1219, 0.01
      %v1410 = vmul.f32 %v1224, 0.01
      %v1411 = vmul.f32 %v1229, 0.01
      %v1412 = vmul.f32 %v1234, 0.01
      %v1413 = vmul.f32 %v1239, 0.01
      %v1414 = vmul.f32 %v1244, 0.01
      %v1415 = vmul.f32 %v1249, 0.01
      %v1416 = vmul.f32 %v1254, 0.01
      %v1417 = vmul.f32 %v1259, 0.01
      %v1418 = vmul.f32 %v1264, 0.01
      %v1419 = vmul.f32 %v1269, 0.01
      %v1420 = vmul.f32 %v1274, 0.01
      %v1421 = vmul.f32 %v1279, 0.01
      %v1422 = vmul.f32 %v1284, 0.01
      %v1423 = vmul.f32 %v1289, 0.01
      %v1424 = vmul.f32 %v1294, 0.01
      %v1425 = vmul.f32 %v1299, 0.01
      %v1426 = vmul.f32 %v1304, 0.01
      %v1427 = vmul.f32 %v1309, 0.01
      %v1428 = vmul.f32 %v1314, 0.01
      %v1429 = vmul.f32 %v1319, 0.01
      %v1430 = vmul.f32 %v1324, 0.01
      %v1431 = vmul.f32 %v1329, 0.01
      %v1432 = vmul.f32 %v1334, 0.01
      %v1433 = vmul.f32 %v1339, 0.01
      %v1434 = vmul.f32 %v1344, 0.01
      %v1435 = vmul.f32 %v1349, 0.01
      %v1436 = vmul.f32 %v1354, 0.01
      %v1437 = vmul.f32 %v1359, 0.01
      %v1438 = vmul.f32 %v1364, 0.01
      %v1439 = vmul.f32 %v1369, 0.01
      %v1440 = vmul.f32 %v1374, 0.01
      %v1441 = vsel %vm1377, %v1219, %v1409
      %v1442 = vsel %vm1378, %v1224, %v1410
      %v1443 = vsel %vm1379, %v1229, %v1411
      %v1444 = vsel %vm1380, %v1234, %v1412
      %v1445 = vsel %vm1381, %v1239, %v1413
      %v1446 = vsel %vm1382, %v1244, %v1414
      %v1447 = vsel %vm1383, %v1249, %v1415
      %v1448 = vsel %vm1384, %v1254, %v1416
      %v1449 = vsel %vm1385, %v1259, %v1417
      %v1450 = vsel %vm1386, %v1264, %v1418
      %v1451 = vsel %vm1387, %v1269, %v1419
      %v1452 = vsel %vm1388, %v1274, %v1420
      %v1453 = vsel %vm1389, %v1279, %v1421
      %v1454 = vsel %vm1390, %v1284, %v1422
      %v1455 = vsel %vm1391, %v1289, %v1423
      %v1456 = vsel %vm1392, %v1294, %v1424
      %v1457 = vsel %vm1393, %v1299, %v1425
      %v1458 = vsel %vm1394, %v1304, %v1426
      %v1459 = vsel %vm1395, %v1309, %v1427
      %v1460 = vsel %vm1396, %v1314, %v1428
      %v1461 = vsel %vm1397, %v1319, %v1429
      %v1462 = vsel %vm1398, %v1324, %v1430
      %v1463 = vsel %vm1399, %v1329, %v1431
      %v1464 = vsel %vm1400, %v1334, %v1432
      %v1465 = vsel %vm1401, %v1339, %v1433
      %v1466 = vsel %vm1402, %v1344, %v1434
      %v1467 = vsel %vm1403, %v1349, %v1435
      %v1468 = vsel %vm1404, %v1354, %v1436
      %v1469 = vsel %vm1405, %v1359, %v1437
      %v1470 = vsel %vm1406, %v1364, %v1438
      %v1471 = vsel %vm1407, %v1369, %v1439
      %v1472 = vsel %vm1408, %v1374, %v1440
      %v1473 = vld [vmem:[%s5] sm:$0xf]
      %v1474 = vld [vmem:[%s6] sm:$0x1]
      %v1476 = vlaneseq
      %v1477 = vshrl.u32 %v1476, 7
      %v1478 = vsub.s32 0, %v1477
      %v1479 = vrot.slane %v1474, %v1478
      %vm1481 = vcmask 31744
      %v1483 = vsel %vm1481, %v1441, 0
      %v1486 = vsel %vm1481, %v1442, 0
      %v1489 = vsel %vm1481, %v1443, 0
      %v1492 = vsel %vm1481, %v1444, 0
      %v1495 = vsel %vm1481, %v1445, 0
      %v1498 = vsel %vm1481, %v1446, 0
      %v1501 = vsel %vm1481, %v1447, 0
      %v1504 = vsel %vm1481, %v1448, 0
      %v1507 = vsel %vm1481, %v1449, 0
      %v1510 = vsel %vm1481, %v1450, 0
      %v1513 = vsel %vm1481, %v1451, 0
      %v1516 = vsel %vm1481, %v1452, 0
      %v1519 = vsel %vm1481, %v1453, 0
      %v1522 = vsel %vm1481, %v1454, 0
      %v1525 = vsel %vm1481, %v1455, 0
      %v1528 = vsel %vm1481, %v1456, 0
      %v1531 = vsel %vm1481, %v1457, 0
      %v1534 = vsel %vm1481, %v1458, 0
      %v1537 = vsel %vm1481, %v1459, 0
      %v1540 = vsel %vm1481, %v1460, 0
      %v1543 = vsel %vm1481, %v1461, 0
      %v1546 = vsel %vm1481, %v1462, 0
      %v1549 = vsel %vm1481, %v1463, 0
      %v1552 = vsel %vm1481, %v1464, 0
      %v1555 = vsel %vm1481, %v1465, 0
      %v1558 = vsel %vm1481, %v1466, 0
      %v1561 = vsel %vm1481, %v1467, 0
      %v1564 = vsel %vm1481, %v1468, 0
      %v1567 = vsel %vm1481, %v1469, 0
      %v1570 = vsel %vm1481, %v1470, 0
      %v1573 = vsel %vm1481, %v1471, 0
      %v1576 = vsel %vm1481, %v1472, 0
      %vm1578 = vcmask 1043456
      %v1580 = vsel %vm1578, %v1473, 0
      %1582 = vmatprep.subr.mxu0 0.0
      %1583 = vmatpush1.msra.mxu0 0.0
      %1584 = vmatprep.subr.mxu0 0.0
      %1585 = vmatpush1.msra.mxu0 0.0
      %1586 = vmatprep.subr.mxu0 0.0
      %1587 = vmatpush1.msra.mxu0 0.0
      %1588 = vmatprep.subr.mxu0 0.0
      %1589 = vmatpush1.msra.mxu0 0.0
      %1590 = vmatprep.subr.mxu0 0.0
      %1591 = vmatpush1.msra.mxu0 0.0
      %1592 = vmatprep.subr.mxu0 0.0
      %1593 = vmatpush1.msra.mxu0 0.0
      %1594 = vmatprep.subr.mxu0 0.0
      %1595 = vmatpush1.msra.mxu0 0.0
      %1596 = vmatprep.subr.mxu0 0.0
      %1597 = vmatpush1.msra.mxu0 0.0
      %1598 = vmatprep.subr.mxu0 0.0
      %1599 = vmatpush1.msra.mxu0 0.0
      %1600 = vmatprep.subr.mxu0 0.0
      %1601 = vmatpush1.msra.mxu0 0.0
      %1602 = vmatprep.subr.mxu0 0.0
      %1603 = vmatpush1.msra.mxu0 0.0
      %1604 = vmatprep.subr.mxu0 0.0
      %1605 = vmatpush1.msra.mxu0 0.0
      %1606 = vmatprep.subr.mxu0 0.0
      %1607 = vmatpush1.msra.mxu0 0.0
      %1608 = vmatprep.subr.mxu0 0.0
      %1609 = vmatpush1.msra.mxu0 0.0
      %1610 = vmatprep.subr.mxu0 0.0
      %1611 = vmatpush1.msra.mxu0 0.0
      %1612 = vmatprep.subr.mxu0 0.0
      %1613 = vmatpush1.msra.mxu0 %v1580
      %1614 = vmatprep.subr.mxu0 0.0
      %1615 = vmatpush2.msra.mxu0 0.0
      %1616 = vmatprep.subr.mxu0 0.0
      %1617 = vmatpush2.msra.mxu0 0.0
      %1618 = vmatprep.subr.mxu0 0.0
      %1619 = vmatpush2.msra.mxu0 0.0
      %1620 = vmatprep.subr.mxu0 0.0
      %1621 = vmatpush2.msra.mxu0 0.0
      %1622 = vmatprep.subr.mxu0 0.0
      %1623 = vmatpush2.msra.mxu0 0.0
      %1624 = vmatprep.subr.mxu0 0.0
      %1625 = vmatpush2.msra.mxu0 0.0
      %1626 = vmatprep.subr.mxu0 0.0
      %1627 = vmatpush2.msra.mxu0 0.0
      %1628 = vmatprep.subr.mxu0 0.0
      %1629 = vmatpush2.msra.mxu0 0.0
      %1630 = vmatprep.subr.mxu0 0.0
      %1631 = vmatpush2.msra.mxu0 0.0
      %1632 = vmatprep.subr.mxu0 0.0
      %1633 = vmatpush2.msra.mxu0 0.0
      %1634 = vmatprep.subr.mxu0 0.0
      %1635 = vmatpush2.msra.mxu0 0.0
      %1636 = vmatprep.subr.mxu0 0.0
      %1637 = vmatpush2.msra.mxu0 0.0
      %1638 = vmatprep.subr.mxu0 0.0
      %1639 = vmatpush2.msra.mxu0 0.0
      %1640 = vmatprep.subr.mxu0 0.0
      %1641 = vmatpush2.msra.mxu0 0.0
      %1642 = vmatprep.subr.mxu0 0.0
      %1643 = vmatpush2.msra.mxu0 0.0
      %1644 = vmatprep.subr.mxu0 0.0
      %1645 = vmatpush2.msra.mxu0 0.0
      %1646 = vmatprep.mubr.f32.mxu0 0.0
      %1647 = vmatmul.mubr.f32.gmra.mxu0 %v1483
      %v1648 = vpop.f32.mrf.mxu0
      %v1649 = vadd.f32 %v1479, %v1648
      %v1650 = vpop.f32.mrf.mxu0
      %1651 = vmatprep.mubr.f32.mxu0 0.0
      %1652 = vmatmul.mubr.f32.gmra.mxu0 %v1486
      %v1653 = vpop.f32.mrf.mxu0
      %v1654 = vadd.f32 %v1479, %v1653
      %v1655 = vpop.f32.mrf.mxu0
      %1656 = vmatprep.mubr.f32.mxu0 0.0
      %1657 = vmatmul.mubr.f32.gmra.mxu0 %v1489
      %v1658 = vpop.f32.mrf.mxu0
      %v1659 = vadd.f32 %v1479, %v1658
      %v1660 = vpop.f32.mrf.mxu0
      %1661 = vmatprep.mubr.f32.mxu0 0.0
      %1662 = vmatmul.mubr.f32.gmra.mxu0 %v1492
      %v1663 = vpop.f32.mrf.mxu0
      %v1664 = vadd.f32 %v1479, %v1663
      %v1665 = vpop.f32.mrf.mxu0
      %1666 = vmatprep.mubr.f32.mxu0 0.0
      %1667 = vmatmul.mubr.f32.gmra.mxu0 %v1495
      %v1668 = vpop.f32.mrf.mxu0
      %v1669 = vadd.f32 %v1479, %v1668
      %v1670 = vpop.f32.mrf.mxu0
      %1671 = vmatprep.mubr.f32.mxu0 0.0
      %1672 = vmatmul.mubr.f32.gmra.mxu0 %v1498
      %v1673 = vpop.f32.mrf.mxu0
      %v1674 = vadd.f32 %v1479, %v1673
      %v1675 = vpop.f32.mrf.mxu0
      %1676 = vmatprep.mubr.f32.mxu0 0.0
      %1677 = vmatmul.mubr.f32.gmra.mxu0 %v1501
      %v1678 = vpop.f32.mrf.mxu0
      %v1679 = vadd.f32 %v1479, %v1678
      %v1680 = vpop.f32.mrf.mxu0
      %1681 = vmatprep.mubr.f32.mxu0 0.0
      %1682 = vmatmul.mubr.f32.gmra.mxu0 %v1504
      %v1683 = vpop.f32.mrf.mxu0
      %v1684 = vadd.f32 %v1479, %v1683
      %v1685 = vpop.f32.mrf.mxu0
      %1686 = vmatprep.mubr.f32.mxu0 0.0
      %1687 = vmatmul.mubr.f32.gmra.mxu0 %v1507
      %v1688 = vpop.f32.mrf.mxu0
      %v1689 = vadd.f32 %v1479, %v1688
      %v1690 = vpop.f32.mrf.mxu0
      %1691 = vmatprep.mubr.f32.mxu0 0.0
      %1692 = vmatmul.mubr.f32.gmra.mxu0 %v1510
      %v1693 = vpop.f32.mrf.mxu0
      %v1694 = vadd.f32 %v1479, %v1693
      %v1695 = vpop.f32.mrf.mxu0
      %1696 = vmatprep.mubr.f32.mxu0 0.0
      %1697 = vmatmul.mubr.f32.gmra.mxu0 %v1513
      %v1698 = vpop.f32.mrf.mxu0
      %v1699 = vadd.f32 %v1479, %v1698
      %v1700 = vpop.f32.mrf.mxu0
      %1701 = vmatprep.mubr.f32.mxu0 0.0
      %1702 = vmatmul.mubr.f32.gmra.mxu0 %v1516
      %v1703 = vpop.f32.mrf.mxu0
      %v1704 = vadd.f32 %v1479, %v1703
      %v1705 = vpop.f32.mrf.mxu0
      %1706 = vmatprep.mubr.f32.mxu0 0.0
      %1707 = vmatmul.mubr.f32.gmra.mxu0 %v1519
      %v1708 = vpop.f32.mrf.mxu0
      %v1709 = vadd.f32 %v1479, %v1708
      %v1710 = vpop.f32.mrf.mxu0
      %1711 = vmatprep.mubr.f32.mxu0 0.0
      %1712 = vmatmul.mubr.f32.gmra.mxu0 %v1522
      %v1713 = vpop.f32.mrf.mxu0
      %v1714 = vadd.f32 %v1479, %v1713
      %v1715 = vpop.f32.mrf.mxu0
      %1716 = vmatprep.mubr.f32.mxu0 0.0
      %1717 = vmatmul.mubr.f32.gmra.mxu0 %v1525
      %v1718 = vpop.f32.mrf.mxu0
      %v1719 = vadd.f32 %v1479, %v1718
      %v1720 = vpop.f32.mrf.mxu0
      %1721 = vmatprep.mubr.f32.mxu0 0.0
      %1722 = vmatmul.mubr.f32.gmra.mxu0 %v1528
      %v1723 = vpop.f32.mrf.mxu0
      %v1724 = vadd.f32 %v1479, %v1723
      %v1725 = vpop.f32.mrf.mxu0
      %1726 = vmatprep.mubr.f32.mxu0 0.0
      %1727 = vmatmul.mubr.f32.gmra.mxu0 %v1531
      %v1728 = vpop.f32.mrf.mxu0
      %v1729 = vadd.f32 %v1479, %v1728
      %v1730 = vpop.f32.mrf.mxu0
      %1731 = vmatprep.mubr.f32.mxu0 0.0
      %1732 = vmatmul.mubr.f32.gmra.mxu0 %v1534
      %v1733 = vpop.f32.mrf.mxu0
      %v1734 = vadd.f32 %v1479, %v1733
      %v1735 = vpop.f32.mrf.mxu0
      %1736 = vmatprep.mubr.f32.mxu0 0.0
      %1737 = vmatmul.mubr.f32.gmra.mxu0 %v1537
      %v1738 = vpop.f32.mrf.mxu0
      %v1739 = vadd.f32 %v1479, %v1738
      %v1740 = vpop.f32.mrf.mxu0
      %1741 = vmatprep.mubr.f32.mxu0 0.0
      %1742 = vmatmul.mubr.f32.gmra.mxu0 %v1540
      %v1743 = vpop.f32.mrf.mxu0
      %v1744 = vadd.f32 %v1479, %v1743
      %v1745 = vpop.f32.mrf.mxu0
      %1746 = vmatprep.mubr.f32.mxu0 0.0
      %1747 = vmatmul.mubr.f32.gmra.mxu0 %v1543
      %v1748 = vpop.f32.mrf.mxu0
      %v1749 = vadd.f32 %v1479, %v1748
      %v1750 = vpop.f32.mrf.mxu0
      %1751 = vmatprep.mubr.f32.mxu0 0.0
      %1752 = vmatmul.mubr.f32.gmra.mxu0 %v1546
      %v1753 = vpop.f32.mrf.mxu0
      %v1754 = vadd.f32 %v1479, %v1753
      %v1755 = vpop.f32.mrf.mxu0
      %1756 = vmatprep.mubr.f32.mxu0 0.0
      %1757 = vmatmul.mubr.f32.gmra.mxu0 %v1549
      %v1758 = vpop.f32.mrf.mxu0
      %v1759 = vadd.f32 %v1479, %v1758
      %v1760 = vpop.f32.mrf.mxu0
      %1761 = vmatprep.mubr.f32.mxu0 0.0
      %1762 = vmatmul.mubr.f32.gmra.mxu0 %v1552
      %v1763 = vpop.f32.mrf.mxu0
      %v1764 = vadd.f32 %v1479, %v1763
      %v1765 = vpop.f32.mrf.mxu0
      %1766 = vmatprep.mubr.f32.mxu0 0.0
      %1767 = vmatmul.mubr.f32.gmra.mxu0 %v1555
      %v1768 = vpop.f32.mrf.mxu0
      %v1769 = vadd.f32 %v1479, %v1768
      %v1770 = vpop.f32.mrf.mxu0
      %1771 = vmatprep.mubr.f32.mxu0 0.0
      %1772 = vmatmul.mubr.f32.gmra.mxu0 %v1558
      %v1773 = vpop.f32.mrf.mxu0
      %v1774 = vadd.f32 %v1479, %v1773
      %v1775 = vpop.f32.mrf.mxu0
      %1776 = vmatprep.mubr.f32.mxu0 0.0
      %1777 = vmatmul.mubr.f32.gmra.mxu0 %v1561
      %v1778 = vpop.f32.mrf.mxu0
      %v1779 = vadd.f32 %v1479, %v1778
      %v1780 = vpop.f32.mrf.mxu0
      %1781 = vmatprep.mubr.f32.mxu0 0.0
      %1782 = vmatmul.mubr.f32.gmra.mxu0 %v1564
      %v1783 = vpop.f32.mrf.mxu0
      %v1784 = vadd.f32 %v1479, %v1783
      %v1785 = vpop.f32.mrf.mxu0
      %1786 = vmatprep.mubr.f32.mxu0 0.0
      %1787 = vmatmul.mubr.f32.gmra.mxu0 %v1567
      %v1788 = vpop.f32.mrf.mxu0
      %v1789 = vadd.f32 %v1479, %v1788
      %v1790 = vpop.f32.mrf.mxu0
      %1791 = vmatprep.mubr.f32.mxu0 0.0
      %1792 = vmatmul.mubr.f32.gmra.mxu0 %v1570
      %v1793 = vpop.f32.mrf.mxu0
      %v1794 = vadd.f32 %v1479, %v1793
      %v1795 = vpop.f32.mrf.mxu0
      %1796 = vmatprep.mubr.f32.mxu0 0.0
      %1797 = vmatmul.mubr.f32.gmra.mxu0 %v1573
      %v1798 = vpop.f32.mrf.mxu0
      %v1799 = vadd.f32 %v1479, %v1798
      %v1800 = vpop.f32.mrf.mxu0
      %1801 = vmatprep.mubr.f32.mxu0 0.0
      %1802 = vmatmul.mubr.f32.gmra.mxu0 %v1576
      %v1803 = vpop.f32.mrf.mxu0
      %v1804 = vadd.f32 %v1479, %v1803
      %v1805 = vpop.f32.mrf.mxu0
      %1806 = vdwg.mxu0
      %vm1807 = vcmp.gt.f32.partialorder %v1649, 0.0
      %vm1808 = vcmp.gt.f32.partialorder %v1654, 0.0
      %vm1809 = vcmp.gt.f32.partialorder %v1659, 0.0
      %vm1810 = vcmp.gt.f32.partialorder %v1664, 0.0
      %vm1811 = vcmp.gt.f32.partialorder %v1669, 0.0
      %vm1812 = vcmp.gt.f32.partialorder %v1674, 0.0
      %vm1813 = vcmp.gt.f32.partialorder %v1679, 0.0
      %vm1814 = vcmp.gt.f32.partialorder %v1684, 0.0
      %vm1815 = vcmp.gt.f32.partialorder %v1689, 0.0
      %vm1816 = vcmp.gt.f32.partialorder %v1694, 0.0
      %vm1817 = vcmp.gt.f32.partialorder %v1699, 0.0
      %vm1818 = vcmp.gt.f32.partialorder %v1704, 0.0
      %vm1819 = vcmp.gt.f32.partialorder %v1709, 0.0
      %vm1820 = vcmp.gt.f32.partialorder %v1714, 0.0
      %vm1821 = vcmp.gt.f32.partialorder %v1719, 0.0
      %vm1822 = vcmp.gt.f32.partialorder %v1724, 0.0
      %vm1823 = vcmp.gt.f32.partialorder %v1729, 0.0
      %vm1824 = vcmp.gt.f32.partialorder %v1734, 0.0
      %vm1825 = vcmp.gt.f32.partialorder %v1739, 0.0
      %vm1826 = vcmp.gt.f32.partialorder %v1744, 0.0
      %vm1827 = vcmp.gt.f32.partialorder %v1749, 0.0
      %vm1828 = vcmp.gt.f32.partialorder %v1754, 0.0
      %vm1829 = vcmp.gt.f32.partialorder %v1759, 0.0
      %vm1830 = vcmp.gt.f32.partialorder %v1764, 0.0
      %vm1831 = vcmp.gt.f32.partialorder %v1769, 0.0
      %vm1832 = vcmp.gt.f32.partialorder %v1774, 0.0
      %vm1833 = vcmp.gt.f32.partialorder %v1779, 0.0
      %vm1834 = vcmp.gt.f32.partialorder %v1784, 0.0
      %vm1835 = vcmp.gt.f32.partialorder %v1789, 0.0
      %vm1836 = vcmp.gt.f32.partialorder %v1794, 0.0
      %vm1837 = vcmp.gt.f32.partialorder %v1799, 0.0
      %vm1838 = vcmp.gt.f32.partialorder %v1804, 0.0
      %v1839 = vmul.f32 %v1649, 0.01
      %v1840 = vmul.f32 %v1654, 0.01
      %v1841 = vmul.f32 %v1659, 0.01
      %v1842 = vmul.f32 %v1664, 0.01
      %v1843 = vmul.f32 %v1669, 0.01
      %v1844 = vmul.f32 %v1674, 0.01
      %v1845 = vmul.f32 %v1679, 0.01
      %v1846 = vmul.f32 %v1684, 0.01
      %v1847 = vmul.f32 %v1689, 0.01
      %v1848 = vmul.f32 %v1694, 0.01
      %v1849 = vmul.f32 %v1699, 0.01
      %v1850 = vmul.f32 %v1704, 0.01
      %v1851 = vmul.f32 %v1709, 0.01
      %v1852 = vmul.f32 %v1714, 0.01
      %v1853 = vmul.f32 %v1719, 0.01
      %v1854 = vmul.f32 %v1724, 0.01
      %v1855 = vmul.f32 %v1729, 0.01
      %v1856 = vmul.f32 %v1734, 0.01
      %v1857 = vmul.f32 %v1739, 0.01
      %v1858 = vmul.f32 %v1744, 0.01
      %v1859 = vmul.f32 %v1749, 0.01
      %v1860 = vmul.f32 %v1754, 0.01
      %v1861 = vmul.f32 %v1759, 0.01
      %v1862 = vmul.f32 %v1764, 0.01
      %v1863 = vmul.f32 %v1769, 0.01
      %v1864 = vmul.f32 %v1774, 0.01
      %v1865 = vmul.f32 %v1779, 0.01
      %v1866 = vmul.f32 %v1784, 0.01
      %v1867 = vmul.f32 %v1789, 0.01
      %v1868 = vmul.f32 %v1794, 0.01
      %v1869 = vmul.f32 %v1799, 0.01
      %v1870 = vmul.f32 %v1804, 0.01
      %v1871 = vsel %vm1807, %v1649, %v1839
      %v1872 = vsel %vm1808, %v1654, %v1840
      %v1873 = vsel %vm1809, %v1659, %v1841
      %v1874 = vsel %vm1810, %v1664, %v1842
      %v1875 = vsel %vm1811, %v1669, %v1843
      %v1876 = vsel %vm1812, %v1674, %v1844
      %v1877 = vsel %vm1813, %v1679, %v1845
      %v1878 = vsel %vm1814, %v1684, %v1846
      %v1879 = vsel %vm1815, %v1689, %v1847
      %v1880 = vsel %vm1816, %v1694, %v1848
      %v1881 = vsel %vm1817, %v1699, %v1849
      %v1882 = vsel %vm1818, %v1704, %v1850
      %v1883 = vsel %vm1819, %v1709, %v1851
      %v1884 = vsel %vm1820, %v1714, %v1852
      %v1885 = vsel %vm1821, %v1719, %v1853
      %v1886 = vsel %vm1822, %v1724, %v1854
      %v1887 = vsel %vm1823, %v1729, %v1855
      %v1888 = vsel %vm1824, %v1734, %v1856
      %v1889 = vsel %vm1825, %v1739, %v1857
      %v1890 = vsel %vm1826, %v1744, %v1858
      %v1891 = vsel %vm1827, %v1749, %v1859
      %v1892 = vsel %vm1828, %v1754, %v1860
      %v1893 = vsel %vm1829, %v1759, %v1861
      %v1894 = vsel %vm1830, %v1764, %v1862
      %v1895 = vsel %vm1831, %v1769, %v1863
      %v1896 = vsel %vm1832, %v1774, %v1864
      %v1897 = vsel %vm1833, %v1779, %v1865
      %v1898 = vsel %vm1834, %v1784, %v1866
      %v1899 = vsel %vm1835, %v1789, %v1867
      %v1900 = vsel %vm1836, %v1794, %v1868
      %v1901 = vsel %vm1837, %v1799, %v1869
      %v1902 = vsel %vm1838, %v1804, %v1870
      %v1903 = vld [vmem:[%s7] sm:$0xff]
      %1904 = vmatprep.subr.mxu0 0.0
      %1905 = vmatpush1.msra.mxu0 0.0
      %1906 = vmatprep.subr.mxu0 0.0
      %1907 = vmatpush1.msra.mxu0 0.0
      %1908 = vmatprep.subr.mxu0 0.0
      %1909 = vmatpush1.msra.mxu0 0.0
      %1910 = vmatprep.subr.mxu0 0.0
      %1911 = vmatpush1.msra.mxu0 0.0
      %1912 = vmatprep.subr.mxu0 0.0
      %1913 = vmatpush1.msra.mxu0 0.0
      %1914 = vmatprep.subr.mxu0 0.0
      %1915 = vmatpush1.msra.mxu0 0.0
      %1916 = vmatprep.subr.mxu0 0.0
      %1917 = vmatpush1.msra.mxu0 0.0
      %1918 = vmatprep.subr.mxu0 0.0
      %1919 = vmatpush1.msra.mxu0 0.0
      %1920 = vmatprep.subr.mxu0 0.0
      %1921 = vmatpush1.msra.mxu0 0.0
      %1922 = vmatprep.subr.mxu0 0.0
      %1923 = vmatpush1.msra.mxu0 0.0
      %1924 = vmatprep.subr.mxu0 0.0
      %1925 = vmatpush1.msra.mxu0 0.0
      %1926 = vmatprep.subr.mxu0 0.0
      %1927 = vmatpush1.msra.mxu0 0.0
      %1928 = vmatprep.subr.mxu0 0.0
      %1929 = vmatpush1.msra.mxu0 0.0
      %1930 = vmatprep.subr.mxu0 0.0
      %1931 = vmatpush1.msra.mxu0 0.0
      %1932 = vmatprep.subr.mxu0 0.0
      %1933 = vmatpush1.msra.mxu0 0.0
      %1934 = vmatprep.subr.mxu0 0.0
      %1935 = vmatpush1.msra.mxu0 %v1903
      %1936 = vmatprep.subr.mxu0 0.0
      %1937 = vmatpush2.msra.mxu0 0.0
      %1938 = vmatprep.subr.mxu0 0.0
      %1939 = vmatpush2.msra.mxu0 0.0
      %1940 = vmatprep.subr.mxu0 0.0
      %1941 = vmatpush2.msra.mxu0 0.0
      %1942 = vmatprep.subr.mxu0 0.0
      %1943 = vmatpush2.msra.mxu0 0.0
      %1944 = vmatprep.subr.mxu0 0.0
      %1945 = vmatpush2.msra.mxu0 0.0
      %1946 = vmatprep.subr.mxu0 0.0
      %1947 = vmatpush2.msra.mxu0 0.0
      %1948 = vmatprep.subr.mxu0 0.0
      %1949 = vmatpush2.msra.mxu0 0.0
      %1950 = vmatprep.subr.mxu0 0.0
      %1951 = vmatpush2.msra.mxu0 0.0
      %1952 = vmatprep.subr.mxu0 0.0
      %1953 = vmatpush2.msra.mxu0 0.0
      %1954 = vmatprep.subr.mxu0 0.0
      %1955 = vmatpush2.msra.mxu0 0.0
      %1956 = vmatprep.subr.mxu0 0.0
      %1957 = vmatpush2.msra.mxu0 0.0
      %1958 = vmatprep.subr.mxu0 0.0
      %1959 = vmatpush2.msra.mxu0 0.0
      %1960 = vmatprep.subr.mxu0 0.0
      %1961 = vmatpush2.msra.mxu0 0.0
      %1962 = vmatprep.subr.mxu0 0.0
      %1963 = vmatpush2.msra.mxu0 0.0
      %1964 = vmatprep.subr.mxu0 0.0
      %1965 = vmatpush2.msra.mxu0 0.0
      %1966 = vmatprep.subr.mxu0 0.0
      %1967 = vmatpush2.msra.mxu0 0.0
      %1968 = vmatprep.mubr.f32.mxu0 0.0
      %1969 = vmatmul.mubr.f32.gmra.mxu0 %v1057
      %v1970 = vpop.f32.mrf.mxu0
      %v1971 = vadd.f32 0.0, %v1970
      %v1972 = vpop.f32.mrf.mxu0
      %1973 = vmatprep.mubr.f32.mxu0 0.0
      %1974 = vmatmul.mubr.f32.gmra.mxu0 %v1060
      %v1975 = vpop.f32.mrf.mxu0
      %v1976 = vadd.f32 0.0, %v1975
      %v1977 = vpop.f32.mrf.mxu0
      %1978 = vmatprep.mubr.f32.mxu0 0.0
      %1979 = vmatmul.mubr.f32.gmra.mxu0 %v1063
      %v1980 = vpop.f32.mrf.mxu0
      %v1981 = vadd.f32 0.0, %v1980
      %v1982 = vpop.f32.mrf.mxu0
      %1983 = vmatprep.mubr.f32.mxu0 0.0
      %1984 = vmatmul.mubr.f32.gmra.mxu0 %v1066
      %v1985 = vpop.f32.mrf.mxu0
      %v1986 = vadd.f32 0.0, %v1985
      %v1987 = vpop.f32.mrf.mxu0
      %1988 = vmatprep.mubr.f32.mxu0 0.0
      %1989 = vmatmul.mubr.f32.gmra.mxu0 %v1069
      %v1990 = vpop.f32.mrf.mxu0
      %v1991 = vadd.f32 0.0, %v1990
      %v1992 = vpop.f32.mrf.mxu0
      %1993 = vmatprep.mubr.f32.mxu0 0.0
      %1994 = vmatmul.mubr.f32.gmra.mxu0 %v1072
      %v1995 = vpop.f32.mrf.mxu0
      %v1996 = vadd.f32 0.0, %v1995
      %v1997 = vpop.f32.mrf.mxu0
      %1998 = vmatprep.mubr.f32.mxu0 0.0
      %1999 = vmatmul.mubr.f32.gmra.mxu0 %v1075
      %v2000 = vpop.f32.mrf.mxu0
      %v2001 = vadd.f32 0.0, %v2000
      %v2002 = vpop.f32.mrf.mxu0
      %2003 = vmatprep.mubr.f32.mxu0 0.0
      %2004 = vmatmul.mubr.f32.gmra.mxu0 %v1078
      %v2005 = vpop.f32.mrf.mxu0
      %v2006 = vadd.f32 0.0, %v2005
      %v2007 = vpop.f32.mrf.mxu0
      %2008 = vmatprep.mubr.f32.mxu0 0.0
      %2009 = vmatmul.mubr.f32.gmra.mxu0 %v1081
      %v2010 = vpop.f32.mrf.mxu0
      %v2011 = vadd.f32 0.0, %v2010
      %v2012 = vpop.f32.mrf.mxu0
      %2013 = vmatprep.mubr.f32.mxu0 0.0
      %2014 = vmatmul.mubr.f32.gmra.mxu0 %v1084
      %v2015 = vpop.f32.mrf.mxu0
      %v2016 = vadd.f32 0.0, %v2015
      %v2017 = vpop.f32.mrf.mxu0
      %2018 = vmatprep.mubr.f32.mxu0 0.0
      %2019 = vmatmul.mubr.f32.gmra.mxu0 %v1087
      %v2020 = vpop.f32.mrf.mxu0
      %v2021 = vadd.f32 0.0, %v2020
      %v2022 = vpop.f32.mrf.mxu0
      %2023 = vmatprep.mubr.f32.mxu0 0.0
      %2024 = vmatmul.mubr.f32.gmra.mxu0 %v1090
      %v2025 = vpop.f32.mrf.mxu0
      %v2026 = vadd.f32 0.0, %v2025
      %v2027 = vpop.f32.mrf.mxu0
      %2028 = vmatprep.mubr.f32.mxu0 0.0
      %2029 = vmatmul.mubr.f32.gmra.mxu0 %v1093
      %v2030 = vpop.f32.mrf.mxu0
      %v2031 = vadd.f32 0.0, %v2030
      %v2032 = vpop.f32.mrf.mxu0
      %2033 = vmatprep.mubr.f32.mxu0 0.0
      %2034 = vmatmul.mubr.f32.gmra.mxu0 %v1096
      %v2035 = vpop.f32.mrf.mxu0
      %v2036 = vadd.f32 0.0, %v2035
      %v2037 = vpop.f32.mrf.mxu0
      %2038 = vmatprep.mubr.f32.mxu0 0.0
      %2039 = vmatmul.mubr.f32.gmra.mxu0 %v1099
      %v2040 = vpop.f32.mrf.mxu0
      %v2041 = vadd.f32 0.0, %v2040
      %v2042 = vpop.f32.mrf.mxu0
      %2043 = vmatprep.mubr.f32.mxu0 0.0
      %2044 = vmatmul.mubr.f32.gmra.mxu0 %v1102
      %v2045 = vpop.f32.mrf.mxu0
      %v2046 = vadd.f32 0.0, %v2045
      %v2047 = vpop.f32.mrf.mxu0
      %2048 = vmatprep.mubr.f32.mxu0 0.0
      %2049 = vmatmul.mubr.f32.gmra.mxu0 %v1105
      %v2050 = vpop.f32.mrf.mxu0
      %v2051 = vadd.f32 0.0, %v2050
      %v2052 = vpop.f32.mrf.mxu0
      %2053 = vmatprep.mubr.f32.mxu0 0.0
      %2054 = vmatmul.mubr.f32.gmra.mxu0 %v1108
      %v2055 = vpop.f32.mrf.mxu0
      %v2056 = vadd.f32 0.0, %v2055
      %v2057 = vpop.f32.mrf.mxu0
      %2058 = vmatprep.mubr.f32.mxu0 0.0
      %2059 = vmatmul.mubr.f32.gmra.mxu0 %v1111
      %v2060 = vpop.f32.mrf.mxu0
      %v2061 = vadd.f32 0.0, %v2060
      %v2062 = vpop.f32.mrf.mxu0
      %2063 = vmatprep.mubr.f32.mxu0 0.0
      %2064 = vmatmul.mubr.f32.gmra.mxu0 %v1114
      %v2065 = vpop.f32.mrf.mxu0
      %v2066 = vadd.f32 0.0, %v2065
      %v2067 = vpop.f32.mrf.mxu0
      %2068 = vmatprep.mubr.f32.mxu0 0.0
      %2069 = vmatmul.mubr.f32.gmra.mxu0 %v1117
      %v2070 = vpop.f32.mrf.mxu0
      %v2071 = vadd.f32 0.0, %v2070
      %v2072 = vpop.f32.mrf.mxu0
      %2073 = vmatprep.mubr.f32.mxu0 0.0
      %2074 = vmatmul.mubr.f32.gmra.mxu0 %v1120
      %v2075 = vpop.f32.mrf.mxu0
      %v2076 = vadd.f32 0.0, %v2075
      %v2077 = vpop.f32.mrf.mxu0
      %2078 = vmatprep.mubr.f32.mxu0 0.0
      %2079 = vmatmul.mubr.f32.gmra.mxu0 %v1123
      %v2080 = vpop.f32.mrf.mxu0
      %v2081 = vadd.f32 0.0, %v2080
      %v2082 = vpop.f32.mrf.mxu0
      %2083 = vmatprep.mubr.f32.mxu0 0.0
      %2084 = vmatmul.mubr.f32.gmra.mxu0 %v1126
      %v2085 = vpop.f32.mrf.mxu0
      %v2086 = vadd.f32 0.0, %v2085
      %v2087 = vpop.f32.mrf.mxu0
      %2088 = vmatprep.mubr.f32.mxu0 0.0
      %2089 = vmatmul.mubr.f32.gmra.mxu0 %v1129
      %v2090 = vpop.f32.mrf.mxu0
      %v2091 = vadd.f32 0.0, %v2090
      %v2092 = vpop.f32.mrf.mxu0
      %2093 = vmatprep.mubr.f32.mxu0 0.0
      %2094 = vmatmul.mubr.f32.gmra.mxu0 %v1132
      %v2095 = vpop.f32.mrf.mxu0
      %v2096 = vadd.f32 0.0, %v2095
      %v2097 = vpop.f32.mrf.mxu0
      %2098 = vmatprep.mubr.f32.mxu0 0.0
      %2099 = vmatmul.mubr.f32.gmra.mxu0 %v1135
      %v2100 = vpop.f32.mrf.mxu0
      %v2101 = vadd.f32 0.0, %v2100
      %v2102 = vpop.f32.mrf.mxu0
      %2103 = vmatprep.mubr.f32.mxu0 0.0
      %2104 = vmatmul.mubr.f32.gmra.mxu0 %v1138
      %v2105 = vpop.f32.mrf.mxu0
      %v2106 = vadd.f32 0.0, %v2105
      %v2107 = vpop.f32.mrf.mxu0
      %2108 = vmatprep.mubr.f32.mxu0 0.0
      %2109 = vmatmul.mubr.f32.gmra.mxu0 %v1141
      %v2110 = vpop.f32.mrf.mxu0
      %v2111 = vadd.f32 0.0, %v2110
      %v2112 = vpop.f32.mrf.mxu0
      %2113 = vmatprep.mubr.f32.mxu0 0.0
      %2114 = vmatmul.mubr.f32.gmra.mxu0 %v1144
      %v2115 = vpop.f32.mrf.mxu0
      %v2116 = vadd.f32 0.0, %v2115
      %v2117 = vpop.f32.mrf.mxu0
      %2118 = vmatprep.mubr.f32.mxu0 0.0
      %2119 = vmatmul.mubr.f32.gmra.mxu0 %v1147
      %v2120 = vpop.f32.mrf.mxu0
      %v2121 = vadd.f32 0.0, %v2120
      %v2122 = vpop.f32.mrf.mxu0
      %2123 = vmatprep.mubr.f32.mxu0 0.0
      %2124 = vmatmul.mubr.f32.gmra.mxu0 %v1150
      %v2125 = vpop.f32.mrf.mxu0
      %v2126 = vadd.f32 0.0, %v2125
      %v2127 = vpop.f32.mrf.mxu0
      %2128 = vdwg.mxu0
      %v2130 = vsel %vm1481, %v1871, 0
      %v2133 = vsel %vm1481, %v1872, 0
      %v2136 = vsel %vm1481, %v1873, 0
      %v2139 = vsel %vm1481, %v1874, 0
      %v2142 = vsel %vm1481, %v1875, 0
      %v2145 = vsel %vm1481, %v1876, 0
      %v2148 = vsel %vm1481, %v1877, 0
      %v2151 = vsel %vm1481, %v1878, 0
      %v2154 = vsel %vm1481, %v1879, 0
      %v2157 = vsel %vm1481, %v1880, 0
      %v2160 = vsel %vm1481, %v1881, 0
      %v2163 = vsel %vm1481, %v1882, 0
      %v2166 = vsel %vm1481, %v1883, 0
      %v2169 = vsel %vm1481, %v1884, 0
      %v2172 = vsel %vm1481, %v1885, 0
      %v2175 = vsel %vm1481, %v1886, 0
      %v2178 = vsel %vm1481, %v1887, 0
      %v2181 = vsel %vm1481, %v1888, 0
      %v2184 = vsel %vm1481, %v1889, 0
      %v2187 = vsel %vm1481, %v1890, 0
      %v2190 = vsel %vm1481, %v1891, 0
      %v2193 = vsel %vm1481, %v1892, 0
      %v2196 = vsel %vm1481, %v1893, 0
      %v2199 = vsel %vm1481, %v1894, 0
      %v2202 = vsel %vm1481, %v1895, 0
      %v2205 = vsel %vm1481, %v1896, 0
      %v2208 = vsel %vm1481, %v1897, 0
      %v2211 = vsel %vm1481, %v1898, 0
      %v2214 = vsel %vm1481, %v1899, 0
      %v2217 = vsel %vm1481, %v1900, 0
      %v2220 = vsel %vm1481, %v1901, 0
      %v2223 = vsel %vm1481, %v1902, 0
      %2225 = vmatprep.subr.mxu0 0.0
      %2226 = vmatpush1.xpose.msra.mxu0 %v2175
      %2227 = vmatprep.subr.mxu0 0.0
      %2228 = vmatpush1.xpose.msra.mxu0 %v2172
      %2229 = vmatprep.subr.mxu0 0.0
      %2230 = vmatpush1.xpose.msra.mxu0 %v2169
      %2231 = vmatprep.subr.mxu0 0.0
      %2232 = vmatpush1.xpose.msra.mxu0 %v2166
      %2233 = vmatprep.subr.mxu0 0.0
      %2234 = vmatpush1.xpose.msra.mxu0 %v2163
      %2235 = vmatprep.subr.mxu0 0.0
      %2236 = vmatpush1.xpose.msra.mxu0 %v2160
      %2237 = vmatprep.subr.mxu0 0.0
      %2238 = vmatpush1.xpose.msra.mxu0 %v2157
      %2239 = vmatprep.subr.mxu0 0.0
      %2240 = vmatpush1.xpose.msra.mxu0 %v2154
      %2241 = vmatprep.subr.mxu0 0.0
      %2242 = vmatpush1.xpose.msra.mxu0 %v2151
      %2243 = vmatprep.subr.mxu0 0.0
      %2244 = vmatpush1.xpose.msra.mxu0 %v2148
      %2245 = vmatprep.subr.mxu0 0.0
      %2246 = vmatpush1.xpose.msra.mxu0 %v2145
      %2247 = vmatprep.subr.mxu0 0.0
      %2248 = vmatpush1.xpose.msra.mxu0 %v2142
      %2249 = vmatprep.subr.mxu0 0.0
      %2250 = vmatpush1.xpose.msra.mxu0 %v2139
      %2251 = vmatprep.subr.mxu0 0.0
      %2252 = vmatpush1.xpose.msra.mxu0 %v2136
      %2253 = vmatprep.subr.mxu0 0.0
      %2254 = vmatpush1.xpose.msra.mxu0 %v2133
      %2255 = vmatprep.subr.mxu0 0.0
      %2256 = vmatpush1.xpose.msra.mxu0 %v2130
      %2257 = vmatprep.subr.mxu0 0.0
      %2258 = vmatpush2.xpose.msra.mxu0 %v2223
      %2259 = vmatprep.subr.mxu0 0.0
      %2260 = vmatpush2.xpose.msra.mxu0 %v2220
      %2261 = vmatprep.subr.mxu0 0.0
      %2262 = vmatpush2.xpose.msra.mxu0 %v2217
      %2263 = vmatprep.subr.mxu0 0.0
      %2264 = vmatpush2.xpose.msra.mxu0 %v2214
      %2265 = vmatprep.subr.mxu0 0.0
      %2266 = vmatpush2.xpose.msra.mxu0 %v2211
      %2267 = vmatprep.subr.mxu0 0.0
      %2268 = vmatpush2.xpose.msra.mxu0 %v2208
      %2269 = vmatprep.subr.mxu0 0.0
      %2270 = vmatpush2.xpose.msra.mxu0 %v2205
      %2271 = vmatprep.subr.mxu0 0.0
      %2272 = vmatpush2.xpose.msra.mxu0 %v2202
      %2273 = vmatprep.subr.mxu0 0.0
      %2274 = vmatpush2.xpose.msra.mxu0 %v2199
      %2275 = vmatprep.subr.mxu0 0.0
      %2276 = vmatpush2.xpose.msra.mxu0 %v2196
      %2277 = vmatprep.subr.mxu0 0.0
      %2278 = vmatpush2.xpose.msra.mxu0 %v2193
      %2279 = vmatprep.subr.mxu0 0.0
      %2280 = vmatpush2.xpose.msra.mxu0 %v2190
      %2281 = vmatprep.subr.mxu0 0.0
      %2282 = vmatpush2.xpose.msra.mxu0 %v2187
      %2283 = vmatprep.subr.mxu0 0.0
      %2284 = vmatpush2.xpose.msra.mxu0 %v2184
      %2285 = vmatprep.subr.mxu0 0.0
      %2286 = vmatpush2.xpose.msra.mxu0 %v2181
      %2287 = vmatprep.subr.mxu0 0.0
      %2288 = vmatpush2.xpose.msra.mxu0 %v2178
      %2289 = vmatprep.mubr.f32.mxu0 0.0
      %2290 = vmatmul.mubr.f32.gmra.mxu0 %v2130
      %v2291 = vpop.f32.mrf.mxu0
      %v2292 = vadd.f32 0.0, %v2291
      %v2293 = vpop.f32.mrf.mxu0
      %v2294 = vadd.f32 0.0, %v2293
      %2295 = vmatprep.mubr.f32.mxu0 0.0
      %2296 = vmatmul.mubr.f32.gmra.mxu0 %v2133
      %v2297 = vpop.f32.mrf.mxu0
      %v2298 = vadd.f32 0.0, %v2297
      %v2299 = vpop.f32.mrf.mxu0
      %v2300 = vadd.f32 0.0, %v2299
      %2301 = vmatprep.mubr.f32.mxu0 0.0
      %2302 = vmatmul.mubr.f32.gmra.mxu0 %v2136
      %v2303 = vpop.f32.mrf.mxu0
      %v2304 = vadd.f32 0.0, %v2303
      %v2305 = vpop.f32.mrf.mxu0
      %v2306 = vadd.f32 0.0, %v2305
      %2307 = vmatprep.mubr.f32.mxu0 0.0
      %2308 = vmatmul.mubr.f32.gmra.mxu0 %v2139
      %v2309 = vpop.f32.mrf.mxu0
      %v2310 = vadd.f32 0.0, %v2309
      %v2311 = vpop.f32.mrf.mxu0
      %v2312 = vadd.f32 0.0, %v2311
      %2313 = vmatprep.mubr.f32.mxu0 0.0
      %2314 = vmatmul.mubr.f32.gmra.mxu0 %v2142
      %v2315 = vpop.f32.mrf.mxu0
      %v2316 = vadd.f32 0.0, %v2315
      %v2317 = vpop.f32.mrf.mxu0
      %v2318 = vadd.f32 0.0, %v2317
      %2319 = vmatprep.mubr.f32.mxu0 0.0
      %2320 = vmatmul.mubr.f32.gmra.mxu0 %v2145
      %v2321 = vpop.f32.mrf.mxu0
      %v2322 = vadd.f32 0.0, %v2321
      %v2323 = vpop.f32.mrf.mxu0
      %v2324 = vadd.f32 0.0, %v2323
      %2325 = vmatprep.mubr.f32.mxu0 0.0
      %2326 = vmatmul.mubr.f32.gmra.mxu0 %v2148
      %v2327 = vpop.f32.mrf.mxu0
      %v2328 = vadd.f32 0.0, %v2327
      %v2329 = vpop.f32.mrf.mxu0
      %v2330 = vadd.f32 0.0, %v2329
      %2331 = vmatprep.mubr.f32.mxu0 0.0
      %2332 = vmatmul.mubr.f32.gmra.mxu0 %v2151
      %v2333 = vpop.f32.mrf.mxu0
      %v2334 = vadd.f32 0.0, %v2333
      %v2335 = vpop.f32.mrf.mxu0
      %v2336 = vadd.f32 0.0, %v2335
      %2337 = vmatprep.mubr.f32.mxu0 0.0
      %2338 = vmatmul.mubr.f32.gmra.mxu0 %v2154
      %v2339 = vpop.f32.mrf.mxu0
      %v2340 = vadd.f32 0.0, %v2339
      %v2341 = vpop.f32.mrf.mxu0
      %v2342 = vadd.f32 0.0, %v2341
      %2343 = vmatprep.mubr.f32.mxu0 0.0
      %2344 = vmatmul.mubr.f32.gmra.mxu0 %v2157
      %v2345 = vpop.f32.mrf.mxu0
      %v2346 = vadd.f32 0.0, %v2345
      %v2347 = vpop.f32.mrf.mxu0
      %v2348 = vadd.f32 0.0, %v2347
      %2349 = vmatprep.mubr.f32.mxu0 0.0
      %2350 = vmatmul.mubr.f32.gmra.mxu0 %v2160
      %v2351 = vpop.f32.mrf.mxu0
      %v2352 = vadd.f32 0.0, %v2351
      %v2353 = vpop.f32.mrf.mxu0
      %v2354 = vadd.f32 0.0, %v2353
      %2355 = vmatprep.mubr.f32.mxu0 0.0
      %2356 = vmatmul.mubr.f32.gmra.mxu0 %v2163
      %v2357 = vpop.f32.mrf.mxu0
      %v2358 = vadd.f32 0.0, %v2357
      %v2359 = vpop.f32.mrf.mxu0
      %v2360 = vadd.f32 0.0, %v2359
      %2361 = vmatprep.mubr.f32.mxu0 0.0
      %2362 = vmatmul.mubr.f32.gmra.mxu0 %v2166
      %v2363 = vpop.f32.mrf.mxu0
      %v2364 = vadd.f32 0.0, %v2363
      %v2365 = vpop.f32.mrf.mxu0
      %v2366 = vadd.f32 0.0, %v2365
      %2367 = vmatprep.mubr.f32.mxu0 0.0
      %2368 = vmatmul.mubr.f32.gmra.mxu0 %v2169
      %v2369 = vpop.f32.mrf.mxu0
      %v2370 = vadd.f32 0.0, %v2369
      %v2371 = vpop.f32.mrf.mxu0
      %v2372 = vadd.f32 0.0, %v2371
      %2373 = vmatprep.mubr.f32.mxu0 0.0
      %2374 = vmatmul.mubr.f32.gmra.mxu0 %v2172
      %v2375 = vpop.f32.mrf.mxu0
      %v2376 = vadd.f32 0.0, %v2375
      %v2377 = vpop.f32.mrf.mxu0
      %v2378 = vadd.f32 0.0, %v2377
      %2379 = vmatprep.mubr.f32.mxu0 0.0
      %2380 = vmatmul.mubr.f32.gmra.mxu0 %v2175
      %v2381 = vpop.f32.mrf.mxu0
      %v2382 = vadd.f32 0.0, %v2381
      %v2383 = vpop.f32.mrf.mxu0
      %v2384 = vadd.f32 0.0, %v2383
      %2385 = vmatprep.mubr.f32.mxu0 0.0
      %2386 = vmatmul.mubr.f32.gmra.mxu0 %v2178
      %v2387 = vpop.f32.mrf.mxu0
      %v2388 = vadd.f32 0.0, %v2387
      %v2389 = vpop.f32.mrf.mxu0
      %v2390 = vadd.f32 0.0, %v2389
      %2391 = vmatprep.mubr.f32.mxu0 0.0
      %2392 = vmatmul.mubr.f32.gmra.mxu0 %v2181
      %v2393 = vpop.f32.mrf.mxu0
      %v2394 = vadd.f32 0.0, %v2393
      %v2395 = vpop.f32.mrf.mxu0
      %v2396 = vadd.f32 0.0, %v2395
      %2397 = vmatprep.mubr.f32.mxu0 0.0
      %2398 = vmatmul.mubr.f32.gmra.mxu0 %v2184
      %v2399 = vpop.f32.mrf.mxu0
      %v2400 = vadd.f32 0.0, %v2399
      %v2401 = vpop.f32.mrf.mxu0
      %v2402 = vadd.f32 0.0, %v2401
      %2403 = vmatprep.mubr.f32.mxu0 0.0
      %2404 = vmatmul.mubr.f32.gmra.mxu0 %v2187
      %v2405 = vpop.f32.mrf.mxu0
      %v2406 = vadd.f32 0.0, %v2405
      %v2407 = vpop.f32.mrf.mxu0
      %v2408 = vadd.f32 0.0, %v2407
      %2409 = vmatprep.mubr.f32.mxu0 0.0
      %2410 = vmatmul.mubr.f32.gmra.mxu0 %v2190
      %v2411 = vpop.f32.mrf.mxu0
      %v2412 = vadd.f32 0.0, %v2411
      %v2413 = vpop.f32.mrf.mxu0
      %v2414 = vadd.f32 0.0, %v2413
      %2415 = vmatprep.mubr.f32.mxu0 0.0
      %2416 = vmatmul.mubr.f32.gmra.mxu0 %v2193
      %v2417 = vpop.f32.mrf.mxu0
      %v2418 = vadd.f32 0.0, %v2417
      %v2419 = vpop.f32.mrf.mxu0
      %v2420 = vadd.f32 0.0, %v2419
      %2421 = vmatprep.mubr.f32.mxu0 0.0
      %2422 = vmatmul.mubr.f32.gmra.mxu0 %v2196
      %v2423 = vpop.f32.mrf.mxu0
      %v2424 = vadd.f32 0.0, %v2423
      %v2425 = vpop.f32.mrf.mxu0
      %v2426 = vadd.f32 0.0, %v2425
      %2427 = vmatprep.mubr.f32.mxu0 0.0
      %2428 = vmatmul.mubr.f32.gmra.mxu0 %v2199
      %v2429 = vpop.f32.mrf.mxu0
      %v2430 = vadd.f32 0.0, %v2429
      %v2431 = vpop.f32.mrf.mxu0
      %v2432 = vadd.f32 0.0, %v2431
      %2433 = vmatprep.mubr.f32.mxu0 0.0
      %2434 = vmatmul.mubr.f32.gmra.mxu0 %v2202
      %v2435 = vpop.f32.mrf.mxu0
      %v2436 = vadd.f32 0.0, %v2435
      %v2437 = vpop.f32.mrf.mxu0
      %v2438 = vadd.f32 0.0, %v2437
      %2439 = vmatprep.mubr.f32.mxu0 0.0
      %2440 = vmatmul.mubr.f32.gmra.mxu0 %v2205
      %v2441 = vpop.f32.mrf.mxu0
      %v2442 = vadd.f32 0.0, %v2441
      %v2443 = vpop.f32.mrf.mxu0
      %v2444 = vadd.f32 0.0, %v2443
      %2445 = vmatprep.mubr.f32.mxu0 0.0
      %2446 = vmatmul.mubr.f32.gmra.mxu0 %v2208
      %v2447 = vpop.f32.mrf.mxu0
      %v2448 = vadd.f32 0.0, %v2447
      %v2449 = vpop.f32.mrf.mxu0
      %v2450 = vadd.f32 0.0, %v2449
      %2451 = vmatprep.mubr.f32.mxu0 0.0
      %2452 = vmatmul.mubr.f32.gmra.mxu0 %v2211
      %v2453 = vpop.f32.mrf.mxu0
      %v2454 = vadd.f32 0.0, %v2453
      %v2455 = vpop.f32.mrf.mxu0
      %v2456 = vadd.f32 0.0, %v2455
      %2457 = vmatprep.mubr.f32.mxu0 0.0
      %2458 = vmatmul.mubr.f32.gmra.mxu0 %v2214
      %v2459 = vpop.f32.mrf.mxu0
      %v2460 = vadd.f32 0.0, %v2459
      %v2461 = vpop.f32.mrf.mxu0
      %v2462 = vadd.f32 0.0, %v2461
      %2463 = vmatprep.mubr.f32.mxu0 0.0
      %2464 = vmatmul.mubr.f32.gmra.mxu0 %v2217
      %v2465 = vpop.f32.mrf.mxu0
      %v2466 = vadd.f32 0.0, %v2465
      %v2467 = vpop.f32.mrf.mxu0
      %v2468 = vadd.f32 0.0, %v2467
      %2469 = vmatprep.mubr.f32.mxu0 0.0
      %2470 = vmatmul.mubr.f32.gmra.mxu0 %v2220
      %v2471 = vpop.f32.mrf.mxu0
      %v2472 = vadd.f32 0.0, %v2471
      %v2473 = vpop.f32.mrf.mxu0
      %v2474 = vadd.f32 0.0, %v2473
      %2475 = vmatprep.mubr.f32.mxu0 0.0
      %2476 = vmatmul.mubr.f32.gmra.mxu0 %v2223
      %v2477 = vpop.f32.mrf.mxu0
      %v2478 = vadd.f32 0.0, %v2477
      %v2479 = vpop.f32.mrf.mxu0
      %v2480 = vadd.f32 0.0, %v2479
      %2481 = vdwg.mxu0
      %v2482 = vsel %vm807, %v2292, -1e+30
      %v2483 = vsel %vm808, %v2294, -1e+30
      %v2484 = vsel %vm809, %v2298, -1e+30
      %v2485 = vsel %vm810, %v2300, -1e+30
      %v2486 = vsel %vm811, %v2304, -1e+30
      %v2487 = vsel %vm812, %v2306, -1e+30
      %v2488 = vsel %vm813, %v2310, -1e+30
      %v2489 = vsel %vm814, %v2312, -1e+30
      %v2490 = vsel %vm815, %v2316, -1e+30
      %v2491 = vsel %vm816, %v2318, -1e+30
      %v2492 = vsel %vm817, %v2322, -1e+30
      %v2493 = vsel %vm818, %v2324, -1e+30
      %v2494 = vsel %vm819, %v2328, -1e+30
      %v2495 = vsel %vm820, %v2330, -1e+30
      %v2496 = vsel %vm821, %v2334, -1e+30
      %v2497 = vsel %vm822, %v2336, -1e+30
      %v2498 = vsel %vm823, %v2340, -1e+30
      %v2499 = vsel %vm824, %v2342, -1e+30
      %v2500 = vsel %vm825, %v2346, -1e+30
      %v2501 = vsel %vm826, %v2348, -1e+30
      %v2502 = vsel %vm827, %v2352, -1e+30
      %v2503 = vsel %vm828, %v2354, -1e+30
      %v2504 = vsel %vm829, %v2358, -1e+30
      %v2505 = vsel %vm830, %v2360, -1e+30
      %v2506 = vsel %vm831, %v2364, -1e+30
      %v2507 = vsel %vm832, %v2366, -1e+30
      %v2508 = vsel %vm833, %v2370, -1e+30
      %v2509 = vsel %vm834, %v2372, -1e+30
      %v2510 = vsel %vm835, %v2376, -1e+30
      %v2511 = vsel %vm836, %v2378, -1e+30
      %v2512 = vsel %vm837, %v2382, -1e+30
      %v2513 = vsel %vm838, %v2384, -1e+30
      %v2514 = vsel %vm839, %v2388, -1e+30
      %v2515 = vsel %vm840, %v2390, -1e+30
      %v2516 = vsel %vm841, %v2394, -1e+30
      %v2517 = vsel %vm842, %v2396, -1e+30
      %v2518 = vsel %vm843, %v2400, -1e+30
      %v2519 = vsel %vm844, %v2402, -1e+30
      %v2520 = vsel %vm845, %v2406, -1e+30
      %v2521 = vsel %vm846, %v2408, -1e+30
      %v2522 = vsel %vm847, %v2412, -1e+30
      %v2523 = vsel %vm848, %v2414, -1e+30
      %v2524 = vsel %vm849, %v2418, -1e+30
      %v2525 = vsel %vm850, %v2420, -1e+30
      %v2526 = vsel %vm851, %v2424, -1e+30
      %v2527 = vsel %vm852, %v2426, -1e+30
      %v2528 = vsel %vm853, %v2430, -1e+30
      %v2529 = vsel %vm854, %v2432, -1e+30
      %v2530 = vsel %vm855, %v2436, -1e+30
      %v2531 = vsel %vm856, %v2438, -1e+30
      %v2532 = vsel %vm857, %v2442, -1e+30
      %v2533 = vsel %vm858, %v2444, -1e+30
      %v2534 = vsel %vm859, %v2448, -1e+30
      %v2535 = vsel %vm860, %v2450, -1e+30
      %v2536 = vsel %vm861, %v2454, -1e+30
      %v2537 = vsel %vm862, %v2456, -1e+30
      %v2538 = vsel %vm863, %v2460, -1e+30
      %v2539 = vsel %vm864, %v2462, -1e+30
      %v2540 = vsel %vm865, %v2466, -1e+30
      %v2541 = vsel %vm866, %v2468, -1e+30
      %v2542 = vsel %vm867, %v2472, -1e+30
      %v2543 = vsel %vm868, %v2474, -1e+30
      %v2544 = vsel %vm869, %v2478, -1e+30
      %v2545 = vsel %vm870, %v2480, -1e+30
      %v2546 = vmax.f32 %v2482, %v2483
      %2547 = vmax.xlane.f32.xlu0 %v2546
      %v2548 = vpop.xlane.xlu0 %2547
      %v2549 = vmax.f32 %v2484, %v2485
      %2550 = vmax.xlane.f32.xlu0 %v2549
      %v2551 = vpop.xlane.xlu0 %2550
      %v2552 = vmax.f32 %v2486, %v2487
      %2553 = vmax.xlane.f32.xlu0 %v2552
      %v2554 = vpop.xlane.xlu0 %2553
      %v2555 = vmax.f32 %v2488, %v2489
      %2556 = vmax.xlane.f32.xlu0 %v2555
      %v2557 = vpop.xlane.xlu0 %2556
      %v2558 = vmax.f32 %v2490, %v2491
      %2559 = vmax.xlane.f32.xlu0 %v2558
      %v2560 = vpop.xlane.xlu0 %2559
      %v2561 = vmax.f32 %v2492, %v2493
      %2562 = vmax.xlane.f32.xlu0 %v2561
      %v2563 = vpop.xlane.xlu0 %2562
      %v2564 = vmax.f32 %v2494, %v2495
      %2565 = vmax.xlane.f32.xlu0 %v2564
      %v2566 = vpop.xlane.xlu0 %2565
      %v2567 = vmax.f32 %v2496, %v2497
      %2568 = vmax.xlane.f32.xlu0 %v2567
      %v2569 = vpop.xlane.xlu0 %2568
      %v2570 = vmax.f32 %v2498, %v2499
      %2571 = vmax.xlane.f32.xlu0 %v2570
      %v2572 = vpop.xlane.xlu0 %2571
      %v2573 = vmax.f32 %v2500, %v2501
      %2574 = vmax.xlane.f32.xlu0 %v2573
      %v2575 = vpop.xlane.xlu0 %2574
      %v2576 = vmax.f32 %v2502, %v2503
      %2577 = vmax.xlane.f32.xlu0 %v2576
      %v2578 = vpop.xlane.xlu0 %2577
      %v2579 = vmax.f32 %v2504, %v2505
      %2580 = vmax.xlane.f32.xlu0 %v2579
      %v2581 = vpop.xlane.xlu0 %2580
      %v2582 = vmax.f32 %v2506, %v2507
      %2583 = vmax.xlane.f32.xlu0 %v2582
      %v2584 = vpop.xlane.xlu0 %2583
      %v2585 = vmax.f32 %v2508, %v2509
      %2586 = vmax.xlane.f32.xlu0 %v2585
      %v2587 = vpop.xlane.xlu0 %2586
      %v2588 = vmax.f32 %v2510, %v2511
      %2589 = vmax.xlane.f32.xlu0 %v2588
      %v2590 = vpop.xlane.xlu0 %2589
      %v2591 = vmax.f32 %v2512, %v2513
      %2592 = vmax.xlane.f32.xlu0 %v2591
      %v2593 = vpop.xlane.xlu0 %2592
      %v2594 = vmax.f32 %v2514, %v2515
      %2595 = vmax.xlane.f32.xlu0 %v2594
      %v2596 = vpop.xlane.xlu0 %2595
      %v2597 = vmax.f32 %v2516, %v2517
      %2598 = vmax.xlane.f32.xlu0 %v2597
      %v2599 = vpop.xlane.xlu0 %2598
      %v2600 = vmax.f32 %v2518, %v2519
      %2601 = vmax.xlane.f32.xlu0 %v2600
      %v2602 = vpop.xlane.xlu0 %2601
      %v2603 = vmax.f32 %v2520, %v2521
      %2604 = vmax.xlane.f32.xlu0 %v2603
      %v2605 = vpop.xlane.xlu0 %2604
      %v2606 = vmax.f32 %v2522, %v2523
      %2607 = vmax.xlane.f32.xlu0 %v2606
      %v2608 = vpop.xlane.xlu0 %2607
      %v2609 = vmax.f32 %v2524, %v2525
      %2610 = vmax.xlane.f32.xlu0 %v2609
      %v2611 = vpop.xlane.xlu0 %2610
      %v2612 = vmax.f32 %v2526, %v2527
      %2613 = vmax.xlane.f32.xlu0 %v2612
      %v2614 = vpop.xlane.xlu0 %2613
      %v2615 = vmax.f32 %v2528, %v2529
      %2616 = vmax.xlane.f32.xlu0 %v2615
      %v2617 = vpop.xlane.xlu0 %2616
      %v2618 = vmax.f32 %v2530, %v2531
      %2619 = vmax.xlane.f32.xlu0 %v2618
      %v2620 = vpop.xlane.xlu0 %2619
      %v2621 = vmax.f32 %v2532, %v2533
      %2622 = vmax.xlane.f32.xlu0 %v2621
      %v2623 = vpop.xlane.xlu0 %2622
      %v2624 = vmax.f32 %v2534, %v2535
      %2625 = vmax.xlane.f32.xlu0 %v2624
      %v2626 = vpop.xlane.xlu0 %2625
      %v2627 = vmax.f32 %v2536, %v2537
      %2628 = vmax.xlane.f32.xlu0 %v2627
      %v2629 = vpop.xlane.xlu0 %2628
      %v2630 = vmax.f32 %v2538, %v2539
      %2631 = vmax.xlane.f32.xlu0 %v2630
      %v2632 = vpop.xlane.xlu0 %2631
      %v2633 = vmax.f32 %v2540, %v2541
      %2634 = vmax.xlane.f32.xlu0 %v2633
      %v2635 = vpop.xlane.xlu0 %2634
      %v2636 = vmax.f32 %v2542, %v2543
      %2637 = vmax.xlane.f32.xlu0 %v2636
      %v2638 = vpop.xlane.xlu0 %2637
      %v2639 = vmax.f32 %v2544, %v2545
      %2640 = vmax.xlane.f32.xlu0 %v2639
      %v2641 = vpop.xlane.xlu0 %2640
      %v2642 = vsub.f32 %v2482, %v2548
      %v2643 = vsub.f32 %v2483, %v2548
      %v2644 = vsub.f32 %v2484, %v2551
      %v2645 = vsub.f32 %v2485, %v2551
      %v2646 = vsub.f32 %v2486, %v2554
      %v2647 = vsub.f32 %v2487, %v2554
      %v2648 = vsub.f32 %v2488, %v2557
      %v2649 = vsub.f32 %v2489, %v2557
      %v2650 = vsub.f32 %v2490, %v2560
      %v2651 = vsub.f32 %v2491, %v2560
      %v2652 = vsub.f32 %v2492, %v2563
      %v2653 = vsub.f32 %v2493, %v2563
      %v2654 = vsub.f32 %v2494, %v2566
      %v2655 = vsub.f32 %v2495, %v2566
      %v2656 = vsub.f32 %v2496, %v2569
      %v2657 = vsub.f32 %v2497, %v2569
      %v2658 = vsub.f32 %v2498, %v2572
      %v2659 = vsub.f32 %v2499, %v2572
      %v2660 = vsub.f32 %v2500, %v2575
      %v2661 = vsub.f32 %v2501, %v2575
      %v2662 = vsub.f32 %v2502, %v2578
      %v2663 = vsub.f32 %v2503, %v2578
      %v2664 = vsub.f32 %v2504, %v2581
      %v2665 = vsub.f32 %v2505, %v2581
      %v2666 = vsub.f32 %v2506, %v2584
      %v2667 = vsub.f32 %v2507, %v2584
      %v2668 = vsub.f32 %v2508, %v2587
      %v2669 = vsub.f32 %v2509, %v2587
      %v2670 = vsub.f32 %v2510, %v2590
      %v2671 = vsub.f32 %v2511, %v2590
      %v2672 = vsub.f32 %v2512, %v2593
      %v2673 = vsub.f32 %v2513, %v2593
      %v2674 = vsub.f32 %v2514, %v2596
      %v2675 = vsub.f32 %v2515, %v2596
      %v2676 = vsub.f32 %v2516, %v2599
      %v2677 = vsub.f32 %v2517, %v2599
      %v2678 = vsub.f32 %v2518, %v2602
      %v2679 = vsub.f32 %v2519, %v2602
      %v2680 = vsub.f32 %v2520, %v2605
      %v2681 = vsub.f32 %v2521, %v2605
      %v2682 = vsub.f32 %v2522, %v2608
      %v2683 = vsub.f32 %v2523, %v2608
      %v2684 = vsub.f32 %v2524, %v2611
      %v2685 = vsub.f32 %v2525, %v2611
      %v2686 = vsub.f32 %v2526, %v2614
      %v2687 = vsub.f32 %v2527, %v2614
      %v2688 = vsub.f32 %v2528, %v2617
      %v2689 = vsub.f32 %v2529, %v2617
      %v2690 = vsub.f32 %v2530, %v2620
      %v2691 = vsub.f32 %v2531, %v2620
      %v2692 = vsub.f32 %v2532, %v2623
      %v2693 = vsub.f32 %v2533, %v2623
      %v2694 = vsub.f32 %v2534, %v2626
      %v2695 = vsub.f32 %v2535, %v2626
      %v2696 = vsub.f32 %v2536, %v2629
      %v2697 = vsub.f32 %v2537, %v2629
      %v2698 = vsub.f32 %v2538, %v2632
      %v2699 = vsub.f32 %v2539, %v2632
      %v2700 = vsub.f32 %v2540, %v2635
      %v2701 = vsub.f32 %v2541, %v2635
      %v2702 = vsub.f32 %v2542, %v2638
      %v2703 = vsub.f32 %v2543, %v2638
      %v2704 = vsub.f32 %v2544, %v2641
      %v2705 = vsub.f32 %v2545, %v2641
      %v2706 = vmul.f32 %v2642, 1.442695
      %v2707 = vpow.pop %v2706
      %v2708 = vmul.f32 %v2643, 1.442695
      %v2709 = vpow.pop %v2708
      %v2710 = vmul.f32 %v2644, 1.442695
      %v2711 = vpow.pop %v2710
      %v2712 = vmul.f32 %v2645, 1.442695
      %v2713 = vpow.pop %v2712
      %v2714 = vmul.f32 %v2646, 1.442695
      %v2715 = vpow.pop %v2714
      %v2716 = vmul.f32 %v2647, 1.442695
      %v2717 = vpow.pop %v2716
      %v2718 = vmul.f32 %v2648, 1.442695
      %v2719 = vpow.pop %v2718
      %v2720 = vmul.f32 %v2649, 1.442695
      %v2721 = vpow.pop %v2720
      %v2722 = vmul.f32 %v2650, 1.442695
      %v2723 = vpow.pop %v2722
      %v2724 = vmul.f32 %v2651, 1.442695
      %v2725 = vpow.pop %v2724
      %v2726 = vmul.f32 %v2652, 1.442695
      %v2727 = vpow.pop %v2726
      %v2728 = vmul.f32 %v2653, 1.442695
      %v2729 = vpow.pop %v2728
      %v2730 = vmul.f32 %v2654, 1.442695
      %v2731 = vpow.pop %v2730
      %v2732 = vmul.f32 %v2655, 1.442695
      %v2733 = vpow.pop %v2732
      %v2734 = vmul.f32 %v2656, 1.442695
      %v2735 = vpow.pop %v2734
      %v2736 = vmul.f32 %v2657, 1.442695
      %v2737 = vpow.pop %v2736
      %v2738 = vmul.f32 %v2658, 1.442695
      %v2739 = vpow.pop %v2738
      %v2740 = vmul.f32 %v2659, 1.442695
      %v2741 = vpow.pop %v2740
      %v2742 = vmul.f32 %v2660, 1.442695
      %v2743 = vpow.pop %v2742
      %v2744 = vmul.f32 %v2661, 1.442695
      %v2745 = vpow.pop %v2744
      %v2746 = vmul.f32 %v2662, 1.442695
      %v2747 = vpow.pop %v2746
      %v2748 = vmul.f32 %v2663, 1.442695
      %v2749 = vpow.pop %v2748
      %v2750 = vmul.f32 %v2664, 1.442695
      %v2751 = vpow.pop %v2750
      %v2752 = vmul.f32 %v2665, 1.442695
      %v2753 = vpow.pop %v2752
      %v2754 = vmul.f32 %v2666, 1.442695
      %v2755 = vpow.pop %v2754
      %v2756 = vmul.f32 %v2667, 1.442695
      %v2757 = vpow.pop %v2756
      %v2758 = vmul.f32 %v2668, 1.442695
      %v2759 = vpow.pop %v2758
      %v2760 = vmul.f32 %v2669, 1.442695
      %v2761 = vpow.pop %v2760
      %v2762 = vmul.f32 %v2670, 1.442695
      %v2763 = vpow.pop %v2762
      %v2764 = vmul.f32 %v2671, 1.442695
      %v2765 = vpow.pop %v2764
      %v2766 = vmul.f32 %v2672, 1.442695
      %v2767 = vpow.pop %v2766
      %v2768 = vmul.f32 %v2673, 1.442695
      %v2769 = vpow.pop %v2768
      %v2770 = vmul.f32 %v2674, 1.442695
      %v2771 = vpow.pop %v2770
      %v2772 = vmul.f32 %v2675, 1.442695
      %v2773 = vpow.pop %v2772
      %v2774 = vmul.f32 %v2676, 1.442695
      %v2775 = vpow.pop %v2774
      %v2776 = vmul.f32 %v2677, 1.442695
      %v2777 = vpow.pop %v2776
      %v2778 = vmul.f32 %v2678, 1.442695
      %v2779 = vpow.pop %v2778
      %v2780 = vmul.f32 %v2679, 1.442695
      %v2781 = vpow.pop %v2780
      %v2782 = vmul.f32 %v2680, 1.442695
      %v2783 = vpow.pop %v2782
      %v2784 = vmul.f32 %v2681, 1.442695
      %v2785 = vpow.pop %v2784
      %v2786 = vmul.f32 %v2682, 1.442695
      %v2787 = vpow.pop %v2786
      %v2788 = vmul.f32 %v2683, 1.442695
      %v2789 = vpow.pop %v2788
      %v2790 = vmul.f32 %v2684, 1.442695
      %v2791 = vpow.pop %v2790
      %v2792 = vmul.f32 %v2685, 1.442695
      %v2793 = vpow.pop %v2792
      %v2794 = vmul.f32 %v2686, 1.442695
      %v2795 = vpow.pop %v2794
      %v2796 = vmul.f32 %v2687, 1.442695
      %v2797 = vpow.pop %v2796
      %v2798 = vmul.f32 %v2688, 1.442695
      %v2799 = vpow.pop %v2798
      %v2800 = vmul.f32 %v2689, 1.442695
      %v2801 = vpow.pop %v2800
      %v2802 = vmul.f32 %v2690, 1.442695
      %v2803 = vpow.pop %v2802
      %v2804 = vmul.f32 %v2691, 1.442695
      %v2805 = vpow.pop %v2804
      %v2806 = vmul.f32 %v2692, 1.442695
      %v2807 = vpow.pop %v2806
      %v2808 = vmul.f32 %v2693, 1.442695
      %v2809 = vpow.pop %v2808
      %v2810 = vmul.f32 %v2694, 1.442695
      %v2811 = vpow.pop %v2810
      %v2812 = vmul.f32 %v2695, 1.442695
      %v2813 = vpow.pop %v2812
      %v2814 = vmul.f32 %v2696, 1.442695
      %v2815 = vpow.pop %v2814
      %v2816 = vmul.f32 %v2697, 1.442695
      %v2817 = vpow.pop %v2816
      %v2818 = vmul.f32 %v2698, 1.442695
      %v2819 = vpow.pop %v2818
      %v2820 = vmul.f32 %v2699, 1.442695
      %v2821 = vpow.pop %v2820
      %v2822 = vmul.f32 %v2700, 1.442695
      %v2823 = vpow.pop %v2822
      %v2824 = vmul.f32 %v2701, 1.442695
      %v2825 = vpow.pop %v2824
      %v2826 = vmul.f32 %v2702, 1.442695
      %v2827 = vpow.pop %v2826
      %v2828 = vmul.f32 %v2703, 1.442695
      %v2829 = vpow.pop %v2828
      %v2830 = vmul.f32 %v2704, 1.442695
      %v2831 = vpow.pop %v2830
      %v2832 = vmul.f32 %v2705, 1.442695
      %v2833 = vpow.pop %v2832
      %v2834 = vadd.f32 %v2707, %v2709
      %2835 = vadd.xlane.f32.xlu0 %v2834
      %v2836 = vpop.xlane.xlu0 %2835
      %v2837 = vadd.f32 %v2711, %v2713
      %2838 = vadd.xlane.f32.xlu0 %v2837
      %v2839 = vpop.xlane.xlu0 %2838
      %v2840 = vadd.f32 %v2715, %v2717
      %2841 = vadd.xlane.f32.xlu0 %v2840
      %v2842 = vpop.xlane.xlu0 %2841
      %v2843 = vadd.f32 %v2719, %v2721
      %2844 = vadd.xlane.f32.xlu0 %v2843
      %v2845 = vpop.xlane.xlu0 %2844
      %v2846 = vadd.f32 %v2723, %v2725
      %2847 = vadd.xlane.f32.xlu0 %v2846
      %v2848 = vpop.xlane.xlu0 %2847
      %v2849 = vadd.f32 %v2727, %v2729
      %2850 = vadd.xlane.f32.xlu0 %v2849
      %v2851 = vpop.xlane.xlu0 %2850
      %v2852 = vadd.f32 %v2731, %v2733
      %2853 = vadd.xlane.f32.xlu0 %v2852
      %v2854 = vpop.xlane.xlu0 %2853
      %v2855 = vadd.f32 %v2735, %v2737
      %2856 = vadd.xlane.f32.xlu0 %v2855
      %v2857 = vpop.xlane.xlu0 %2856
      %v2858 = vadd.f32 %v2739, %v2741
      %2859 = vadd.xlane.f32.xlu0 %v2858
      %v2860 = vpop.xlane.xlu0 %2859
      %v2861 = vadd.f32 %v2743, %v2745
      %2862 = vadd.xlane.f32.xlu0 %v2861
      %v2863 = vpop.xlane.xlu0 %2862
      %v2864 = vadd.f32 %v2747, %v2749
      %2865 = vadd.xlane.f32.xlu0 %v2864
      %v2866 = vpop.xlane.xlu0 %2865
      %v2867 = vadd.f32 %v2751, %v2753
      %2868 = vadd.xlane.f32.xlu0 %v2867
      %v2869 = vpop.xlane.xlu0 %2868
      %v2870 = vadd.f32 %v2755, %v2757
      %2871 = vadd.xlane.f32.xlu0 %v2870
      %v2872 = vpop.xlane.xlu0 %2871
      %v2873 = vadd.f32 %v2759, %v2761
      %2874 = vadd.xlane.f32.xlu0 %v2873
      %v2875 = vpop.xlane.xlu0 %2874
      %v2876 = vadd.f32 %v2763, %v2765
      %2877 = vadd.xlane.f32.xlu0 %v2876
      %v2878 = vpop.xlane.xlu0 %2877
      %v2879 = vadd.f32 %v2767, %v2769
      %2880 = vadd.xlane.f32.xlu0 %v2879
      %v2881 = vpop.xlane.xlu0 %2880
      %v2882 = vadd.f32 %v2771, %v2773
      %2883 = vadd.xlane.f32.xlu0 %v2882
      %v2884 = vpop.xlane.xlu0 %2883
      %v2885 = vadd.f32 %v2775, %v2777
      %2886 = vadd.xlane.f32.xlu0 %v2885
      %v2887 = vpop.xlane.xlu0 %2886
      %v2888 = vadd.f32 %v2779, %v2781
      %2889 = vadd.xlane.f32.xlu0 %v2888
      %v2890 = vpop.xlane.xlu0 %2889
      %v2891 = vadd.f32 %v2783, %v2785
      %2892 = vadd.xlane.f32.xlu0 %v2891
      %v2893 = vpop.xlane.xlu0 %2892
      %v2894 = vadd.f32 %v2787, %v2789
      %2895 = vadd.xlane.f32.xlu0 %v2894
      %v2896 = vpop.xlane.xlu0 %2895
      %v2897 = vadd.f32 %v2791, %v2793
      %2898 = vadd.xlane.f32.xlu0 %v2897
      %v2899 = vpop.xlane.xlu0 %2898
      %v2900 = vadd.f32 %v2795, %v2797
      %2901 = vadd.xlane.f32.xlu0 %v2900
      %v2902 = vpop.xlane.xlu0 %2901
      %v2903 = vadd.f32 %v2799, %v2801
      %2904 = vadd.xlane.f32.xlu0 %v2903
      %v2905 = vpop.xlane.xlu0 %2904
      %v2906 = vadd.f32 %v2803, %v2805
      %2907 = vadd.xlane.f32.xlu0 %v2906
      %v2908 = vpop.xlane.xlu0 %2907
      %v2909 = vadd.f32 %v2807, %v2809
      %2910 = vadd.xlane.f32.xlu0 %v2909
      %v2911 = vpop.xlane.xlu0 %2910
      %v2912 = vadd.f32 %v2811, %v2813
      %2913 = vadd.xlane.f32.xlu0 %v2912
      %v2914 = vpop.xlane.xlu0 %2913
      %v2915 = vadd.f32 %v2815, %v2817
      %2916 = vadd.xlane.f32.xlu0 %v2915
      %v2917 = vpop.xlane.xlu0 %2916
      %v2918 = vadd.f32 %v2819, %v2821
      %2919 = vadd.xlane.f32.xlu0 %v2918
      %v2920 = vpop.xlane.xlu0 %2919
      %v2921 = vadd.f32 %v2823, %v2825
      %2922 = vadd.xlane.f32.xlu0 %v2921
      %v2923 = vpop.xlane.xlu0 %2922
      %v2924 = vadd.f32 %v2827, %v2829
      %2925 = vadd.xlane.f32.xlu0 %v2924
      %v2926 = vpop.xlane.xlu0 %2925
      %v2927 = vadd.f32 %v2831, %v2833
      %2928 = vadd.xlane.f32.xlu0 %v2927
      %v2929 = vpop.xlane.xlu0 %2928
      %v2930 = vrcp.pop %v2836
      %v2931 = vrcp.pop %v2839
      %v2932 = vrcp.pop %v2842
      %v2933 = vrcp.pop %v2845
      %v2934 = vrcp.pop %v2848
      %v2935 = vrcp.pop %v2851
      %v2936 = vrcp.pop %v2854
      %v2937 = vrcp.pop %v2857
      %v2938 = vrcp.pop %v2860
      %v2939 = vrcp.pop %v2863
      %v2940 = vrcp.pop %v2866
      %v2941 = vrcp.pop %v2869
      %v2942 = vrcp.pop %v2872
      %v2943 = vrcp.pop %v2875
      %v2944 = vrcp.pop %v2878
      %v2945 = vrcp.pop %v2881
      %v2946 = vrcp.pop %v2884
      %v2947 = vrcp.pop %v2887
      %v2948 = vrcp.pop %v2890
      %v2949 = vrcp.pop %v2893
      %v2950 = vrcp.pop %v2896
      %v2951 = vrcp.pop %v2899
      %v2952 = vrcp.pop %v2902
      %v2953 = vrcp.pop %v2905
      %v2954 = vrcp.pop %v2908
      %v2955 = vrcp.pop %v2911
      %v2956 = vrcp.pop %v2914
      %v2957 = vrcp.pop %v2917
      %v2958 = vrcp.pop %v2920
      %v2959 = vrcp.pop %v2923
      %v2960 = vrcp.pop %v2926
      %v2961 = vrcp.pop %v2929
      %v2962 = vmul.f32 %v2707, %v2930
      %v2963 = vmul.f32 %v2709, %v2930
      %v2964 = vmul.f32 %v2711, %v2931
      %v2965 = vmul.f32 %v2713, %v2931
      %v2966 = vmul.f32 %v2715, %v2932
      %v2967 = vmul.f32 %v2717, %v2932
      %v2968 = vmul.f32 %v2719, %v2933
      %v2969 = vmul.f32 %v2721, %v2933
      %v2970 = vmul.f32 %v2723, %v2934
      %v2971 = vmul.f32 %v2725, %v2934
      %v2972 = vmul.f32 %v2727, %v2935
      %v2973 = vmul.f32 %v2729, %v2935
      %v2974 = vmul.f32 %v2731, %v2936
      %v2975 = vmul.f32 %v2733, %v2936
      %v2976 = vmul.f32 %v2735, %v2937
      %v2977 = vmul.f32 %v2737, %v2937
      %v2978 = vmul.f32 %v2739, %v2938
      %v2979 = vmul.f32 %v2741, %v2938
      %v2980 = vmul.f32 %v2743, %v2939
      %v2981 = vmul.f32 %v2745, %v2939
      %v2982 = vmul.f32 %v2747, %v2940
      %v2983 = vmul.f32 %v2749, %v2940
      %v2984 = vmul.f32 %v2751, %v2941
      %v2985 = vmul.f32 %v2753, %v2941
      %v2986 = vmul.f32 %v2755, %v2942
      %v2987 = vmul.f32 %v2757, %v2942
      %v2988 = vmul.f32 %v2759, %v2943
      %v2989 = vmul.f32 %v2761, %v2943
      %v2990 = vmul.f32 %v2763, %v2944
      %v2991 = vmul.f32 %v2765, %v2944
      %v2992 = vmul.f32 %v2767, %v2945
      %v2993 = vmul.f32 %v2769, %v2945
      %v2994 = vmul.f32 %v2771, %v2946
      %v2995 = vmul.f32 %v2773, %v2946
      %v2996 = vmul.f32 %v2775, %v2947
      %v2997 = vmul.f32 %v2777, %v2947
      %v2998 = vmul.f32 %v2779, %v2948
      %v2999 = vmul.f32 %v2781, %v2948
      %v3000 = vmul.f32 %v2783, %v2949
      %v3001 = vmul.f32 %v2785, %v2949
      %v3002 = vmul.f32 %v2787, %v2950
      %v3003 = vmul.f32 %v2789, %v2950
      %v3004 = vmul.f32 %v2791, %v2951
      %v3005 = vmul.f32 %v2793, %v2951
      %v3006 = vmul.f32 %v2795, %v2952
      %v3007 = vmul.f32 %v2797, %v2952
      %v3008 = vmul.f32 %v2799, %v2953
      %v3009 = vmul.f32 %v2801, %v2953
      %v3010 = vmul.f32 %v2803, %v2954
      %v3011 = vmul.f32 %v2805, %v2954
      %v3012 = vmul.f32 %v2807, %v2955
      %v3013 = vmul.f32 %v2809, %v2955
      %v3014 = vmul.f32 %v2811, %v2956
      %v3015 = vmul.f32 %v2813, %v2956
      %v3016 = vmul.f32 %v2815, %v2957
      %v3017 = vmul.f32 %v2817, %v2957
      %v3018 = vmul.f32 %v2819, %v2958
      %v3019 = vmul.f32 %v2821, %v2958
      %v3020 = vmul.f32 %v2823, %v2959
      %v3021 = vmul.f32 %v2825, %v2959
      %v3022 = vmul.f32 %v2827, %v2960
      %v3023 = vmul.f32 %v2829, %v2960
      %v3024 = vmul.f32 %v2831, %v2961
      %v3025 = vmul.f32 %v2833, %v2961
      %3026 = vmatprep.subr.mxu0 0.0
      %3027 = vmatpush1.msra.mxu0 %v2046
      %3028 = vmatprep.subr.mxu0 0.0
      %3029 = vmatpush1.msra.mxu0 %v2041
      %3030 = vmatprep.subr.mxu0 0.0
      %3031 = vmatpush1.msra.mxu0 %v2036
      %3032 = vmatprep.subr.mxu0 0.0
      %3033 = vmatpush1.msra.mxu0 %v2031
      %3034 = vmatprep.subr.mxu0 0.0
      %3035 = vmatpush1.msra.mxu0 %v2026
      %3036 = vmatprep.subr.mxu0 0.0
      %3037 = vmatpush1.msra.mxu0 %v2021
      %3038 = vmatprep.subr.mxu0 0.0
      %3039 = vmatpush1.msra.mxu0 %v2016
      %3040 = vmatprep.subr.mxu0 0.0
      %3041 = vmatpush1.msra.mxu0 %v2011
      %3042 = vmatprep.subr.mxu0 0.0
      %3043 = vmatpush1.msra.mxu0 %v2006
      %3044 = vmatprep.subr.mxu0 0.0
      %3045 = vmatpush1.msra.mxu0 %v2001
      %3046 = vmatprep.subr.mxu0 0.0
      %3047 = vmatpush1.msra.mxu0 %v1996
      %3048 = vmatprep.subr.mxu0 0.0
      %3049 = vmatpush1.msra.mxu0 %v1991
      %3050 = vmatprep.subr.mxu0 0.0
      %3051 = vmatpush1.msra.mxu0 %v1986
      %3052 = vmatprep.subr.mxu0 0.0
      %3053 = vmatpush1.msra.mxu0 %v1981
      %3054 = vmatprep.subr.mxu0 0.0
      %3055 = vmatpush1.msra.mxu0 %v1976
      %3056 = vmatprep.subr.mxu0 0.0
      %3057 = vmatpush1.msra.mxu0 %v1971
      %3058 = vmatprep.subr.mxu0 0.0
      %3059 = vmatpush2.msra.mxu0 %v2126
      %3060 = vmatprep.subr.mxu0 0.0
      %3061 = vmatpush2.msra.mxu0 %v2121
      %3062 = vmatprep.subr.mxu0 0.0
      %3063 = vmatpush2.msra.mxu0 %v2116
      %3064 = vmatprep.subr.mxu0 0.0
      %3065 = vmatpush2.msra.mxu0 %v2111
      %3066 = vmatprep.subr.mxu0 0.0
      %3067 = vmatpush2.msra.mxu0 %v2106
      %3068 = vmatprep.subr.mxu0 0.0
      %3069 = vmatpush2.msra.mxu0 %v2101
      %3070 = vmatprep.subr.mxu0 0.0
      %3071 = vmatpush2.msra.mxu0 %v2096
      %3072 = vmatprep.subr.mxu0 0.0
      %3073 = vmatpush2.msra.mxu0 %v2091
      %3074 = vmatprep.subr.mxu0 0.0
      %3075 = vmatpush2.msra.mxu0 %v2086
      %3076 = vmatprep.subr.mxu0 0.0
      %3077 = vmatpush2.msra.mxu0 %v2081
      %3078 = vmatprep.subr.mxu0 0.0
      %3079 = vmatpush2.msra.mxu0 %v2076
      %3080 = vmatprep.subr.mxu0 0.0
      %3081 = vmatpush2.msra.mxu0 %v2071
      %3082 = vmatprep.subr.mxu0 0.0
      %3083 = vmatpush2.msra.mxu0 %v2066
      %3084 = vmatprep.subr.mxu0 0.0
      %3085 = vmatpush2.msra.mxu0 %v2061
      %3086 = vmatprep.subr.mxu0 0.0
      %3087 = vmatpush2.msra.mxu0 %v2056
      %3088 = vmatprep.subr.mxu0 0.0
      %3089 = vmatpush2.msra.mxu0 %v2051
      %3090 = vmatprep.mubr.f32.mxu0 %v2963
      %3091 = vmatmul.mubr.f32.gmra.mxu0 %v2962
      %v3092 = vpop.f32.mrf.mxu0
      %v3093 = vadd.f32 0.0, %v3092
      %v3094 = vpop.f32.mrf.mxu0
      %3095 = vmatprep.mubr.f32.mxu0 %v2965
      %3096 = vmatmul.mubr.f32.gmra.mxu0 %v2964
      %v3097 = vpop.f32.mrf.mxu0
      %v3098 = vadd.f32 0.0, %v3097
      %v3099 = vpop.f32.mrf.mxu0
      %3100 = vmatprep.mubr.f32.mxu0 %v2967
      %3101 = vmatmul.mubr.f32.gmra.mxu0 %v2966
      %v3102 = vpop.f32.mrf.mxu0
      %v3103 = vadd.f32 0.0, %v3102
      %v3104 = vpop.f32.mrf.mxu0
      %3105 = vmatprep.mubr.f32.mxu0 %v2969
      %3106 = vmatmul.mubr.f32.gmra.mxu0 %v2968
      %v3107 = vpop.f32.mrf.mxu0
      %v3108 = vadd.f32 0.0, %v3107
      %v3109 = vpop.f32.mrf.mxu0
      %3110 = vmatprep.mubr.f32.mxu0 %v2971
      %3111 = vmatmul.mubr.f32.gmra.mxu0 %v2970
      %v3112 = vpop.f32.mrf.mxu0
      %v3113 = vadd.f32 0.0, %v3112
      %v3114 = vpop.f32.mrf.mxu0
      %3115 = vmatprep.mubr.f32.mxu0 %v2973
      %3116 = vmatmul.mubr.f32.gmra.mxu0 %v2972
      %v3117 = vpop.f32.mrf.mxu0
      %v3118 = vadd.f32 0.0, %v3117
      %v3119 = vpop.f32.mrf.mxu0
      %3120 = vmatprep.mubr.f32.mxu0 %v2975
      %3121 = vmatmul.mubr.f32.gmra.mxu0 %v2974
      %v3122 = vpop.f32.mrf.mxu0
      %v3123 = vadd.f32 0.0, %v3122
      %v3124 = vpop.f32.mrf.mxu0
      %3125 = vmatprep.mubr.f32.mxu0 %v2977
      %3126 = vmatmul.mubr.f32.gmra.mxu0 %v2976
      %v3127 = vpop.f32.mrf.mxu0
      %v3128 = vadd.f32 0.0, %v3127
      %v3129 = vpop.f32.mrf.mxu0
      %3130 = vmatprep.mubr.f32.mxu0 %v2979
      %3131 = vmatmul.mubr.f32.gmra.mxu0 %v2978
      %v3132 = vpop.f32.mrf.mxu0
      %v3133 = vadd.f32 0.0, %v3132
      %v3134 = vpop.f32.mrf.mxu0
      %3135 = vmatprep.mubr.f32.mxu0 %v2981
      %3136 = vmatmul.mubr.f32.gmra.mxu0 %v2980
      %v3137 = vpop.f32.mrf.mxu0
      %v3138 = vadd.f32 0.0, %v3137
      %v3139 = vpop.f32.mrf.mxu0
      %3140 = vmatprep.mubr.f32.mxu0 %v2983
      %3141 = vmatmul.mubr.f32.gmra.mxu0 %v2982
      %v3142 = vpop.f32.mrf.mxu0
      %v3143 = vadd.f32 0.0, %v3142
      %v3144 = vpop.f32.mrf.mxu0
      %3145 = vmatprep.mubr.f32.mxu0 %v2985
      %3146 = vmatmul.mubr.f32.gmra.mxu0 %v2984
      %v3147 = vpop.f32.mrf.mxu0
      %v3148 = vadd.f32 0.0, %v3147
      %v3149 = vpop.f32.mrf.mxu0
      %3150 = vmatprep.mubr.f32.mxu0 %v2987
      %3151 = vmatmul.mubr.f32.gmra.mxu0 %v2986
      %v3152 = vpop.f32.mrf.mxu0
      %v3153 = vadd.f32 0.0, %v3152
      %v3154 = vpop.f32.mrf.mxu0
      %3155 = vmatprep.mubr.f32.mxu0 %v2989
      %3156 = vmatmul.mubr.f32.gmra.mxu0 %v2988
      %v3157 = vpop.f32.mrf.mxu0
      %v3158 = vadd.f32 0.0, %v3157
      %v3159 = vpop.f32.mrf.mxu0
      %3160 = vmatprep.mubr.f32.mxu0 %v2991
      %3161 = vmatmul.mubr.f32.gmra.mxu0 %v2990
      %v3162 = vpop.f32.mrf.mxu0
      %v3163 = vadd.f32 0.0, %v3162
      %v3164 = vpop.f32.mrf.mxu0
      %3165 = vmatprep.mubr.f32.mxu0 %v2993
      %3166 = vmatmul.mubr.f32.gmra.mxu0 %v2992
      %v3167 = vpop.f32.mrf.mxu0
      %v3168 = vadd.f32 0.0, %v3167
      %v3169 = vpop.f32.mrf.mxu0
      %3170 = vmatprep.mubr.f32.mxu0 %v2995
      %3171 = vmatmul.mubr.f32.gmra.mxu0 %v2994
      %v3172 = vpop.f32.mrf.mxu0
      %v3173 = vadd.f32 0.0, %v3172
      %v3174 = vpop.f32.mrf.mxu0
      %3175 = vmatprep.mubr.f32.mxu0 %v2997
      %3176 = vmatmul.mubr.f32.gmra.mxu0 %v2996
      %v3177 = vpop.f32.mrf.mxu0
      %v3178 = vadd.f32 0.0, %v3177
      %v3179 = vpop.f32.mrf.mxu0
      %3180 = vmatprep.mubr.f32.mxu0 %v2999
      %3181 = vmatmul.mubr.f32.gmra.mxu0 %v2998
      %v3182 = vpop.f32.mrf.mxu0
      %v3183 = vadd.f32 0.0, %v3182
      %v3184 = vpop.f32.mrf.mxu0
      %3185 = vmatprep.mubr.f32.mxu0 %v3001
      %3186 = vmatmul.mubr.f32.gmra.mxu0 %v3000
      %v3187 = vpop.f32.mrf.mxu0
      %v3188 = vadd.f32 0.0, %v3187
      %v3189 = vpop.f32.mrf.mxu0
      %3190 = vmatprep.mubr.f32.mxu0 %v3003
      %3191 = vmatmul.mubr.f32.gmra.mxu0 %v3002
      %v3192 = vpop.f32.mrf.mxu0
      %v3193 = vadd.f32 0.0, %v3192
      %v3194 = vpop.f32.mrf.mxu0
      %3195 = vmatprep.mubr.f32.mxu0 %v3005
      %3196 = vmatmul.mubr.f32.gmra.mxu0 %v3004
      %v3197 = vpop.f32.mrf.mxu0
      %v3198 = vadd.f32 0.0, %v3197
      %v3199 = vpop.f32.mrf.mxu0
      %3200 = vmatprep.mubr.f32.mxu0 %v3007
      %3201 = vmatmul.mubr.f32.gmra.mxu0 %v3006
      %v3202 = vpop.f32.mrf.mxu0
      %v3203 = vadd.f32 0.0, %v3202
      %v3204 = vpop.f32.mrf.mxu0
      %3205 = vmatprep.mubr.f32.mxu0 %v3009
      %3206 = vmatmul.mubr.f32.gmra.mxu0 %v3008
      %v3207 = vpop.f32.mrf.mxu0
      %v3208 = vadd.f32 0.0, %v3207
      %v3209 = vpop.f32.mrf.mxu0
      %3210 = vmatprep.mubr.f32.mxu0 %v3011
      %3211 = vmatmul.mubr.f32.gmra.mxu0 %v3010
      %v3212 = vpop.f32.mrf.mxu0
      %v3213 = vadd.f32 0.0, %v3212
      %v3214 = vpop.f32.mrf.mxu0
      %3215 = vmatprep.mubr.f32.mxu0 %v3013
      %3216 = vmatmul.mubr.f32.gmra.mxu0 %v3012
      %v3217 = vpop.f32.mrf.mxu0
      %v3218 = vadd.f32 0.0, %v3217
      %v3219 = vpop.f32.mrf.mxu0
      %3220 = vmatprep.mubr.f32.mxu0 %v3015
      %3221 = vmatmul.mubr.f32.gmra.mxu0 %v3014
      %v3222 = vpop.f32.mrf.mxu0
      %v3223 = vadd.f32 0.0, %v3222
      %v3224 = vpop.f32.mrf.mxu0
      %3225 = vmatprep.mubr.f32.mxu0 %v3017
      %3226 = vmatmul.mubr.f32.gmra.mxu0 %v3016
      %v3227 = vpop.f32.mrf.mxu0
      %v3228 = vadd.f32 0.0, %v3227
      %v3229 = vpop.f32.mrf.mxu0
      %3230 = vmatprep.mubr.f32.mxu0 %v3019
      %3231 = vmatmul.mubr.f32.gmra.mxu0 %v3018
      %v3232 = vpop.f32.mrf.mxu0
      %v3233 = vadd.f32 0.0, %v3232
      %v3234 = vpop.f32.mrf.mxu0
      %3235 = vmatprep.mubr.f32.mxu0 %v3021
      %3236 = vmatmul.mubr.f32.gmra.mxu0 %v3020
      %v3237 = vpop.f32.mrf.mxu0
      %v3238 = vadd.f32 0.0, %v3237
      %v3239 = vpop.f32.mrf.mxu0
      %3240 = vmatprep.mubr.f32.mxu0 %v3023
      %3241 = vmatmul.mubr.f32.gmra.mxu0 %v3022
      %v3242 = vpop.f32.mrf.mxu0
      %v3243 = vadd.f32 0.0, %v3242
      %v3244 = vpop.f32.mrf.mxu0
      %3245 = vmatprep.mubr.f32.mxu0 %v3025
      %3246 = vmatmul.mubr.f32.gmra.mxu0 %v3024
      %v3247 = vpop.f32.mrf.mxu0
      %v3248 = vadd.f32 0.0, %v3247
      %v3249 = vpop.f32.mrf.mxu0
      %3250 = vdwg.mxu0
      %v3251 = vld [vmem:[%s8] sm:$0xff]
      %v3252 = vld [vmem:[%s9] sm:$0x1]
      %v3254 = vlaneseq
      %v3255 = vshrl.u32 %v3254, 7
      %v3256 = vsub.s32 0, %v3255
      %v3257 = vrot.slane %v3252, %v3256
      %v3260 = vsel %vm1055, %v3093, 0
      %v3263 = vsel %vm1055, %v3098, 0
      %v3266 = vsel %vm1055, %v3103, 0
      %v3269 = vsel %vm1055, %v3108, 0
      %v3272 = vsel %vm1055, %v3113, 0
      %v3275 = vsel %vm1055, %v3118, 0
      %v3278 = vsel %vm1055, %v3123, 0
      %v3281 = vsel %vm1055, %v3128, 0
      %v3284 = vsel %vm1055, %v3133, 0
      %v3287 = vsel %vm1055, %v3138, 0
      %v3290 = vsel %vm1055, %v3143, 0
      %v3293 = vsel %vm1055, %v3148, 0
      %v3296 = vsel %vm1055, %v3153, 0
      %v3299 = vsel %vm1055, %v3158, 0
      %v3302 = vsel %vm1055, %v3163, 0
      %v3305 = vsel %vm1055, %v3168, 0
      %v3308 = vsel %vm1055, %v3173, 0
      %v3311 = vsel %vm1055, %v3178, 0
      %v3314 = vsel %vm1055, %v3183, 0
      %v3317 = vsel %vm1055, %v3188, 0
      %v3320 = vsel %vm1055, %v3193, 0
      %v3323 = vsel %vm1055, %v3198, 0
      %v3326 = vsel %vm1055, %v3203, 0
      %v3329 = vsel %vm1055, %v3208, 0
      %v3332 = vsel %vm1055, %v3213, 0
      %v3335 = vsel %vm1055, %v3218, 0
      %v3338 = vsel %vm1055, %v3223, 0
      %v3341 = vsel %vm1055, %v3228, 0
      %v3344 = vsel %vm1055, %v3233, 0
      %v3347 = vsel %vm1055, %v3238, 0
      %v3350 = vsel %vm1055, %v3243, 0
      %v3353 = vsel %vm1055, %v3248, 0
      %3355 = vmatprep.subr.mxu0 0.0
      %3356 = vmatpush1.msra.mxu0 0.0
      %3357 = vmatprep.subr.mxu0 0.0
      %3358 = vmatpush1.msra.mxu0 0.0
      %3359 = vmatprep.subr.mxu0 0.0
      %3360 = vmatpush1.msra.mxu0 0.0
      %3361 = vmatprep.subr.mxu0 0.0
      %3362 = vmatpush1.msra.mxu0 0.0
      %3363 = vmatprep.subr.mxu0 0.0
      %3364 = vmatpush1.msra.mxu0 0.0
      %3365 = vmatprep.subr.mxu0 0.0
      %3366 = vmatpush1.msra.mxu0 0.0
      %3367 = vmatprep.subr.mxu0 0.0
      %3368 = vmatpush1.msra.mxu0 0.0
      %3369 = vmatprep.subr.mxu0 0.0
      %3370 = vmatpush1.msra.mxu0 0.0
      %3371 = vmatprep.subr.mxu0 0.0
      %3372 = vmatpush1.msra.mxu0 0.0
      %3373 = vmatprep.subr.mxu0 0.0
      %3374 = vmatpush1.msra.mxu0 0.0
      %3375 = vmatprep.subr.mxu0 0.0
      %3376 = vmatpush1.msra.mxu0 0.0
      %3377 = vmatprep.subr.mxu0 0.0
      %3378 = vmatpush1.msra.mxu0 0.0
      %3379 = vmatprep.subr.mxu0 0.0
      %3380 = vmatpush1.msra.mxu0 0.0
      %3381 = vmatprep.subr.mxu0 0.0
      %3382 = vmatpush1.msra.mxu0 0.0
      %3383 = vmatprep.subr.mxu0 0.0
      %3384 = vmatpush1.msra.mxu0 0.0
      %3385 = vmatprep.subr.mxu0 0.0
      %3386 = vmatpush1.msra.mxu0 %v3251
      %3387 = vmatprep.subr.mxu0 0.0
      %3388 = vmatpush2.msra.mxu0 0.0
      %3389 = vmatprep.subr.mxu0 0.0
      %3390 = vmatpush2.msra.mxu0 0.0
      %3391 = vmatprep.subr.mxu0 0.0
      %3392 = vmatpush2.msra.mxu0 0.0
      %3393 = vmatprep.subr.mxu0 0.0
      %3394 = vmatpush2.msra.mxu0 0.0
      %3395 = vmatprep.subr.mxu0 0.0
      %3396 = vmatpush2.msra.mxu0 0.0
      %3397 = vmatprep.subr.mxu0 0.0
      %3398 = vmatpush2.msra.mxu0 0.0
      %3399 = vmatprep.subr.mxu0 0.0
      %3400 = vmatpush2.msra.mxu0 0.0
      %3401 = vmatprep.subr.mxu0 0.0
      %3402 = vmatpush2.msra.mxu0 0.0
      %3403 = vmatprep.subr.mxu0 0.0
      %3404 = vmatpush2.msra.mxu0 0.0
      %3405 = vmatprep.subr.mxu0 0.0
      %3406 = vmatpush2.msra.mxu0 0.0
      %3407 = vmatprep.subr.mxu0 0.0
      %3408 = vmatpush2.msra.mxu0 0.0
      %3409 = vmatprep.subr.mxu0 0.0
      %3410 = vmatpush2.msra.mxu0 0.0
      %3411 = vmatprep.subr.mxu0 0.0
      %3412 = vmatpush2.msra.mxu0 0.0
      %3413 = vmatprep.subr.mxu0 0.0
      %3414 = vmatpush2.msra.mxu0 0.0
      %3415 = vmatprep.subr.mxu0 0.0
      %3416 = vmatpush2.msra.mxu0 0.0
      %3417 = vmatprep.subr.mxu0 0.0
      %3418 = vmatpush2.msra.mxu0 0.0
      %3419 = vmatprep.mubr.f32.mxu0 0.0
      %3420 = vmatmul.mubr.f32.gmra.mxu0 %v3260
      %v3421 = vpop.f32.mrf.mxu0
      %v3422 = vadd.f32 %v3257, %v3421
      %v3423 = vpop.f32.mrf.mxu0
      %3424 = vmatprep.mubr.f32.mxu0 0.0
      %3425 = vmatmul.mubr.f32.gmra.mxu0 %v3263
      %v3426 = vpop.f32.mrf.mxu0
      %v3427 = vadd.f32 %v3257, %v3426
      %v3428 = vpop.f32.mrf.mxu0
      %3429 = vmatprep.mubr.f32.mxu0 0.0
      %3430 = vmatmul.mubr.f32.gmra.mxu0 %v3266
      %v3431 = vpop.f32.mrf.mxu0
      %v3432 = vadd.f32 %v3257, %v3431
      %v3433 = vpop.f32.mrf.mxu0
      %3434 = vmatprep.mubr.f32.mxu0 0.0
      %3435 = vmatmul.mubr.f32.gmra.mxu0 %v3269
      %v3436 = vpop.f32.mrf.mxu0
      %v3437 = vadd.f32 %v3257, %v3436
      %v3438 = vpop.f32.mrf.mxu0
      %3439 = vmatprep.mubr.f32.mxu0 0.0
      %3440 = vmatmul.mubr.f32.gmra.mxu0 %v3272
      %v3441 = vpop.f32.mrf.mxu0
      %v3442 = vadd.f32 %v3257, %v3441
      %v3443 = vpop.f32.mrf.mxu0
      %3444 = vmatprep.mubr.f32.mxu0 0.0
      %3445 = vmatmul.mubr.f32.gmra.mxu0 %v3275
      %v3446 = vpop.f32.mrf.mxu0
      %v3447 = vadd.f32 %v3257, %v3446
      %v3448 = vpop.f32.mrf.mxu0
      %3449 = vmatprep.mubr.f32.mxu0 0.0
      %3450 = vmatmul.mubr.f32.gmra.mxu0 %v3278
      %v3451 = vpop.f32.mrf.mxu0
      %v3452 = vadd.f32 %v3257, %v3451
      %v3453 = vpop.f32.mrf.mxu0
      %3454 = vmatprep.mubr.f32.mxu0 0.0
      %3455 = vmatmul.mubr.f32.gmra.mxu0 %v3281
      %v3456 = vpop.f32.mrf.mxu0
      %v3457 = vadd.f32 %v3257, %v3456
      %v3458 = vpop.f32.mrf.mxu0
      %3459 = vmatprep.mubr.f32.mxu0 0.0
      %3460 = vmatmul.mubr.f32.gmra.mxu0 %v3284
      %v3461 = vpop.f32.mrf.mxu0
      %v3462 = vadd.f32 %v3257, %v3461
      %v3463 = vpop.f32.mrf.mxu0
      %3464 = vmatprep.mubr.f32.mxu0 0.0
      %3465 = vmatmul.mubr.f32.gmra.mxu0 %v3287
      %v3466 = vpop.f32.mrf.mxu0
      %v3467 = vadd.f32 %v3257, %v3466
      %v3468 = vpop.f32.mrf.mxu0
      %3469 = vmatprep.mubr.f32.mxu0 0.0
      %3470 = vmatmul.mubr.f32.gmra.mxu0 %v3290
      %v3471 = vpop.f32.mrf.mxu0
      %v3472 = vadd.f32 %v3257, %v3471
      %v3473 = vpop.f32.mrf.mxu0
      %3474 = vmatprep.mubr.f32.mxu0 0.0
      %3475 = vmatmul.mubr.f32.gmra.mxu0 %v3293
      %v3476 = vpop.f32.mrf.mxu0
      %v3477 = vadd.f32 %v3257, %v3476
      %v3478 = vpop.f32.mrf.mxu0
      %3479 = vmatprep.mubr.f32.mxu0 0.0
      %3480 = vmatmul.mubr.f32.gmra.mxu0 %v3296
      %v3481 = vpop.f32.mrf.mxu0
      %v3482 = vadd.f32 %v3257, %v3481
      %v3483 = vpop.f32.mrf.mxu0
      %3484 = vmatprep.mubr.f32.mxu0 0.0
      %3485 = vmatmul.mubr.f32.gmra.mxu0 %v3299
      %v3486 = vpop.f32.mrf.mxu0
      %v3487 = vadd.f32 %v3257, %v3486
      %v3488 = vpop.f32.mrf.mxu0
      %3489 = vmatprep.mubr.f32.mxu0 0.0
      %3490 = vmatmul.mubr.f32.gmra.mxu0 %v3302
      %v3491 = vpop.f32.mrf.mxu0
      %v3492 = vadd.f32 %v3257, %v3491
      %v3493 = vpop.f32.mrf.mxu0
      %3494 = vmatprep.mubr.f32.mxu0 0.0
      %3495 = vmatmul.mubr.f32.gmra.mxu0 %v3305
      %v3496 = vpop.f32.mrf.mxu0
      %v3497 = vadd.f32 %v3257, %v3496
      %v3498 = vpop.f32.mrf.mxu0
      %3499 = vmatprep.mubr.f32.mxu0 0.0
      %3500 = vmatmul.mubr.f32.gmra.mxu0 %v3308
      %v3501 = vpop.f32.mrf.mxu0
      %v3502 = vadd.f32 %v3257, %v3501
      %v3503 = vpop.f32.mrf.mxu0
      %3504 = vmatprep.mubr.f32.mxu0 0.0
      %3505 = vmatmul.mubr.f32.gmra.mxu0 %v3311
      %v3506 = vpop.f32.mrf.mxu0
      %v3507 = vadd.f32 %v3257, %v3506
      %v3508 = vpop.f32.mrf.mxu0
      %3509 = vmatprep.mubr.f32.mxu0 0.0
      %3510 = vmatmul.mubr.f32.gmra.mxu0 %v3314
      %v3511 = vpop.f32.mrf.mxu0
      %v3512 = vadd.f32 %v3257, %v3511
      %v3513 = vpop.f32.mrf.mxu0
      %3514 = vmatprep.mubr.f32.mxu0 0.0
      %3515 = vmatmul.mubr.f32.gmra.mxu0 %v3317
      %v3516 = vpop.f32.mrf.mxu0
      %v3517 = vadd.f32 %v3257, %v3516
      %v3518 = vpop.f32.mrf.mxu0
      %3519 = vmatprep.mubr.f32.mxu0 0.0
      %3520 = vmatmul.mubr.f32.gmra.mxu0 %v3320
      %v3521 = vpop.f32.mrf.mxu0
      %v3522 = vadd.f32 %v3257, %v3521
      %v3523 = vpop.f32.mrf.mxu0
      %3524 = vmatprep.mubr.f32.mxu0 0.0
      %3525 = vmatmul.mubr.f32.gmra.mxu0 %v3323
      %v3526 = vpop.f32.mrf.mxu0
      %v3527 = vadd.f32 %v3257, %v3526
      %v3528 = vpop.f32.mrf.mxu0
      %3529 = vmatprep.mubr.f32.mxu0 0.0
      %3530 = vmatmul.mubr.f32.gmra.mxu0 %v3326
      %v3531 = vpop.f32.mrf.mxu0
      %v3532 = vadd.f32 %v3257, %v3531
      %v3533 = vpop.f32.mrf.mxu0
      %3534 = vmatprep.mubr.f32.mxu0 0.0
      %3535 = vmatmul.mubr.f32.gmra.mxu0 %v3329
      %v3536 = vpop.f32.mrf.mxu0
      %v3537 = vadd.f32 %v3257, %v3536
      %v3538 = vpop.f32.mrf.mxu0
      %3539 = vmatprep.mubr.f32.mxu0 0.0
      %3540 = vmatmul.mubr.f32.gmra.mxu0 %v3332
      %v3541 = vpop.f32.mrf.mxu0
      %v3542 = vadd.f32 %v3257, %v3541
      %v3543 = vpop.f32.mrf.mxu0
      %3544 = vmatprep.mubr.f32.mxu0 0.0
      %3545 = vmatmul.mubr.f32.gmra.mxu0 %v3335
      %v3546 = vpop.f32.mrf.mxu0
      %v3547 = vadd.f32 %v3257, %v3546
      %v3548 = vpop.f32.mrf.mxu0
      %3549 = vmatprep.mubr.f32.mxu0 0.0
      %3550 = vmatmul.mubr.f32.gmra.mxu0 %v3338
      %v3551 = vpop.f32.mrf.mxu0
      %v3552 = vadd.f32 %v3257, %v3551
      %v3553 = vpop.f32.mrf.mxu0
      %3554 = vmatprep.mubr.f32.mxu0 0.0
      %3555 = vmatmul.mubr.f32.gmra.mxu0 %v3341
      %v3556 = vpop.f32.mrf.mxu0
      %v3557 = vadd.f32 %v3257, %v3556
      %v3558 = vpop.f32.mrf.mxu0
      %3559 = vmatprep.mubr.f32.mxu0 0.0
      %3560 = vmatmul.mubr.f32.gmra.mxu0 %v3344
      %v3561 = vpop.f32.mrf.mxu0
      %v3562 = vadd.f32 %v3257, %v3561
      %v3563 = vpop.f32.mrf.mxu0
      %3564 = vmatprep.mubr.f32.mxu0 0.0
      %3565 = vmatmul.mubr.f32.gmra.mxu0 %v3347
      %v3566 = vpop.f32.mrf.mxu0
      %v3567 = vadd.f32 %v3257, %v3566
      %v3568 = vpop.f32.mrf.mxu0
      %3569 = vmatprep.mubr.f32.mxu0 0.0
      %3570 = vmatmul.mubr.f32.gmra.mxu0 %v3350
      %v3571 = vpop.f32.mrf.mxu0
      %v3572 = vadd.f32 %v3257, %v3571
      %v3573 = vpop.f32.mrf.mxu0
      %3574 = vmatprep.mubr.f32.mxu0 0.0
      %3575 = vmatmul.mubr.f32.gmra.mxu0 %v3353
      %v3576 = vpop.f32.mrf.mxu0
      %v3577 = vadd.f32 %v3257, %v3576
      %v3578 = vpop.f32.mrf.mxu0
      %3579 = vdwg.mxu0
      %vm3580 = vcmp.gt.f32.partialorder %v3422, 0.0
      %vm3581 = vcmp.gt.f32.partialorder %v3427, 0.0
      %vm3582 = vcmp.gt.f32.partialorder %v3432, 0.0
      %vm3583 = vcmp.gt.f32.partialorder %v3437, 0.0
      %vm3584 = vcmp.gt.f32.partialorder %v3442, 0.0
      %vm3585 = vcmp.gt.f32.partialorder %v3447, 0.0
      %vm3586 = vcmp.gt.f32.partialorder %v3452, 0.0
      %vm3587 = vcmp.gt.f32.partialorder %v3457, 0.0
      %vm3588 = vcmp.gt.f32.partialorder %v3462, 0.0
      %vm3589 = vcmp.gt.f32.partialorder %v3467, 0.0
      %vm3590 = vcmp.gt.f32.partialorder %v3472, 0.0
      %vm3591 = vcmp.gt.f32.partialorder %v3477, 0.0
      %vm3592 = vcmp.gt.f32.partialorder %v3482, 0.0
      %vm3593 = vcmp.gt.f32.partialorder %v3487, 0.0
      %vm3594 = vcmp.gt.f32.partialorder %v3492, 0.0
      %vm3595 = vcmp.gt.f32.partialorder %v3497, 0.0
      %vm3596 = vcmp.gt.f32.partialorder %v3502, 0.0
      %vm3597 = vcmp.gt.f32.partialorder %v3507, 0.0
      %vm3598 = vcmp.gt.f32.partialorder %v3512, 0.0
      %vm3599 = vcmp.gt.f32.partialorder %v3517, 0.0
      %vm3600 = vcmp.gt.f32.partialorder %v3522, 0.0
      %vm3601 = vcmp.gt.f32.partialorder %v3527, 0.0
      %vm3602 = vcmp.gt.f32.partialorder %v3532, 0.0
      %vm3603 = vcmp.gt.f32.partialorder %v3537, 0.0
      %vm3604 = vcmp.gt.f32.partialorder %v3542, 0.0
      %vm3605 = vcmp.gt.f32.partialorder %v3547, 0.0
      %vm3606 = vcmp.gt.f32.partialorder %v3552, 0.0
      %vm3607 = vcmp.gt.f32.partialorder %v3557, 0.0
      %vm3608 = vcmp.gt.f32.partialorder %v3562, 0.0
      %vm3609 = vcmp.gt.f32.partialorder %v3567, 0.0
      %vm3610 = vcmp.gt.f32.partialorder %v3572, 0.0
      %vm3611 = vcmp.gt.f32.partialorder %v3577, 0.0
      %v3612 = vmul.f32 %v3422, 0.01
      %v3613 = vmul.f32 %v3427, 0.01
      %v3614 = vmul.f32 %v3432, 0.01
      %v3615 = vmul.f32 %v3437, 0.01
      %v3616 = vmul.f32 %v3442, 0.01
      %v3617 = vmul.f32 %v3447, 0.01
      %v3618 = vmul.f32 %v3452, 0.01
      %v3619 = vmul.f32 %v3457, 0.01
      %v3620 = vmul.f32 %v3462, 0.01
      %v3621 = vmul.f32 %v3467, 0.01
      %v3622 = vmul.f32 %v3472, 0.01
      %v3623 = vmul.f32 %v3477, 0.01
      %v3624 = vmul.f32 %v3482, 0.01
      %v3625 = vmul.f32 %v3487, 0.01
      %v3626 = vmul.f32 %v3492, 0.01
      %v3627 = vmul.f32 %v3497, 0.01
      %v3628 = vmul.f32 %v3502, 0.01
      %v3629 = vmul.f32 %v3507, 0.01
      %v3630 = vmul.f32 %v3512, 0.01
      %v3631 = vmul.f32 %v3517, 0.01
      %v3632 = vmul.f32 %v3522, 0.01
      %v3633 = vmul.f32 %v3527, 0.01
      %v3634 = vmul.f32 %v3532, 0.01
      %v3635 = vmul.f32 %v3537, 0.01
      %v3636 = vmul.f32 %v3542, 0.01
      %v3637 = vmul.f32 %v3547, 0.01
      %v3638 = vmul.f32 %v3552, 0.01
      %v3639 = vmul.f32 %v3557, 0.01
      %v3640 = vmul.f32 %v3562, 0.01
      %v3641 = vmul.f32 %v3567, 0.01
      %v3642 = vmul.f32 %v3572, 0.01
      %v3643 = vmul.f32 %v3577, 0.01
      %v3644 = vsel %vm3580, %v3422, %v3612
      %v3645 = vsel %vm3581, %v3427, %v3613
      %v3646 = vsel %vm3582, %v3432, %v3614
      %v3647 = vsel %vm3583, %v3437, %v3615
      %v3648 = vsel %vm3584, %v3442, %v3616
      %v3649 = vsel %vm3585, %v3447, %v3617
      %v3650 = vsel %vm3586, %v3452, %v3618
      %v3651 = vsel %vm3587, %v3457, %v3619
      %v3652 = vsel %vm3588, %v3462, %v3620
      %v3653 = vsel %vm3589, %v3467, %v3621
      %v3654 = vsel %vm3590, %v3472, %v3622
      %v3655 = vsel %vm3591, %v3477, %v3623
      %v3656 = vsel %vm3592, %v3482, %v3624
      %v3657 = vsel %vm3593, %v3487, %v3625
      %v3658 = vsel %vm3594, %v3492, %v3626
      %v3659 = vsel %vm3595, %v3497, %v3627
      %v3660 = vsel %vm3596, %v3502, %v3628
      %v3661 = vsel %vm3597, %v3507, %v3629
      %v3662 = vsel %vm3598, %v3512, %v3630
      %v3663 = vsel %vm3599, %v3517, %v3631
      %v3664 = vsel %vm3600, %v3522, %v3632
      %v3665 = vsel %vm3601, %v3527, %v3633
      %v3666 = vsel %vm3602, %v3532, %v3634
      %v3667 = vsel %vm3603, %v3537, %v3635
      %v3668 = vsel %vm3604, %v3542, %v3636
      %v3669 = vsel %vm3605, %v3547, %v3637
      %v3670 = vsel %vm3606, %v3552, %v3638
      %v3671 = vsel %vm3607, %v3557, %v3639
      %v3672 = vsel %vm3608, %v3562, %v3640
      %v3673 = vsel %vm3609, %v3567, %v3641
      %v3674 = vsel %vm3610, %v3572, %v3642
      %v3675 = vsel %vm3611, %v3577, %v3643
      %v3676 = vld [vmem:[%s10] sm:$0xff]
      %v3677 = vld [vmem:[%s11] sm:$0x1]
      %v3679 = vlaneseq
      %v3680 = vshrl.u32 %v3679, 7
      %v3681 = vsub.s32 0, %v3680
      %v3682 = vrot.slane %v3677, %v3681
      %v3685 = vsel %vm1055, %v3644, 0
      %v3688 = vsel %vm1055, %v3645, 0
      %v3691 = vsel %vm1055, %v3646, 0
      %v3694 = vsel %vm1055, %v3647, 0
      %v3697 = vsel %vm1055, %v3648, 0
      %v3700 = vsel %vm1055, %v3649, 0
      %v3703 = vsel %vm1055, %v3650, 0
      %v3706 = vsel %vm1055, %v3651, 0
      %v3709 = vsel %vm1055, %v3652, 0
      %v3712 = vsel %vm1055, %v3653, 0
      %v3715 = vsel %vm1055, %v3654, 0
      %v3718 = vsel %vm1055, %v3655, 0
      %v3721 = vsel %vm1055, %v3656, 0
      %v3724 = vsel %vm1055, %v3657, 0
      %v3727 = vsel %vm1055, %v3658, 0
      %v3730 = vsel %vm1055, %v3659, 0
      %v3733 = vsel %vm1055, %v3660, 0
      %v3736 = vsel %vm1055, %v3661, 0
      %v3739 = vsel %vm1055, %v3662, 0
      %v3742 = vsel %vm1055, %v3663, 0
      %v3745 = vsel %vm1055, %v3664, 0
      %v3748 = vsel %vm1055, %v3665, 0
      %v3751 = vsel %vm1055, %v3666, 0
      %v3754 = vsel %vm1055, %v3667, 0
      %v3757 = vsel %vm1055, %v3668, 0
      %v3760 = vsel %vm1055, %v3669, 0
      %v3763 = vsel %vm1055, %v3670, 0
      %v3766 = vsel %vm1055, %v3671, 0
      %v3769 = vsel %vm1055, %v3672, 0
      %v3772 = vsel %vm1055, %v3673, 0
      %v3775 = vsel %vm1055, %v3674, 0
      %v3778 = vsel %vm1055, %v3675, 0
      %3780 = vmatprep.subr.mxu0 0.0
      %3781 = vmatpush1.msra.mxu0 0.0
      %3782 = vmatprep.subr.mxu0 0.0
      %3783 = vmatpush1.msra.mxu0 0.0
      %3784 = vmatprep.subr.mxu0 0.0
      %3785 = vmatpush1.msra.mxu0 0.0
      %3786 = vmatprep.subr.mxu0 0.0
      %3787 = vmatpush1.msra.mxu0 0.0
      %3788 = vmatprep.subr.mxu0 0.0
      %3789 = vmatpush1.msra.mxu0 0.0
      %3790 = vmatprep.subr.mxu0 0.0
      %3791 = vmatpush1.msra.mxu0 0.0
      %3792 = vmatprep.subr.mxu0 0.0
      %3793 = vmatpush1.msra.mxu0 0.0
      %3794 = vmatprep.subr.mxu0 0.0
      %3795 = vmatpush1.msra.mxu0 0.0
      %3796 = vmatprep.subr.mxu0 0.0
      %3797 = vmatpush1.msra.mxu0 0.0
      %3798 = vmatprep.subr.mxu0 0.0
      %3799 = vmatpush1.msra.mxu0 0.0
      %3800 = vmatprep.subr.mxu0 0.0
      %3801 = vmatpush1.msra.mxu0 0.0
      %3802 = vmatprep.subr.mxu0 0.0
      %3803 = vmatpush1.msra.mxu0 0.0
      %3804 = vmatprep.subr.mxu0 0.0
      %3805 = vmatpush1.msra.mxu0 0.0
      %3806 = vmatprep.subr.mxu0 0.0
      %3807 = vmatpush1.msra.mxu0 0.0
      %3808 = vmatprep.subr.mxu0 0.0
      %3809 = vmatpush1.msra.mxu0 0.0
      %3810 = vmatprep.subr.mxu0 0.0
      %3811 = vmatpush1.msra.mxu0 %v3676
      %3812 = vmatprep.subr.mxu0 0.0
      %3813 = vmatpush2.msra.mxu0 0.0
      %3814 = vmatprep.subr.mxu0 0.0
      %3815 = vmatpush2.msra.mxu0 0.0
      %3816 = vmatprep.subr.mxu0 0.0
      %3817 = vmatpush2.msra.mxu0 0.0
      %3818 = vmatprep.subr.mxu0 0.0
      %3819 = vmatpush2.msra.mxu0 0.0
      %3820 = vmatprep.subr.mxu0 0.0
      %3821 = vmatpush2.msra.mxu0 0.0
      %3822 = vmatprep.subr.mxu0 0.0
      %3823 = vmatpush2.msra.mxu0 0.0
      %3824 = vmatprep.subr.mxu0 0.0
      %3825 = vmatpush2.msra.mxu0 0.0
      %3826 = vmatprep.subr.mxu0 0.0
      %3827 = vmatpush2.msra.mxu0 0.0
      %3828 = vmatprep.subr.mxu0 0.0
      %3829 = vmatpush2.msra.mxu0 0.0
      %3830 = vmatprep.subr.mxu0 0.0
      %3831 = vmatpush2.msra.mxu0 0.0
      %3832 = vmatprep.subr.mxu0 0.0
      %3833 = vmatpush2.msra.mxu0 0.0
      %3834 = vmatprep.subr.mxu0 0.0
      %3835 = vmatpush2.msra.mxu0 0.0
      %3836 = vmatprep.subr.mxu0 0.0
      %3837 = vmatpush2.msra.mxu0 0.0
      %3838 = vmatprep.subr.mxu0 0.0
      %3839 = vmatpush2.msra.mxu0 0.0
      %3840 = vmatprep.subr.mxu0 0.0
      %3841 = vmatpush2.msra.mxu0 0.0
      %3842 = vmatprep.subr.mxu0 0.0
      %3843 = vmatpush2.msra.mxu0 0.0
      %3844 = vmatprep.mubr.f32.mxu0 0.0
      %3845 = vmatmul.mubr.f32.gmra.mxu0 %v3685
      %v3846 = vpop.f32.mrf.mxu0
      %v3847 = vadd.f32 %v3682, %v3846
      %v3848 = vpop.f32.mrf.mxu0
      %3849 = vmatprep.mubr.f32.mxu0 0.0
      %3850 = vmatmul.mubr.f32.gmra.mxu0 %v3688
      %v3851 = vpop.f32.mrf.mxu0
      %v3852 = vadd.f32 %v3682, %v3851
      %v3853 = vpop.f32.mrf.mxu0
      %3854 = vmatprep.mubr.f32.mxu0 0.0
      %3855 = vmatmul.mubr.f32.gmra.mxu0 %v3691
      %v3856 = vpop.f32.mrf.mxu0
      %v3857 = vadd.f32 %v3682, %v3856
      %v3858 = vpop.f32.mrf.mxu0
      %3859 = vmatprep.mubr.f32.mxu0 0.0
      %3860 = vmatmul.mubr.f32.gmra.mxu0 %v3694
      %v3861 = vpop.f32.mrf.mxu0
      %v3862 = vadd.f32 %v3682, %v3861
      %v3863 = vpop.f32.mrf.mxu0
      %3864 = vmatprep.mubr.f32.mxu0 0.0
      %3865 = vmatmul.mubr.f32.gmra.mxu0 %v3697
      %v3866 = vpop.f32.mrf.mxu0
      %v3867 = vadd.f32 %v3682, %v3866
      %v3868 = vpop.f32.mrf.mxu0
      %3869 = vmatprep.mubr.f32.mxu0 0.0
      %3870 = vmatmul.mubr.f32.gmra.mxu0 %v3700
      %v3871 = vpop.f32.mrf.mxu0
      %v3872 = vadd.f32 %v3682, %v3871
      %v3873 = vpop.f32.mrf.mxu0
      %3874 = vmatprep.mubr.f32.mxu0 0.0
      %3875 = vmatmul.mubr.f32.gmra.mxu0 %v3703
      %v3876 = vpop.f32.mrf.mxu0
      %v3877 = vadd.f32 %v3682, %v3876
      %v3878 = vpop.f32.mrf.mxu0
      %3879 = vmatprep.mubr.f32.mxu0 0.0
      %3880 = vmatmul.mubr.f32.gmra.mxu0 %v3706
      %v3881 = vpop.f32.mrf.mxu0
      %v3882 = vadd.f32 %v3682, %v3881
      %v3883 = vpop.f32.mrf.mxu0
      %3884 = vmatprep.mubr.f32.mxu0 0.0
      %3885 = vmatmul.mubr.f32.gmra.mxu0 %v3709
      %v3886 = vpop.f32.mrf.mxu0
      %v3887 = vadd.f32 %v3682, %v3886
      %v3888 = vpop.f32.mrf.mxu0
      %3889 = vmatprep.mubr.f32.mxu0 0.0
      %3890 = vmatmul.mubr.f32.gmra.mxu0 %v3712
      %v3891 = vpop.f32.mrf.mxu0
      %v3892 = vadd.f32 %v3682, %v3891
      %v3893 = vpop.f32.mrf.mxu0
      %3894 = vmatprep.mubr.f32.mxu0 0.0
      %3895 = vmatmul.mubr.f32.gmra.mxu0 %v3715
      %v3896 = vpop.f32.mrf.mxu0
      %v3897 = vadd.f32 %v3682, %v3896
      %v3898 = vpop.f32.mrf.mxu0
      %3899 = vmatprep.mubr.f32.mxu0 0.0
      %3900 = vmatmul.mubr.f32.gmra.mxu0 %v3718
      %v3901 = vpop.f32.mrf.mxu0
      %v3902 = vadd.f32 %v3682, %v3901
      %v3903 = vpop.f32.mrf.mxu0
      %3904 = vmatprep.mubr.f32.mxu0 0.0
      %3905 = vmatmul.mubr.f32.gmra.mxu0 %v3721
      %v3906 = vpop.f32.mrf.mxu0
      %v3907 = vadd.f32 %v3682, %v3906
      %v3908 = vpop.f32.mrf.mxu0
      %3909 = vmatprep.mubr.f32.mxu0 0.0
      %3910 = vmatmul.mubr.f32.gmra.mxu0 %v3724
      %v3911 = vpop.f32.mrf.mxu0
      %v3912 = vadd.f32 %v3682, %v3911
      %v3913 = vpop.f32.mrf.mxu0
      %3914 = vmatprep.mubr.f32.mxu0 0.0
      %3915 = vmatmul.mubr.f32.gmra.mxu0 %v3727
      %v3916 = vpop.f32.mrf.mxu0
      %v3917 = vadd.f32 %v3682, %v3916
      %v3918 = vpop.f32.mrf.mxu0
      %3919 = vmatprep.mubr.f32.mxu0 0.0
      %3920 = vmatmul.mubr.f32.gmra.mxu0 %v3730
      %v3921 = vpop.f32.mrf.mxu0
      %v3922 = vadd.f32 %v3682, %v3921
      %v3923 = vpop.f32.mrf.mxu0
      %3924 = vmatprep.mubr.f32.mxu0 0.0
      %3925 = vmatmul.mubr.f32.gmra.mxu0 %v3733
      %v3926 = vpop.f32.mrf.mxu0
      %v3927 = vadd.f32 %v3682, %v3926
      %v3928 = vpop.f32.mrf.mxu0
      %3929 = vmatprep.mubr.f32.mxu0 0.0
      %3930 = vmatmul.mubr.f32.gmra.mxu0 %v3736
      %v3931 = vpop.f32.mrf.mxu0
      %v3932 = vadd.f32 %v3682, %v3931
      %v3933 = vpop.f32.mrf.mxu0
      %3934 = vmatprep.mubr.f32.mxu0 0.0
      %3935 = vmatmul.mubr.f32.gmra.mxu0 %v3739
      %v3936 = vpop.f32.mrf.mxu0
      %v3937 = vadd.f32 %v3682, %v3936
      %v3938 = vpop.f32.mrf.mxu0
      %3939 = vmatprep.mubr.f32.mxu0 0.0
      %3940 = vmatmul.mubr.f32.gmra.mxu0 %v3742
      %v3941 = vpop.f32.mrf.mxu0
      %v3942 = vadd.f32 %v3682, %v3941
      %v3943 = vpop.f32.mrf.mxu0
      %3944 = vmatprep.mubr.f32.mxu0 0.0
      %3945 = vmatmul.mubr.f32.gmra.mxu0 %v3745
      %v3946 = vpop.f32.mrf.mxu0
      %v3947 = vadd.f32 %v3682, %v3946
      %v3948 = vpop.f32.mrf.mxu0
      %3949 = vmatprep.mubr.f32.mxu0 0.0
      %3950 = vmatmul.mubr.f32.gmra.mxu0 %v3748
      %v3951 = vpop.f32.mrf.mxu0
      %v3952 = vadd.f32 %v3682, %v3951
      %v3953 = vpop.f32.mrf.mxu0
      %3954 = vmatprep.mubr.f32.mxu0 0.0
      %3955 = vmatmul.mubr.f32.gmra.mxu0 %v3751
      %v3956 = vpop.f32.mrf.mxu0
      %v3957 = vadd.f32 %v3682, %v3956
      %v3958 = vpop.f32.mrf.mxu0
      %3959 = vmatprep.mubr.f32.mxu0 0.0
      %3960 = vmatmul.mubr.f32.gmra.mxu0 %v3754
      %v3961 = vpop.f32.mrf.mxu0
      %v3962 = vadd.f32 %v3682, %v3961
      %v3963 = vpop.f32.mrf.mxu0
      %3964 = vmatprep.mubr.f32.mxu0 0.0
      %3965 = vmatmul.mubr.f32.gmra.mxu0 %v3757
      %v3966 = vpop.f32.mrf.mxu0
      %v3967 = vadd.f32 %v3682, %v3966
      %v3968 = vpop.f32.mrf.mxu0
      %3969 = vmatprep.mubr.f32.mxu0 0.0
      %3970 = vmatmul.mubr.f32.gmra.mxu0 %v3760
      %v3971 = vpop.f32.mrf.mxu0
      %v3972 = vadd.f32 %v3682, %v3971
      %v3973 = vpop.f32.mrf.mxu0
      %3974 = vmatprep.mubr.f32.mxu0 0.0
      %3975 = vmatmul.mubr.f32.gmra.mxu0 %v3763
      %v3976 = vpop.f32.mrf.mxu0
      %v3977 = vadd.f32 %v3682, %v3976
      %v3978 = vpop.f32.mrf.mxu0
      %3979 = vmatprep.mubr.f32.mxu0 0.0
      %3980 = vmatmul.mubr.f32.gmra.mxu0 %v3766
      %v3981 = vpop.f32.mrf.mxu0
      %v3982 = vadd.f32 %v3682, %v3981
      %v3983 = vpop.f32.mrf.mxu0
      %3984 = vmatprep.mubr.f32.mxu0 0.0
      %3985 = vmatmul.mubr.f32.gmra.mxu0 %v3769
      %v3986 = vpop.f32.mrf.mxu0
      %v3987 = vadd.f32 %v3682, %v3986
      %v3988 = vpop.f32.mrf.mxu0
      %3989 = vmatprep.mubr.f32.mxu0 0.0
      %3990 = vmatmul.mubr.f32.gmra.mxu0 %v3772
      %v3991 = vpop.f32.mrf.mxu0
      %v3992 = vadd.f32 %v3682, %v3991
      %v3993 = vpop.f32.mrf.mxu0
      %3994 = vmatprep.mubr.f32.mxu0 0.0
      %3995 = vmatmul.mubr.f32.gmra.mxu0 %v3775
      %v3996 = vpop.f32.mrf.mxu0
      %v3997 = vadd.f32 %v3682, %v3996
      %v3998 = vpop.f32.mrf.mxu0
      %3999 = vmatprep.mubr.f32.mxu0 0.0
      %4000 = vmatmul.mubr.f32.gmra.mxu0 %v3778
      %v4001 = vpop.f32.mrf.mxu0
      %v4002 = vadd.f32 %v3682, %v4001
      %v4003 = vpop.f32.mrf.mxu0
      %4004 = vdwg.mxu0
      %vm4005 = vcmp.gt.f32.partialorder %v3847, 0.0
      %vm4006 = vcmp.gt.f32.partialorder %v3852, 0.0
      %vm4007 = vcmp.gt.f32.partialorder %v3857, 0.0
      %vm4008 = vcmp.gt.f32.partialorder %v3862, 0.0
      %vm4009 = vcmp.gt.f32.partialorder %v3867, 0.0
      %vm4010 = vcmp.gt.f32.partialorder %v3872, 0.0
      %vm4011 = vcmp.gt.f32.partialorder %v3877, 0.0
      %vm4012 = vcmp.gt.f32.partialorder %v3882, 0.0
      %vm4013 = vcmp.gt.f32.partialorder %v3887, 0.0
      %vm4014 = vcmp.gt.f32.partialorder %v3892, 0.0
      %vm4015 = vcmp.gt.f32.partialorder %v3897, 0.0
      %vm4016 = vcmp.gt.f32.partialorder %v3902, 0.0
      %vm4017 = vcmp.gt.f32.partialorder %v3907, 0.0
      %vm4018 = vcmp.gt.f32.partialorder %v3912, 0.0
      %vm4019 = vcmp.gt.f32.partialorder %v3917, 0.0
      %vm4020 = vcmp.gt.f32.partialorder %v3922, 0.0
      %vm4021 = vcmp.gt.f32.partialorder %v3927, 0.0
      %vm4022 = vcmp.gt.f32.partialorder %v3932, 0.0
      %vm4023 = vcmp.gt.f32.partialorder %v3937, 0.0
      %vm4024 = vcmp.gt.f32.partialorder %v3942, 0.0
      %vm4025 = vcmp.gt.f32.partialorder %v3947, 0.0
      %vm4026 = vcmp.gt.f32.partialorder %v3952, 0.0
      %vm4027 = vcmp.gt.f32.partialorder %v3957, 0.0
      %vm4028 = vcmp.gt.f32.partialorder %v3962, 0.0
      %vm4029 = vcmp.gt.f32.partialorder %v3967, 0.0
      %vm4030 = vcmp.gt.f32.partialorder %v3972, 0.0
      %vm4031 = vcmp.gt.f32.partialorder %v3977, 0.0
      %vm4032 = vcmp.gt.f32.partialorder %v3982, 0.0
      %vm4033 = vcmp.gt.f32.partialorder %v3987, 0.0
      %vm4034 = vcmp.gt.f32.partialorder %v3992, 0.0
      %vm4035 = vcmp.gt.f32.partialorder %v3997, 0.0
      %vm4036 = vcmp.gt.f32.partialorder %v4002, 0.0
      %v4037 = vmul.f32 %v3847, 0.01
      %v4038 = vmul.f32 %v3852, 0.01
      %v4039 = vmul.f32 %v3857, 0.01
      %v4040 = vmul.f32 %v3862, 0.01
      %v4041 = vmul.f32 %v3867, 0.01
      %v4042 = vmul.f32 %v3872, 0.01
      %v4043 = vmul.f32 %v3877, 0.01
      %v4044 = vmul.f32 %v3882, 0.01
      %v4045 = vmul.f32 %v3887, 0.01
      %v4046 = vmul.f32 %v3892, 0.01
      %v4047 = vmul.f32 %v3897, 0.01
      %v4048 = vmul.f32 %v3902, 0.01
      %v4049 = vmul.f32 %v3907, 0.01
      %v4050 = vmul.f32 %v3912, 0.01
      %v4051 = vmul.f32 %v3917, 0.01
      %v4052 = vmul.f32 %v3922, 0.01
      %v4053 = vmul.f32 %v3927, 0.01
      %v4054 = vmul.f32 %v3932, 0.01
      %v4055 = vmul.f32 %v3937, 0.01
      %v4056 = vmul.f32 %v3942, 0.01
      %v4057 = vmul.f32 %v3947, 0.01
      %v4058 = vmul.f32 %v3952, 0.01
      %v4059 = vmul.f32 %v3957, 0.01
      %v4060 = vmul.f32 %v3962, 0.01
      %v4061 = vmul.f32 %v3967, 0.01
      %v4062 = vmul.f32 %v3972, 0.01
      %v4063 = vmul.f32 %v3977, 0.01
      %v4064 = vmul.f32 %v3982, 0.01
      %v4065 = vmul.f32 %v3987, 0.01
      %v4066 = vmul.f32 %v3992, 0.01
      %v4067 = vmul.f32 %v3997, 0.01
      %v4068 = vmul.f32 %v4002, 0.01
      %v4069 = vsel %vm4005, %v3847, %v4037
      %v4070 = vsel %vm4006, %v3852, %v4038
      %v4071 = vsel %vm4007, %v3857, %v4039
      %v4072 = vsel %vm4008, %v3862, %v4040
      %v4073 = vsel %vm4009, %v3867, %v4041
      %v4074 = vsel %vm4010, %v3872, %v4042
      %v4075 = vsel %vm4011, %v3877, %v4043
      %v4076 = vsel %vm4012, %v3882, %v4044
      %v4077 = vsel %vm4013, %v3887, %v4045
      %v4078 = vsel %vm4014, %v3892, %v4046
      %v4079 = vsel %vm4015, %v3897, %v4047
      %v4080 = vsel %vm4016, %v3902, %v4048
      %v4081 = vsel %vm4017, %v3907, %v4049
      %v4082 = vsel %vm4018, %v3912, %v4050
      %v4083 = vsel %vm4019, %v3917, %v4051
      %v4084 = vsel %vm4020, %v3922, %v4052
      %v4085 = vsel %vm4021, %v3927, %v4053
      %v4086 = vsel %vm4022, %v3932, %v4054
      %v4087 = vsel %vm4023, %v3937, %v4055
      %v4088 = vsel %vm4024, %v3942, %v4056
      %v4089 = vsel %vm4025, %v3947, %v4057
      %v4090 = vsel %vm4026, %v3952, %v4058
      %v4091 = vsel %vm4027, %v3957, %v4059
      %v4092 = vsel %vm4028, %v3962, %v4060
      %v4093 = vsel %vm4029, %v3967, %v4061
      %v4094 = vsel %vm4030, %v3972, %v4062
      %v4095 = vsel %vm4031, %v3977, %v4063
      %v4096 = vsel %vm4032, %v3982, %v4064
      %v4097 = vsel %vm4033, %v3987, %v4065
      %v4098 = vsel %vm4034, %v3992, %v4066
      %v4099 = vsel %vm4035, %v3997, %v4067
      %v4100 = vsel %vm4036, %v4002, %v4068
      %v4101 = vld [vmem:[%s12] sm:$0xf]
      %v4102 = vld [vmem:[%s13] sm:$0x1]
      %v4104 = vlaneseq
      %v4105 = vshrl.u32 %v4104, 7
      %v4106 = vsub.s32 0, %v4105
      %v4107 = vrot.slane %v4102, %v4106
      %v4110 = vsel %vm1481, %v4069, 0
      %v4113 = vsel %vm1481, %v4070, 0
      %v4116 = vsel %vm1481, %v4071, 0
      %v4119 = vsel %vm1481, %v4072, 0
      %v4122 = vsel %vm1481, %v4073, 0
      %v4125 = vsel %vm1481, %v4074, 0
      %v4128 = vsel %vm1481, %v4075, 0
      %v4131 = vsel %vm1481, %v4076, 0
      %v4134 = vsel %vm1481, %v4077, 0
      %v4137 = vsel %vm1481, %v4078, 0
      %v4140 = vsel %vm1481, %v4079, 0
      %v4143 = vsel %vm1481, %v4080, 0
      %v4146 = vsel %vm1481, %v4081, 0
      %v4149 = vsel %vm1481, %v4082, 0
      %v4152 = vsel %vm1481, %v4083, 0
      %v4155 = vsel %vm1481, %v4084, 0
      %v4158 = vsel %vm1481, %v4085, 0
      %v4161 = vsel %vm1481, %v4086, 0
      %v4164 = vsel %vm1481, %v4087, 0
      %v4167 = vsel %vm1481, %v4088, 0
      %v4170 = vsel %vm1481, %v4089, 0
      %v4173 = vsel %vm1481, %v4090, 0
      %v4176 = vsel %vm1481, %v4091, 0
      %v4179 = vsel %vm1481, %v4092, 0
      %v4182 = vsel %vm1481, %v4093, 0
      %v4185 = vsel %vm1481, %v4094, 0
      %v4188 = vsel %vm1481, %v4095, 0
      %v4191 = vsel %vm1481, %v4096, 0
      %v4194 = vsel %vm1481, %v4097, 0
      %v4197 = vsel %vm1481, %v4098, 0
      %v4200 = vsel %vm1481, %v4099, 0
      %v4203 = vsel %vm1481, %v4100, 0
      %v4206 = vsel %vm1578, %v4101, 0
      %4208 = vmatprep.subr.mxu0 0.0
      %4209 = vmatpush1.msra.mxu0 0.0
      %4210 = vmatprep.subr.mxu0 0.0
      %4211 = vmatpush1.msra.mxu0 0.0
      %4212 = vmatprep.subr.mxu0 0.0
      %4213 = vmatpush1.msra.mxu0 0.0
      %4214 = vmatprep.subr.mxu0 0.0
      %4215 = vmatpush1.msra.mxu0 0.0
      %4216 = vmatprep.subr.mxu0 0.0
      %4217 = vmatpush1.msra.mxu0 0.0
      %4218 = vmatprep.subr.mxu0 0.0
      %4219 = vmatpush1.msra.mxu0 0.0
      %4220 = vmatprep.subr.mxu0 0.0
      %4221 = vmatpush1.msra.mxu0 0.0
      %4222 = vmatprep.subr.mxu0 0.0
      %4223 = vmatpush1.msra.mxu0 0.0
      %4224 = vmatprep.subr.mxu0 0.0
      %4225 = vmatpush1.msra.mxu0 0.0
      %4226 = vmatprep.subr.mxu0 0.0
      %4227 = vmatpush1.msra.mxu0 0.0
      %4228 = vmatprep.subr.mxu0 0.0
      %4229 = vmatpush1.msra.mxu0 0.0
      %4230 = vmatprep.subr.mxu0 0.0
      %4231 = vmatpush1.msra.mxu0 0.0
      %4232 = vmatprep.subr.mxu0 0.0
      %4233 = vmatpush1.msra.mxu0 0.0
      %4234 = vmatprep.subr.mxu0 0.0
      %4235 = vmatpush1.msra.mxu0 0.0
      %4236 = vmatprep.subr.mxu0 0.0
      %4237 = vmatpush1.msra.mxu0 0.0
      %4238 = vmatprep.subr.mxu0 0.0
      %4239 = vmatpush1.msra.mxu0 %v4206
      %4240 = vmatprep.subr.mxu0 0.0
      %4241 = vmatpush2.msra.mxu0 0.0
      %4242 = vmatprep.subr.mxu0 0.0
      %4243 = vmatpush2.msra.mxu0 0.0
      %4244 = vmatprep.subr.mxu0 0.0
      %4245 = vmatpush2.msra.mxu0 0.0
      %4246 = vmatprep.subr.mxu0 0.0
      %4247 = vmatpush2.msra.mxu0 0.0
      %4248 = vmatprep.subr.mxu0 0.0
      %4249 = vmatpush2.msra.mxu0 0.0
      %4250 = vmatprep.subr.mxu0 0.0
      %4251 = vmatpush2.msra.mxu0 0.0
      %4252 = vmatprep.subr.mxu0 0.0
      %4253 = vmatpush2.msra.mxu0 0.0
      %4254 = vmatprep.subr.mxu0 0.0
      %4255 = vmatpush2.msra.mxu0 0.0
      %4256 = vmatprep.subr.mxu0 0.0
      %4257 = vmatpush2.msra.mxu0 0.0
      %4258 = vmatprep.subr.mxu0 0.0
      %4259 = vmatpush2.msra.mxu0 0.0
      %4260 = vmatprep.subr.mxu0 0.0
      %4261 = vmatpush2.msra.mxu0 0.0
      %4262 = vmatprep.subr.mxu0 0.0
      %4263 = vmatpush2.msra.mxu0 0.0
      %4264 = vmatprep.subr.mxu0 0.0
      %4265 = vmatpush2.msra.mxu0 0.0
      %4266 = vmatprep.subr.mxu0 0.0
      %4267 = vmatpush2.msra.mxu0 0.0
      %4268 = vmatprep.subr.mxu0 0.0
      %4269 = vmatpush2.msra.mxu0 0.0
      %4270 = vmatprep.subr.mxu0 0.0
      %4271 = vmatpush2.msra.mxu0 0.0
      %4272 = vmatprep.mubr.f32.mxu0 0.0
      %4273 = vmatmul.mubr.f32.gmra.mxu0 %v4110
      %v4274 = vpop.f32.mrf.mxu0
      %v4275 = vadd.f32 %v4107, %v4274
      %v4276 = vpop.f32.mrf.mxu0
      %4277 = vmatprep.mubr.f32.mxu0 0.0
      %4278 = vmatmul.mubr.f32.gmra.mxu0 %v4113
      %v4279 = vpop.f32.mrf.mxu0
      %v4280 = vadd.f32 %v4107, %v4279
      %v4281 = vpop.f32.mrf.mxu0
      %4282 = vmatprep.mubr.f32.mxu0 0.0
      %4283 = vmatmul.mubr.f32.gmra.mxu0 %v4116
      %v4284 = vpop.f32.mrf.mxu0
      %v4285 = vadd.f32 %v4107, %v4284
      %v4286 = vpop.f32.mrf.mxu0
      %4287 = vmatprep.mubr.f32.mxu0 0.0
      %4288 = vmatmul.mubr.f32.gmra.mxu0 %v4119
      %v4289 = vpop.f32.mrf.mxu0
      %v4290 = vadd.f32 %v4107, %v4289
      %v4291 = vpop.f32.mrf.mxu0
      %4292 = vmatprep.mubr.f32.mxu0 0.0
      %4293 = vmatmul.mubr.f32.gmra.mxu0 %v4122
      %v4294 = vpop.f32.mrf.mxu0
      %v4295 = vadd.f32 %v4107, %v4294
      %v4296 = vpop.f32.mrf.mxu0
      %4297 = vmatprep.mubr.f32.mxu0 0.0
      %4298 = vmatmul.mubr.f32.gmra.mxu0 %v4125
      %v4299 = vpop.f32.mrf.mxu0
      %v4300 = vadd.f32 %v4107, %v4299
      %v4301 = vpop.f32.mrf.mxu0
      %4302 = vmatprep.mubr.f32.mxu0 0.0
      %4303 = vmatmul.mubr.f32.gmra.mxu0 %v4128
      %v4304 = vpop.f32.mrf.mxu0
      %v4305 = vadd.f32 %v4107, %v4304
      %v4306 = vpop.f32.mrf.mxu0
      %4307 = vmatprep.mubr.f32.mxu0 0.0
      %4308 = vmatmul.mubr.f32.gmra.mxu0 %v4131
      %v4309 = vpop.f32.mrf.mxu0
      %v4310 = vadd.f32 %v4107, %v4309
      %v4311 = vpop.f32.mrf.mxu0
      %4312 = vmatprep.mubr.f32.mxu0 0.0
      %4313 = vmatmul.mubr.f32.gmra.mxu0 %v4134
      %v4314 = vpop.f32.mrf.mxu0
      %v4315 = vadd.f32 %v4107, %v4314
      %v4316 = vpop.f32.mrf.mxu0
      %4317 = vmatprep.mubr.f32.mxu0 0.0
      %4318 = vmatmul.mubr.f32.gmra.mxu0 %v4137
      %v4319 = vpop.f32.mrf.mxu0
      %v4320 = vadd.f32 %v4107, %v4319
      %v4321 = vpop.f32.mrf.mxu0
      %4322 = vmatprep.mubr.f32.mxu0 0.0
      %4323 = vmatmul.mubr.f32.gmra.mxu0 %v4140
      %v4324 = vpop.f32.mrf.mxu0
      %v4325 = vadd.f32 %v4107, %v4324
      %v4326 = vpop.f32.mrf.mxu0
      %4327 = vmatprep.mubr.f32.mxu0 0.0
      %4328 = vmatmul.mubr.f32.gmra.mxu0 %v4143
      %v4329 = vpop.f32.mrf.mxu0
      %v4330 = vadd.f32 %v4107, %v4329
      %v4331 = vpop.f32.mrf.mxu0
      %4332 = vmatprep.mubr.f32.mxu0 0.0
      %4333 = vmatmul.mubr.f32.gmra.mxu0 %v4146
      %v4334 = vpop.f32.mrf.mxu0
      %v4335 = vadd.f32 %v4107, %v4334
      %v4336 = vpop.f32.mrf.mxu0
      %4337 = vmatprep.mubr.f32.mxu0 0.0
      %4338 = vmatmul.mubr.f32.gmra.mxu0 %v4149
      %v4339 = vpop.f32.mrf.mxu0
      %v4340 = vadd.f32 %v4107, %v4339
      %v4341 = vpop.f32.mrf.mxu0
      %4342 = vmatprep.mubr.f32.mxu0 0.0
      %4343 = vmatmul.mubr.f32.gmra.mxu0 %v4152
      %v4344 = vpop.f32.mrf.mxu0
      %v4345 = vadd.f32 %v4107, %v4344
      %v4346 = vpop.f32.mrf.mxu0
      %4347 = vmatprep.mubr.f32.mxu0 0.0
      %4348 = vmatmul.mubr.f32.gmra.mxu0 %v4155
      %v4349 = vpop.f32.mrf.mxu0
      %v4350 = vadd.f32 %v4107, %v4349
      %v4351 = vpop.f32.mrf.mxu0
      %4352 = vmatprep.mubr.f32.mxu0 0.0
      %4353 = vmatmul.mubr.f32.gmra.mxu0 %v4158
      %v4354 = vpop.f32.mrf.mxu0
      %v4355 = vadd.f32 %v4107, %v4354
      %v4356 = vpop.f32.mrf.mxu0
      %4357 = vmatprep.mubr.f32.mxu0 0.0
      %4358 = vmatmul.mubr.f32.gmra.mxu0 %v4161
      %v4359 = vpop.f32.mrf.mxu0
      %v4360 = vadd.f32 %v4107, %v4359
      %v4361 = vpop.f32.mrf.mxu0
      %4362 = vmatprep.mubr.f32.mxu0 0.0
      %4363 = vmatmul.mubr.f32.gmra.mxu0 %v4164
      %v4364 = vpop.f32.mrf.mxu0
      %v4365 = vadd.f32 %v4107, %v4364
      %v4366 = vpop.f32.mrf.mxu0
      %4367 = vmatprep.mubr.f32.mxu0 0.0
      %4368 = vmatmul.mubr.f32.gmra.mxu0 %v4167
      %v4369 = vpop.f32.mrf.mxu0
      %v4370 = vadd.f32 %v4107, %v4369
      %v4371 = vpop.f32.mrf.mxu0
      %4372 = vmatprep.mubr.f32.mxu0 0.0
      %4373 = vmatmul.mubr.f32.gmra.mxu0 %v4170
      %v4374 = vpop.f32.mrf.mxu0
      %v4375 = vadd.f32 %v4107, %v4374
      %v4376 = vpop.f32.mrf.mxu0
      %4377 = vmatprep.mubr.f32.mxu0 0.0
      %4378 = vmatmul.mubr.f32.gmra.mxu0 %v4173
      %v4379 = vpop.f32.mrf.mxu0
      %v4380 = vadd.f32 %v4107, %v4379
      %v4381 = vpop.f32.mrf.mxu0
      %4382 = vmatprep.mubr.f32.mxu0 0.0
      %4383 = vmatmul.mubr.f32.gmra.mxu0 %v4176
      %v4384 = vpop.f32.mrf.mxu0
      %v4385 = vadd.f32 %v4107, %v4384
      %v4386 = vpop.f32.mrf.mxu0
      %4387 = vmatprep.mubr.f32.mxu0 0.0
      %4388 = vmatmul.mubr.f32.gmra.mxu0 %v4179
      %v4389 = vpop.f32.mrf.mxu0
      %v4390 = vadd.f32 %v4107, %v4389
      %v4391 = vpop.f32.mrf.mxu0
      %4392 = vmatprep.mubr.f32.mxu0 0.0
      %4393 = vmatmul.mubr.f32.gmra.mxu0 %v4182
      %v4394 = vpop.f32.mrf.mxu0
      %v4395 = vadd.f32 %v4107, %v4394
      %v4396 = vpop.f32.mrf.mxu0
      %4397 = vmatprep.mubr.f32.mxu0 0.0
      %4398 = vmatmul.mubr.f32.gmra.mxu0 %v4185
      %v4399 = vpop.f32.mrf.mxu0
      %v4400 = vadd.f32 %v4107, %v4399
      %v4401 = vpop.f32.mrf.mxu0
      %4402 = vmatprep.mubr.f32.mxu0 0.0
      %4403 = vmatmul.mubr.f32.gmra.mxu0 %v4188
      %v4404 = vpop.f32.mrf.mxu0
      %v4405 = vadd.f32 %v4107, %v4404
      %v4406 = vpop.f32.mrf.mxu0
      %4407 = vmatprep.mubr.f32.mxu0 0.0
      %4408 = vmatmul.mubr.f32.gmra.mxu0 %v4191
      %v4409 = vpop.f32.mrf.mxu0
      %v4410 = vadd.f32 %v4107, %v4409
      %v4411 = vpop.f32.mrf.mxu0
      %4412 = vmatprep.mubr.f32.mxu0 0.0
      %4413 = vmatmul.mubr.f32.gmra.mxu0 %v4194
      %v4414 = vpop.f32.mrf.mxu0
      %v4415 = vadd.f32 %v4107, %v4414
      %v4416 = vpop.f32.mrf.mxu0
      %4417 = vmatprep.mubr.f32.mxu0 0.0
      %4418 = vmatmul.mubr.f32.gmra.mxu0 %v4197
      %v4419 = vpop.f32.mrf.mxu0
      %v4420 = vadd.f32 %v4107, %v4419
      %v4421 = vpop.f32.mrf.mxu0
      %4422 = vmatprep.mubr.f32.mxu0 0.0
      %4423 = vmatmul.mubr.f32.gmra.mxu0 %v4200
      %v4424 = vpop.f32.mrf.mxu0
      %v4425 = vadd.f32 %v4107, %v4424
      %v4426 = vpop.f32.mrf.mxu0
      %4427 = vmatprep.mubr.f32.mxu0 0.0
      %4428 = vmatmul.mubr.f32.gmra.mxu0 %v4203
      %v4429 = vpop.f32.mrf.mxu0
      %v4430 = vadd.f32 %v4107, %v4429
      %v4431 = vpop.f32.mrf.mxu0
      %4432 = vdwg.mxu0
      %vm4433 = vcmp.gt.f32.partialorder %v4275, 0.0
      %vm4434 = vcmp.gt.f32.partialorder %v4280, 0.0
      %vm4435 = vcmp.gt.f32.partialorder %v4285, 0.0
      %vm4436 = vcmp.gt.f32.partialorder %v4290, 0.0
      %vm4437 = vcmp.gt.f32.partialorder %v4295, 0.0
      %vm4438 = vcmp.gt.f32.partialorder %v4300, 0.0
      %vm4439 = vcmp.gt.f32.partialorder %v4305, 0.0
      %vm4440 = vcmp.gt.f32.partialorder %v4310, 0.0
      %vm4441 = vcmp.gt.f32.partialorder %v4315, 0.0
      %vm4442 = vcmp.gt.f32.partialorder %v4320, 0.0
      %vm4443 = vcmp.gt.f32.partialorder %v4325, 0.0
      %vm4444 = vcmp.gt.f32.partialorder %v4330, 0.0
      %vm4445 = vcmp.gt.f32.partialorder %v4335, 0.0
      %vm4446 = vcmp.gt.f32.partialorder %v4340, 0.0
      %vm4447 = vcmp.gt.f32.partialorder %v4345, 0.0
      %vm4448 = vcmp.gt.f32.partialorder %v4350, 0.0
      %vm4449 = vcmp.gt.f32.partialorder %v4355, 0.0
      %vm4450 = vcmp.gt.f32.partialorder %v4360, 0.0
      %vm4451 = vcmp.gt.f32.partialorder %v4365, 0.0
      %vm4452 = vcmp.gt.f32.partialorder %v4370, 0.0
      %vm4453 = vcmp.gt.f32.partialorder %v4375, 0.0
      %vm4454 = vcmp.gt.f32.partialorder %v4380, 0.0
      %vm4455 = vcmp.gt.f32.partialorder %v4385, 0.0
      %vm4456 = vcmp.gt.f32.partialorder %v4390, 0.0
      %vm4457 = vcmp.gt.f32.partialorder %v4395, 0.0
      %vm4458 = vcmp.gt.f32.partialorder %v4400, 0.0
      %vm4459 = vcmp.gt.f32.partialorder %v4405, 0.0
      %vm4460 = vcmp.gt.f32.partialorder %v4410, 0.0
      %vm4461 = vcmp.gt.f32.partialorder %v4415, 0.0
      %vm4462 = vcmp.gt.f32.partialorder %v4420, 0.0
      %vm4463 = vcmp.gt.f32.partialorder %v4425, 0.0
      %vm4464 = vcmp.gt.f32.partialorder %v4430, 0.0
      %v4465 = vmul.f32 %v4275, 0.01
      %v4466 = vmul.f32 %v4280, 0.01
      %v4467 = vmul.f32 %v4285, 0.01
      %v4468 = vmul.f32 %v4290, 0.01
      %v4469 = vmul.f32 %v4295, 0.01
      %v4470 = vmul.f32 %v4300, 0.01
      %v4471 = vmul.f32 %v4305, 0.01
      %v4472 = vmul.f32 %v4310, 0.01
      %v4473 = vmul.f32 %v4315, 0.01
      %v4474 = vmul.f32 %v4320, 0.01
      %v4475 = vmul.f32 %v4325, 0.01
      %v4476 = vmul.f32 %v4330, 0.01
      %v4477 = vmul.f32 %v4335, 0.01
      %v4478 = vmul.f32 %v4340, 0.01
      %v4479 = vmul.f32 %v4345, 0.01
      %v4480 = vmul.f32 %v4350, 0.01
      %v4481 = vmul.f32 %v4355, 0.01
      %v4482 = vmul.f32 %v4360, 0.01
      %v4483 = vmul.f32 %v4365, 0.01
      %v4484 = vmul.f32 %v4370, 0.01
      %v4485 = vmul.f32 %v4375, 0.01
      %v4486 = vmul.f32 %v4380, 0.01
      %v4487 = vmul.f32 %v4385, 0.01
      %v4488 = vmul.f32 %v4390, 0.01
      %v4489 = vmul.f32 %v4395, 0.01
      %v4490 = vmul.f32 %v4400, 0.01
      %v4491 = vmul.f32 %v4405, 0.01
      %v4492 = vmul.f32 %v4410, 0.01
      %v4493 = vmul.f32 %v4415, 0.01
      %v4494 = vmul.f32 %v4420, 0.01
      %v4495 = vmul.f32 %v4425, 0.01
      %v4496 = vmul.f32 %v4430, 0.01
      %v4497 = vsel %vm4433, %v4275, %v4465
      %v4498 = vsel %vm4434, %v4280, %v4466
      %v4499 = vsel %vm4435, %v4285, %v4467
      %v4500 = vsel %vm4436, %v4290, %v4468
      %v4501 = vsel %vm4437, %v4295, %v4469
      %v4502 = vsel %vm4438, %v4300, %v4470
      %v4503 = vsel %vm4439, %v4305, %v4471
      %v4504 = vsel %vm4440, %v4310, %v4472
      %v4505 = vsel %vm4441, %v4315, %v4473
      %v4506 = vsel %vm4442, %v4320, %v4474
      %v4507 = vsel %vm4443, %v4325, %v4475
      %v4508 = vsel %vm4444, %v4330, %v4476
      %v4509 = vsel %vm4445, %v4335, %v4477
      %v4510 = vsel %vm4446, %v4340, %v4478
      %v4511 = vsel %vm4447, %v4345, %v4479
      %v4512 = vsel %vm4448, %v4350, %v4480
      %v4513 = vsel %vm4449, %v4355, %v4481
      %v4514 = vsel %vm4450, %v4360, %v4482
      %v4515 = vsel %vm4451, %v4365, %v4483
      %v4516 = vsel %vm4452, %v4370, %v4484
      %v4517 = vsel %vm4453, %v4375, %v4485
      %v4518 = vsel %vm4454, %v4380, %v4486
      %v4519 = vsel %vm4455, %v4385, %v4487
      %v4520 = vsel %vm4456, %v4390, %v4488
      %v4521 = vsel %vm4457, %v4395, %v4489
      %v4522 = vsel %vm4458, %v4400, %v4490
      %v4523 = vsel %vm4459, %v4405, %v4491
      %v4524 = vsel %vm4460, %v4410, %v4492
      %v4525 = vsel %vm4461, %v4415, %v4493
      %v4526 = vsel %vm4462, %v4420, %v4494
      %v4527 = vsel %vm4463, %v4425, %v4495
      %v4528 = vsel %vm4464, %v4430, %v4496
      %v4529 = vld [vmem:[%s14] sm:$0xff]
      %4530 = vmatprep.subr.mxu0 0.0
      %4531 = vmatpush1.msra.mxu0 0.0
      %4532 = vmatprep.subr.mxu0 0.0
      %4533 = vmatpush1.msra.mxu0 0.0
      %4534 = vmatprep.subr.mxu0 0.0
      %4535 = vmatpush1.msra.mxu0 0.0
      %4536 = vmatprep.subr.mxu0 0.0
      %4537 = vmatpush1.msra.mxu0 0.0
      %4538 = vmatprep.subr.mxu0 0.0
      %4539 = vmatpush1.msra.mxu0 0.0
      %4540 = vmatprep.subr.mxu0 0.0
      %4541 = vmatpush1.msra.mxu0 0.0
      %4542 = vmatprep.subr.mxu0 0.0
      %4543 = vmatpush1.msra.mxu0 0.0
      %4544 = vmatprep.subr.mxu0 0.0
      %4545 = vmatpush1.msra.mxu0 0.0
      %4546 = vmatprep.subr.mxu0 0.0
      %4547 = vmatpush1.msra.mxu0 0.0
      %4548 = vmatprep.subr.mxu0 0.0
      %4549 = vmatpush1.msra.mxu0 0.0
      %4550 = vmatprep.subr.mxu0 0.0
      %4551 = vmatpush1.msra.mxu0 0.0
      %4552 = vmatprep.subr.mxu0 0.0
      %4553 = vmatpush1.msra.mxu0 0.0
      %4554 = vmatprep.subr.mxu0 0.0
      %4555 = vmatpush1.msra.mxu0 0.0
      %4556 = vmatprep.subr.mxu0 0.0
      %4557 = vmatpush1.msra.mxu0 0.0
      %4558 = vmatprep.subr.mxu0 0.0
      %4559 = vmatpush1.msra.mxu0 0.0
      %4560 = vmatprep.subr.mxu0 0.0
      %4561 = vmatpush1.msra.mxu0 %v4529
      %4562 = vmatprep.subr.mxu0 0.0
      %4563 = vmatpush2.msra.mxu0 0.0
      %4564 = vmatprep.subr.mxu0 0.0
      %4565 = vmatpush2.msra.mxu0 0.0
      %4566 = vmatprep.subr.mxu0 0.0
      %4567 = vmatpush2.msra.mxu0 0.0
      %4568 = vmatprep.subr.mxu0 0.0
      %4569 = vmatpush2.msra.mxu0 0.0
      %4570 = vmatprep.subr.mxu0 0.0
      %4571 = vmatpush2.msra.mxu0 0.0
      %4572 = vmatprep.subr.mxu0 0.0
      %4573 = vmatpush2.msra.mxu0 0.0
      %4574 = vmatprep.subr.mxu0 0.0
      %4575 = vmatpush2.msra.mxu0 0.0
      %4576 = vmatprep.subr.mxu0 0.0
      %4577 = vmatpush2.msra.mxu0 0.0
      %4578 = vmatprep.subr.mxu0 0.0
      %4579 = vmatpush2.msra.mxu0 0.0
      %4580 = vmatprep.subr.mxu0 0.0
      %4581 = vmatpush2.msra.mxu0 0.0
      %4582 = vmatprep.subr.mxu0 0.0
      %4583 = vmatpush2.msra.mxu0 0.0
      %4584 = vmatprep.subr.mxu0 0.0
      %4585 = vmatpush2.msra.mxu0 0.0
      %4586 = vmatprep.subr.mxu0 0.0
      %4587 = vmatpush2.msra.mxu0 0.0
      %4588 = vmatprep.subr.mxu0 0.0
      %4589 = vmatpush2.msra.mxu0 0.0
      %4590 = vmatprep.subr.mxu0 0.0
      %4591 = vmatpush2.msra.mxu0 0.0
      %4592 = vmatprep.subr.mxu0 0.0
      %4593 = vmatpush2.msra.mxu0 0.0
      %4594 = vmatprep.mubr.f32.mxu0 0.0
      %4595 = vmatmul.mubr.f32.gmra.mxu0 %v3685
      %v4596 = vpop.f32.mrf.mxu0
      %v4597 = vadd.f32 0.0, %v4596
      %v4598 = vpop.f32.mrf.mxu0
      %4599 = vmatprep.mubr.f32.mxu0 0.0
      %4600 = vmatmul.mubr.f32.gmra.mxu0 %v3688
      %v4601 = vpop.f32.mrf.mxu0
      %v4602 = vadd.f32 0.0, %v4601
      %v4603 = vpop.f32.mrf.mxu0
      %4604 = vmatprep.mubr.f32.mxu0 0.0
      %4605 = vmatmul.mubr.f32.gmra.mxu0 %v3691
      %v4606 = vpop.f32.mrf.mxu0
      %v4607 = vadd.f32 0.0, %v4606
      %v4608 = vpop.f32.mrf.mxu0
      %4609 = vmatprep.mubr.f32.mxu0 0.0
      %4610 = vmatmul.mubr.f32.gmra.mxu0 %v3694
      %v4611 = vpop.f32.mrf.mxu0
      %v4612 = vadd.f32 0.0, %v4611
      %v4613 = vpop.f32.mrf.mxu0
      %4614 = vmatprep.mubr.f32.mxu0 0.0
      %4615 = vmatmul.mubr.f32.gmra.mxu0 %v3697
      %v4616 = vpop.f32.mrf.mxu0
      %v4617 = vadd.f32 0.0, %v4616
      %v4618 = vpop.f32.mrf.mxu0
      %4619 = vmatprep.mubr.f32.mxu0 0.0
      %4620 = vmatmul.mubr.f32.gmra.mxu0 %v3700
      %v4621 = vpop.f32.mrf.mxu0
      %v4622 = vadd.f32 0.0, %v4621
      %v4623 = vpop.f32.mrf.mxu0
      %4624 = vmatprep.mubr.f32.mxu0 0.0
      %4625 = vmatmul.mubr.f32.gmra.mxu0 %v3703
      %v4626 = vpop.f32.mrf.mxu0
      %v4627 = vadd.f32 0.0, %v4626
      %v4628 = vpop.f32.mrf.mxu0
      %4629 = vmatprep.mubr.f32.mxu0 0.0
      %4630 = vmatmul.mubr.f32.gmra.mxu0 %v3706
      %v4631 = vpop.f32.mrf.mxu0
      %v4632 = vadd.f32 0.0, %v4631
      %v4633 = vpop.f32.mrf.mxu0
      %4634 = vmatprep.mubr.f32.mxu0 0.0
      %4635 = vmatmul.mubr.f32.gmra.mxu0 %v3709
      %v4636 = vpop.f32.mrf.mxu0
      %v4637 = vadd.f32 0.0, %v4636
      %v4638 = vpop.f32.mrf.mxu0
      %4639 = vmatprep.mubr.f32.mxu0 0.0
      %4640 = vmatmul.mubr.f32.gmra.mxu0 %v3712
      %v4641 = vpop.f32.mrf.mxu0
      %v4642 = vadd.f32 0.0, %v4641
      %v4643 = vpop.f32.mrf.mxu0
      %4644 = vmatprep.mubr.f32.mxu0 0.0
      %4645 = vmatmul.mubr.f32.gmra.mxu0 %v3715
      %v4646 = vpop.f32.mrf.mxu0
      %v4647 = vadd.f32 0.0, %v4646
      %v4648 = vpop.f32.mrf.mxu0
      %4649 = vmatprep.mubr.f32.mxu0 0.0
      %4650 = vmatmul.mubr.f32.gmra.mxu0 %v3718
      %v4651 = vpop.f32.mrf.mxu0
      %v4652 = vadd.f32 0.0, %v4651
      %v4653 = vpop.f32.mrf.mxu0
      %4654 = vmatprep.mubr.f32.mxu0 0.0
      %4655 = vmatmul.mubr.f32.gmra.mxu0 %v3721
      %v4656 = vpop.f32.mrf.mxu0
      %v4657 = vadd.f32 0.0, %v4656
      %v4658 = vpop.f32.mrf.mxu0
      %4659 = vmatprep.mubr.f32.mxu0 0.0
      %4660 = vmatmul.mubr.f32.gmra.mxu0 %v3724
      %v4661 = vpop.f32.mrf.mxu0
      %v4662 = vadd.f32 0.0, %v4661
      %v4663 = vpop.f32.mrf.mxu0
      %4664 = vmatprep.mubr.f32.mxu0 0.0
      %4665 = vmatmul.mubr.f32.gmra.mxu0 %v3727
      %v4666 = vpop.f32.mrf.mxu0
      %v4667 = vadd.f32 0.0, %v4666
      %v4668 = vpop.f32.mrf.mxu0
      %4669 = vmatprep.mubr.f32.mxu0 0.0
      %4670 = vmatmul.mubr.f32.gmra.mxu0 %v3730
      %v4671 = vpop.f32.mrf.mxu0
      %v4672 = vadd.f32 0.0, %v4671
      %v4673 = vpop.f32.mrf.mxu0
      %4674 = vmatprep.mubr.f32.mxu0 0.0
      %4675 = vmatmul.mubr.f32.gmra.mxu0 %v3733
      %v4676 = vpop.f32.mrf.mxu0
      %v4677 = vadd.f32 0.0, %v4676
      %v4678 = vpop.f32.mrf.mxu0
      %4679 = vmatprep.mubr.f32.mxu0 0.0
      %4680 = vmatmul.mubr.f32.gmra.mxu0 %v3736
      %v4681 = vpop.f32.mrf.mxu0
      %v4682 = vadd.f32 0.0, %v4681
      %v4683 = vpop.f32.mrf.mxu0
      %4684 = vmatprep.mubr.f32.mxu0 0.0
      %4685 = vmatmul.mubr.f32.gmra.mxu0 %v3739
      %v4686 = vpop.f32.mrf.mxu0
      %v4687 = vadd.f32 0.0, %v4686
      %v4688 = vpop.f32.mrf.mxu0
      %4689 = vmatprep.mubr.f32.mxu0 0.0
      %4690 = vmatmul.mubr.f32.gmra.mxu0 %v3742
      %v4691 = vpop.f32.mrf.mxu0
      %v4692 = vadd.f32 0.0, %v4691
      %v4693 = vpop.f32.mrf.mxu0
      %4694 = vmatprep.mubr.f32.mxu0 0.0
      %4695 = vmatmul.mubr.f32.gmra.mxu0 %v3745
      %v4696 = vpop.f32.mrf.mxu0
      %v4697 = vadd.f32 0.0, %v4696
      %v4698 = vpop.f32.mrf.mxu0
      %4699 = vmatprep.mubr.f32.mxu0 0.0
      %4700 = vmatmul.mubr.f32.gmra.mxu0 %v3748
      %v4701 = vpop.f32.mrf.mxu0
      %v4702 = vadd.f32 0.0, %v4701
      %v4703 = vpop.f32.mrf.mxu0
      %4704 = vmatprep.mubr.f32.mxu0 0.0
      %4705 = vmatmul.mubr.f32.gmra.mxu0 %v3751
      %v4706 = vpop.f32.mrf.mxu0
      %v4707 = vadd.f32 0.0, %v4706
      %v4708 = vpop.f32.mrf.mxu0
      %4709 = vmatprep.mubr.f32.mxu0 0.0
      %4710 = vmatmul.mubr.f32.gmra.mxu0 %v3754
      %v4711 = vpop.f32.mrf.mxu0
      %v4712 = vadd.f32 0.0, %v4711
      %v4713 = vpop.f32.mrf.mxu0
      %4714 = vmatprep.mubr.f32.mxu0 0.0
      %4715 = vmatmul.mubr.f32.gmra.mxu0 %v3757
      %v4716 = vpop.f32.mrf.mxu0
      %v4717 = vadd.f32 0.0, %v4716
      %v4718 = vpop.f32.mrf.mxu0
      %4719 = vmatprep.mubr.f32.mxu0 0.0
      %4720 = vmatmul.mubr.f32.gmra.mxu0 %v3760
      %v4721 = vpop.f32.mrf.mxu0
      %v4722 = vadd.f32 0.0, %v4721
      %v4723 = vpop.f32.mrf.mxu0
      %4724 = vmatprep.mubr.f32.mxu0 0.0
      %4725 = vmatmul.mubr.f32.gmra.mxu0 %v3763
      %v4726 = vpop.f32.mrf.mxu0
      %v4727 = vadd.f32 0.0, %v4726
      %v4728 = vpop.f32.mrf.mxu0
      %4729 = vmatprep.mubr.f32.mxu0 0.0
      %4730 = vmatmul.mubr.f32.gmra.mxu0 %v3766
      %v4731 = vpop.f32.mrf.mxu0
      %v4732 = vadd.f32 0.0, %v4731
      %v4733 = vpop.f32.mrf.mxu0
      %4734 = vmatprep.mubr.f32.mxu0 0.0
      %4735 = vmatmul.mubr.f32.gmra.mxu0 %v3769
      %v4736 = vpop.f32.mrf.mxu0
      %v4737 = vadd.f32 0.0, %v4736
      %v4738 = vpop.f32.mrf.mxu0
      %4739 = vmatprep.mubr.f32.mxu0 0.0
      %4740 = vmatmul.mubr.f32.gmra.mxu0 %v3772
      %v4741 = vpop.f32.mrf.mxu0
      %v4742 = vadd.f32 0.0, %v4741
      %v4743 = vpop.f32.mrf.mxu0
      %4744 = vmatprep.mubr.f32.mxu0 0.0
      %4745 = vmatmul.mubr.f32.gmra.mxu0 %v3775
      %v4746 = vpop.f32.mrf.mxu0
      %v4747 = vadd.f32 0.0, %v4746
      %v4748 = vpop.f32.mrf.mxu0
      %4749 = vmatprep.mubr.f32.mxu0 0.0
      %4750 = vmatmul.mubr.f32.gmra.mxu0 %v3778
      %v4751 = vpop.f32.mrf.mxu0
      %v4752 = vadd.f32 0.0, %v4751
      %v4753 = vpop.f32.mrf.mxu0
      %4754 = vdwg.mxu0
      %v4756 = vsel %vm1481, %v4497, 0
      %v4759 = vsel %vm1481, %v4498, 0
      %v4762 = vsel %vm1481, %v4499, 0
      %v4765 = vsel %vm1481, %v4500, 0
      %v4768 = vsel %vm1481, %v4501, 0
      %v4771 = vsel %vm1481, %v4502, 0
      %v4774 = vsel %vm1481, %v4503, 0
      %v4777 = vsel %vm1481, %v4504, 0
      %v4780 = vsel %vm1481, %v4505, 0
      %v4783 = vsel %vm1481, %v4506, 0
      %v4786 = vsel %vm1481, %v4507, 0
      %v4789 = vsel %vm1481, %v4508, 0
      %v4792 = vsel %vm1481, %v4509, 0
      %v4795 = vsel %vm1481, %v4510, 0
      %v4798 = vsel %vm1481, %v4511, 0
      %v4801 = vsel %vm1481, %v4512, 0
      %v4804 = vsel %vm1481, %v4513, 0
      %v4807 = vsel %vm1481, %v4514, 0
      %v4810 = vsel %vm1481, %v4515, 0
      %v4813 = vsel %vm1481, %v4516, 0
      %v4816 = vsel %vm1481, %v4517, 0
      %v4819 = vsel %vm1481, %v4518, 0
      %v4822 = vsel %vm1481, %v4519, 0
      %v4825 = vsel %vm1481, %v4520, 0
      %v4828 = vsel %vm1481, %v4521, 0
      %v4831 = vsel %vm1481, %v4522, 0
      %v4834 = vsel %vm1481, %v4523, 0
      %v4837 = vsel %vm1481, %v4524, 0
      %v4840 = vsel %vm1481, %v4525, 0
      %v4843 = vsel %vm1481, %v4526, 0
      %v4846 = vsel %vm1481, %v4527, 0
      %v4849 = vsel %vm1481, %v4528, 0
      %4851 = vmatprep.subr.mxu0 0.0
      %4852 = vmatpush1.xpose.msra.mxu0 %v4801
      %4853 = vmatprep.subr.mxu0 0.0
      %4854 = vmatpush1.xpose.msra.mxu0 %v4798
      %4855 = vmatprep.subr.mxu0 0.0
      %4856 = vmatpush1.xpose.msra.mxu0 %v4795
      %4857 = vmatprep.subr.mxu0 0.0
      %4858 = vmatpush1.xpose.msra.mxu0 %v4792
      %4859 = vmatprep.subr.mxu0 0.0
      %4860 = vmatpush1.xpose.msra.mxu0 %v4789
      %4861 = vmatprep.subr.mxu0 0.0
      %4862 = vmatpush1.xpose.msra.mxu0 %v4786
      %4863 = vmatprep.subr.mxu0 0.0
      %4864 = vmatpush1.xpose.msra.mxu0 %v4783
      %4865 = vmatprep.subr.mxu0 0.0
      %4866 = vmatpush1.xpose.msra.mxu0 %v4780
      %4867 = vmatprep.subr.mxu0 0.0
      %4868 = vmatpush1.xpose.msra.mxu0 %v4777
      %4869 = vmatprep.subr.mxu0 0.0
      %4870 = vmatpush1.xpose.msra.mxu0 %v4774
      %4871 = vmatprep.subr.mxu0 0.0
      %4872 = vmatpush1.xpose.msra.mxu0 %v4771
      %4873 = vmatprep.subr.mxu0 0.0
      %4874 = vmatpush1.xpose.msra.mxu0 %v4768
      %4875 = vmatprep.subr.mxu0 0.0
      %4876 = vmatpush1.xpose.msra.mxu0 %v4765
      %4877 = vmatprep.subr.mxu0 0.0
      %4878 = vmatpush1.xpose.msra.mxu0 %v4762
      %4879 = vmatprep.subr.mxu0 0.0
      %4880 = vmatpush1.xpose.msra.mxu0 %v4759
      %4881 = vmatprep.subr.mxu0 0.0
      %4882 = vmatpush1.xpose.msra.mxu0 %v4756
      %4883 = vmatprep.subr.mxu0 0.0
      %4884 = vmatpush2.xpose.msra.mxu0 %v4849
      %4885 = vmatprep.subr.mxu0 0.0
      %4886 = vmatpush2.xpose.msra.mxu0 %v4846
      %4887 = vmatprep.subr.mxu0 0.0
      %4888 = vmatpush2.xpose.msra.mxu0 %v4843
      %4889 = vmatprep.subr.mxu0 0.0
      %4890 = vmatpush2.xpose.msra.mxu0 %v4840
      %4891 = vmatprep.subr.mxu0 0.0
      %4892 = vmatpush2.xpose.msra.mxu0 %v4837
      %4893 = vmatprep.subr.mxu0 0.0
      %4894 = vmatpush2.xpose.msra.mxu0 %v4834
      %4895 = vmatprep.subr.mxu0 0.0
      %4896 = vmatpush2.xpose.msra.mxu0 %v4831
      %4897 = vmatprep.subr.mxu0 0.0
      %4898 = vmatpush2.xpose.msra.mxu0 %v4828
      %4899 = vmatprep.subr.mxu0 0.0
      %4900 = vmatpush2.xpose.msra.mxu0 %v4825
      %4901 = vmatprep.subr.mxu0 0.0
      %4902 = vmatpush2.xpose.msra.mxu0 %v4822
      %4903 = vmatprep.subr.mxu0 0.0
      %4904 = vmatpush2.xpose.msra.mxu0 %v4819
      %4905 = vmatprep.subr.mxu0 0.0
      %4906 = vmatpush2.xpose.msra.mxu0 %v4816
      %4907 = vmatprep.subr.mxu0 0.0
      %4908 = vmatpush2.xpose.msra.mxu0 %v4813
      %4909 = vmatprep.subr.mxu0 0.0
      %4910 = vmatpush2.xpose.msra.mxu0 %v4810
      %4911 = vmatprep.subr.mxu0 0.0
      %4912 = vmatpush2.xpose.msra.mxu0 %v4807
      %4913 = vmatprep.subr.mxu0 0.0
      %4914 = vmatpush2.xpose.msra.mxu0 %v4804
      %4915 = vmatprep.mubr.f32.mxu0 0.0
      %4916 = vmatmul.mubr.f32.gmra.mxu0 %v4756
      %v4917 = vpop.f32.mrf.mxu0
      %v4918 = vadd.f32 0.0, %v4917
      %v4919 = vpop.f32.mrf.mxu0
      %v4920 = vadd.f32 0.0, %v4919
      %4921 = vmatprep.mubr.f32.mxu0 0.0
      %4922 = vmatmul.mubr.f32.gmra.mxu0 %v4759
      %v4923 = vpop.f32.mrf.mxu0
      %v4924 = vadd.f32 0.0, %v4923
      %v4925 = vpop.f32.mrf.mxu0
      %v4926 = vadd.f32 0.0, %v4925
      %4927 = vmatprep.mubr.f32.mxu0 0.0
      %4928 = vmatmul.mubr.f32.gmra.mxu0 %v4762
      %v4929 = vpop.f32.mrf.mxu0
      %v4930 = vadd.f32 0.0, %v4929
      %v4931 = vpop.f32.mrf.mxu0
      %v4932 = vadd.f32 0.0, %v4931
      %4933 = vmatprep.mubr.f32.mxu0 0.0
      %4934 = vmatmul.mubr.f32.gmra.mxu0 %v4765
      %v4935 = vpop.f32.mrf.mxu0
      %v4936 = vadd.f32 0.0, %v4935
      %v4937 = vpop.f32.mrf.mxu0
      %v4938 = vadd.f32 0.0, %v4937
      %4939 = vmatprep.mubr.f32.mxu0 0.0
      %4940 = vmatmul.mubr.f32.gmra.mxu0 %v4768
      %v4941 = vpop.f32.mrf.mxu0
      %v4942 = vadd.f32 0.0, %v4941
      %v4943 = vpop.f32.mrf.mxu0
      %v4944 = vadd.f32 0.0, %v4943
      %4945 = vmatprep.mubr.f32.mxu0 0.0
      %4946 = vmatmul.mubr.f32.gmra.mxu0 %v4771
      %v4947 = vpop.f32.mrf.mxu0
      %v4948 = vadd.f32 0.0, %v4947
      %v4949 = vpop.f32.mrf.mxu0
      %v4950 = vadd.f32 0.0, %v4949
      %4951 = vmatprep.mubr.f32.mxu0 0.0
      %4952 = vmatmul.mubr.f32.gmra.mxu0 %v4774
      %v4953 = vpop.f32.mrf.mxu0
      %v4954 = vadd.f32 0.0, %v4953
      %v4955 = vpop.f32.mrf.mxu0
      %v4956 = vadd.f32 0.0, %v4955
      %4957 = vmatprep.mubr.f32.mxu0 0.0
      %4958 = vmatmul.mubr.f32.gmra.mxu0 %v4777
      %v4959 = vpop.f32.mrf.mxu0
      %v4960 = vadd.f32 0.0, %v4959
      %v4961 = vpop.f32.mrf.mxu0
      %v4962 = vadd.f32 0.0, %v4961
      %4963 = vmatprep.mubr.f32.mxu0 0.0
      %4964 = vmatmul.mubr.f32.gmra.mxu0 %v4780
      %v4965 = vpop.f32.mrf.mxu0
      %v4966 = vadd.f32 0.0, %v4965
      %v4967 = vpop.f32.mrf.mxu0
      %v4968 = vadd.f32 0.0, %v4967
      %4969 = vmatprep.mubr.f32.mxu0 0.0
      %4970 = vmatmul.mubr.f32.gmra.mxu0 %v4783
      %v4971 = vpop.f32.mrf.mxu0
      %v4972 = vadd.f32 0.0, %v4971
      %v4973 = vpop.f32.mrf.mxu0
      %v4974 = vadd.f32 0.0, %v4973
      %4975 = vmatprep.mubr.f32.mxu0 0.0
      %4976 = vmatmul.mubr.f32.gmra.mxu0 %v4786
      %v4977 = vpop.f32.mrf.mxu0
      %v4978 = vadd.f32 0.0, %v4977
      %v4979 = vpop.f32.mrf.mxu0
      %v4980 = vadd.f32 0.0, %v4979
      %4981 = vmatprep.mubr.f32.mxu0 0.0
      %4982 = vmatmul.mubr.f32.gmra.mxu0 %v4789
      %v4983 = vpop.f32.mrf.mxu0
      %v4984 = vadd.f32 0.0, %v4983
      %v4985 = vpop.f32.mrf.mxu0
      %v4986 = vadd.f32 0.0, %v4985
      %4987 = vmatprep.mubr.f32.mxu0 0.0
      %4988 = vmatmul.mubr.f32.gmra.mxu0 %v4792
      %v4989 = vpop.f32.mrf.mxu0
      %v4990 = vadd.f32 0.0, %v4989
      %v4991 = vpop.f32.mrf.mxu0
      %v4992 = vadd.f32 0.0, %v4991
      %4993 = vmatprep.mubr.f32.mxu0 0.0
      %4994 = vmatmul.mubr.f32.gmra.mxu0 %v4795
      %v4995 = vpop.f32.mrf.mxu0
      %v4996 = vadd.f32 0.0, %v4995
      %v4997 = vpop.f32.mrf.mxu0
      %v4998 = vadd.f32 0.0, %v4997
      %4999 = vmatprep.mubr.f32.mxu0 0.0
      %5000 = vmatmul.mubr.f32.gmra.mxu0 %v4798
      %v5001 = vpop.f32.mrf.mxu0
      %v5002 = vadd.f32 0.0, %v5001
      %v5003 = vpop.f32.mrf.mxu0
      %v5004 = vadd.f32 0.0, %v5003
      %5005 = vmatprep.mubr.f32.mxu0 0.0
      %5006 = vmatmul.mubr.f32.gmra.mxu0 %v4801
      %v5007 = vpop.f32.mrf.mxu0
      %v5008 = vadd.f32 0.0, %v5007
      %v5009 = vpop.f32.mrf.mxu0
      %v5010 = vadd.f32 0.0, %v5009
      %5011 = vmatprep.mubr.f32.mxu0 0.0
      %5012 = vmatmul.mubr.f32.gmra.mxu0 %v4804
      %v5013 = vpop.f32.mrf.mxu0
      %v5014 = vadd.f32 0.0, %v5013
      %v5015 = vpop.f32.mrf.mxu0
      %v5016 = vadd.f32 0.0, %v5015
      %5017 = vmatprep.mubr.f32.mxu0 0.0
      %5018 = vmatmul.mubr.f32.gmra.mxu0 %v4807
      %v5019 = vpop.f32.mrf.mxu0
      %v5020 = vadd.f32 0.0, %v5019
      %v5021 = vpop.f32.mrf.mxu0
      %v5022 = vadd.f32 0.0, %v5021
      %5023 = vmatprep.mubr.f32.mxu0 0.0
      %5024 = vmatmul.mubr.f32.gmra.mxu0 %v4810
      %v5025 = vpop.f32.mrf.mxu0
      %v5026 = vadd.f32 0.0, %v5025
      %v5027 = vpop.f32.mrf.mxu0
      %v5028 = vadd.f32 0.0, %v5027
      %5029 = vmatprep.mubr.f32.mxu0 0.0
      %5030 = vmatmul.mubr.f32.gmra.mxu0 %v4813
      %v5031 = vpop.f32.mrf.mxu0
      %v5032 = vadd.f32 0.0, %v5031
      %v5033 = vpop.f32.mrf.mxu0
      %v5034 = vadd.f32 0.0, %v5033
      %5035 = vmatprep.mubr.f32.mxu0 0.0
      %5036 = vmatmul.mubr.f32.gmra.mxu0 %v4816
      %v5037 = vpop.f32.mrf.mxu0
      %v5038 = vadd.f32 0.0, %v5037
      %v5039 = vpop.f32.mrf.mxu0
      %v5040 = vadd.f32 0.0, %v5039
      %5041 = vmatprep.mubr.f32.mxu0 0.0
      %5042 = vmatmul.mubr.f32.gmra.mxu0 %v4819
      %v5043 = vpop.f32.mrf.mxu0
      %v5044 = vadd.f32 0.0, %v5043
      %v5045 = vpop.f32.mrf.mxu0
      %v5046 = vadd.f32 0.0, %v5045
      %5047 = vmatprep.mubr.f32.mxu0 0.0
      %5048 = vmatmul.mubr.f32.gmra.mxu0 %v4822
      %v5049 = vpop.f32.mrf.mxu0
      %v5050 = vadd.f32 0.0, %v5049
      %v5051 = vpop.f32.mrf.mxu0
      %v5052 = vadd.f32 0.0, %v5051
      %5053 = vmatprep.mubr.f32.mxu0 0.0
      %5054 = vmatmul.mubr.f32.gmra.mxu0 %v4825
      %v5055 = vpop.f32.mrf.mxu0
      %v5056 = vadd.f32 0.0, %v5055
      %v5057 = vpop.f32.mrf.mxu0
      %v5058 = vadd.f32 0.0, %v5057
      %5059 = vmatprep.mubr.f32.mxu0 0.0
      %5060 = vmatmul.mubr.f32.gmra.mxu0 %v4828
      %v5061 = vpop.f32.mrf.mxu0
      %v5062 = vadd.f32 0.0, %v5061
      %v5063 = vpop.f32.mrf.mxu0
      %v5064 = vadd.f32 0.0, %v5063
      %5065 = vmatprep.mubr.f32.mxu0 0.0
      %5066 = vmatmul.mubr.f32.gmra.mxu0 %v4831
      %v5067 = vpop.f32.mrf.mxu0
      %v5068 = vadd.f32 0.0, %v5067
      %v5069 = vpop.f32.mrf.mxu0
      %v5070 = vadd.f32 0.0, %v5069
      %5071 = vmatprep.mubr.f32.mxu0 0.0
      %5072 = vmatmul.mubr.f32.gmra.mxu0 %v4834
      %v5073 = vpop.f32.mrf.mxu0
      %v5074 = vadd.f32 0.0, %v5073
      %v5075 = vpop.f32.mrf.mxu0
      %v5076 = vadd.f32 0.0, %v5075
      %5077 = vmatprep.mubr.f32.mxu0 0.0
      %5078 = vmatmul.mubr.f32.gmra.mxu0 %v4837
      %v5079 = vpop.f32.mrf.mxu0
      %v5080 = vadd.f32 0.0, %v5079
      %v5081 = vpop.f32.mrf.mxu0
      %v5082 = vadd.f32 0.0, %v5081
      %5083 = vmatprep.mubr.f32.mxu0 0.0
      %5084 = vmatmul.mubr.f32.gmra.mxu0 %v4840
      %v5085 = vpop.f32.mrf.mxu0
      %v5086 = vadd.f32 0.0, %v5085
      %v5087 = vpop.f32.mrf.mxu0
      %v5088 = vadd.f32 0.0, %v5087
      %5089 = vmatprep.mubr.f32.mxu0 0.0
      %5090 = vmatmul.mubr.f32.gmra.mxu0 %v4843
      %v5091 = vpop.f32.mrf.mxu0
      %v5092 = vadd.f32 0.0, %v5091
      %v5093 = vpop.f32.mrf.mxu0
      %v5094 = vadd.f32 0.0, %v5093
      %5095 = vmatprep.mubr.f32.mxu0 0.0
      %5096 = vmatmul.mubr.f32.gmra.mxu0 %v4846
      %v5097 = vpop.f32.mrf.mxu0
      %v5098 = vadd.f32 0.0, %v5097
      %v5099 = vpop.f32.mrf.mxu0
      %v5100 = vadd.f32 0.0, %v5099
      %5101 = vmatprep.mubr.f32.mxu0 0.0
      %5102 = vmatmul.mubr.f32.gmra.mxu0 %v4849
      %v5103 = vpop.f32.mrf.mxu0
      %v5104 = vadd.f32 0.0, %v5103
      %v5105 = vpop.f32.mrf.mxu0
      %v5106 = vadd.f32 0.0, %v5105
      %5107 = vdwg.mxu0
      %v5108 = vsel %vm983, %v4918, -1e+30
      %v5109 = vsel %vm984, %v4920, -1e+30
      %v5110 = vsel %vm985, %v4924, -1e+30
      %v5111 = vsel %vm986, %v4926, -1e+30
      %v5112 = vsel %vm987, %v4930, -1e+30
      %v5113 = vsel %vm988, %v4932, -1e+30
      %v5114 = vsel %vm989, %v4936, -1e+30
      %v5115 = vsel %vm990, %v4938, -1e+30
      %v5116 = vsel %vm991, %v4942, -1e+30
      %v5117 = vsel %vm992, %v4944, -1e+30
      %v5118 = vsel %vm993, %v4948, -1e+30
      %v5119 = vsel %vm994, %v4950, -1e+30
      %v5120 = vsel %vm995, %v4954, -1e+30
      %v5121 = vsel %vm996, %v4956, -1e+30
      %v5122 = vsel %vm997, %v4960, -1e+30
      %v5123 = vsel %vm998, %v4962, -1e+30
      %v5124 = vsel %vm999, %v4966, -1e+30
      %v5125 = vsel %vm1000, %v4968, -1e+30
      %v5126 = vsel %vm1001, %v4972, -1e+30
      %v5127 = vsel %vm1002, %v4974, -1e+30
      %v5128 = vsel %vm1003, %v4978, -1e+30
      %v5129 = vsel %vm1004, %v4980, -1e+30
      %v5130 = vsel %vm1005, %v4984, -1e+30
      %v5131 = vsel %vm1006, %v4986, -1e+30
      %v5132 = vsel %vm1007, %v4990, -1e+30
      %v5133 = vsel %vm1008, %v4992, -1e+30
      %v5134 = vsel %vm1009, %v4996, -1e+30
      %v5135 = vsel %vm1010, %v4998, -1e+30
      %v5136 = vsel %vm1011, %v5002, -1e+30
      %v5137 = vsel %vm1012, %v5004, -1e+30
      %v5138 = vsel %vm1013, %v5008, -1e+30
      %v5139 = vsel %vm1014, %v5010, -1e+30
      %v5140 = vsel %vm1015, %v5014, -1e+30
      %v5141 = vsel %vm1016, %v5016, -1e+30
      %v5142 = vsel %vm1017, %v5020, -1e+30
      %v5143 = vsel %vm1018, %v5022, -1e+30
      %v5144 = vsel %vm1019, %v5026, -1e+30
      %v5145 = vsel %vm1020, %v5028, -1e+30
      %v5146 = vsel %vm1021, %v5032, -1e+30
      %v5147 = vsel %vm1022, %v5034, -1e+30
      %v5148 = vsel %vm1023, %v5038, -1e+30
      %v5149 = vsel %vm1024, %v5040, -1e+30
      %v5150 = vsel %vm1025, %v5044, -1e+30
      %v5151 = vsel %vm1026, %v5046, -1e+30
      %v5152 = vsel %vm1027, %v5050, -1e+30
      %v5153 = vsel %vm1028, %v5052, -1e+30
      %v5154 = vsel %vm1029, %v5056, -1e+30
      %v5155 = vsel %vm1030, %v5058, -1e+30
      %v5156 = vsel %vm1031, %v5062, -1e+30
      %v5157 = vsel %vm1032, %v5064, -1e+30
      %v5158 = vsel %vm1033, %v5068, -1e+30
      %v5159 = vsel %vm1034, %v5070, -1e+30
      %v5160 = vsel %vm1035, %v5074, -1e+30
      %v5161 = vsel %vm1036, %v5076, -1e+30
      %v5162 = vsel %vm1037, %v5080, -1e+30
      %v5163 = vsel %vm1038, %v5082, -1e+30
      %v5164 = vsel %vm1039, %v5086, -1e+30
      %v5165 = vsel %vm1040, %v5088, -1e+30
      %v5166 = vsel %vm1041, %v5092, -1e+30
      %v5167 = vsel %vm1042, %v5094, -1e+30
      %v5168 = vsel %vm1043, %v5098, -1e+30
      %v5169 = vsel %vm1044, %v5100, -1e+30
      %v5170 = vsel %vm1045, %v5104, -1e+30
      %v5171 = vsel %vm1046, %v5106, -1e+30
      %v5172 = vmax.f32 %v5108, %v5109
      %5173 = vmax.xlane.f32.xlu0 %v5172
      %v5174 = vpop.xlane.xlu0 %5173
      %v5175 = vmax.f32 %v5110, %v5111
      %5176 = vmax.xlane.f32.xlu0 %v5175
      %v5177 = vpop.xlane.xlu0 %5176
      %v5178 = vmax.f32 %v5112, %v5113
      %5179 = vmax.xlane.f32.xlu0 %v5178
      %v5180 = vpop.xlane.xlu0 %5179
      %v5181 = vmax.f32 %v5114, %v5115
      %5182 = vmax.xlane.f32.xlu0 %v5181
      %v5183 = vpop.xlane.xlu0 %5182
      %v5184 = vmax.f32 %v5116, %v5117
      %5185 = vmax.xlane.f32.xlu0 %v5184
      %v5186 = vpop.xlane.xlu0 %5185
      %v5187 = vmax.f32 %v5118, %v5119
      %5188 = vmax.xlane.f32.xlu0 %v5187
      %v5189 = vpop.xlane.xlu0 %5188
      %v5190 = vmax.f32 %v5120, %v5121
      %5191 = vmax.xlane.f32.xlu0 %v5190
      %v5192 = vpop.xlane.xlu0 %5191
      %v5193 = vmax.f32 %v5122, %v5123
      %5194 = vmax.xlane.f32.xlu0 %v5193
      %v5195 = vpop.xlane.xlu0 %5194
      %v5196 = vmax.f32 %v5124, %v5125
      %5197 = vmax.xlane.f32.xlu0 %v5196
      %v5198 = vpop.xlane.xlu0 %5197
      %v5199 = vmax.f32 %v5126, %v5127
      %5200 = vmax.xlane.f32.xlu0 %v5199
      %v5201 = vpop.xlane.xlu0 %5200
      %v5202 = vmax.f32 %v5128, %v5129
      %5203 = vmax.xlane.f32.xlu0 %v5202
      %v5204 = vpop.xlane.xlu0 %5203
      %v5205 = vmax.f32 %v5130, %v5131
      %5206 = vmax.xlane.f32.xlu0 %v5205
      %v5207 = vpop.xlane.xlu0 %5206
      %v5208 = vmax.f32 %v5132, %v5133
      %5209 = vmax.xlane.f32.xlu0 %v5208
      %v5210 = vpop.xlane.xlu0 %5209
      %v5211 = vmax.f32 %v5134, %v5135
      %5212 = vmax.xlane.f32.xlu0 %v5211
      %v5213 = vpop.xlane.xlu0 %5212
      %v5214 = vmax.f32 %v5136, %v5137
      %5215 = vmax.xlane.f32.xlu0 %v5214
      %v5216 = vpop.xlane.xlu0 %5215
      %v5217 = vmax.f32 %v5138, %v5139
      %5218 = vmax.xlane.f32.xlu0 %v5217
      %v5219 = vpop.xlane.xlu0 %5218
      %v5220 = vmax.f32 %v5140, %v5141
      %5221 = vmax.xlane.f32.xlu0 %v5220
      %v5222 = vpop.xlane.xlu0 %5221
      %v5223 = vmax.f32 %v5142, %v5143
      %5224 = vmax.xlane.f32.xlu0 %v5223
      %v5225 = vpop.xlane.xlu0 %5224
      %v5226 = vmax.f32 %v5144, %v5145
      %5227 = vmax.xlane.f32.xlu0 %v5226
      %v5228 = vpop.xlane.xlu0 %5227
      %v5229 = vmax.f32 %v5146, %v5147
      %5230 = vmax.xlane.f32.xlu0 %v5229
      %v5231 = vpop.xlane.xlu0 %5230
      %v5232 = vmax.f32 %v5148, %v5149
      %5233 = vmax.xlane.f32.xlu0 %v5232
      %v5234 = vpop.xlane.xlu0 %5233
      %v5235 = vmax.f32 %v5150, %v5151
      %5236 = vmax.xlane.f32.xlu0 %v5235
      %v5237 = vpop.xlane.xlu0 %5236
      %v5238 = vmax.f32 %v5152, %v5153
      %5239 = vmax.xlane.f32.xlu0 %v5238
      %v5240 = vpop.xlane.xlu0 %5239
      %v5241 = vmax.f32 %v5154, %v5155
      %5242 = vmax.xlane.f32.xlu0 %v5241
      %v5243 = vpop.xlane.xlu0 %5242
      %v5244 = vmax.f32 %v5156, %v5157
      %5245 = vmax.xlane.f32.xlu0 %v5244
      %v5246 = vpop.xlane.xlu0 %5245
      %v5247 = vmax.f32 %v5158, %v5159
      %5248 = vmax.xlane.f32.xlu0 %v5247
      %v5249 = vpop.xlane.xlu0 %5248
      %v5250 = vmax.f32 %v5160, %v5161
      %5251 = vmax.xlane.f32.xlu0 %v5250
      %v5252 = vpop.xlane.xlu0 %5251
      %v5253 = vmax.f32 %v5162, %v5163
      %5254 = vmax.xlane.f32.xlu0 %v5253
      %v5255 = vpop.xlane.xlu0 %5254
      %v5256 = vmax.f32 %v5164, %v5165
      %5257 = vmax.xlane.f32.xlu0 %v5256
      %v5258 = vpop.xlane.xlu0 %5257
      %v5259 = vmax.f32 %v5166, %v5167
      %5260 = vmax.xlane.f32.xlu0 %v5259
      %v5261 = vpop.xlane.xlu0 %5260
      %v5262 = vmax.f32 %v5168, %v5169
      %5263 = vmax.xlane.f32.xlu0 %v5262
      %v5264 = vpop.xlane.xlu0 %5263
      %v5265 = vmax.f32 %v5170, %v5171
      %5266 = vmax.xlane.f32.xlu0 %v5265
      %v5267 = vpop.xlane.xlu0 %5266
      %v5268 = vsub.f32 %v5108, %v5174
      %v5269 = vsub.f32 %v5109, %v5174
      %v5270 = vsub.f32 %v5110, %v5177
      %v5271 = vsub.f32 %v5111, %v5177
      %v5272 = vsub.f32 %v5112, %v5180
      %v5273 = vsub.f32 %v5113, %v5180
      %v5274 = vsub.f32 %v5114, %v5183
      %v5275 = vsub.f32 %v5115, %v5183
      %v5276 = vsub.f32 %v5116, %v5186
      %v5277 = vsub.f32 %v5117, %v5186
      %v5278 = vsub.f32 %v5118, %v5189
      %v5279 = vsub.f32 %v5119, %v5189
      %v5280 = vsub.f32 %v5120, %v5192
      %v5281 = vsub.f32 %v5121, %v5192
      %v5282 = vsub.f32 %v5122, %v5195
      %v5283 = vsub.f32 %v5123, %v5195
      %v5284 = vsub.f32 %v5124, %v5198
      %v5285 = vsub.f32 %v5125, %v5198
      %v5286 = vsub.f32 %v5126, %v5201
      %v5287 = vsub.f32 %v5127, %v5201
      %v5288 = vsub.f32 %v5128, %v5204
      %v5289 = vsub.f32 %v5129, %v5204
      %v5290 = vsub.f32 %v5130, %v5207
      %v5291 = vsub.f32 %v5131, %v5207
      %v5292 = vsub.f32 %v5132, %v5210
      %v5293 = vsub.f32 %v5133, %v5210
      %v5294 = vsub.f32 %v5134, %v5213
      %v5295 = vsub.f32 %v5135, %v5213
      %v5296 = vsub.f32 %v5136, %v5216
      %v5297 = vsub.f32 %v5137, %v5216
      %v5298 = vsub.f32 %v5138, %v5219
      %v5299 = vsub.f32 %v5139, %v5219
      %v5300 = vsub.f32 %v5140, %v5222
      %v5301 = vsub.f32 %v5141, %v5222
      %v5302 = vsub.f32 %v5142, %v5225
      %v5303 = vsub.f32 %v5143, %v5225
      %v5304 = vsub.f32 %v5144, %v5228
      %v5305 = vsub.f32 %v5145, %v5228
      %v5306 = vsub.f32 %v5146, %v5231
      %v5307 = vsub.f32 %v5147, %v5231
      %v5308 = vsub.f32 %v5148, %v5234
      %v5309 = vsub.f32 %v5149, %v5234
      %v5310 = vsub.f32 %v5150, %v5237
      %v5311 = vsub.f32 %v5151, %v5237
      %v5312 = vsub.f32 %v5152, %v5240
      %v5313 = vsub.f32 %v5153, %v5240
      %v5314 = vsub.f32 %v5154, %v5243
      %v5315 = vsub.f32 %v5155, %v5243
      %v5316 = vsub.f32 %v5156, %v5246
      %v5317 = vsub.f32 %v5157, %v5246
      %v5318 = vsub.f32 %v5158, %v5249
      %v5319 = vsub.f32 %v5159, %v5249
      %v5320 = vsub.f32 %v5160, %v5252
      %v5321 = vsub.f32 %v5161, %v5252
      %v5322 = vsub.f32 %v5162, %v5255
      %v5323 = vsub.f32 %v5163, %v5255
      %v5324 = vsub.f32 %v5164, %v5258
      %v5325 = vsub.f32 %v5165, %v5258
      %v5326 = vsub.f32 %v5166, %v5261
      %v5327 = vsub.f32 %v5167, %v5261
      %v5328 = vsub.f32 %v5168, %v5264
      %v5329 = vsub.f32 %v5169, %v5264
      %v5330 = vsub.f32 %v5170, %v5267
      %v5331 = vsub.f32 %v5171, %v5267
      %v5332 = vmul.f32 %v5268, 1.442695
      %v5333 = vpow.pop %v5332
      %v5334 = vmul.f32 %v5269, 1.442695
      %v5335 = vpow.pop %v5334
      %v5336 = vmul.f32 %v5270, 1.442695
      %v5337 = vpow.pop %v5336
      %v5338 = vmul.f32 %v5271, 1.442695
      %v5339 = vpow.pop %v5338
      %v5340 = vmul.f32 %v5272, 1.442695
      %v5341 = vpow.pop %v5340
      %v5342 = vmul.f32 %v5273, 1.442695
      %v5343 = vpow.pop %v5342
      %v5344 = vmul.f32 %v5274, 1.442695
      %v5345 = vpow.pop %v5344
      %v5346 = vmul.f32 %v5275, 1.442695
      %v5347 = vpow.pop %v5346
      %v5348 = vmul.f32 %v5276, 1.442695
      %v5349 = vpow.pop %v5348
      %v5350 = vmul.f32 %v5277, 1.442695
      %v5351 = vpow.pop %v5350
      %v5352 = vmul.f32 %v5278, 1.442695
      %v5353 = vpow.pop %v5352
      %v5354 = vmul.f32 %v5279, 1.442695
      %v5355 = vpow.pop %v5354
      %v5356 = vmul.f32 %v5280, 1.442695
      %v5357 = vpow.pop %v5356
      %v5358 = vmul.f32 %v5281, 1.442695
      %v5359 = vpow.pop %v5358
      %v5360 = vmul.f32 %v5282, 1.442695
      %v5361 = vpow.pop %v5360
      %v5362 = vmul.f32 %v5283, 1.442695
      %v5363 = vpow.pop %v5362
      %v5364 = vmul.f32 %v5284, 1.442695
      %v5365 = vpow.pop %v5364
      %v5366 = vmul.f32 %v5285, 1.442695
      %v5367 = vpow.pop %v5366
      %v5368 = vmul.f32 %v5286, 1.442695
      %v5369 = vpow.pop %v5368
      %v5370 = vmul.f32 %v5287, 1.442695
      %v5371 = vpow.pop %v5370
      %v5372 = vmul.f32 %v5288, 1.442695
      %v5373 = vpow.pop %v5372
      %v5374 = vmul.f32 %v5289, 1.442695
      %v5375 = vpow.pop %v5374
      %v5376 = vmul.f32 %v5290, 1.442695
      %v5377 = vpow.pop %v5376
      %v5378 = vmul.f32 %v5291, 1.442695
      %v5379 = vpow.pop %v5378
      %v5380 = vmul.f32 %v5292, 1.442695
      %v5381 = vpow.pop %v5380
      %v5382 = vmul.f32 %v5293, 1.442695
      %v5383 = vpow.pop %v5382
      %v5384 = vmul.f32 %v5294, 1.442695
      %v5385 = vpow.pop %v5384
      %v5386 = vmul.f32 %v5295, 1.442695
      %v5387 = vpow.pop %v5386
      %v5388 = vmul.f32 %v5296, 1.442695
      %v5389 = vpow.pop %v5388
      %v5390 = vmul.f32 %v5297, 1.442695
      %v5391 = vpow.pop %v5390
      %v5392 = vmul.f32 %v5298, 1.442695
      %v5393 = vpow.pop %v5392
      %v5394 = vmul.f32 %v5299, 1.442695
      %v5395 = vpow.pop %v5394
      %v5396 = vmul.f32 %v5300, 1.442695
      %v5397 = vpow.pop %v5396
      %v5398 = vmul.f32 %v5301, 1.442695
      %v5399 = vpow.pop %v5398
      %v5400 = vmul.f32 %v5302, 1.442695
      %v5401 = vpow.pop %v5400
      %v5402 = vmul.f32 %v5303, 1.442695
      %v5403 = vpow.pop %v5402
      %v5404 = vmul.f32 %v5304, 1.442695
      %v5405 = vpow.pop %v5404
      %v5406 = vmul.f32 %v5305, 1.442695
      %v5407 = vpow.pop %v5406
      %v5408 = vmul.f32 %v5306, 1.442695
      %v5409 = vpow.pop %v5408
      %v5410 = vmul.f32 %v5307, 1.442695
      %v5411 = vpow.pop %v5410
      %v5412 = vmul.f32 %v5308, 1.442695
      %v5413 = vpow.pop %v5412
      %v5414 = vmul.f32 %v5309, 1.442695
      %v5415 = vpow.pop %v5414
      %v5416 = vmul.f32 %v5310, 1.442695
      %v5417 = vpow.pop %v5416
      %v5418 = vmul.f32 %v5311, 1.442695
      %v5419 = vpow.pop %v5418
      %v5420 = vmul.f32 %v5312, 1.442695
      %v5421 = vpow.pop %v5420
      %v5422 = vmul.f32 %v5313, 1.442695
      %v5423 = vpow.pop %v5422
      %v5424 = vmul.f32 %v5314, 1.442695
      %v5425 = vpow.pop %v5424
      %v5426 = vmul.f32 %v5315, 1.442695
      %v5427 = vpow.pop %v5426
      %v5428 = vmul.f32 %v5316, 1.442695
      %v5429 = vpow.pop %v5428
      %v5430 = vmul.f32 %v5317, 1.442695
      %v5431 = vpow.pop %v5430
      %v5432 = vmul.f32 %v5318, 1.442695
      %v5433 = vpow.pop %v5432
      %v5434 = vmul.f32 %v5319, 1.442695
      %v5435 = vpow.pop %v5434
      %v5436 = vmul.f32 %v5320, 1.442695
      %v5437 = vpow.pop %v5436
      %v5438 = vmul.f32 %v5321, 1.442695
      %v5439 = vpow.pop %v5438
      %v5440 = vmul.f32 %v5322, 1.442695
      %v5441 = vpow.pop %v5440
      %v5442 = vmul.f32 %v5323, 1.442695
      %v5443 = vpow.pop %v5442
      %v5444 = vmul.f32 %v5324, 1.442695
      %v5445 = vpow.pop %v5444
      %v5446 = vmul.f32 %v5325, 1.442695
      %v5447 = vpow.pop %v5446
      %v5448 = vmul.f32 %v5326, 1.442695
      %v5449 = vpow.pop %v5448
      %v5450 = vmul.f32 %v5327, 1.442695
      %v5451 = vpow.pop %v5450
      %v5452 = vmul.f32 %v5328, 1.442695
      %v5453 = vpow.pop %v5452
      %v5454 = vmul.f32 %v5329, 1.442695
      %v5455 = vpow.pop %v5454
      %v5456 = vmul.f32 %v5330, 1.442695
      %v5457 = vpow.pop %v5456
      %v5458 = vmul.f32 %v5331, 1.442695
      %v5459 = vpow.pop %v5458
      %v5460 = vadd.f32 %v5333, %v5335
      %5461 = vadd.xlane.f32.xlu0 %v5460
      %v5462 = vpop.xlane.xlu0 %5461
      %v5463 = vadd.f32 %v5337, %v5339
      %5464 = vadd.xlane.f32.xlu0 %v5463
      %v5465 = vpop.xlane.xlu0 %5464
      %v5466 = vadd.f32 %v5341, %v5343
      %5467 = vadd.xlane.f32.xlu0 %v5466
      %v5468 = vpop.xlane.xlu0 %5467
      %v5469 = vadd.f32 %v5345, %v5347
      %5470 = vadd.xlane.f32.xlu0 %v5469
      %v5471 = vpop.xlane.xlu0 %5470
      %v5472 = vadd.f32 %v5349, %v5351
      %5473 = vadd.xlane.f32.xlu0 %v5472
      %v5474 = vpop.xlane.xlu0 %5473
      %v5475 = vadd.f32 %v5353, %v5355
      %5476 = vadd.xlane.f32.xlu0 %v5475
      %v5477 = vpop.xlane.xlu0 %5476
      %v5478 = vadd.f32 %v5357, %v5359
      %5479 = vadd.xlane.f32.xlu0 %v5478
      %v5480 = vpop.xlane.xlu0 %5479
      %v5481 = vadd.f32 %v5361, %v5363
      %5482 = vadd.xlane.f32.xlu0 %v5481
      %v5483 = vpop.xlane.xlu0 %5482
      %v5484 = vadd.f32 %v5365, %v5367
      %5485 = vadd.xlane.f32.xlu0 %v5484
      %v5486 = vpop.xlane.xlu0 %5485
      %v5487 = vadd.f32 %v5369, %v5371
      %5488 = vadd.xlane.f32.xlu0 %v5487
      %v5489 = vpop.xlane.xlu0 %5488
      %v5490 = vadd.f32 %v5373, %v5375
      %5491 = vadd.xlane.f32.xlu0 %v5490
      %v5492 = vpop.xlane.xlu0 %5491
      %v5493 = vadd.f32 %v5377, %v5379
      %5494 = vadd.xlane.f32.xlu0 %v5493
      %v5495 = vpop.xlane.xlu0 %5494
      %v5496 = vadd.f32 %v5381, %v5383
      %5497 = vadd.xlane.f32.xlu0 %v5496
      %v5498 = vpop.xlane.xlu0 %5497
      %v5499 = vadd.f32 %v5385, %v5387
      %5500 = vadd.xlane.f32.xlu0 %v5499
      %v5501 = vpop.xlane.xlu0 %5500
      %v5502 = vadd.f32 %v5389, %v5391
      %5503 = vadd.xlane.f32.xlu0 %v5502
      %v5504 = vpop.xlane.xlu0 %5503
      %v5505 = vadd.f32 %v5393, %v5395
      %5506 = vadd.xlane.f32.xlu0 %v5505
      %v5507 = vpop.xlane.xlu0 %5506
      %v5508 = vadd.f32 %v5397, %v5399
      %5509 = vadd.xlane.f32.xlu0 %v5508
      %v5510 = vpop.xlane.xlu0 %5509
      %v5511 = vadd.f32 %v5401, %v5403
      %5512 = vadd.xlane.f32.xlu0 %v5511
      %v5513 = vpop.xlane.xlu0 %5512
      %v5514 = vadd.f32 %v5405, %v5407
      %5515 = vadd.xlane.f32.xlu0 %v5514
      %v5516 = vpop.xlane.xlu0 %5515
      %v5517 = vadd.f32 %v5409, %v5411
      %5518 = vadd.xlane.f32.xlu0 %v5517
      %v5519 = vpop.xlane.xlu0 %5518
      %v5520 = vadd.f32 %v5413, %v5415
      %5521 = vadd.xlane.f32.xlu0 %v5520
      %v5522 = vpop.xlane.xlu0 %5521
      %v5523 = vadd.f32 %v5417, %v5419
      %5524 = vadd.xlane.f32.xlu0 %v5523
      %v5525 = vpop.xlane.xlu0 %5524
      %v5526 = vadd.f32 %v5421, %v5423
      %5527 = vadd.xlane.f32.xlu0 %v5526
      %v5528 = vpop.xlane.xlu0 %5527
      %v5529 = vadd.f32 %v5425, %v5427
      %5530 = vadd.xlane.f32.xlu0 %v5529
      %v5531 = vpop.xlane.xlu0 %5530
      %v5532 = vadd.f32 %v5429, %v5431
      %5533 = vadd.xlane.f32.xlu0 %v5532
      %v5534 = vpop.xlane.xlu0 %5533
      %v5535 = vadd.f32 %v5433, %v5435
      %5536 = vadd.xlane.f32.xlu0 %v5535
      %v5537 = vpop.xlane.xlu0 %5536
      %v5538 = vadd.f32 %v5437, %v5439
      %5539 = vadd.xlane.f32.xlu0 %v5538
      %v5540 = vpop.xlane.xlu0 %5539
      %v5541 = vadd.f32 %v5441, %v5443
      %5542 = vadd.xlane.f32.xlu0 %v5541
      %v5543 = vpop.xlane.xlu0 %5542
      %v5544 = vadd.f32 %v5445, %v5447
      %5545 = vadd.xlane.f32.xlu0 %v5544
      %v5546 = vpop.xlane.xlu0 %5545
      %v5547 = vadd.f32 %v5449, %v5451
      %5548 = vadd.xlane.f32.xlu0 %v5547
      %v5549 = vpop.xlane.xlu0 %5548
      %v5550 = vadd.f32 %v5453, %v5455
      %5551 = vadd.xlane.f32.xlu0 %v5550
      %v5552 = vpop.xlane.xlu0 %5551
      %v5553 = vadd.f32 %v5457, %v5459
      %5554 = vadd.xlane.f32.xlu0 %v5553
      %v5555 = vpop.xlane.xlu0 %5554
      %v5556 = vrcp.pop %v5462
      %v5557 = vrcp.pop %v5465
      %v5558 = vrcp.pop %v5468
      %v5559 = vrcp.pop %v5471
      %v5560 = vrcp.pop %v5474
      %v5561 = vrcp.pop %v5477
      %v5562 = vrcp.pop %v5480
      %v5563 = vrcp.pop %v5483
      %v5564 = vrcp.pop %v5486
      %v5565 = vrcp.pop %v5489
      %v5566 = vrcp.pop %v5492
      %v5567 = vrcp.pop %v5495
      %v5568 = vrcp.pop %v5498
      %v5569 = vrcp.pop %v5501
      %v5570 = vrcp.pop %v5504
      %v5571 = vrcp.pop %v5507
      %v5572 = vrcp.pop %v5510
      %v5573 = vrcp.pop %v5513
      %v5574 = vrcp.pop %v5516
      %v5575 = vrcp.pop %v5519
      %v5576 = vrcp.pop %v5522
      %v5577 = vrcp.pop %v5525
      %v5578 = vrcp.pop %v5528
      %v5579 = vrcp.pop %v5531
      %v5580 = vrcp.pop %v5534
      %v5581 = vrcp.pop %v5537
      %v5582 = vrcp.pop %v5540
      %v5583 = vrcp.pop %v5543
      %v5584 = vrcp.pop %v5546
      %v5585 = vrcp.pop %v5549
      %v5586 = vrcp.pop %v5552
      %v5587 = vrcp.pop %v5555
      %v5588 = vmul.f32 %v5333, %v5556
      %v5589 = vmul.f32 %v5335, %v5556
      %v5590 = vmul.f32 %v5337, %v5557
      %v5591 = vmul.f32 %v5339, %v5557
      %v5592 = vmul.f32 %v5341, %v5558
      %v5593 = vmul.f32 %v5343, %v5558
      %v5594 = vmul.f32 %v5345, %v5559
      %v5595 = vmul.f32 %v5347, %v5559
      %v5596 = vmul.f32 %v5349, %v5560
      %v5597 = vmul.f32 %v5351, %v5560
      %v5598 = vmul.f32 %v5353, %v5561
      %v5599 = vmul.f32 %v5355, %v5561
      %v5600 = vmul.f32 %v5357, %v5562
      %v5601 = vmul.f32 %v5359, %v5562
      %v5602 = vmul.f32 %v5361, %v5563
      %v5603 = vmul.f32 %v5363, %v5563
      %v5604 = vmul.f32 %v5365, %v5564
      %v5605 = vmul.f32 %v5367, %v5564
      %v5606 = vmul.f32 %v5369, %v5565
      %v5607 = vmul.f32 %v5371, %v5565
      %v5608 = vmul.f32 %v5373, %v5566
      %v5609 = vmul.f32 %v5375, %v5566
      %v5610 = vmul.f32 %v5377, %v5567
      %v5611 = vmul.f32 %v5379, %v5567
      %v5612 = vmul.f32 %v5381, %v5568
      %v5613 = vmul.f32 %v5383, %v5568
      %v5614 = vmul.f32 %v5385, %v5569
      %v5615 = vmul.f32 %v5387, %v5569
      %v5616 = vmul.f32 %v5389, %v5570
      %v5617 = vmul.f32 %v5391, %v5570
      %v5618 = vmul.f32 %v5393, %v5571
      %v5619 = vmul.f32 %v5395, %v5571
      %v5620 = vmul.f32 %v5397, %v5572
      %v5621 = vmul.f32 %v5399, %v5572
      %v5622 = vmul.f32 %v5401, %v5573
      %v5623 = vmul.f32 %v5403, %v5573
      %v5624 = vmul.f32 %v5405, %v5574
      %v5625 = vmul.f32 %v5407, %v5574
      %v5626 = vmul.f32 %v5409, %v5575
      %v5627 = vmul.f32 %v5411, %v5575
      %v5628 = vmul.f32 %v5413, %v5576
      %v5629 = vmul.f32 %v5415, %v5576
      %v5630 = vmul.f32 %v5417, %v5577
      %v5631 = vmul.f32 %v5419, %v5577
      %v5632 = vmul.f32 %v5421, %v5578
      %v5633 = vmul.f32 %v5423, %v5578
      %v5634 = vmul.f32 %v5425, %v5579
      %v5635 = vmul.f32 %v5427, %v5579
      %v5636 = vmul.f32 %v5429, %v5580
      %v5637 = vmul.f32 %v5431, %v5580
      %v5638 = vmul.f32 %v5433, %v5581
      %v5639 = vmul.f32 %v5435, %v5581
      %v5640 = vmul.f32 %v5437, %v5582
      %v5641 = vmul.f32 %v5439, %v5582
      %v5642 = vmul.f32 %v5441, %v5583
      %v5643 = vmul.f32 %v5443, %v5583
      %v5644 = vmul.f32 %v5445, %v5584
      %v5645 = vmul.f32 %v5447, %v5584
      %v5646 = vmul.f32 %v5449, %v5585
      %v5647 = vmul.f32 %v5451, %v5585
      %v5648 = vmul.f32 %v5453, %v5586
      %v5649 = vmul.f32 %v5455, %v5586
      %v5650 = vmul.f32 %v5457, %v5587
      %v5651 = vmul.f32 %v5459, %v5587
      %5652 = vmatprep.subr.mxu0 0.0
      %5653 = vmatpush1.msra.mxu0 %v4672
      %5654 = vmatprep.subr.mxu0 0.0
      %5655 = vmatpush1.msra.mxu0 %v4667
      %5656 = vmatprep.subr.mxu0 0.0
      %5657 = vmatpush1.msra.mxu0 %v4662
      %5658 = vmatprep.subr.mxu0 0.0
      %5659 = vmatpush1.msra.mxu0 %v4657
      %5660 = vmatprep.subr.mxu0 0.0
      %5661 = vmatpush1.msra.mxu0 %v4652
      %5662 = vmatprep.subr.mxu0 0.0
      %5663 = vmatpush1.msra.mxu0 %v4647
      %5664 = vmatprep.subr.mxu0 0.0
      %5665 = vmatpush1.msra.mxu0 %v4642
      %5666 = vmatprep.subr.mxu0 0.0
      %5667 = vmatpush1.msra.mxu0 %v4637
      %5668 = vmatprep.subr.mxu0 0.0
      %5669 = vmatpush1.msra.mxu0 %v4632
      %5670 = vmatprep.subr.mxu0 0.0
      %5671 = vmatpush1.msra.mxu0 %v4627
      %5672 = vmatprep.subr.mxu0 0.0
      %5673 = vmatpush1.msra.mxu0 %v4622
      %5674 = vmatprep.subr.mxu0 0.0
      %5675 = vmatpush1.msra.mxu0 %v4617
      %5676 = vmatprep.subr.mxu0 0.0
      %5677 = vmatpush1.msra.mxu0 %v4612
      %5678 = vmatprep.subr.mxu0 0.0
      %5679 = vmatpush1.msra.mxu0 %v4607
      %5680 = vmatprep.subr.mxu0 0.0
      %5681 = vmatpush1.msra.mxu0 %v4602
      %5682 = vmatprep.subr.mxu0 0.0
      %5683 = vmatpush1.msra.mxu0 %v4597
      %5684 = vmatprep.subr.mxu0 0.0
      %5685 = vmatpush2.msra.mxu0 %v4752
      %5686 = vmatprep.subr.mxu0 0.0
      %5687 = vmatpush2.msra.mxu0 %v4747
      %5688 = vmatprep.subr.mxu0 0.0
      %5689 = vmatpush2.msra.mxu0 %v4742
      %5690 = vmatprep.subr.mxu0 0.0
      %5691 = vmatpush2.msra.mxu0 %v4737
      %5692 = vmatprep.subr.mxu0 0.0
      %5693 = vmatpush2.msra.mxu0 %v4732
      %5694 = vmatprep.subr.mxu0 0.0
      %5695 = vmatpush2.msra.mxu0 %v4727
      %5696 = vmatprep.subr.mxu0 0.0
      %5697 = vmatpush2.msra.mxu0 %v4722
      %5698 = vmatprep.subr.mxu0 0.0
      %5699 = vmatpush2.msra.mxu0 %v4717
      %5700 = vmatprep.subr.mxu0 0.0
      %5701 = vmatpush2.msra.mxu0 %v4712
      %5702 = vmatprep.subr.mxu0 0.0
      %5703 = vmatpush2.msra.mxu0 %v4707
      %5704 = vmatprep.subr.mxu0 0.0
      %5705 = vmatpush2.msra.mxu0 %v4702
      %5706 = vmatprep.subr.mxu0 0.0
      %5707 = vmatpush2.msra.mxu0 %v4697
      %5708 = vmatprep.subr.mxu0 0.0
      %5709 = vmatpush2.msra.mxu0 %v4692
      %5710 = vmatprep.subr.mxu0 0.0
      %5711 = vmatpush2.msra.mxu0 %v4687
      %5712 = vmatprep.subr.mxu0 0.0
      %5713 = vmatpush2.msra.mxu0 %v4682
      %5714 = vmatprep.subr.mxu0 0.0
      %5715 = vmatpush2.msra.mxu0 %v4677
      %5716 = vmatprep.mubr.f32.mxu0 %v5589
      %5717 = vmatmul.mubr.f32.gmra.mxu0 %v5588
      %v5718 = vpop.f32.mrf.mxu0
      %v5719 = vadd.f32 0.0, %v5718
      %v5720 = vpop.f32.mrf.mxu0
      %5721 = vmatprep.mubr.f32.mxu0 %v5591
      %5722 = vmatmul.mubr.f32.gmra.mxu0 %v5590
      %v5723 = vpop.f32.mrf.mxu0
      %v5724 = vadd.f32 0.0, %v5723
      %v5725 = vpop.f32.mrf.mxu0
      %5726 = vmatprep.mubr.f32.mxu0 %v5593
      %5727 = vmatmul.mubr.f32.gmra.mxu0 %v5592
      %v5728 = vpop.f32.mrf.mxu0
      %v5729 = vadd.f32 0.0, %v5728
      %v5730 = vpop.f32.mrf.mxu0
      %5731 = vmatprep.mubr.f32.mxu0 %v5595
      %5732 = vmatmul.mubr.f32.gmra.mxu0 %v5594
      %v5733 = vpop.f32.mrf.mxu0
      %v5734 = vadd.f32 0.0, %v5733
      %v5735 = vpop.f32.mrf.mxu0
      %5736 = vmatprep.mubr.f32.mxu0 %v5597
      %5737 = vmatmul.mubr.f32.gmra.mxu0 %v5596
      %v5738 = vpop.f32.mrf.mxu0
      %v5739 = vadd.f32 0.0, %v5738
      %v5740 = vpop.f32.mrf.mxu0
      %5741 = vmatprep.mubr.f32.mxu0 %v5599
      %5742 = vmatmul.mubr.f32.gmra.mxu0 %v5598
      %v5743 = vpop.f32.mrf.mxu0
      %v5744 = vadd.f32 0.0, %v5743
      %v5745 = vpop.f32.mrf.mxu0
      %5746 = vmatprep.mubr.f32.mxu0 %v5601
      %5747 = vmatmul.mubr.f32.gmra.mxu0 %v5600
      %v5748 = vpop.f32.mrf.mxu0
      %v5749 = vadd.f32 0.0, %v5748
      %v5750 = vpop.f32.mrf.mxu0
      %5751 = vmatprep.mubr.f32.mxu0 %v5603
      %5752 = vmatmul.mubr.f32.gmra.mxu0 %v5602
      %v5753 = vpop.f32.mrf.mxu0
      %v5754 = vadd.f32 0.0, %v5753
      %v5755 = vpop.f32.mrf.mxu0
      %5756 = vmatprep.mubr.f32.mxu0 %v5605
      %5757 = vmatmul.mubr.f32.gmra.mxu0 %v5604
      %v5758 = vpop.f32.mrf.mxu0
      %v5759 = vadd.f32 0.0, %v5758
      %v5760 = vpop.f32.mrf.mxu0
      %5761 = vmatprep.mubr.f32.mxu0 %v5607
      %5762 = vmatmul.mubr.f32.gmra.mxu0 %v5606
      %v5763 = vpop.f32.mrf.mxu0
      %v5764 = vadd.f32 0.0, %v5763
      %v5765 = vpop.f32.mrf.mxu0
      %5766 = vmatprep.mubr.f32.mxu0 %v5609
      %5767 = vmatmul.mubr.f32.gmra.mxu0 %v5608
      %v5768 = vpop.f32.mrf.mxu0
      %v5769 = vadd.f32 0.0, %v5768
      %v5770 = vpop.f32.mrf.mxu0
      %5771 = vmatprep.mubr.f32.mxu0 %v5611
      %5772 = vmatmul.mubr.f32.gmra.mxu0 %v5610
      %v5773 = vpop.f32.mrf.mxu0
      %v5774 = vadd.f32 0.0, %v5773
      %v5775 = vpop.f32.mrf.mxu0
      %5776 = vmatprep.mubr.f32.mxu0 %v5613
      %5777 = vmatmul.mubr.f32.gmra.mxu0 %v5612
      %v5778 = vpop.f32.mrf.mxu0
      %v5779 = vadd.f32 0.0, %v5778
      %v5780 = vpop.f32.mrf.mxu0
      %5781 = vmatprep.mubr.f32.mxu0 %v5615
      %5782 = vmatmul.mubr.f32.gmra.mxu0 %v5614
      %v5783 = vpop.f32.mrf.mxu0
      %v5784 = vadd.f32 0.0, %v5783
      %v5785 = vpop.f32.mrf.mxu0
      %5786 = vmatprep.mubr.f32.mxu0 %v5617
      %5787 = vmatmul.mubr.f32.gmra.mxu0 %v5616
      %v5788 = vpop.f32.mrf.mxu0
      %v5789 = vadd.f32 0.0, %v5788
      %v5790 = vpop.f32.mrf.mxu0
      %5791 = vmatprep.mubr.f32.mxu0 %v5619
      %5792 = vmatmul.mubr.f32.gmra.mxu0 %v5618
      %v5793 = vpop.f32.mrf.mxu0
      %v5794 = vadd.f32 0.0, %v5793
      %v5795 = vpop.f32.mrf.mxu0
      %5796 = vmatprep.mubr.f32.mxu0 %v5621
      %5797 = vmatmul.mubr.f32.gmra.mxu0 %v5620
      %v5798 = vpop.f32.mrf.mxu0
      %v5799 = vadd.f32 0.0, %v5798
      %v5800 = vpop.f32.mrf.mxu0
      %5801 = vmatprep.mubr.f32.mxu0 %v5623
      %5802 = vmatmul.mubr.f32.gmra.mxu0 %v5622
      %v5803 = vpop.f32.mrf.mxu0
      %v5804 = vadd.f32 0.0, %v5803
      %v5805 = vpop.f32.mrf.mxu0
      %5806 = vmatprep.mubr.f32.mxu0 %v5625
      %5807 = vmatmul.mubr.f32.gmra.mxu0 %v5624
      %v5808 = vpop.f32.mrf.mxu0
      %v5809 = vadd.f32 0.0, %v5808
      %v5810 = vpop.f32.mrf.mxu0
      %5811 = vmatprep.mubr.f32.mxu0 %v5627
      %5812 = vmatmul.mubr.f32.gmra.mxu0 %v5626
      %v5813 = vpop.f32.mrf.mxu0
      %v5814 = vadd.f32 0.0, %v5813
      %v5815 = vpop.f32.mrf.mxu0
      %5816 = vmatprep.mubr.f32.mxu0 %v5629
      %5817 = vmatmul.mubr.f32.gmra.mxu0 %v5628
      %v5818 = vpop.f32.mrf.mxu0
      %v5819 = vadd.f32 0.0, %v5818
      %v5820 = vpop.f32.mrf.mxu0
      %5821 = vmatprep.mubr.f32.mxu0 %v5631
      %5822 = vmatmul.mubr.f32.gmra.mxu0 %v5630
      %v5823 = vpop.f32.mrf.mxu0
      %v5824 = vadd.f32 0.0, %v5823
      %v5825 = vpop.f32.mrf.mxu0
      %5826 = vmatprep.mubr.f32.mxu0 %v5633
      %5827 = vmatmul.mubr.f32.gmra.mxu0 %v5632
      %v5828 = vpop.f32.mrf.mxu0
      %v5829 = vadd.f32 0.0, %v5828
      %v5830 = vpop.f32.mrf.mxu0
      %5831 = vmatprep.mubr.f32.mxu0 %v5635
      %5832 = vmatmul.mubr.f32.gmra.mxu0 %v5634
      %v5833 = vpop.f32.mrf.mxu0
      %v5834 = vadd.f32 0.0, %v5833
      %v5835 = vpop.f32.mrf.mxu0
      %5836 = vmatprep.mubr.f32.mxu0 %v5637
      %5837 = vmatmul.mubr.f32.gmra.mxu0 %v5636
      %v5838 = vpop.f32.mrf.mxu0
      %v5839 = vadd.f32 0.0, %v5838
      %v5840 = vpop.f32.mrf.mxu0
      %5841 = vmatprep.mubr.f32.mxu0 %v5639
      %5842 = vmatmul.mubr.f32.gmra.mxu0 %v5638
      %v5843 = vpop.f32.mrf.mxu0
      %v5844 = vadd.f32 0.0, %v5843
      %v5845 = vpop.f32.mrf.mxu0
      %5846 = vmatprep.mubr.f32.mxu0 %v5641
      %5847 = vmatmul.mubr.f32.gmra.mxu0 %v5640
      %v5848 = vpop.f32.mrf.mxu0
      %v5849 = vadd.f32 0.0, %v5848
      %v5850 = vpop.f32.mrf.mxu0
      %5851 = vmatprep.mubr.f32.mxu0 %v5643
      %5852 = vmatmul.mubr.f32.gmra.mxu0 %v5642
      %v5853 = vpop.f32.mrf.mxu0
      %v5854 = vadd.f32 0.0, %v5853
      %v5855 = vpop.f32.mrf.mxu0
      %5856 = vmatprep.mubr.f32.mxu0 %v5645
      %5857 = vmatmul.mubr.f32.gmra.mxu0 %v5644
      %v5858 = vpop.f32.mrf.mxu0
      %v5859 = vadd.f32 0.0, %v5858
      %v5860 = vpop.f32.mrf.mxu0
      %5861 = vmatprep.mubr.f32.mxu0 %v5647
      %5862 = vmatmul.mubr.f32.gmra.mxu0 %v5646
      %v5863 = vpop.f32.mrf.mxu0
      %v5864 = vadd.f32 0.0, %v5863
      %v5865 = vpop.f32.mrf.mxu0
      %5866 = vmatprep.mubr.f32.mxu0 %v5649
      %5867 = vmatmul.mubr.f32.gmra.mxu0 %v5648
      %v5868 = vpop.f32.mrf.mxu0
      %v5869 = vadd.f32 0.0, %v5868
      %v5870 = vpop.f32.mrf.mxu0
      %5871 = vmatprep.mubr.f32.mxu0 %v5651
      %5872 = vmatmul.mubr.f32.gmra.mxu0 %v5650
      %v5873 = vpop.f32.mrf.mxu0
      %v5874 = vadd.f32 0.0, %v5873
      %v5875 = vpop.f32.mrf.mxu0
      %5876 = vdwg.mxu0
      %v5877 = vld [vmem:[%s15] sm:$0xff]
      %v5878 = vld [vmem:[%s16] sm:$0x1]
      %v5880 = vlaneseq
      %v5881 = vshrl.u32 %v5880, 7
      %v5882 = vsub.s32 0, %v5881
      %v5883 = vrot.slane %v5878, %v5882
      %v5886 = vsel %vm1055, %v5719, 0
      %v5889 = vsel %vm1055, %v5724, 0
      %v5892 = vsel %vm1055, %v5729, 0
      %v5895 = vsel %vm1055, %v5734, 0
      %v5898 = vsel %vm1055, %v5739, 0
      %v5901 = vsel %vm1055, %v5744, 0
      %v5904 = vsel %vm1055, %v5749, 0
      %v5907 = vsel %vm1055, %v5754, 0
      %v5910 = vsel %vm1055, %v5759, 0
      %v5913 = vsel %vm1055, %v5764, 0
      %v5916 = vsel %vm1055, %v5769, 0
      %v5919 = vsel %vm1055, %v5774, 0
      %v5922 = vsel %vm1055, %v5779, 0
      %v5925 = vsel %vm1055, %v5784, 0
      %v5928 = vsel %vm1055, %v5789, 0
      %v5931 = vsel %vm1055, %v5794, 0
      %v5934 = vsel %vm1055, %v5799, 0
      %v5937 = vsel %vm1055, %v5804, 0
      %v5940 = vsel %vm1055, %v5809, 0
      %v5943 = vsel %vm1055, %v5814, 0
      %v5946 = vsel %vm1055, %v5819, 0
      %v5949 = vsel %vm1055, %v5824, 0
      %v5952 = vsel %vm1055, %v5829, 0
      %v5955 = vsel %vm1055, %v5834, 0
      %v5958 = vsel %vm1055, %v5839, 0
      %v5961 = vsel %vm1055, %v5844, 0
      %v5964 = vsel %vm1055, %v5849, 0
      %v5967 = vsel %vm1055, %v5854, 0
      %v5970 = vsel %vm1055, %v5859, 0
      %v5973 = vsel %vm1055, %v5864, 0
      %v5976 = vsel %vm1055, %v5869, 0
      %v5979 = vsel %vm1055, %v5874, 0
      %5981 = vmatprep.subr.mxu0 0.0
      %5982 = vmatpush1.msra.mxu0 0.0
      %5983 = vmatprep.subr.mxu0 0.0
      %5984 = vmatpush1.msra.mxu0 0.0
      %5985 = vmatprep.subr.mxu0 0.0
      %5986 = vmatpush1.msra.mxu0 0.0
      %5987 = vmatprep.subr.mxu0 0.0
      %5988 = vmatpush1.msra.mxu0 0.0
      %5989 = vmatprep.subr.mxu0 0.0
      %5990 = vmatpush1.msra.mxu0 0.0
      %5991 = vmatprep.subr.mxu0 0.0
      %5992 = vmatpush1.msra.mxu0 0.0
      %5993 = vmatprep.subr.mxu0 0.0
      %5994 = vmatpush1.msra.mxu0 0.0
      %5995 = vmatprep.subr.mxu0 0.0
      %5996 = vmatpush1.msra.mxu0 0.0
      %5997 = vmatprep.subr.mxu0 0.0
      %5998 = vmatpush1.msra.mxu0 0.0
      %5999 = vmatprep.subr.mxu0 0.0
      %6000 = vmatpush1.msra.mxu0 0.0
      %6001 = vmatprep.subr.mxu0 0.0
      %6002 = vmatpush1.msra.mxu0 0.0
      %6003 = vmatprep.subr.mxu0 0.0
      %6004 = vmatpush1.msra.mxu0 0.0
      %6005 = vmatprep.subr.mxu0 0.0
      %6006 = vmatpush1.msra.mxu0 0.0
      %6007 = vmatprep.subr.mxu0 0.0
      %6008 = vmatpush1.msra.mxu0 0.0
      %6009 = vmatprep.subr.mxu0 0.0
      %6010 = vmatpush1.msra.mxu0 0.0
      %6011 = vmatprep.subr.mxu0 0.0
      %6012 = vmatpush1.msra.mxu0 %v5877
      %6013 = vmatprep.subr.mxu0 0.0
      %6014 = vmatpush2.msra.mxu0 0.0
      %6015 = vmatprep.subr.mxu0 0.0
      %6016 = vmatpush2.msra.mxu0 0.0
      %6017 = vmatprep.subr.mxu0 0.0
      %6018 = vmatpush2.msra.mxu0 0.0
      %6019 = vmatprep.subr.mxu0 0.0
      %6020 = vmatpush2.msra.mxu0 0.0
      %6021 = vmatprep.subr.mxu0 0.0
      %6022 = vmatpush2.msra.mxu0 0.0
      %6023 = vmatprep.subr.mxu0 0.0
      %6024 = vmatpush2.msra.mxu0 0.0
      %6025 = vmatprep.subr.mxu0 0.0
      %6026 = vmatpush2.msra.mxu0 0.0
      %6027 = vmatprep.subr.mxu0 0.0
      %6028 = vmatpush2.msra.mxu0 0.0
      %6029 = vmatprep.subr.mxu0 0.0
      %6030 = vmatpush2.msra.mxu0 0.0
      %6031 = vmatprep.subr.mxu0 0.0
      %6032 = vmatpush2.msra.mxu0 0.0
      %6033 = vmatprep.subr.mxu0 0.0
      %6034 = vmatpush2.msra.mxu0 0.0
      %6035 = vmatprep.subr.mxu0 0.0
      %6036 = vmatpush2.msra.mxu0 0.0
      %6037 = vmatprep.subr.mxu0 0.0
      %6038 = vmatpush2.msra.mxu0 0.0
      %6039 = vmatprep.subr.mxu0 0.0
      %6040 = vmatpush2.msra.mxu0 0.0
      %6041 = vmatprep.subr.mxu0 0.0
      %6042 = vmatpush2.msra.mxu0 0.0
      %6043 = vmatprep.subr.mxu0 0.0
      %6044 = vmatpush2.msra.mxu0 0.0
      %6045 = vmatprep.mubr.f32.mxu0 0.0
      %6046 = vmatmul.mubr.f32.gmra.mxu0 %v5886
      %v6047 = vpop.f32.mrf.mxu0
      %v6048 = vadd.f32 %v5883, %v6047
      %v6049 = vpop.f32.mrf.mxu0
      %6050 = vmatprep.mubr.f32.mxu0 0.0
      %6051 = vmatmul.mubr.f32.gmra.mxu0 %v5889
      %v6052 = vpop.f32.mrf.mxu0
      %v6053 = vadd.f32 %v5883, %v6052
      %v6054 = vpop.f32.mrf.mxu0
      %6055 = vmatprep.mubr.f32.mxu0 0.0
      %6056 = vmatmul.mubr.f32.gmra.mxu0 %v5892
      %v6057 = vpop.f32.mrf.mxu0
      %v6058 = vadd.f32 %v5883, %v6057
      %v6059 = vpop.f32.mrf.mxu0
      %6060 = vmatprep.mubr.f32.mxu0 0.0
      %6061 = vmatmul.mubr.f32.gmra.mxu0 %v5895
      %v6062 = vpop.f32.mrf.mxu0
      %v6063 = vadd.f32 %v5883, %v6062
      %v6064 = vpop.f32.mrf.mxu0
      %6065 = vmatprep.mubr.f32.mxu0 0.0
      %6066 = vmatmul.mubr.f32.gmra.mxu0 %v5898
      %v6067 = vpop.f32.mrf.mxu0
      %v6068 = vadd.f32 %v5883, %v6067
      %v6069 = vpop.f32.mrf.mxu0
      %6070 = vmatprep.mubr.f32.mxu0 0.0
      %6071 = vmatmul.mubr.f32.gmra.mxu0 %v5901
      %v6072 = vpop.f32.mrf.mxu0
      %v6073 = vadd.f32 %v5883, %v6072
      %v6074 = vpop.f32.mrf.mxu0
      %6075 = vmatprep.mubr.f32.mxu0 0.0
      %6076 = vmatmul.mubr.f32.gmra.mxu0 %v5904
      %v6077 = vpop.f32.mrf.mxu0
      %v6078 = vadd.f32 %v5883, %v6077
      %v6079 = vpop.f32.mrf.mxu0
      %6080 = vmatprep.mubr.f32.mxu0 0.0
      %6081 = vmatmul.mubr.f32.gmra.mxu0 %v5907
      %v6082 = vpop.f32.mrf.mxu0
      %v6083 = vadd.f32 %v5883, %v6082
      %v6084 = vpop.f32.mrf.mxu0
      %6085 = vmatprep.mubr.f32.mxu0 0.0
      %6086 = vmatmul.mubr.f32.gmra.mxu0 %v5910
      %v6087 = vpop.f32.mrf.mxu0
      %v6088 = vadd.f32 %v5883, %v6087
      %v6089 = vpop.f32.mrf.mxu0
      %6090 = vmatprep.mubr.f32.mxu0 0.0
      %6091 = vmatmul.mubr.f32.gmra.mxu0 %v5913
      %v6092 = vpop.f32.mrf.mxu0
      %v6093 = vadd.f32 %v5883, %v6092
      %v6094 = vpop.f32.mrf.mxu0
      %6095 = vmatprep.mubr.f32.mxu0 0.0
      %6096 = vmatmul.mubr.f32.gmra.mxu0 %v5916
      %v6097 = vpop.f32.mrf.mxu0
      %v6098 = vadd.f32 %v5883, %v6097
      %v6099 = vpop.f32.mrf.mxu0
      %6100 = vmatprep.mubr.f32.mxu0 0.0
      %6101 = vmatmul.mubr.f32.gmra.mxu0 %v5919
      %v6102 = vpop.f32.mrf.mxu0
      %v6103 = vadd.f32 %v5883, %v6102
      %v6104 = vpop.f32.mrf.mxu0
      %6105 = vmatprep.mubr.f32.mxu0 0.0
      %6106 = vmatmul.mubr.f32.gmra.mxu0 %v5922
      %v6107 = vpop.f32.mrf.mxu0
      %v6108 = vadd.f32 %v5883, %v6107
      %v6109 = vpop.f32.mrf.mxu0
      %6110 = vmatprep.mubr.f32.mxu0 0.0
      %6111 = vmatmul.mubr.f32.gmra.mxu0 %v5925
      %v6112 = vpop.f32.mrf.mxu0
      %v6113 = vadd.f32 %v5883, %v6112
      %v6114 = vpop.f32.mrf.mxu0
      %6115 = vmatprep.mubr.f32.mxu0 0.0
      %6116 = vmatmul.mubr.f32.gmra.mxu0 %v5928
      %v6117 = vpop.f32.mrf.mxu0
      %v6118 = vadd.f32 %v5883, %v6117
      %v6119 = vpop.f32.mrf.mxu0
      %6120 = vmatprep.mubr.f32.mxu0 0.0
      %6121 = vmatmul.mubr.f32.gmra.mxu0 %v5931
      %v6122 = vpop.f32.mrf.mxu0
      %v6123 = vadd.f32 %v5883, %v6122
      %v6124 = vpop.f32.mrf.mxu0
      %6125 = vmatprep.mubr.f32.mxu0 0.0
      %6126 = vmatmul.mubr.f32.gmra.mxu0 %v5934
      %v6127 = vpop.f32.mrf.mxu0
      %v6128 = vadd.f32 %v5883, %v6127
      %v6129 = vpop.f32.mrf.mxu0
      %6130 = vmatprep.mubr.f32.mxu0 0.0
      %6131 = vmatmul.mubr.f32.gmra.mxu0 %v5937
      %v6132 = vpop.f32.mrf.mxu0
      %v6133 = vadd.f32 %v5883, %v6132
      %v6134 = vpop.f32.mrf.mxu0
      %6135 = vmatprep.mubr.f32.mxu0 0.0
      %6136 = vmatmul.mubr.f32.gmra.mxu0 %v5940
      %v6137 = vpop.f32.mrf.mxu0
      %v6138 = vadd.f32 %v5883, %v6137
      %v6139 = vpop.f32.mrf.mxu0
      %6140 = vmatprep.mubr.f32.mxu0 0.0
      %6141 = vmatmul.mubr.f32.gmra.mxu0 %v5943
      %v6142 = vpop.f32.mrf.mxu0
      %v6143 = vadd.f32 %v5883, %v6142
      %v6144 = vpop.f32.mrf.mxu0
      %6145 = vmatprep.mubr.f32.mxu0 0.0
      %6146 = vmatmul.mubr.f32.gmra.mxu0 %v5946
      %v6147 = vpop.f32.mrf.mxu0
      %v6148 = vadd.f32 %v5883, %v6147
      %v6149 = vpop.f32.mrf.mxu0
      %6150 = vmatprep.mubr.f32.mxu0 0.0
      %6151 = vmatmul.mubr.f32.gmra.mxu0 %v5949
      %v6152 = vpop.f32.mrf.mxu0
      %v6153 = vadd.f32 %v5883, %v6152
      %v6154 = vpop.f32.mrf.mxu0
      %6155 = vmatprep.mubr.f32.mxu0 0.0
      %6156 = vmatmul.mubr.f32.gmra.mxu0 %v5952
      %v6157 = vpop.f32.mrf.mxu0
      %v6158 = vadd.f32 %v5883, %v6157
      %v6159 = vpop.f32.mrf.mxu0
      %6160 = vmatprep.mubr.f32.mxu0 0.0
      %6161 = vmatmul.mubr.f32.gmra.mxu0 %v5955
      %v6162 = vpop.f32.mrf.mxu0
      %v6163 = vadd.f32 %v5883, %v6162
      %v6164 = vpop.f32.mrf.mxu0
      %6165 = vmatprep.mubr.f32.mxu0 0.0
      %6166 = vmatmul.mubr.f32.gmra.mxu0 %v5958
      %v6167 = vpop.f32.mrf.mxu0
      %v6168 = vadd.f32 %v5883, %v6167
      %v6169 = vpop.f32.mrf.mxu0
      %6170 = vmatprep.mubr.f32.mxu0 0.0
      %6171 = vmatmul.mubr.f32.gmra.mxu0 %v5961
      %v6172 = vpop.f32.mrf.mxu0
      %v6173 = vadd.f32 %v5883, %v6172
      %v6174 = vpop.f32.mrf.mxu0
      %6175 = vmatprep.mubr.f32.mxu0 0.0
      %6176 = vmatmul.mubr.f32.gmra.mxu0 %v5964
      %v6177 = vpop.f32.mrf.mxu0
      %v6178 = vadd.f32 %v5883, %v6177
      %v6179 = vpop.f32.mrf.mxu0
      %6180 = vmatprep.mubr.f32.mxu0 0.0
      %6181 = vmatmul.mubr.f32.gmra.mxu0 %v5967
      %v6182 = vpop.f32.mrf.mxu0
      %v6183 = vadd.f32 %v5883, %v6182
      %v6184 = vpop.f32.mrf.mxu0
      %6185 = vmatprep.mubr.f32.mxu0 0.0
      %6186 = vmatmul.mubr.f32.gmra.mxu0 %v5970
      %v6187 = vpop.f32.mrf.mxu0
      %v6188 = vadd.f32 %v5883, %v6187
      %v6189 = vpop.f32.mrf.mxu0
      %6190 = vmatprep.mubr.f32.mxu0 0.0
      %6191 = vmatmul.mubr.f32.gmra.mxu0 %v5973
      %v6192 = vpop.f32.mrf.mxu0
      %v6193 = vadd.f32 %v5883, %v6192
      %v6194 = vpop.f32.mrf.mxu0
      %6195 = vmatprep.mubr.f32.mxu0 0.0
      %6196 = vmatmul.mubr.f32.gmra.mxu0 %v5976
      %v6197 = vpop.f32.mrf.mxu0
      %v6198 = vadd.f32 %v5883, %v6197
      %v6199 = vpop.f32.mrf.mxu0
      %6200 = vmatprep.mubr.f32.mxu0 0.0
      %6201 = vmatmul.mubr.f32.gmra.mxu0 %v5979
      %v6202 = vpop.f32.mrf.mxu0
      %v6203 = vadd.f32 %v5883, %v6202
      %v6204 = vpop.f32.mrf.mxu0
      %6205 = vdwg.mxu0
      %vm6206 = vcmp.gt.f32.partialorder %v6048, 0.0
      %vm6207 = vcmp.gt.f32.partialorder %v6053, 0.0
      %vm6208 = vcmp.gt.f32.partialorder %v6058, 0.0
      %vm6209 = vcmp.gt.f32.partialorder %v6063, 0.0
      %vm6210 = vcmp.gt.f32.partialorder %v6068, 0.0
      %vm6211 = vcmp.gt.f32.partialorder %v6073, 0.0
      %vm6212 = vcmp.gt.f32.partialorder %v6078, 0.0
      %vm6213 = vcmp.gt.f32.partialorder %v6083, 0.0
      %vm6214 = vcmp.gt.f32.partialorder %v6088, 0.0
      %vm6215 = vcmp.gt.f32.partialorder %v6093, 0.0
      %vm6216 = vcmp.gt.f32.partialorder %v6098, 0.0
      %vm6217 = vcmp.gt.f32.partialorder %v6103, 0.0
      %vm6218 = vcmp.gt.f32.partialorder %v6108, 0.0
      %vm6219 = vcmp.gt.f32.partialorder %v6113, 0.0
      %vm6220 = vcmp.gt.f32.partialorder %v6118, 0.0
      %vm6221 = vcmp.gt.f32.partialorder %v6123, 0.0
      %vm6222 = vcmp.gt.f32.partialorder %v6128, 0.0
      %vm6223 = vcmp.gt.f32.partialorder %v6133, 0.0
      %vm6224 = vcmp.gt.f32.partialorder %v6138, 0.0
      %vm6225 = vcmp.gt.f32.partialorder %v6143, 0.0
      %vm6226 = vcmp.gt.f32.partialorder %v6148, 0.0
      %vm6227 = vcmp.gt.f32.partialorder %v6153, 0.0
      %vm6228 = vcmp.gt.f32.partialorder %v6158, 0.0
      %vm6229 = vcmp.gt.f32.partialorder %v6163, 0.0
      %vm6230 = vcmp.gt.f32.partialorder %v6168, 0.0
      %vm6231 = vcmp.gt.f32.partialorder %v6173, 0.0
      %vm6232 = vcmp.gt.f32.partialorder %v6178, 0.0
      %vm6233 = vcmp.gt.f32.partialorder %v6183, 0.0
      %vm6234 = vcmp.gt.f32.partialorder %v6188, 0.0
      %vm6235 = vcmp.gt.f32.partialorder %v6193, 0.0
      %vm6236 = vcmp.gt.f32.partialorder %v6198, 0.0
      %vm6237 = vcmp.gt.f32.partialorder %v6203, 0.0
      %v6238 = vmul.f32 %v6048, 0.01
      %v6239 = vmul.f32 %v6053, 0.01
      %v6240 = vmul.f32 %v6058, 0.01
      %v6241 = vmul.f32 %v6063, 0.01
      %v6242 = vmul.f32 %v6068, 0.01
      %v6243 = vmul.f32 %v6073, 0.01
      %v6244 = vmul.f32 %v6078, 0.01
      %v6245 = vmul.f32 %v6083, 0.01
      %v6246 = vmul.f32 %v6088, 0.01
      %v6247 = vmul.f32 %v6093, 0.01
      %v6248 = vmul.f32 %v6098, 0.01
      %v6249 = vmul.f32 %v6103, 0.01
      %v6250 = vmul.f32 %v6108, 0.01
      %v6251 = vmul.f32 %v6113, 0.01
      %v6252 = vmul.f32 %v6118, 0.01
      %v6253 = vmul.f32 %v6123, 0.01
      %v6254 = vmul.f32 %v6128, 0.01
      %v6255 = vmul.f32 %v6133, 0.01
      %v6256 = vmul.f32 %v6138, 0.01
      %v6257 = vmul.f32 %v6143, 0.01
      %v6258 = vmul.f32 %v6148, 0.01
      %v6259 = vmul.f32 %v6153, 0.01
      %v6260 = vmul.f32 %v6158, 0.01
      %v6261 = vmul.f32 %v6163, 0.01
      %v6262 = vmul.f32 %v6168, 0.01
      %v6263 = vmul.f32 %v6173, 0.01
      %v6264 = vmul.f32 %v6178, 0.01
      %v6265 = vmul.f32 %v6183, 0.01
      %v6266 = vmul.f32 %v6188, 0.01
      %v6267 = vmul.f32 %v6193, 0.01
      %v6268 = vmul.f32 %v6198, 0.01
      %v6269 = vmul.f32 %v6203, 0.01
      %v6270 = vsel %vm6206, %v6048, %v6238
      %v6271 = vsel %vm6207, %v6053, %v6239
      %v6272 = vsel %vm6208, %v6058, %v6240
      %v6273 = vsel %vm6209, %v6063, %v6241
      %v6274 = vsel %vm6210, %v6068, %v6242
      %v6275 = vsel %vm6211, %v6073, %v6243
      %v6276 = vsel %vm6212, %v6078, %v6244
      %v6277 = vsel %vm6213, %v6083, %v6245
      %v6278 = vsel %vm6214, %v6088, %v6246
      %v6279 = vsel %vm6215, %v6093, %v6247
      %v6280 = vsel %vm6216, %v6098, %v6248
      %v6281 = vsel %vm6217, %v6103, %v6249
      %v6282 = vsel %vm6218, %v6108, %v6250
      %v6283 = vsel %vm6219, %v6113, %v6251
      %v6284 = vsel %vm6220, %v6118, %v6252
      %v6285 = vsel %vm6221, %v6123, %v6253
      %v6286 = vsel %vm6222, %v6128, %v6254
      %v6287 = vsel %vm6223, %v6133, %v6255
      %v6288 = vsel %vm6224, %v6138, %v6256
      %v6289 = vsel %vm6225, %v6143, %v6257
      %v6290 = vsel %vm6226, %v6148, %v6258
      %v6291 = vsel %vm6227, %v6153, %v6259
      %v6292 = vsel %vm6228, %v6158, %v6260
      %v6293 = vsel %vm6229, %v6163, %v6261
      %v6294 = vsel %vm6230, %v6168, %v6262
      %v6295 = vsel %vm6231, %v6173, %v6263
      %v6296 = vsel %vm6232, %v6178, %v6264
      %v6297 = vsel %vm6233, %v6183, %v6265
      %v6298 = vsel %vm6234, %v6188, %v6266
      %v6299 = vsel %vm6235, %v6193, %v6267
      %v6300 = vsel %vm6236, %v6198, %v6268
      %v6301 = vsel %vm6237, %v6203, %v6269
      %v6302 = vld [vmem:[%s17] sm:$0xff]
      %v6303 = vld [vmem:[%s18] sm:$0xff]
      %v6305 = vsel %vm1055, %v6270, 0
      %v6308 = vsel %vm1055, %v6271, 0
      %v6311 = vsel %vm1055, %v6272, 0
      %v6314 = vsel %vm1055, %v6273, 0
      %v6317 = vsel %vm1055, %v6274, 0
      %v6320 = vsel %vm1055, %v6275, 0
      %v6323 = vsel %vm1055, %v6276, 0
      %v6326 = vsel %vm1055, %v6277, 0
      %v6329 = vsel %vm1055, %v6278, 0
      %v6332 = vsel %vm1055, %v6279, 0
      %v6335 = vsel %vm1055, %v6280, 0
      %v6338 = vsel %vm1055, %v6281, 0
      %v6341 = vsel %vm1055, %v6282, 0
      %v6344 = vsel %vm1055, %v6283, 0
      %v6347 = vsel %vm1055, %v6284, 0
      %v6350 = vsel %vm1055, %v6285, 0
      %v6353 = vsel %vm1055, %v6286, 0
      %v6356 = vsel %vm1055, %v6287, 0
      %v6359 = vsel %vm1055, %v6288, 0
      %v6362 = vsel %vm1055, %v6289, 0
      %v6365 = vsel %vm1055, %v6290, 0
      %v6368 = vsel %vm1055, %v6291, 0
      %v6371 = vsel %vm1055, %v6292, 0
      %v6374 = vsel %vm1055, %v6293, 0
      %v6377 = vsel %vm1055, %v6294, 0
      %v6380 = vsel %vm1055, %v6295, 0
      %v6383 = vsel %vm1055, %v6296, 0
      %v6386 = vsel %vm1055, %v6297, 0
      %v6389 = vsel %vm1055, %v6298, 0
      %v6392 = vsel %vm1055, %v6299, 0
      %v6395 = vsel %vm1055, %v6300, 0
      %v6398 = vsel %vm1055, %v6301, 0
      %6400 = vmatprep.subr.mxu0 0.0
      %6401 = vmatpush1.msra.mxu0 0.0
      %6402 = vmatprep.subr.mxu0 0.0
      %6403 = vmatpush1.msra.mxu0 0.0
      %6404 = vmatprep.subr.mxu0 0.0
      %6405 = vmatpush1.msra.mxu0 0.0
      %6406 = vmatprep.subr.mxu0 0.0
      %6407 = vmatpush1.msra.mxu0 0.0
      %6408 = vmatprep.subr.mxu0 0.0
      %6409 = vmatpush1.msra.mxu0 0.0
      %6410 = vmatprep.subr.mxu0 0.0
      %6411 = vmatpush1.msra.mxu0 0.0
      %6412 = vmatprep.subr.mxu0 0.0
      %6413 = vmatpush1.msra.mxu0 0.0
      %6414 = vmatprep.subr.mxu0 0.0
      %6415 = vmatpush1.msra.mxu0 0.0
      %6416 = vmatprep.subr.mxu0 0.0
      %6417 = vmatpush1.msra.mxu0 0.0
      %6418 = vmatprep.subr.mxu0 0.0
      %6419 = vmatpush1.msra.mxu0 0.0
      %6420 = vmatprep.subr.mxu0 0.0
      %6421 = vmatpush1.msra.mxu0 0.0
      %6422 = vmatprep.subr.mxu0 0.0
      %6423 = vmatpush1.msra.mxu0 0.0
      %6424 = vmatprep.subr.mxu0 0.0
      %6425 = vmatpush1.msra.mxu0 0.0
      %6426 = vmatprep.subr.mxu0 0.0
      %6427 = vmatpush1.msra.mxu0 0.0
      %6428 = vmatprep.subr.mxu0 0.0
      %6429 = vmatpush1.msra.mxu0 0.0
      %6430 = vmatprep.subr.mxu0 0.0
      %6431 = vmatpush1.msra.mxu0 %v6303
      %6432 = vmatprep.subr.mxu0 0.0
      %6433 = vmatpush2.msra.mxu0 0.0
      %6434 = vmatprep.subr.mxu0 0.0
      %6435 = vmatpush2.msra.mxu0 0.0
      %6436 = vmatprep.subr.mxu0 0.0
      %6437 = vmatpush2.msra.mxu0 0.0
      %6438 = vmatprep.subr.mxu0 0.0
      %6439 = vmatpush2.msra.mxu0 0.0
      %6440 = vmatprep.subr.mxu0 0.0
      %6441 = vmatpush2.msra.mxu0 0.0
      %6442 = vmatprep.subr.mxu0 0.0
      %6443 = vmatpush2.msra.mxu0 0.0
      %6444 = vmatprep.subr.mxu0 0.0
      %6445 = vmatpush2.msra.mxu0 0.0
      %6446 = vmatprep.subr.mxu0 0.0
      %6447 = vmatpush2.msra.mxu0 0.0
      %6448 = vmatprep.subr.mxu0 0.0
      %6449 = vmatpush2.msra.mxu0 0.0
      %6450 = vmatprep.subr.mxu0 0.0
      %6451 = vmatpush2.msra.mxu0 0.0
      %6452 = vmatprep.subr.mxu0 0.0
      %6453 = vmatpush2.msra.mxu0 0.0
      %6454 = vmatprep.subr.mxu0 0.0
      %6455 = vmatpush2.msra.mxu0 0.0
      %6456 = vmatprep.subr.mxu0 0.0
      %6457 = vmatpush2.msra.mxu0 0.0
      %6458 = vmatprep.subr.mxu0 0.0
      %6459 = vmatpush2.msra.mxu0 0.0
      %6460 = vmatprep.subr.mxu0 0.0
      %6461 = vmatpush2.msra.mxu0 0.0
      %6462 = vmatprep.subr.mxu0 0.0
      %6463 = vmatpush2.msra.mxu0 0.0
      %6464 = vmatprep.mubr.f32.mxu0 0.0
      %6465 = vmatmul.mubr.f32.gmra.mxu0 %v6305
      %v6466 = vpop.f32.mrf.mxu0
      %v6467 = vadd.f32 0.0, %v6466
      %v6468 = vpop.f32.mrf.mxu0
      %6469 = vmatprep.mubr.f32.mxu0 0.0
      %6470 = vmatmul.mubr.f32.gmra.mxu0 %v6308
      %v6471 = vpop.f32.mrf.mxu0
      %v6472 = vadd.f32 0.0, %v6471
      %v6473 = vpop.f32.mrf.mxu0
      %6474 = vmatprep.mubr.f32.mxu0 0.0
      %6475 = vmatmul.mubr.f32.gmra.mxu0 %v6311
      %v6476 = vpop.f32.mrf.mxu0
      %v6477 = vadd.f32 0.0, %v6476
      %v6478 = vpop.f32.mrf.mxu0
      %6479 = vmatprep.mubr.f32.mxu0 0.0
      %6480 = vmatmul.mubr.f32.gmra.mxu0 %v6314
      %v6481 = vpop.f32.mrf.mxu0
      %v6482 = vadd.f32 0.0, %v6481
      %v6483 = vpop.f32.mrf.mxu0
      %6484 = vmatprep.mubr.f32.mxu0 0.0
      %6485 = vmatmul.mubr.f32.gmra.mxu0 %v6317
      %v6486 = vpop.f32.mrf.mxu0
      %v6487 = vadd.f32 0.0, %v6486
      %v6488 = vpop.f32.mrf.mxu0
      %6489 = vmatprep.mubr.f32.mxu0 0.0
      %6490 = vmatmul.mubr.f32.gmra.mxu0 %v6320
      %v6491 = vpop.f32.mrf.mxu0
      %v6492 = vadd.f32 0.0, %v6491
      %v6493 = vpop.f32.mrf.mxu0
      %6494 = vmatprep.mubr.f32.mxu0 0.0
      %6495 = vmatmul.mubr.f32.gmra.mxu0 %v6323
      %v6496 = vpop.f32.mrf.mxu0
      %v6497 = vadd.f32 0.0, %v6496
      %v6498 = vpop.f32.mrf.mxu0
      %6499 = vmatprep.mubr.f32.mxu0 0.0
      %6500 = vmatmul.mubr.f32.gmra.mxu0 %v6326
      %v6501 = vpop.f32.mrf.mxu0
      %v6502 = vadd.f32 0.0, %v6501
      %v6503 = vpop.f32.mrf.mxu0
      %6504 = vmatprep.mubr.f32.mxu0 0.0
      %6505 = vmatmul.mubr.f32.gmra.mxu0 %v6329
      %v6506 = vpop.f32.mrf.mxu0
      %v6507 = vadd.f32 0.0, %v6506
      %v6508 = vpop.f32.mrf.mxu0
      %6509 = vmatprep.mubr.f32.mxu0 0.0
      %6510 = vmatmul.mubr.f32.gmra.mxu0 %v6332
      %v6511 = vpop.f32.mrf.mxu0
      %v6512 = vadd.f32 0.0, %v6511
      %v6513 = vpop.f32.mrf.mxu0
      %6514 = vmatprep.mubr.f32.mxu0 0.0
      %6515 = vmatmul.mubr.f32.gmra.mxu0 %v6335
      %v6516 = vpop.f32.mrf.mxu0
      %v6517 = vadd.f32 0.0, %v6516
      %v6518 = vpop.f32.mrf.mxu0
      %6519 = vmatprep.mubr.f32.mxu0 0.0
      %6520 = vmatmul.mubr.f32.gmra.mxu0 %v6338
      %v6521 = vpop.f32.mrf.mxu0
      %v6522 = vadd.f32 0.0, %v6521
      %v6523 = vpop.f32.mrf.mxu0
      %6524 = vmatprep.mubr.f32.mxu0 0.0
      %6525 = vmatmul.mubr.f32.gmra.mxu0 %v6341
      %v6526 = vpop.f32.mrf.mxu0
      %v6527 = vadd.f32 0.0, %v6526
      %v6528 = vpop.f32.mrf.mxu0
      %6529 = vmatprep.mubr.f32.mxu0 0.0
      %6530 = vmatmul.mubr.f32.gmra.mxu0 %v6344
      %v6531 = vpop.f32.mrf.mxu0
      %v6532 = vadd.f32 0.0, %v6531
      %v6533 = vpop.f32.mrf.mxu0
      %6534 = vmatprep.mubr.f32.mxu0 0.0
      %6535 = vmatmul.mubr.f32.gmra.mxu0 %v6347
      %v6536 = vpop.f32.mrf.mxu0
      %v6537 = vadd.f32 0.0, %v6536
      %v6538 = vpop.f32.mrf.mxu0
      %6539 = vmatprep.mubr.f32.mxu0 0.0
      %6540 = vmatmul.mubr.f32.gmra.mxu0 %v6350
      %v6541 = vpop.f32.mrf.mxu0
      %v6542 = vadd.f32 0.0, %v6541
      %v6543 = vpop.f32.mrf.mxu0
      %6544 = vmatprep.mubr.f32.mxu0 0.0
      %6545 = vmatmul.mubr.f32.gmra.mxu0 %v6353
      %v6546 = vpop.f32.mrf.mxu0
      %v6547 = vadd.f32 0.0, %v6546
      %v6548 = vpop.f32.mrf.mxu0
      %6549 = vmatprep.mubr.f32.mxu0 0.0
      %6550 = vmatmul.mubr.f32.gmra.mxu0 %v6356
      %v6551 = vpop.f32.mrf.mxu0
      %v6552 = vadd.f32 0.0, %v6551
      %v6553 = vpop.f32.mrf.mxu0
      %6554 = vmatprep.mubr.f32.mxu0 0.0
      %6555 = vmatmul.mubr.f32.gmra.mxu0 %v6359
      %v6556 = vpop.f32.mrf.mxu0
      %v6557 = vadd.f32 0.0, %v6556
      %v6558 = vpop.f32.mrf.mxu0
      %6559 = vmatprep.mubr.f32.mxu0 0.0
      %6560 = vmatmul.mubr.f32.gmra.mxu0 %v6362
      %v6561 = vpop.f32.mrf.mxu0
      %v6562 = vadd.f32 0.0, %v6561
      %v6563 = vpop.f32.mrf.mxu0
      %6564 = vmatprep.mubr.f32.mxu0 0.0
      %6565 = vmatmul.mubr.f32.gmra.mxu0 %v6365
      %v6566 = vpop.f32.mrf.mxu0
      %v6567 = vadd.f32 0.0, %v6566
      %v6568 = vpop.f32.mrf.mxu0
      %6569 = vmatprep.mubr.f32.mxu0 0.0
      %6570 = vmatmul.mubr.f32.gmra.mxu0 %v6368
      %v6571 = vpop.f32.mrf.mxu0
      %v6572 = vadd.f32 0.0, %v6571
      %v6573 = vpop.f32.mrf.mxu0
      %6574 = vmatprep.mubr.f32.mxu0 0.0
      %6575 = vmatmul.mubr.f32.gmra.mxu0 %v6371
      %v6576 = vpop.f32.mrf.mxu0
      %v6577 = vadd.f32 0.0, %v6576
      %v6578 = vpop.f32.mrf.mxu0
      %6579 = vmatprep.mubr.f32.mxu0 0.0
      %6580 = vmatmul.mubr.f32.gmra.mxu0 %v6374
      %v6581 = vpop.f32.mrf.mxu0
      %v6582 = vadd.f32 0.0, %v6581
      %v6583 = vpop.f32.mrf.mxu0
      %6584 = vmatprep.mubr.f32.mxu0 0.0
      %6585 = vmatmul.mubr.f32.gmra.mxu0 %v6377
      %v6586 = vpop.f32.mrf.mxu0
      %v6587 = vadd.f32 0.0, %v6586
      %v6588 = vpop.f32.mrf.mxu0
      %6589 = vmatprep.mubr.f32.mxu0 0.0
      %6590 = vmatmul.mubr.f32.gmra.mxu0 %v6380
      %v6591 = vpop.f32.mrf.mxu0
      %v6592 = vadd.f32 0.0, %v6591
      %v6593 = vpop.f32.mrf.mxu0
      %6594 = vmatprep.mubr.f32.mxu0 0.0
      %6595 = vmatmul.mubr.f32.gmra.mxu0 %v6383
      %v6596 = vpop.f32.mrf.mxu0
      %v6597 = vadd.f32 0.0, %v6596
      %v6598 = vpop.f32.mrf.mxu0
      %6599 = vmatprep.mubr.f32.mxu0 0.0
      %6600 = vmatmul.mubr.f32.gmra.mxu0 %v6386
      %v6601 = vpop.f32.mrf.mxu0
      %v6602 = vadd.f32 0.0, %v6601
      %v6603 = vpop.f32.mrf.mxu0
      %6604 = vmatprep.mubr.f32.mxu0 0.0
      %6605 = vmatmul.mubr.f32.gmra.mxu0 %v6389
      %v6606 = vpop.f32.mrf.mxu0
      %v6607 = vadd.f32 0.0, %v6606
      %v6608 = vpop.f32.mrf.mxu0
      %6609 = vmatprep.mubr.f32.mxu0 0.0
      %6610 = vmatmul.mubr.f32.gmra.mxu0 %v6392
      %v6611 = vpop.f32.mrf.mxu0
      %v6612 = vadd.f32 0.0, %v6611
      %v6613 = vpop.f32.mrf.mxu0
      %6614 = vmatprep.mubr.f32.mxu0 0.0
      %6615 = vmatmul.mubr.f32.gmra.mxu0 %v6395
      %v6616 = vpop.f32.mrf.mxu0
      %v6617 = vadd.f32 0.0, %v6616
      %v6618 = vpop.f32.mrf.mxu0
      %6619 = vmatprep.mubr.f32.mxu0 0.0
      %6620 = vmatmul.mubr.f32.gmra.mxu0 %v6398
      %v6621 = vpop.f32.mrf.mxu0
      %v6622 = vadd.f32 0.0, %v6621
      %v6623 = vpop.f32.mrf.mxu0
      %6624 = vdwg.mxu0
      %6625 = vmatprep.subr.mxu0 0.0
      %6626 = vmatpush1.msra.mxu0 0.0
      %6627 = vmatprep.subr.mxu0 0.0
      %6628 = vmatpush1.msra.mxu0 0.0
      %6629 = vmatprep.subr.mxu0 0.0
      %6630 = vmatpush1.msra.mxu0 0.0
      %6631 = vmatprep.subr.mxu0 0.0
      %6632 = vmatpush1.msra.mxu0 0.0
      %6633 = vmatprep.subr.mxu0 0.0
      %6634 = vmatpush1.msra.mxu0 0.0
      %6635 = vmatprep.subr.mxu0 0.0
      %6636 = vmatpush1.msra.mxu0 0.0
      %6637 = vmatprep.subr.mxu0 0.0
      %6638 = vmatpush1.msra.mxu0 0.0
      %6639 = vmatprep.subr.mxu0 0.0
      %6640 = vmatpush1.msra.mxu0 0.0
      %6641 = vmatprep.subr.mxu0 0.0
      %6642 = vmatpush1.msra.mxu0 0.0
      %6643 = vmatprep.subr.mxu0 0.0
      %6644 = vmatpush1.msra.mxu0 0.0
      %6645 = vmatprep.subr.mxu0 0.0
      %6646 = vmatpush1.msra.mxu0 0.0
      %6647 = vmatprep.subr.mxu0 0.0
      %6648 = vmatpush1.msra.mxu0 0.0
      %6649 = vmatprep.subr.mxu0 0.0
      %6650 = vmatpush1.msra.mxu0 0.0
      %6651 = vmatprep.subr.mxu0 0.0
      %6652 = vmatpush1.msra.mxu0 0.0
      %6653 = vmatprep.subr.mxu0 0.0
      %6654 = vmatpush1.msra.mxu0 0.0
      %6655 = vmatprep.subr.mxu0 0.0
      %6656 = vmatpush1.msra.mxu0 %v6302
      %6657 = vmatprep.subr.mxu0 0.0
      %6658 = vmatpush2.msra.mxu0 0.0
      %6659 = vmatprep.subr.mxu0 0.0
      %6660 = vmatpush2.msra.mxu0 0.0
      %6661 = vmatprep.subr.mxu0 0.0
      %6662 = vmatpush2.msra.mxu0 0.0
      %6663 = vmatprep.subr.mxu0 0.0
      %6664 = vmatpush2.msra.mxu0 0.0
      %6665 = vmatprep.subr.mxu0 0.0
      %6666 = vmatpush2.msra.mxu0 0.0
      %6667 = vmatprep.subr.mxu0 0.0
      %6668 = vmatpush2.msra.mxu0 0.0
      %6669 = vmatprep.subr.mxu0 0.0
      %6670 = vmatpush2.msra.mxu0 0.0
      %6671 = vmatprep.subr.mxu0 0.0
      %6672 = vmatpush2.msra.mxu0 0.0
      %6673 = vmatprep.subr.mxu0 0.0
      %6674 = vmatpush2.msra.mxu0 0.0
      %6675 = vmatprep.subr.mxu0 0.0
      %6676 = vmatpush2.msra.mxu0 0.0
      %6677 = vmatprep.subr.mxu0 0.0
      %6678 = vmatpush2.msra.mxu0 0.0
      %6679 = vmatprep.subr.mxu0 0.0
      %6680 = vmatpush2.msra.mxu0 0.0
      %6681 = vmatprep.subr.mxu0 0.0
      %6682 = vmatpush2.msra.mxu0 0.0
      %6683 = vmatprep.subr.mxu0 0.0
      %6684 = vmatpush2.msra.mxu0 0.0
      %6685 = vmatprep.subr.mxu0 0.0
      %6686 = vmatpush2.msra.mxu0 0.0
      %6687 = vmatprep.subr.mxu0 0.0
      %6688 = vmatpush2.msra.mxu0 0.0
      %6689 = vmatprep.mubr.f32.mxu0 0.0
      %6690 = vmatmul.mubr.f32.gmra.mxu0 %v1057
      %v6691 = vpop.f32.mrf.mxu0
      %v6692 = vadd.f32 %v6467, %v6691
      %v6693 = vpop.f32.mrf.mxu0
      %6694 = vmatprep.mubr.f32.mxu0 0.0
      %6695 = vmatmul.mubr.f32.gmra.mxu0 %v1060
      %v6696 = vpop.f32.mrf.mxu0
      %v6697 = vadd.f32 %v6472, %v6696
      %v6698 = vpop.f32.mrf.mxu0
      %6699 = vmatprep.mubr.f32.mxu0 0.0
      %6700 = vmatmul.mubr.f32.gmra.mxu0 %v1063
      %v6701 = vpop.f32.mrf.mxu0
      %v6702 = vadd.f32 %v6477, %v6701
      %v6703 = vpop.f32.mrf.mxu0
      %6704 = vmatprep.mubr.f32.mxu0 0.0
      %6705 = vmatmul.mubr.f32.gmra.mxu0 %v1066
      %v6706 = vpop.f32.mrf.mxu0
      %v6707 = vadd.f32 %v6482, %v6706
      %v6708 = vpop.f32.mrf.mxu0
      %6709 = vmatprep.mubr.f32.mxu0 0.0
      %6710 = vmatmul.mubr.f32.gmra.mxu0 %v1069
      %v6711 = vpop.f32.mrf.mxu0
      %v6712 = vadd.f32 %v6487, %v6711
      %v6713 = vpop.f32.mrf.mxu0
      %6714 = vmatprep.mubr.f32.mxu0 0.0
      %6715 = vmatmul.mubr.f32.gmra.mxu0 %v1072
      %v6716 = vpop.f32.mrf.mxu0
      %v6717 = vadd.f32 %v6492, %v6716
      %v6718 = vpop.f32.mrf.mxu0
      %6719 = vmatprep.mubr.f32.mxu0 0.0
      %6720 = vmatmul.mubr.f32.gmra.mxu0 %v1075
      %v6721 = vpop.f32.mrf.mxu0
      %v6722 = vadd.f32 %v6497, %v6721
      %v6723 = vpop.f32.mrf.mxu0
      %6724 = vmatprep.mubr.f32.mxu0 0.0
      %6725 = vmatmul.mubr.f32.gmra.mxu0 %v1078
      %v6726 = vpop.f32.mrf.mxu0
      %v6727 = vadd.f32 %v6502, %v6726
      %v6728 = vpop.f32.mrf.mxu0
      %6729 = vmatprep.mubr.f32.mxu0 0.0
      %6730 = vmatmul.mubr.f32.gmra.mxu0 %v1081
      %v6731 = vpop.f32.mrf.mxu0
      %v6732 = vadd.f32 %v6507, %v6731
      %v6733 = vpop.f32.mrf.mxu0
      %6734 = vmatprep.mubr.f32.mxu0 0.0
      %6735 = vmatmul.mubr.f32.gmra.mxu0 %v1084
      %v6736 = vpop.f32.mrf.mxu0
      %v6737 = vadd.f32 %v6512, %v6736
      %v6738 = vpop.f32.mrf.mxu0
      %6739 = vmatprep.mubr.f32.mxu0 0.0
      %6740 = vmatmul.mubr.f32.gmra.mxu0 %v1087
      %v6741 = vpop.f32.mrf.mxu0
      %v6742 = vadd.f32 %v6517, %v6741
      %v6743 = vpop.f32.mrf.mxu0
      %6744 = vmatprep.mubr.f32.mxu0 0.0
      %6745 = vmatmul.mubr.f32.gmra.mxu0 %v1090
      %v6746 = vpop.f32.mrf.mxu0
      %v6747 = vadd.f32 %v6522, %v6746
      %v6748 = vpop.f32.mrf.mxu0
      %6749 = vmatprep.mubr.f32.mxu0 0.0
      %6750 = vmatmul.mubr.f32.gmra.mxu0 %v1093
      %v6751 = vpop.f32.mrf.mxu0
      %v6752 = vadd.f32 %v6527, %v6751
      %v6753 = vpop.f32.mrf.mxu0
      %6754 = vmatprep.mubr.f32.mxu0 0.0
      %6755 = vmatmul.mubr.f32.gmra.mxu0 %v1096
      %v6756 = vpop.f32.mrf.mxu0
      %v6757 = vadd.f32 %v6532, %v6756
      %v6758 = vpop.f32.mrf.mxu0
      %6759 = vmatprep.mubr.f32.mxu0 0.0
      %6760 = vmatmul.mubr.f32.gmra.mxu0 %v1099
      %v6761 = vpop.f32.mrf.mxu0
      %v6762 = vadd.f32 %v6537, %v6761
      %v6763 = vpop.f32.mrf.mxu0
      %6764 = vmatprep.mubr.f32.mxu0 0.0
      %6765 = vmatmul.mubr.f32.gmra.mxu0 %v1102
      %v6766 = vpop.f32.mrf.mxu0
      %v6767 = vadd.f32 %v6542, %v6766
      %v6768 = vpop.f32.mrf.mxu0
      %6769 = vmatprep.mubr.f32.mxu0 0.0
      %6770 = vmatmul.mubr.f32.gmra.mxu0 %v1105
      %v6771 = vpop.f32.mrf.mxu0
      %v6772 = vadd.f32 %v6547, %v6771
      %v6773 = vpop.f32.mrf.mxu0
      %6774 = vmatprep.mubr.f32.mxu0 0.0
      %6775 = vmatmul.mubr.f32.gmra.mxu0 %v1108
      %v6776 = vpop.f32.mrf.mxu0
      %v6777 = vadd.f32 %v6552, %v6776
      %v6778 = vpop.f32.mrf.mxu0
      %6779 = vmatprep.mubr.f32.mxu0 0.0
      %6780 = vmatmul.mubr.f32.gmra.mxu0 %v1111
      %v6781 = vpop.f32.mrf.mxu0
      %v6782 = vadd.f32 %v6557, %v6781
      %v6783 = vpop.f32.mrf.mxu0
      %6784 = vmatprep.mubr.f32.mxu0 0.0
      %6785 = vmatmul.mubr.f32.gmra.mxu0 %v1114
      %v6786 = vpop.f32.mrf.mxu0
      %v6787 = vadd.f32 %v6562, %v6786
      %v6788 = vpop.f32.mrf.mxu0
      %6789 = vmatprep.mubr.f32.mxu0 0.0
      %6790 = vmatmul.mubr.f32.gmra.mxu0 %v1117
      %v6791 = vpop.f32.mrf.mxu0
      %v6792 = vadd.f32 %v6567, %v6791
      %v6793 = vpop.f32.mrf.mxu0
      %6794 = vmatprep.mubr.f32.mxu0 0.0
      %6795 = vmatmul.mubr.f32.gmra.mxu0 %v1120
      %v6796 = vpop.f32.mrf.mxu0
      %v6797 = vadd.f32 %v6572, %v6796
      %v6798 = vpop.f32.mrf.mxu0
      %6799 = vmatprep.mubr.f32.mxu0 0.0
      %6800 = vmatmul.mubr.f32.gmra.mxu0 %v1123
      %v6801 = vpop.f32.mrf.mxu0
      %v6802 = vadd.f32 %v6577, %v6801
      %v6803 = vpop.f32.mrf.mxu0
      %6804 = vmatprep.mubr.f32.mxu0 0.0
      %6805 = vmatmul.mubr.f32.gmra.mxu0 %v1126
      %v6806 = vpop.f32.mrf.mxu0
      %v6807 = vadd.f32 %v6582, %v6806
      %v6808 = vpop.f32.mrf.mxu0
      %6809 = vmatprep.mubr.f32.mxu0 0.0
      %6810 = vmatmul.mubr.f32.gmra.mxu0 %v1129
      %v6811 = vpop.f32.mrf.mxu0
      %v6812 = vadd.f32 %v6587, %v6811
      %v6813 = vpop.f32.mrf.mxu0
      %6814 = vmatprep.mubr.f32.mxu0 0.0
      %6815 = vmatmul.mubr.f32.gmra.mxu0 %v1132
      %v6816 = vpop.f32.mrf.mxu0
      %v6817 = vadd.f32 %v6592, %v6816
      %v6818 = vpop.f32.mrf.mxu0
      %6819 = vmatprep.mubr.f32.mxu0 0.0
      %6820 = vmatmul.mubr.f32.gmra.mxu0 %v1135
      %v6821 = vpop.f32.mrf.mxu0
      %v6822 = vadd.f32 %v6597, %v6821
      %v6823 = vpop.f32.mrf.mxu0
      %6824 = vmatprep.mubr.f32.mxu0 0.0
      %6825 = vmatmul.mubr.f32.gmra.mxu0 %v1138
      %v6826 = vpop.f32.mrf.mxu0
      %v6827 = vadd.f32 %v6602, %v6826
      %v6828 = vpop.f32.mrf.mxu0
      %6829 = vmatprep.mubr.f32.mxu0 0.0
      %6830 = vmatmul.mubr.f32.gmra.mxu0 %v1141
      %v6831 = vpop.f32.mrf.mxu0
      %v6832 = vadd.f32 %v6607, %v6831
      %v6833 = vpop.f32.mrf.mxu0
      %6834 = vmatprep.mubr.f32.mxu0 0.0
      %6835 = vmatmul.mubr.f32.gmra.mxu0 %v1144
      %v6836 = vpop.f32.mrf.mxu0
      %v6837 = vadd.f32 %v6612, %v6836
      %v6838 = vpop.f32.mrf.mxu0
      %6839 = vmatprep.mubr.f32.mxu0 0.0
      %6840 = vmatmul.mubr.f32.gmra.mxu0 %v1147
      %v6841 = vpop.f32.mrf.mxu0
      %v6842 = vadd.f32 %v6617, %v6841
      %v6843 = vpop.f32.mrf.mxu0
      %6844 = vmatprep.mubr.f32.mxu0 0.0
      %6845 = vmatmul.mubr.f32.gmra.mxu0 %v1150
      %v6846 = vpop.f32.mrf.mxu0
      %v6847 = vadd.f32 %v6622, %v6846
      %v6848 = vpop.f32.mrf.mxu0
      %6849 = vdwg.mxu0
      %v6850 = vld [vmem:[%s19] sm:$0x1]
      %v6852 = vlaneseq
      %v6853 = vshrl.u32 %v6852, 7
      %v6854 = vsub.s32 0, %v6853
      %v6855 = vrot.slane %v6850, %v6854
      %v6857 = vadd.f32 %v6692, %v6855
      %v6858 = vadd.f32 %v6697, %v6855
      %v6859 = vadd.f32 %v6702, %v6855
      %v6860 = vadd.f32 %v6707, %v6855
      %v6861 = vadd.f32 %v6712, %v6855
      %v6862 = vadd.f32 %v6717, %v6855
      %v6863 = vadd.f32 %v6722, %v6855
      %v6864 = vadd.f32 %v6727, %v6855
      %v6865 = vadd.f32 %v6732, %v6855
      %v6866 = vadd.f32 %v6737, %v6855
      %v6867 = vadd.f32 %v6742, %v6855
      %v6868 = vadd.f32 %v6747, %v6855
      %v6869 = vadd.f32 %v6752, %v6855
      %v6870 = vadd.f32 %v6757, %v6855
      %v6871 = vadd.f32 %v6762, %v6855
      %v6872 = vadd.f32 %v6767, %v6855
      %v6873 = vadd.f32 %v6772, %v6855
      %v6874 = vadd.f32 %v6777, %v6855
      %v6875 = vadd.f32 %v6782, %v6855
      %v6876 = vadd.f32 %v6787, %v6855
      %v6877 = vadd.f32 %v6792, %v6855
      %v6878 = vadd.f32 %v6797, %v6855
      %v6879 = vadd.f32 %v6802, %v6855
      %v6880 = vadd.f32 %v6807, %v6855
      %v6881 = vadd.f32 %v6812, %v6855
      %v6882 = vadd.f32 %v6817, %v6855
      %v6883 = vadd.f32 %v6822, %v6855
      %v6884 = vadd.f32 %v6827, %v6855
      %v6885 = vadd.f32 %v6832, %v6855
      %v6886 = vadd.f32 %v6837, %v6855
      %v6887 = vadd.f32 %v6842, %v6855
      %v6888 = vadd.f32 %v6847, %v6855
      %vm6889 = vcmp.gt.f32.partialorder %v6857, 0.0
      %vm6890 = vcmp.gt.f32.partialorder %v6858, 0.0
      %vm6891 = vcmp.gt.f32.partialorder %v6859, 0.0
      %vm6892 = vcmp.gt.f32.partialorder %v6860, 0.0
      %vm6893 = vcmp.gt.f32.partialorder %v6861, 0.0
      %vm6894 = vcmp.gt.f32.partialorder %v6862, 0.0
      %vm6895 = vcmp.gt.f32.partialorder %v6863, 0.0
      %vm6896 = vcmp.gt.f32.partialorder %v6864, 0.0
      %vm6897 = vcmp.gt.f32.partialorder %v6865, 0.0
      %vm6898 = vcmp.gt.f32.partialorder %v6866, 0.0
      %vm6899 = vcmp.gt.f32.partialorder %v6867, 0.0
      %vm6900 = vcmp.gt.f32.partialorder %v6868, 0.0
      %vm6901 = vcmp.gt.f32.partialorder %v6869, 0.0
      %vm6902 = vcmp.gt.f32.partialorder %v6870, 0.0
      %vm6903 = vcmp.gt.f32.partialorder %v6871, 0.0
      %vm6904 = vcmp.gt.f32.partialorder %v6872, 0.0
      %vm6905 = vcmp.gt.f32.partialorder %v6873, 0.0
      %vm6906 = vcmp.gt.f32.partialorder %v6874, 0.0
      %vm6907 = vcmp.gt.f32.partialorder %v6875, 0.0
      %vm6908 = vcmp.gt.f32.partialorder %v6876, 0.0
      %vm6909 = vcmp.gt.f32.partialorder %v6877, 0.0
      %vm6910 = vcmp.gt.f32.partialorder %v6878, 0.0
      %vm6911 = vcmp.gt.f32.partialorder %v6879, 0.0
      %vm6912 = vcmp.gt.f32.partialorder %v6880, 0.0
      %vm6913 = vcmp.gt.f32.partialorder %v6881, 0.0
      %vm6914 = vcmp.gt.f32.partialorder %v6882, 0.0
      %vm6915 = vcmp.gt.f32.partialorder %v6883, 0.0
      %vm6916 = vcmp.gt.f32.partialorder %v6884, 0.0
      %vm6917 = vcmp.gt.f32.partialorder %v6885, 0.0
      %vm6918 = vcmp.gt.f32.partialorder %v6886, 0.0
      %vm6919 = vcmp.gt.f32.partialorder %v6887, 0.0
      %vm6920 = vcmp.gt.f32.partialorder %v6888, 0.0
      %v6921 = vmul.f32 %v6857, 0.01
      %v6922 = vmul.f32 %v6858, 0.01
      %v6923 = vmul.f32 %v6859, 0.01
      %v6924 = vmul.f32 %v6860, 0.01
      %v6925 = vmul.f32 %v6861, 0.01
      %v6926 = vmul.f32 %v6862, 0.01
      %v6927 = vmul.f32 %v6863, 0.01
      %v6928 = vmul.f32 %v6864, 0.01
      %v6929 = vmul.f32 %v6865, 0.01
      %v6930 = vmul.f32 %v6866, 0.01
      %v6931 = vmul.f32 %v6867, 0.01
      %v6932 = vmul.f32 %v6868, 0.01
      %v6933 = vmul.f32 %v6869, 0.01
      %v6934 = vmul.f32 %v6870, 0.01
      %v6935 = vmul.f32 %v6871, 0.01
      %v6936 = vmul.f32 %v6872, 0.01
      %v6937 = vmul.f32 %v6873, 0.01
      %v6938 = vmul.f32 %v6874, 0.01
      %v6939 = vmul.f32 %v6875, 0.01
      %v6940 = vmul.f32 %v6876, 0.01
      %v6941 = vmul.f32 %v6877, 0.01
      %v6942 = vmul.f32 %v6878, 0.01
      %v6943 = vmul.f32 %v6879, 0.01
      %v6944 = vmul.f32 %v6880, 0.01
      %v6945 = vmul.f32 %v6881, 0.01
      %v6946 = vmul.f32 %v6882, 0.01
      %v6947 = vmul.f32 %v6883, 0.01
      %v6948 = vmul.f32 %v6884, 0.01
      %v6949 = vmul.f32 %v6885, 0.01
      %v6950 = vmul.f32 %v6886, 0.01
      %v6951 = vmul.f32 %v6887, 0.01
      %v6952 = vmul.f32 %v6888, 0.01
      %v6953 = vsel %vm6889, %v6857, %v6921
      %v6954 = vsel %vm6890, %v6858, %v6922
      %v6955 = vsel %vm6891, %v6859, %v6923
      %v6956 = vsel %vm6892, %v6860, %v6924
      %v6957 = vsel %vm6893, %v6861, %v6925
      %v6958 = vsel %vm6894, %v6862, %v6926
      %v6959 = vsel %vm6895, %v6863, %v6927
      %v6960 = vsel %vm6896, %v6864, %v6928
      %v6961 = vsel %vm6897, %v6865, %v6929
      %v6962 = vsel %vm6898, %v6866, %v6930
      %v6963 = vsel %vm6899, %v6867, %v6931
      %v6964 = vsel %vm6900, %v6868, %v6932
      %v6965 = vsel %vm6901, %v6869, %v6933
      %v6966 = vsel %vm6902, %v6870, %v6934
      %v6967 = vsel %vm6903, %v6871, %v6935
      %v6968 = vsel %vm6904, %v6872, %v6936
      %v6969 = vsel %vm6905, %v6873, %v6937
      %v6970 = vsel %vm6906, %v6874, %v6938
      %v6971 = vsel %vm6907, %v6875, %v6939
      %v6972 = vsel %vm6908, %v6876, %v6940
      %v6973 = vsel %vm6909, %v6877, %v6941
      %v6974 = vsel %vm6910, %v6878, %v6942
      %v6975 = vsel %vm6911, %v6879, %v6943
      %v6976 = vsel %vm6912, %v6880, %v6944
      %v6977 = vsel %vm6913, %v6881, %v6945
      %v6978 = vsel %vm6914, %v6882, %v6946
      %v6979 = vsel %vm6915, %v6883, %v6947
      %v6980 = vsel %vm6916, %v6884, %v6948
      %v6981 = vsel %vm6917, %v6885, %v6949
      %v6982 = vsel %vm6918, %v6886, %v6950
      %v6983 = vsel %vm6919, %v6887, %v6951
      %v6984 = vsel %vm6920, %v6888, %v6952
      %6985 = vst [vmem:[%s629] sm:$0xff] %v6953
      %6986 = vst [vmem:[%s629 + $0x8] sm:$0xff] %v6954
      %6987 = vst [vmem:[%s629 + $0x10] sm:$0xff] %v6955
      %6988 = vst [vmem:[%s629 + $0x18] sm:$0xff] %v6956
      %6989 = vst [vmem:[%s629 + $0x20] sm:$0xff] %v6957
      %6990 = vst [vmem:[%s629 + $0x28] sm:$0xff] %v6958
      %6991 = vst [vmem:[%s629 + $0x30] sm:$0xff] %v6959
      %6992 = vst [vmem:[%s629 + $0x38] sm:$0xff] %v6960
      %6993 = vst [vmem:[%s629 + $0x40] sm:$0xff] %v6961
      %6994 = vst [vmem:[%s629 + $0x48] sm:$0xff] %v6962
      %6995 = vst [vmem:[%s629 + $0x50] sm:$0xff] %v6963
      %6996 = vst [vmem:[%s629 + $0x58] sm:$0xff] %v6964
      %6997 = vst [vmem:[%s629 + $0x60] sm:$0xff] %v6965
      %6998 = vst [vmem:[%s629 + $0x68] sm:$0xff] %v6966
      %6999 = vst [vmem:[%s629 + $0x70] sm:$0xff] %v6967
      %7000 = vst [vmem:[%s629 + $0x78] sm:$0xff] %v6968
      %7001 = vst [vmem:[%s629 + $0x80] sm:$0xff] %v6969
      %7002 = vst [vmem:[%s629 + $0x88] sm:$0xff] %v6970
      %7003 = vst [vmem:[%s629 + $0x90] sm:$0xff] %v6971
      %7004 = vst [vmem:[%s629 + $0x98] sm:$0xff] %v6972
      %7005 = vst [vmem:[%s629 + $0xa0] sm:$0xff] %v6973
      %7006 = vst [vmem:[%s629 + $0xa8] sm:$0xff] %v6974
      %7007 = vst [vmem:[%s629 + $0xb0] sm:$0xff] %v6975
      %7008 = vst [vmem:[%s629 + $0xb8] sm:$0xff] %v6976
      %7009 = vst [vmem:[%s629 + $0xc0] sm:$0xff] %v6977
      %7010 = vst [vmem:[%s629 + $0xc8] sm:$0xff] %v6978
      %7011 = vst [vmem:[%s629 + $0xd0] sm:$0xff] %v6979
      %7012 = vst [vmem:[%s629 + $0xd8] sm:$0xff] %v6980
      %7013 = vst [vmem:[%s629 + $0xe0] sm:$0xff] %v6981
      %7014 = vst [vmem:[%s629 + $0xe8] sm:$0xff] %v6982
      %7015 = vst [vmem:[%s629 + $0xf0] sm:$0xff] %v6983
      %7016 = vst [vmem:[%s629 + $0xf8] sm:$0xff] %v6984
      %p7017 = scmp.lt.s32.totalorder %s31, 1
      %s7018 = scalar_select %p7017, %s31, 1
      %s7019 = smul.addr %s7018, 32
      %s7020 = smul.addr %s7019, 8
      %s7021 = scalar_lea.vmem %s20, %s7020
      // Predicated region
      $region101: #{isa_module_fwd.1} parent=99 // pred_check
        %p7022 = pneg %p474
      $region102: #{isa_module_fwd.1} parent=99 // pred_check_branch
        %7024 = sbr.rel (%p7022) target = $region104
      $region103: #{isa_module_fwd.1} parent=99 // pred_region
        _
      $region104: #{isa_module_fwd.1} parent=99 // pred_fallthru
        _
    $region100: #{isa_module_fwd.1} parent=5 // pred_fallthru
      _
    %p7025 = scmp.le.s32.totalorder 2, %s26
    // Predicated region
    $region105: #{isa_module_fwd.1} parent=5 // pred_check
      %p7026 = pneg %p7025
    $region106: #{isa_module_fwd.1} parent=5 // pred_check_branch
      %7028 = sbr.rel (%p7026) target = $region108
    $region107: #{isa_module_fwd.1} parent=5 // pred_region
      %s7029 = ssub.s32 %s26, 2
      // Predicated region
      $region109: #{isa_module_fwd.1} parent=107 // pred_check
        %p7030 = pneg %p480
      $region110: #{isa_module_fwd.1} parent=107 // pred_check_branch
        %7032 = sbr.rel (%p7030) target = $region112
      $region111: #{isa_module_fwd.1} parent=107 // pred_region
        %p7033 = scmp.lt.s32.totalorder %s32, 1
        %s7034 = scalar_select %p7033, %s32, 1
        %s7035 = smul.addr %s7034, 32
        %s7036 = smul.addr %s7035, 8
        %s7037 = scalar_lea.vmem %s20, %s7036
      $region112: #{isa_module_fwd.1} parent=107 // pred_fallthru
        _
    $region108: #{isa_module_fwd.1} parent=5 // pred_fallthru
      _
  $region6: #{isa_module_fwd.1} parent=0 // loop_footer
    %s30 = sadd.s32 1, %s26
  $region7: #{isa_module_fwd.1} parent=0 // loop_footer_branch
    %25 = sbr.rel target = $region3
  $region8: #{isa_module_fwd.1} parent=0 // loop_exit
    _

</llo_original>
